<compile_context>
chip_gen: v7x
topology: tpu7x:2x2x1
jax: 0.10.0
libtpu: 0.0.40
codegen_flags: <defaults>
</compile_context>

<pallas_src>
import functools
import math

import jax
import jax.numpy as jnp
from jax.experimental import pallas as pl
from jax.experimental.pallas import tpu as pltpu

# ---- hyper-parameters implied by the torch module ----
NUM_CLASSES = 10
EMBED_SIZE = 128          # config.hidden_size == embed.weight.size(1)
VOCAB_SIZE = 500
MAX_POS = 512             # MAX_LEN
NUM_LAYERS = 4
NUM_HEADS = 4
HEAD_DIM = EMBED_SIZE // NUM_HEADS      # 32
INTERMEDIATE = 256        # num_filter_maps
LN_EPS = 1e-12
FIN_ROWS_MIN = 8          # sublane padding floor for the head output block
ROWS_TARGET = 256         # rows per grid step target (fills v6e/v7x MXU)


# ---------------- in-kernel helpers ----------------
def _layernorm(x, g, b):
    mu = jnp.mean(x, axis=-1, keepdims=True)
    var = jnp.mean(jnp.square(x - mu), axis=-1, keepdims=True)
    return (x - mu) * jax.lax.rsqrt(var + LN_EPS) * g + b


def _bf16(x):
    return x.astype(jnp.bfloat16)


def _seq_id(idx_f32, seq):
    # floor((i + 0.5) / seq) without integer division (robust float trick).
    return jnp.floor((idx_f32 + 0.5) * (1.0 / seq))


# ---------------- the single fused kernel ----------------
def _bert_kernel(emb_ref, mask_ref,
                 emb_ln_g_ref, emb_ln_b_ref,
                 wqkv_ref, bqkv_ref, wao_ref, bao_ref,
                 ln1_g_ref, ln1_b_ref,
                 wi_ref, bi_ref, wo_ref, bo_ref,
                 ln2_g_ref, ln2_b_ref,
                 wfin_ref, bfin_ref,
                 fin_ref, *, b_block, seq, fin_rows):
    h = EMBED_SIZE
    r = b_block * seq
    scale = 1.0 / math.sqrt(HEAD_DIM)

    # BERT embeddings LayerNorm (embedding gather + adds happen in XLA outside)
    x = _layernorm(emb_ref[0], emb_ln_g_ref[...], emb_ln_b_ref[...])      # (R, H)

    # Combined additive attention bias, built ONCE and hoisted out of all
    # loops:  -10000 on padded keys (BERT key mask) and -10000 across
    # different sequences (block-diagonal mask for the folded batch).
    key_bias = jnp.where(mask_ref[0] > 0, 0.0, -10000.0)                  # (1, R)
    row_id = _seq_id(jax.lax.broadcasted_iota(jnp.int32, (r, r), 0)
                     .astype(jnp.float32), seq)
    col_id = _seq_id(jax.lax.broadcasted_iota(jnp.int32, (r, r), 1)
                     .astype(jnp.float32), seq)
    bias = jnp.where(row_id == col_id, 0.0, -10000.0) + key_bias          # (R, R)

    for l in range(NUM_LAYERS):
        # fused QKV projection: one (R,128)x(128,384) bf16 matmul, f32 accum;
        # single f32->bf16 cast, heads sliced from the one bf16 tensor.
        qkv = _bf16(jnp.dot(_bf16(x), wqkv_ref[l],
                            preferred_element_type=jnp.float32) + bqkv_ref[l])

        wao_l = wao_ref[l]                                                # (128,128) bf16
        attn = jnp.zeros((r, h), jnp.float32)
        for hd in range(NUM_HEADS):
            c0 = hd * HEAD_DIM
            qh = qkv[:, c0:c0 + HEAD_DIM]                                 # (R, 32) bf16
            kh = qkv[:, h + c0:h + c0 + HEAD_DIM]
            vh = qkv[:, 2 * h + c0:2 * h + c0 + HEAD_DIM]
            s = jax.lax.dot_general(
                qh, kh, (((1,), (1,)), ((), ())),
                preferred_element_type=jnp.float32) * scale + bias        # (R, R)
            m = jnp.max(s, axis=-1, keepdims=True)
            p = jnp.exp(s - m)
            p = p * pl.reciprocal(jnp.sum(p, axis=-1, keepdims=True),
                                  approx=True)
            ctx = jnp.dot(_bf16(p), vh,
                          preferred_element_type=jnp.float32)             # (R, 32)
            # fold the head concat directly into the output projection
            attn = attn + jnp.dot(_bf16(ctx), wao_l[c0:c0 + HEAD_DIM, :],
                                  preferred_element_type=jnp.float32)
        attn = attn + bao_ref[l]
        x = _layernorm(attn + x, ln1_g_ref[l], ln1_b_ref[l])

        inter = jnp.dot(_bf16(x), wi_ref[l],
                        preferred_element_type=jnp.float32) + bi_ref[l]
        # TODO(synk): HF BERT uses exact erf-GELU; tanh-approx GELU used here.
        inter = jax.nn.gelu(inter, approximate=True)
        out = jnp.dot(_bf16(inter), wo_ref[l],
                      preferred_element_type=jnp.float32) + bo_ref[l]
        x = _layernorm(out + x, ln2_g_ref[l], ln2_b_ref[l])

    # Classification head via linearity: per-sequence mean pooling as one tiny
    # matmul, then a single (FIN_ROWS,128)x(128,128) dot.  Output is a
    # lane-dense, sublane-aligned block; rows >= b_block and lanes >=
    # NUM_CLASSES are padding, sliced off in the wrapper.
    prow = jax.lax.broadcasted_iota(jnp.int32, (fin_rows, r), 0
                                    ).astype(jnp.float32)
    pcol = _seq_id(jax.lax.broadcasted_iota(jnp.int32, (fin_rows, r), 1
                                            ).astype(jnp.float32), seq)
    pool = jnp.where(prow == pcol, 1.0 / seq, 0.0)                        # (FR, R)
    pooled = jnp.dot(_bf16(pool), _bf16(x),
                     preferred_element_type=jnp.float32)                  # (FR, H)
    fin_ref[0] = (jnp.dot(_bf16(pooled), wfin_ref[...],
                          preferred_element_type=jnp.float32)
                  + bfin_ref[...])                                        # (FR, 128)


# ---------------- model wrapper ----------------
def bert_forward(params, input_ids, attention_mask):
    b, s = input_ids.shape
    h = EMBED_SIZE
    enc = params["encoder"]

    # --- batch blocking: fold b_block sequences into the matmul row dim ---
    # >=256 rows/step fills the v6e/v7x MXU (>=128 saturates v5e); the toy
    # B=2, S=8 case collapses to one grid step with all 16 rows at once.
    # For larger batches num_blocks >= 2, which also feeds both v7x TCs via
    # the "parallel" grid axis.
    b_block = max(1, min(b, ROWS_TARGET // max(1, s)))
    num_blocks = pl.cdiv(b, b_block)
    b_pad = num_blocks * b_block
    if b_pad != b:
        pad = b_pad - b
        input_ids = jnp.concatenate(
            [input_ids, jnp.zeros((pad, s), input_ids.dtype)], axis=0)
        attention_mask = jnp.concatenate(
            [attention_mask, jnp.zeros((pad, s), attention_mask.dtype)], axis=0)

    r = b_block * s
    fin_rows = max(FIN_ROWS_MIN, ((b_block + 7) // 8) * 8)

    # embedding gather + position/type add (single fused XLA op under jit);
    # the embedding LayerNorm happens inside the Pallas kernel.
    emb = (enc["word_emb"][input_ids]
           + enc["pos_emb"][:s][None, :, :]
           + enc["type_emb"][0][None, None, :]).astype(jnp.float32)      # (Bp,S,H)
    emb = emb.reshape(num_blocks, r, h)                                  # (NB,R,H)
    mask = attention_mask.astype(jnp.int32).reshape(num_blocks, 1, r)    # (NB,1,R)

    def batch_spec(shape):
        return pl.BlockSpec(shape, lambda i: (i,) + (0,) * (len(shape) - 1))

    def full_spec(shape):
        return pl.BlockSpec(shape, lambda i: (0,) * len(shape))

    in_arrays = [
        emb, mask,
        enc["emb_ln_g"], enc["emb_ln_b"],
        enc["wqkv"], enc["bqkv"], enc["wao"], enc["bao"],
        enc["ln1_g"], enc["ln1_b"],
        enc["wi"], enc["bi"], enc["wo"], enc["bo"],
        enc["ln2_g"], enc["ln2_b"],
        params["final_w"], params["final_b"],
    ]
    in_specs = ([batch_spec((1, r, h)), batch_spec((1, 1, r))]
                + [full_spec(a.shape) for a in in_arrays[2:]])

    fin_pad = pl.pallas_call(
        functools.partial(_bert_kernel, b_block=b_block, seq=s,
                          fin_rows=fin_rows),
        out_shape=jax.ShapeDtypeStruct((num_blocks, fin_rows, 128), jnp.float32),
        grid=(num_blocks,),
        in_specs=in_specs,
        out_specs=batch_spec((1, fin_rows, 128)),
        compiler_params=pltpu.CompilerParams(
            dimension_semantics=("parallel",)),
    )(*in_arrays)

    # TODO(synk): the nn.MultiheadAttention / dropout / conv1 / avgpool branch
    # of the torch forward is dead code w.r.t. the returned (fin, None) (and
    # conv1 has a 768-vs-128 channel mismatch in the source); it is dropped.
    fin = fin_pad[:, :b_block, :].reshape(b_pad, 128)[:b, :NUM_CLASSES]
    return fin, None


# ---------------- deterministic parameter init ----------------
def init_params(key):
    keys = iter(jax.random.split(key, 32))

    def w(shape, dtype=jnp.bfloat16, scale=0.02):
        return (scale * jax.random.normal(next(keys), shape,
                                          jnp.float32)).astype(dtype)

    def zeros(shape):
        return jnp.zeros(shape, jnp.float32)

    def ones(shape):
        return jnp.ones(shape, jnp.float32)

    h, i, L = EMBED_SIZE, INTERMEDIATE, NUM_LAYERS

    word_emb = w((VOCAB_SIZE, h), jnp.float32)
    word_emb = word_emb.at[0].set(0.0)          # padding_idx=0

    final_w = jnp.zeros((h, 128), jnp.float32)
    final_w = final_w.at[:, :NUM_CLASSES].set(
        0.02 * jax.random.normal(next(keys), (h, NUM_CLASSES), jnp.float32))

    return {
        "encoder": {
            "word_emb": word_emb,
            "pos_emb": w((MAX_POS, h), jnp.float32),
            "type_emb": w((2, h), jnp.float32),
            "emb_ln_g": ones((1, h)),
            "emb_ln_b": zeros((1, h)),
            # per-layer weights stacked on a leading layer axis; matmul weights
            # stored in bf16 (f32 accumulation on the MXU); QKV concatenated.
            "wqkv": w((L, h, 3 * h)),
            "bqkv": zeros((L, 1, 3 * h)),
            "wao": w((L, h, h)),
            "bao": zeros((L, 1, h)),
            "ln1_g": ones((L, 1, h)),
            "ln1_b": zeros((L, 1, h)),
            "wi": w((L, h, i)),
            "bi": zeros((L, 1, i)),
            "wo": w((L, i, h)),
            "bo": zeros((L, 1, h)),
            "ln2_g": ones((L, 1, h)),
            "ln2_b": zeros((L, 1, h)),
        },
        # final Linear lane-padded to (128, 128); columns >= NUM_CLASSES are zero
        "final_w": final_w.astype(jnp.bfloat16),
        "final_b": zeros((1, 128)),
    }


if __name__ == "__main__":
    B, S = 2, 8
    key = jax.random.PRNGKey(0)
    pkey, xkey = jax.random.split(key)
    params = init_params(pkey)

    x = jax.random.randint(xkey, (B, S), 1, VOCAB_SIZE, dtype=jnp.int32)
    attention_mask = jnp.array([[1, 1, 1, 1, 1, 1, 1, 1],
                                [1, 1, 1, 1, 1, 1, 0, 0]], dtype=jnp.int32)

    forward = jax.jit(bert_forward)
    fin, _ = forward(params, x, attention_mask)
    fin = jax.block_until_ready(fin)
    assert fin.shape == (B, NUM_CLASSES)
    assert bool(jnp.all(jnp.isfinite(fin)))
    print("KERNEL_OK")
</pallas_src>

<mosaic_0001>
module attributes {stable_mosaic.version = 11 : i64} {
  func.func @_bert_kernel(%arg0: i32, %arg1: memref<1x16x128xf32, #tpu.memory_space<vmem>>, %arg2: memref<1x1x16xi32, #tpu.memory_space<vmem>>, %arg3: memref<1x128xf32, #tpu.memory_space<vmem>>, %arg4: memref<1x128xf32, #tpu.memory_space<vmem>>, %arg5: memref<4x128x384xbf16, #tpu.memory_space<vmem>>, %arg6: memref<4x1x384xf32, #tpu.memory_space<vmem>>, %arg7: memref<4x128x128xbf16, #tpu.memory_space<vmem>>, %arg8: memref<4x1x128xf32, #tpu.memory_space<vmem>>, %arg9: memref<4x1x128xf32, #tpu.memory_space<vmem>>, %arg10: memref<4x1x128xf32, #tpu.memory_space<vmem>>, %arg11: memref<4x128x256xbf16, #tpu.memory_space<vmem>>, %arg12: memref<4x1x256xf32, #tpu.memory_space<vmem>>, %arg13: memref<4x256x128xbf16, #tpu.memory_space<vmem>>, %arg14: memref<4x1x128xf32, #tpu.memory_space<vmem>>, %arg15: memref<4x1x128xf32, #tpu.memory_space<vmem>>, %arg16: memref<4x1x128xf32, #tpu.memory_space<vmem>>, %arg17: memref<128x128xbf16, #tpu.memory_space<vmem>>, %arg18: memref<1x128xf32, #tpu.memory_space<vmem>>, %arg19: memref<1x8x128xf32, #tpu.memory_space<vmem>>) attributes {dimension_semantics = [#tpu.dimension_semantics<parallel>], iteration_bounds = array<i64: 1>, scalar_prefetch = 0 : i64, scratch_operands = 0 : i64, tpu.core_type = #tpu.core_type<tc>, window_params = [{transform_indices = @transform_0, window_bounds = array<i64: 1, 16, 128>}, {transform_indices = @transform_1, window_bounds = array<i64: 1, 1, 16>}, {pipeline_mode = #tpu.pipeline_mode<synchronous>, transform_indices = @transform_2, window_bounds = array<i64: 1, 128>}, {pipeline_mode = #tpu.pipeline_mode<synchronous>, transform_indices = @transform_3, window_bounds = array<i64: 1, 128>}, {pipeline_mode = #tpu.pipeline_mode<synchronous>, transform_indices = @transform_4, window_bounds = array<i64: 4, 128, 384>}, {pipeline_mode = #tpu.pipeline_mode<synchronous>, transform_indices = @transform_5, window_bounds = array<i64: 4, 1, 384>}, {pipeline_mode = #tpu.pipeline_mode<synchronous>, transform_indices = @transform_6, window_bounds = array<i64: 4, 128, 128>}, {pipeline_mode = #tpu.pipeline_mode<synchronous>, transform_indices = @transform_7, window_bounds = array<i64: 4, 1, 128>}, {pipeline_mode = #tpu.pipeline_mode<synchronous>, transform_indices = @transform_8, window_bounds = array<i64: 4, 1, 128>}, {pipeline_mode = #tpu.pipeline_mode<synchronous>, transform_indices = @transform_9, window_bounds = array<i64: 4, 1, 128>}, {pipeline_mode = #tpu.pipeline_mode<synchronous>, transform_indices = @transform_10, window_bounds = array<i64: 4, 128, 256>}, {pipeline_mode = #tpu.pipeline_mode<synchronous>, transform_indices = @transform_11, window_bounds = array<i64: 4, 1, 256>}, {pipeline_mode = #tpu.pipeline_mode<synchronous>, transform_indices = @transform_12, window_bounds = array<i64: 4, 256, 128>}, {pipeline_mode = #tpu.pipeline_mode<synchronous>, transform_indices = @transform_13, window_bounds = array<i64: 4, 1, 128>}, {pipeline_mode = #tpu.pipeline_mode<synchronous>, transform_indices = @transform_14, window_bounds = array<i64: 4, 1, 128>}, {pipeline_mode = #tpu.pipeline_mode<synchronous>, transform_indices = @transform_15, window_bounds = array<i64: 4, 1, 128>}, {pipeline_mode = #tpu.pipeline_mode<synchronous>, transform_indices = @transform_16, window_bounds = array<i64: 128, 128>}, {pipeline_mode = #tpu.pipeline_mode<synchronous>, transform_indices = @transform_17, window_bounds = array<i64: 1, 128>}, {transform_indices = @transform_18, window_bounds = array<i64: 1, 8, 128>}]} {
    %c0 = arith.constant 0 : index
    %c0_0 = arith.constant 0 : index
    %c0_1 = arith.constant 0 : index
    %0 = vector.load %arg1[%c0, %c0_0, %c0_1] : memref<1x16x128xf32, #tpu.memory_space<vmem>>, vector<1x16x128xf32>
    %1 = vector.shape_cast %0 : vector<1x16x128xf32> to vector<16x128xf32>
    %c0_2 = arith.constant 0 : index
    %c0_3 = arith.constant 0 : index
    %2 = vector.load %arg3[%c0_2, %c0_3] : memref<1x128xf32, #tpu.memory_space<vmem>>, vector<1x128xf32>
    %c0_4 = arith.constant 0 : index
    %c0_5 = arith.constant 0 : index
    %3 = vector.load %arg4[%c0_4, %c0_5] : memref<1x128xf32, #tpu.memory_space<vmem>>, vector<1x128xf32>
    %cst = arith.constant dense<0.000000e+00> : vector<16xf32>
    %4 = vector.multi_reduction <add>, %1, %cst [1] : vector<16x128xf32> to vector<16xf32>
    %5 = vector.shape_cast %4 : vector<16xf32> to vector<16x1xf32>
    %cst_6 = arith.constant 1.280000e+02 : f32
    %6 = vector.broadcast %cst_6 : f32 to vector<16x1xf32>
    %7 = arith.divf %5, %6 : vector<16x1xf32>
    %8 = vector.broadcast %7 : vector<16x1xf32> to vector<16x128xf32>
    %9 = arith.subf %1, %8 : vector<16x128xf32>
    %10 = arith.mulf %9, %9 : vector<16x128xf32>
    %cst_7 = arith.constant dense<0.000000e+00> : vector<16xf32>
    %11 = vector.multi_reduction <add>, %10, %cst_7 [1] : vector<16x128xf32> to vector<16xf32>
    %12 = vector.shape_cast %11 : vector<16xf32> to vector<16x1xf32>
    %cst_8 = arith.constant 1.280000e+02 : f32
    %13 = vector.broadcast %cst_8 : f32 to vector<16x1xf32>
    %14 = arith.divf %12, %13 : vector<16x1xf32>
    %15 = vector.broadcast %7 : vector<16x1xf32> to vector<16x128xf32>
    %16 = arith.subf %1, %15 : vector<16x128xf32>
    %cst_9 = arith.constant 9.99999996E-13 : f32
    %17 = vector.broadcast %cst_9 : f32 to vector<16x1xf32>
    %18 = arith.addf %14, %17 : vector<16x1xf32>
    %19 = math.rsqrt %18 : vector<16x1xf32>
    %20 = vector.broadcast %19 : vector<16x1xf32> to vector<16x128xf32>
    %21 = arith.mulf %16, %20 : vector<16x128xf32>
    %22 = vector.broadcast %2 : vector<1x128xf32> to vector<16x128xf32>
    %23 = arith.mulf %21, %22 : vector<16x128xf32>
    %24 = vector.broadcast %3 : vector<1x128xf32> to vector<16x128xf32>
    %25 = arith.addf %23, %24 : vector<16x128xf32>
    %c0_10 = arith.constant 0 : index
    %c0_11 = arith.constant 0 : index
    %c0_12 = arith.constant 0 : index
    %26 = vector.load %arg2[%c0_10, %c0_11, %c0_12] : memref<1x1x16xi32, #tpu.memory_space<vmem>>, vector<1x1x16xi32>
    %27 = vector.shape_cast %26 : vector<1x1x16xi32> to vector<1x16xi32>
    %c0_i32 = arith.constant 0 : i32
    %28 = vector.broadcast %c0_i32 : i32 to vector<1x16xi32>
    %29 = arith.cmpi sgt, %27, %28 : vector<1x16xi32>
    %cst_13 = arith.constant 0.000000e+00 : f32
    %cst_14 = arith.constant -1.000000e+04 : f32
    %30 = vector.broadcast %cst_13 : f32 to vector<1x16xf32>
    %31 = vector.broadcast %cst_14 : f32 to vector<1x16xf32>
    %32 = arith.select %29, %30, %31 : vector<1x16xi1>, vector<1x16xf32>
    %33 = tpu.iota {dimensions = array<i32: 0>} : vector<16x16xi32>
    %34 = arith.sitofp %33 : vector<16x16xi32> to vector<16x16xf32>
    %cst_15 = arith.constant 5.000000e-01 : f32
    %35 = vector.broadcast %cst_15 : f32 to vector<16x16xf32>
    %36 = arith.addf %34, %35 : vector<16x16xf32>
    %cst_16 = arith.constant 1.250000e-01 : f32
    %37 = vector.broadcast %cst_16 : f32 to vector<16x16xf32>
    %38 = arith.mulf %36, %37 : vector<16x16xf32>
    %39 = math.floor %38 : vector<16x16xf32>
    %40 = tpu.iota {dimensions = array<i32: 1>} : vector<16x16xi32>
    %41 = arith.sitofp %40 : vector<16x16xi32> to vector<16x16xf32>
    %cst_17 = arith.constant 5.000000e-01 : f32
    %42 = vector.broadcast %cst_17 : f32 to vector<16x16xf32>
    %43 = arith.addf %41, %42 : vector<16x16xf32>
    %cst_18 = arith.constant 1.250000e-01 : f32
    %44 = vector.broadcast %cst_18 : f32 to vector<16x16xf32>
    %45 = arith.mulf %43, %44 : vector<16x16xf32>
    %46 = math.floor %45 : vector<16x16xf32>
    %47 = arith.cmpf oeq, %39, %46 : vector<16x16xf32>
    %cst_19 = arith.constant 0.000000e+00 : f32
    %cst_20 = arith.constant -1.000000e+04 : f32
    %48 = vector.broadcast %cst_19 : f32 to vector<16x16xf32>
    %49 = vector.broadcast %cst_20 : f32 to vector<16x16xf32>
    %50 = arith.select %47, %48, %49 : vector<16x16xi1>, vector<16x16xf32>
    %51 = vector.broadcast %32 : vector<1x16xf32> to vector<16x16xf32>
    %52 = arith.addf %50, %51 : vector<16x16xf32>
    %53 = arith.truncf %25 : vector<16x128xf32> to vector<16x128xbf16>
    %c0_21 = arith.constant 0 : index
    %c0_22 = arith.constant 0 : index
    %c0_23 = arith.constant 0 : index
    %54 = vector.load %arg5[%c0_21, %c0_22, %c0_23] : memref<4x128x384xbf16, #tpu.memory_space<vmem>>, vector<1x128x384xbf16>
    %55 = vector.shape_cast %54 : vector<1x128x384xbf16> to vector<128x384xbf16>
    %cst_24 = arith.constant dense<0.000000e+00> : vector<16x384xf32>
    %56 = tpu.matmul %53, %55, %cst_24 {dimension_numbers = #tpu.dot_dimension_numbers<[1], [0], [0], [1], [0, 0, 1, 1], [], []>} : vector<16x128xbf16>, vector<128x384xbf16>, vector<16x384xf32> -> vector<16x384xf32>
    %c0_25 = arith.constant 0 : index
    %c0_26 = arith.constant 0 : index
    %c0_27 = arith.constant 0 : index
    %57 = vector.load %arg6[%c0_25, %c0_26, %c0_27] : memref<4x1x384xf32, #tpu.memory_space<vmem>>, vector<1x1x384xf32>
    %58 = vector.shape_cast %57 : vector<1x1x384xf32> to vector<1x384xf32>
    %59 = vector.broadcast %58 : vector<1x384xf32> to vector<16x384xf32>
    %60 = arith.addf %56, %59 : vector<16x384xf32>
    %61 = arith.truncf %60 : vector<16x384xf32> to vector<16x384xbf16>
    %c0_28 = arith.constant 0 : index
    %c0_29 = arith.constant 0 : index
    %c0_30 = arith.constant 0 : index
    %62 = vector.load %arg7[%c0_28, %c0_29, %c0_30] : memref<4x128x128xbf16, #tpu.memory_space<vmem>>, vector<1x128x128xbf16>
    %63 = vector.shape_cast %62 : vector<1x128x128xbf16> to vector<128x128xbf16>
    %cst_31 = arith.constant 0.000000e+00 : f32
    %64 = vector.broadcast %cst_31 : f32 to vector<16x128xf32>
    %65 = vector.extract_strided_slice %61 {offsets = [0, 0], sizes = [16, 32], strides = [1, 1]} : vector<16x384xbf16> to vector<16x32xbf16>
    %66 = vector.extract_strided_slice %61 {offsets = [0, 128], sizes = [16, 32], strides = [1, 1]} : vector<16x384xbf16> to vector<16x32xbf16>
    %67 = vector.extract_strided_slice %61 {offsets = [0, 256], sizes = [16, 32], strides = [1, 1]} : vector<16x384xbf16> to vector<16x32xbf16>
    %cst_32 = arith.constant dense<0.000000e+00> : vector<16x16xf32>
    %68 = tpu.matmul %65, %66, %cst_32 {dimension_numbers = #tpu.dot_dimension_numbers<[1], [1], [0], [0], [0, 0, 1, 0], [], []>} : vector<16x32xbf16>, vector<16x32xbf16>, vector<16x16xf32> -> vector<16x16xf32>
    %cst_33 = arith.constant 0.176776692 : f32
    %69 = vector.broadcast %cst_33 : f32 to vector<16x16xf32>
    %70 = arith.mulf %68, %69 : vector<16x16xf32>
    %71 = arith.addf %70, %52 : vector<16x16xf32>
    %cst_34 = arith.constant dense<0xFF800000> : vector<16xf32>
    %72 = vector.multi_reduction <maximumf>, %71, %cst_34 [1] : vector<16x16xf32> to vector<16xf32>
    %73 = vector.shape_cast %72 : vector<16xf32> to vector<16x1xf32>
    %74 = vector.broadcast %73 : vector<16x1xf32> to vector<16x16xf32>
    %75 = arith.subf %71, %74 : vector<16x16xf32>
    %76 = math.exp %75 : vector<16x16xf32>
    %cst_35 = arith.constant dense<0.000000e+00> : vector<16xf32>
    %77 = vector.multi_reduction <add>, %76, %cst_35 [1] : vector<16x16xf32> to vector<16xf32>
    %78 = vector.shape_cast %77 : vector<16xf32> to vector<16x1xf32>
    %79 = tpu.reciprocal %78 {approx = true} : vector<16x1xf32> -> vector<16x1xf32>
    %80 = vector.broadcast %79 : vector<16x1xf32> to vector<16x16xf32>
    %81 = arith.mulf %76, %80 : vector<16x16xf32>
    %82 = arith.truncf %81 : vector<16x16xf32> to vector<16x16xbf16>
    %cst_36 = arith.constant dense<0.000000e+00> : vector<16x32xf32>
    %83 = tpu.matmul %82, %67, %cst_36 {dimension_numbers = #tpu.dot_dimension_numbers<[1], [0], [0], [1], [0, 0, 1, 1], [], []>} : vector<16x16xbf16>, vector<16x32xbf16>, vector<16x32xf32> -> vector<16x32xf32>
    %84 = arith.truncf %83 : vector<16x32xf32> to vector<16x32xbf16>
    %85 = vector.extract_strided_slice %63 {offsets = [0, 0], sizes = [32, 128], strides = [1, 1]} : vector<128x128xbf16> to vector<32x128xbf16>
    %cst_37 = arith.constant dense<0.000000e+00> : vector<16x128xf32>
    %86 = tpu.matmul %84, %85, %cst_37 {dimension_numbers = #tpu.dot_dimension_numbers<[1], [0], [0], [1], [0, 0, 1, 1], [], []>} : vector<16x32xbf16>, vector<32x128xbf16>, vector<16x128xf32> -> vector<16x128xf32>
    %87 = arith.addf %64, %86 : vector<16x128xf32>
    %88 = vector.extract_strided_slice %61 {offsets = [0, 32], sizes = [16, 32], strides = [1, 1]} : vector<16x384xbf16> to vector<16x32xbf16>
    %89 = vector.extract_strided_slice %61 {offsets = [0, 160], sizes = [16, 32], strides = [1, 1]} : vector<16x384xbf16> to vector<16x32xbf16>
    %90 = vector.extract_strided_slice %61 {offsets = [0, 288], sizes = [16, 32], strides = [1, 1]} : vector<16x384xbf16> to vector<16x32xbf16>
    %cst_38 = arith.constant dense<0.000000e+00> : vector<16x16xf32>
    %91 = tpu.matmul %88, %89, %cst_38 {dimension_numbers = #tpu.dot_dimension_numbers<[1], [1], [0], [0], [0, 0, 1, 0], [], []>} : vector<16x32xbf16>, vector<16x32xbf16>, vector<16x16xf32> -> vector<16x16xf32>
    %cst_39 = arith.constant 0.176776692 : f32
    %92 = vector.broadcast %cst_39 : f32 to vector<16x16xf32>
    %93 = arith.mulf %91, %92 : vector<16x16xf32>
    %94 = arith.addf %93, %52 : vector<16x16xf32>
    %cst_40 = arith.constant dense<0xFF800000> : vector<16xf32>
    %95 = vector.multi_reduction <maximumf>, %94, %cst_40 [1] : vector<16x16xf32> to vector<16xf32>
    %96 = vector.shape_cast %95 : vector<16xf32> to vector<16x1xf32>
    %97 = vector.broadcast %96 : vector<16x1xf32> to vector<16x16xf32>
    %98 = arith.subf %94, %97 : vector<16x16xf32>
    %99 = math.exp %98 : vector<16x16xf32>
    %cst_41 = arith.constant dense<0.000000e+00> : vector<16xf32>
    %100 = vector.multi_reduction <add>, %99, %cst_41 [1] : vector<16x16xf32> to vector<16xf32>
    %101 = vector.shape_cast %100 : vector<16xf32> to vector<16x1xf32>
    %102 = tpu.reciprocal %101 {approx = true} : vector<16x1xf32> -> vector<16x1xf32>
    %103 = vector.broadcast %102 : vector<16x1xf32> to vector<16x16xf32>
    %104 = arith.mulf %99, %103 : vector<16x16xf32>
    %105 = arith.truncf %104 : vector<16x16xf32> to vector<16x16xbf16>
    %cst_42 = arith.constant dense<0.000000e+00> : vector<16x32xf32>
    %106 = tpu.matmul %105, %90, %cst_42 {dimension_numbers = #tpu.dot_dimension_numbers<[1], [0], [0], [1], [0, 0, 1, 1], [], []>} : vector<16x16xbf16>, vector<16x32xbf16>, vector<16x32xf32> -> vector<16x32xf32>
    %107 = arith.truncf %106 : vector<16x32xf32> to vector<16x32xbf16>
    %108 = vector.extract_strided_slice %63 {offsets = [32, 0], sizes = [32, 128], strides = [1, 1]} : vector<128x128xbf16> to vector<32x128xbf16>
    %cst_43 = arith.constant dense<0.000000e+00> : vector<16x128xf32>
    %109 = tpu.matmul %107, %108, %cst_43 {dimension_numbers = #tpu.dot_dimension_numbers<[1], [0], [0], [1], [0, 0, 1, 1], [], []>} : vector<16x32xbf16>, vector<32x128xbf16>, vector<16x128xf32> -> vector<16x128xf32>
    %110 = arith.addf %87, %109 : vector<16x128xf32>
    %111 = vector.extract_strided_slice %61 {offsets = [0, 64], sizes = [16, 32], strides = [1, 1]} : vector<16x384xbf16> to vector<16x32xbf16>
    %112 = vector.extract_strided_slice %61 {offsets = [0, 192], sizes = [16, 32], strides = [1, 1]} : vector<16x384xbf16> to vector<16x32xbf16>
    %113 = vector.extract_strided_slice %61 {offsets = [0, 320], sizes = [16, 32], strides = [1, 1]} : vector<16x384xbf16> to vector<16x32xbf16>
    %cst_44 = arith.constant dense<0.000000e+00> : vector<16x16xf32>
    %114 = tpu.matmul %111, %112, %cst_44 {dimension_numbers = #tpu.dot_dimension_numbers<[1], [1], [0], [0], [0, 0, 1, 0], [], []>} : vector<16x32xbf16>, vector<16x32xbf16>, vector<16x16xf32> -> vector<16x16xf32>
    %cst_45 = arith.constant 0.176776692 : f32
    %115 = vector.broadcast %cst_45 : f32 to vector<16x16xf32>
    %116 = arith.mulf %114, %115 : vector<16x16xf32>
    %117 = arith.addf %116, %52 : vector<16x16xf32>
    %cst_46 = arith.constant dense<0xFF800000> : vector<16xf32>
    %118 = vector.multi_reduction <maximumf>, %117, %cst_46 [1] : vector<16x16xf32> to vector<16xf32>
    %119 = vector.shape_cast %118 : vector<16xf32> to vector<16x1xf32>
    %120 = vector.broadcast %119 : vector<16x1xf32> to vector<16x16xf32>
    %121 = arith.subf %117, %120 : vector<16x16xf32>
    %122 = math.exp %121 : vector<16x16xf32>
    %cst_47 = arith.constant dense<0.000000e+00> : vector<16xf32>
    %123 = vector.multi_reduction <add>, %122, %cst_47 [1] : vector<16x16xf32> to vector<16xf32>
    %124 = vector.shape_cast %123 : vector<16xf32> to vector<16x1xf32>
    %125 = tpu.reciprocal %124 {approx = true} : vector<16x1xf32> -> vector<16x1xf32>
    %126 = vector.broadcast %125 : vector<16x1xf32> to vector<16x16xf32>
    %127 = arith.mulf %122, %126 : vector<16x16xf32>
    %128 = arith.truncf %127 : vector<16x16xf32> to vector<16x16xbf16>
    %cst_48 = arith.constant dense<0.000000e+00> : vector<16x32xf32>
    %129 = tpu.matmul %128, %113, %cst_48 {dimension_numbers = #tpu.dot_dimension_numbers<[1], [0], [0], [1], [0, 0, 1, 1], [], []>} : vector<16x16xbf16>, vector<16x32xbf16>, vector<16x32xf32> -> vector<16x32xf32>
    %130 = arith.truncf %129 : vector<16x32xf32> to vector<16x32xbf16>
    %131 = vector.extract_strided_slice %63 {offsets = [64, 0], sizes = [32, 128], strides = [1, 1]} : vector<128x128xbf16> to vector<32x128xbf16>
    %cst_49 = arith.constant dense<0.000000e+00> : vector<16x128xf32>
    %132 = tpu.matmul %130, %131, %cst_49 {dimension_numbers = #tpu.dot_dimension_numbers<[1], [0], [0], [1], [0, 0, 1, 1], [], []>} : vector<16x32xbf16>, vector<32x128xbf16>, vector<16x128xf32> -> vector<16x128xf32>
    %133 = arith.addf %110, %132 : vector<16x128xf32>
    %134 = vector.extract_strided_slice %61 {offsets = [0, 96], sizes = [16, 32], strides = [1, 1]} : vector<16x384xbf16> to vector<16x32xbf16>
    %135 = vector.extract_strided_slice %61 {offsets = [0, 224], sizes = [16, 32], strides = [1, 1]} : vector<16x384xbf16> to vector<16x32xbf16>
    %136 = vector.extract_strided_slice %61 {offsets = [0, 352], sizes = [16, 32], strides = [1, 1]} : vector<16x384xbf16> to vector<16x32xbf16>
    %cst_50 = arith.constant dense<0.000000e+00> : vector<16x16xf32>
    %137 = tpu.matmul %134, %135, %cst_50 {dimension_numbers = #tpu.dot_dimension_numbers<[1], [1], [0], [0], [0, 0, 1, 0], [], []>} : vector<16x32xbf16>, vector<16x32xbf16>, vector<16x16xf32> -> vector<16x16xf32>
    %cst_51 = arith.constant 0.176776692 : f32
    %138 = vector.broadcast %cst_51 : f32 to vector<16x16xf32>
    %139 = arith.mulf %137, %138 : vector<16x16xf32>
    %140 = arith.addf %139, %52 : vector<16x16xf32>
    %cst_52 = arith.constant dense<0xFF800000> : vector<16xf32>
    %141 = vector.multi_reduction <maximumf>, %140, %cst_52 [1] : vector<16x16xf32> to vector<16xf32>
    %142 = vector.shape_cast %141 : vector<16xf32> to vector<16x1xf32>
    %143 = vector.broadcast %142 : vector<16x1xf32> to vector<16x16xf32>
    %144 = arith.subf %140, %143 : vector<16x16xf32>
    %145 = math.exp %144 : vector<16x16xf32>
    %cst_53 = arith.constant dense<0.000000e+00> : vector<16xf32>
    %146 = vector.multi_reduction <add>, %145, %cst_53 [1] : vector<16x16xf32> to vector<16xf32>
    %147 = vector.shape_cast %146 : vector<16xf32> to vector<16x1xf32>
    %148 = tpu.reciprocal %147 {approx = true} : vector<16x1xf32> -> vector<16x1xf32>
    %149 = vector.broadcast %148 : vector<16x1xf32> to vector<16x16xf32>
    %150 = arith.mulf %145, %149 : vector<16x16xf32>
    %151 = arith.truncf %150 : vector<16x16xf32> to vector<16x16xbf16>
    %cst_54 = arith.constant dense<0.000000e+00> : vector<16x32xf32>
    %152 = tpu.matmul %151, %136, %cst_54 {dimension_numbers = #tpu.dot_dimension_numbers<[1], [0], [0], [1], [0, 0, 1, 1], [], []>} : vector<16x16xbf16>, vector<16x32xbf16>, vector<16x32xf32> -> vector<16x32xf32>
    %153 = arith.truncf %152 : vector<16x32xf32> to vector<16x32xbf16>
    %154 = vector.extract_strided_slice %63 {offsets = [96, 0], sizes = [32, 128], strides = [1, 1]} : vector<128x128xbf16> to vector<32x128xbf16>
    %cst_55 = arith.constant dense<0.000000e+00> : vector<16x128xf32>
    %155 = tpu.matmul %153, %154, %cst_55 {dimension_numbers = #tpu.dot_dimension_numbers<[1], [0], [0], [1], [0, 0, 1, 1], [], []>} : vector<16x32xbf16>, vector<32x128xbf16>, vector<16x128xf32> -> vector<16x128xf32>
    %156 = arith.addf %133, %155 : vector<16x128xf32>
    %c0_56 = arith.constant 0 : index
    %c0_57 = arith.constant 0 : index
    %c0_58 = arith.constant 0 : index
    %157 = vector.load %arg8[%c0_56, %c0_57, %c0_58] : memref<4x1x128xf32, #tpu.memory_space<vmem>>, vector<1x1x128xf32>
    %158 = vector.shape_cast %157 : vector<1x1x128xf32> to vector<1x128xf32>
    %159 = vector.broadcast %158 : vector<1x128xf32> to vector<16x128xf32>
    %160 = arith.addf %156, %159 : vector<16x128xf32>
    %161 = arith.addf %160, %25 : vector<16x128xf32>
    %c0_59 = arith.constant 0 : index
    %c0_60 = arith.constant 0 : index
    %c0_61 = arith.constant 0 : index
    %162 = vector.load %arg9[%c0_59, %c0_60, %c0_61] : memref<4x1x128xf32, #tpu.memory_space<vmem>>, vector<1x1x128xf32>
    %163 = vector.shape_cast %162 : vector<1x1x128xf32> to vector<1x128xf32>
    %c0_62 = arith.constant 0 : index
    %c0_63 = arith.constant 0 : index
    %c0_64 = arith.constant 0 : index
    %164 = vector.load %arg10[%c0_62, %c0_63, %c0_64] : memref<4x1x128xf32, #tpu.memory_space<vmem>>, vector<1x1x128xf32>
    %165 = vector.shape_cast %164 : vector<1x1x128xf32> to vector<1x128xf32>
    %cst_65 = arith.constant dense<0.000000e+00> : vector<16xf32>
    %166 = vector.multi_reduction <add>, %161, %cst_65 [1] : vector<16x128xf32> to vector<16xf32>
    %167 = vector.shape_cast %166 : vector<16xf32> to vector<16x1xf32>
    %cst_66 = arith.constant 1.280000e+02 : f32
    %168 = vector.broadcast %cst_66 : f32 to vector<16x1xf32>
    %169 = arith.divf %167, %168 : vector<16x1xf32>
    %170 = vector.broadcast %169 : vector<16x1xf32> to vector<16x128xf32>
    %171 = arith.subf %161, %170 : vector<16x128xf32>
    %172 = arith.mulf %171, %171 : vector<16x128xf32>
    %cst_67 = arith.constant dense<0.000000e+00> : vector<16xf32>
    %173 = vector.multi_reduction <add>, %172, %cst_67 [1] : vector<16x128xf32> to vector<16xf32>
    %174 = vector.shape_cast %173 : vector<16xf32> to vector<16x1xf32>
    %cst_68 = arith.constant 1.280000e+02 : f32
    %175 = vector.broadcast %cst_68 : f32 to vector<16x1xf32>
    %176 = arith.divf %174, %175 : vector<16x1xf32>
    %177 = vector.broadcast %169 : vector<16x1xf32> to vector<16x128xf32>
    %178 = arith.subf %161, %177 : vector<16x128xf32>
    %cst_69 = arith.constant 9.99999996E-13 : f32
    %179 = vector.broadcast %cst_69 : f32 to vector<16x1xf32>
    %180 = arith.addf %176, %179 : vector<16x1xf32>
    %181 = math.rsqrt %180 : vector<16x1xf32>
    %182 = vector.broadcast %181 : vector<16x1xf32> to vector<16x128xf32>
    %183 = arith.mulf %178, %182 : vector<16x128xf32>
    %184 = vector.broadcast %163 : vector<1x128xf32> to vector<16x128xf32>
    %185 = arith.mulf %183, %184 : vector<16x128xf32>
    %186 = vector.broadcast %165 : vector<1x128xf32> to vector<16x128xf32>
    %187 = arith.addf %185, %186 : vector<16x128xf32>
    %188 = arith.truncf %187 : vector<16x128xf32> to vector<16x128xbf16>
    %c0_70 = arith.constant 0 : index
    %c0_71 = arith.constant 0 : index
    %c0_72 = arith.constant 0 : index
    %189 = vector.load %arg11[%c0_70, %c0_71, %c0_72] : memref<4x128x256xbf16, #tpu.memory_space<vmem>>, vector<1x128x256xbf16>
    %190 = vector.shape_cast %189 : vector<1x128x256xbf16> to vector<128x256xbf16>
    %cst_73 = arith.constant dense<0.000000e+00> : vector<16x256xf32>
    %191 = tpu.matmul %188, %190, %cst_73 {dimension_numbers = #tpu.dot_dimension_numbers<[1], [0], [0], [1], [0, 0, 1, 1], [], []>} : vector<16x128xbf16>, vector<128x256xbf16>, vector<16x256xf32> -> vector<16x256xf32>
    %c0_74 = arith.constant 0 : index
    %c0_75 = arith.constant 0 : index
    %c0_76 = arith.constant 0 : index
    %192 = vector.load %arg12[%c0_74, %c0_75, %c0_76] : memref<4x1x256xf32, #tpu.memory_space<vmem>>, vector<1x1x256xf32>
    %193 = vector.shape_cast %192 : vector<1x1x256xf32> to vector<1x256xf32>
    %194 = vector.broadcast %193 : vector<1x256xf32> to vector<16x256xf32>
    %195 = arith.addf %191, %194 : vector<16x256xf32>
    %196 = arith.mulf %195, %195 : vector<16x256xf32>
    %197 = arith.mulf %195, %196 : vector<16x256xf32>
    %cst_77 = arith.constant 4.471500e-02 : f32
    %198 = vector.broadcast %cst_77 : f32 to vector<16x256xf32>
    %199 = arith.mulf %198, %197 : vector<16x256xf32>
    %200 = arith.addf %195, %199 : vector<16x256xf32>
    %cst_78 = arith.constant 0.797884583 : f32
    %201 = vector.broadcast %cst_78 : f32 to vector<16x256xf32>
    %202 = arith.mulf %201, %200 : vector<16x256xf32>
    %203 = math.tanh %202 : vector<16x256xf32>
    %cst_79 = arith.constant 1.000000e+00 : f32
    %204 = vector.broadcast %cst_79 : f32 to vector<16x256xf32>
    %205 = arith.addf %204, %203 : vector<16x256xf32>
    %cst_80 = arith.constant 5.000000e-01 : f32
    %206 = vector.broadcast %cst_80 : f32 to vector<16x256xf32>
    %207 = arith.mulf %206, %205 : vector<16x256xf32>
    %208 = arith.mulf %195, %207 : vector<16x256xf32>
    %209 = arith.truncf %208 : vector<16x256xf32> to vector<16x256xbf16>
    %c0_81 = arith.constant 0 : index
    %c0_82 = arith.constant 0 : index
    %c0_83 = arith.constant 0 : index
    %210 = vector.load %arg13[%c0_81, %c0_82, %c0_83] : memref<4x256x128xbf16, #tpu.memory_space<vmem>>, vector<1x256x128xbf16>
    %211 = vector.shape_cast %210 : vector<1x256x128xbf16> to vector<256x128xbf16>
    %cst_84 = arith.constant dense<0.000000e+00> : vector<16x128xf32>
    %212 = tpu.matmul %209, %211, %cst_84 {dimension_numbers = #tpu.dot_dimension_numbers<[1], [0], [0], [1], [0, 0, 1, 1], [], []>} : vector<16x256xbf16>, vector<256x128xbf16>, vector<16x128xf32> -> vector<16x128xf32>
    %c0_85 = arith.constant 0 : index
    %c0_86 = arith.constant 0 : index
    %c0_87 = arith.constant 0 : index
    %213 = vector.load %arg14[%c0_85, %c0_86, %c0_87] : memref<4x1x128xf32, #tpu.memory_space<vmem>>, vector<1x1x128xf32>
    %214 = vector.shape_cast %213 : vector<1x1x128xf32> to vector<1x128xf32>
    %215 = vector.broadcast %214 : vector<1x128xf32> to vector<16x128xf32>
    %216 = arith.addf %212, %215 : vector<16x128xf32>
    %217 = arith.addf %216, %187 : vector<16x128xf32>
    %c0_88 = arith.constant 0 : index
    %c0_89 = arith.constant 0 : index
    %c0_90 = arith.constant 0 : index
    %218 = vector.load %arg15[%c0_88, %c0_89, %c0_90] : memref<4x1x128xf32, #tpu.memory_space<vmem>>, vector<1x1x128xf32>
    %219 = vector.shape_cast %218 : vector<1x1x128xf32> to vector<1x128xf32>
    %c0_91 = arith.constant 0 : index
    %c0_92 = arith.constant 0 : index
    %c0_93 = arith.constant 0 : index
    %220 = vector.load %arg16[%c0_91, %c0_92, %c0_93] : memref<4x1x128xf32, #tpu.memory_space<vmem>>, vector<1x1x128xf32>
    %221 = vector.shape_cast %220 : vector<1x1x128xf32> to vector<1x128xf32>
    %cst_94 = arith.constant dense<0.000000e+00> : vector<16xf32>
    %222 = vector.multi_reduction <add>, %217, %cst_94 [1] : vector<16x128xf32> to vector<16xf32>
    %223 = vector.shape_cast %222 : vector<16xf32> to vector<16x1xf32>
    %cst_95 = arith.constant 1.280000e+02 : f32
    %224 = vector.broadcast %cst_95 : f32 to vector<16x1xf32>
    %225 = arith.divf %223, %224 : vector<16x1xf32>
    %226 = vector.broadcast %225 : vector<16x1xf32> to vector<16x128xf32>
    %227 = arith.subf %217, %226 : vector<16x128xf32>
    %228 = arith.mulf %227, %227 : vector<16x128xf32>
    %cst_96 = arith.constant dense<0.000000e+00> : vector<16xf32>
    %229 = vector.multi_reduction <add>, %228, %cst_96 [1] : vector<16x128xf32> to vector<16xf32>
    %230 = vector.shape_cast %229 : vector<16xf32> to vector<16x1xf32>
    %cst_97 = arith.constant 1.280000e+02 : f32
    %231 = vector.broadcast %cst_97 : f32 to vector<16x1xf32>
    %232 = arith.divf %230, %231 : vector<16x1xf32>
    %233 = vector.broadcast %225 : vector<16x1xf32> to vector<16x128xf32>
    %234 = arith.subf %217, %233 : vector<16x128xf32>
    %cst_98 = arith.constant 9.99999996E-13 : f32
    %235 = vector.broadcast %cst_98 : f32 to vector<16x1xf32>
    %236 = arith.addf %232, %235 : vector<16x1xf32>
    %237 = math.rsqrt %236 : vector<16x1xf32>
    %238 = vector.broadcast %237 : vector<16x1xf32> to vector<16x128xf32>
    %239 = arith.mulf %234, %238 : vector<16x128xf32>
    %240 = vector.broadcast %219 : vector<1x128xf32> to vector<16x128xf32>
    %241 = arith.mulf %239, %240 : vector<16x128xf32>
    %242 = vector.broadcast %221 : vector<1x128xf32> to vector<16x128xf32>
    %243 = arith.addf %241, %242 : vector<16x128xf32>
    %244 = arith.truncf %243 : vector<16x128xf32> to vector<16x128xbf16>
    %c1 = arith.constant 1 : index
    %c0_99 = arith.constant 0 : index
    %c0_100 = arith.constant 0 : index
    %245 = vector.load %arg5[%c1, %c0_99, %c0_100] : memref<4x128x384xbf16, #tpu.memory_space<vmem>>, vector<1x128x384xbf16>
    %246 = vector.shape_cast %245 : vector<1x128x384xbf16> to vector<128x384xbf16>
    %cst_101 = arith.constant dense<0.000000e+00> : vector<16x384xf32>
    %247 = tpu.matmul %244, %246, %cst_101 {dimension_numbers = #tpu.dot_dimension_numbers<[1], [0], [0], [1], [0, 0, 1, 1], [], []>} : vector<16x128xbf16>, vector<128x384xbf16>, vector<16x384xf32> -> vector<16x384xf32>
    %c1_102 = arith.constant 1 : index
    %c0_103 = arith.constant 0 : index
    %c0_104 = arith.constant 0 : index
    %248 = vector.load %arg6[%c1_102, %c0_103, %c0_104] : memref<4x1x384xf32, #tpu.memory_space<vmem>>, vector<1x1x384xf32>
    %249 = vector.shape_cast %248 : vector<1x1x384xf32> to vector<1x384xf32>
    %250 = vector.broadcast %249 : vector<1x384xf32> to vector<16x384xf32>
    %251 = arith.addf %247, %250 : vector<16x384xf32>
    %252 = arith.truncf %251 : vector<16x384xf32> to vector<16x384xbf16>
    %c1_105 = arith.constant 1 : index
    %c0_106 = arith.constant 0 : index
    %c0_107 = arith.constant 0 : index
    %253 = vector.load %arg7[%c1_105, %c0_106, %c0_107] : memref<4x128x128xbf16, #tpu.memory_space<vmem>>, vector<1x128x128xbf16>
    %254 = vector.shape_cast %253 : vector<1x128x128xbf16> to vector<128x128xbf16>
    %cst_108 = arith.constant 0.000000e+00 : f32
    %255 = vector.broadcast %cst_108 : f32 to vector<16x128xf32>
    %256 = vector.extract_strided_slice %252 {offsets = [0, 0], sizes = [16, 32], strides = [1, 1]} : vector<16x384xbf16> to vector<16x32xbf16>
    %257 = vector.extract_strided_slice %252 {offsets = [0, 128], sizes = [16, 32], strides = [1, 1]} : vector<16x384xbf16> to vector<16x32xbf16>
    %258 = vector.extract_strided_slice %252 {offsets = [0, 256], sizes = [16, 32], strides = [1, 1]} : vector<16x384xbf16> to vector<16x32xbf16>
    %cst_109 = arith.constant dense<0.000000e+00> : vector<16x16xf32>
    %259 = tpu.matmul %256, %257, %cst_109 {dimension_numbers = #tpu.dot_dimension_numbers<[1], [1], [0], [0], [0, 0, 1, 0], [], []>} : vector<16x32xbf16>, vector<16x32xbf16>, vector<16x16xf32> -> vector<16x16xf32>
    %cst_110 = arith.constant 0.176776692 : f32
    %260 = vector.broadcast %cst_110 : f32 to vector<16x16xf32>
    %261 = arith.mulf %259, %260 : vector<16x16xf32>
    %262 = arith.addf %261, %52 : vector<16x16xf32>
    %cst_111 = arith.constant dense<0xFF800000> : vector<16xf32>
    %263 = vector.multi_reduction <maximumf>, %262, %cst_111 [1] : vector<16x16xf32> to vector<16xf32>
    %264 = vector.shape_cast %263 : vector<16xf32> to vector<16x1xf32>
    %265 = vector.broadcast %264 : vector<16x1xf32> to vector<16x16xf32>
    %266 = arith.subf %262, %265 : vector<16x16xf32>
    %267 = math.exp %266 : vector<16x16xf32>
    %cst_112 = arith.constant dense<0.000000e+00> : vector<16xf32>
    %268 = vector.multi_reduction <add>, %267, %cst_112 [1] : vector<16x16xf32> to vector<16xf32>
    %269 = vector.shape_cast %268 : vector<16xf32> to vector<16x1xf32>
    %270 = tpu.reciprocal %269 {approx = true} : vector<16x1xf32> -> vector<16x1xf32>
    %271 = vector.broadcast %270 : vector<16x1xf32> to vector<16x16xf32>
    %272 = arith.mulf %267, %271 : vector<16x16xf32>
    %273 = arith.truncf %272 : vector<16x16xf32> to vector<16x16xbf16>
    %cst_113 = arith.constant dense<0.000000e+00> : vector<16x32xf32>
    %274 = tpu.matmul %273, %258, %cst_113 {dimension_numbers = #tpu.dot_dimension_numbers<[1], [0], [0], [1], [0, 0, 1, 1], [], []>} : vector<16x16xbf16>, vector<16x32xbf16>, vector<16x32xf32> -> vector<16x32xf32>
    %275 = arith.truncf %274 : vector<16x32xf32> to vector<16x32xbf16>
    %276 = vector.extract_strided_slice %254 {offsets = [0, 0], sizes = [32, 128], strides = [1, 1]} : vector<128x128xbf16> to vector<32x128xbf16>
    %cst_114 = arith.constant dense<0.000000e+00> : vector<16x128xf32>
    %277 = tpu.matmul %275, %276, %cst_114 {dimension_numbers = #tpu.dot_dimension_numbers<[1], [0], [0], [1], [0, 0, 1, 1], [], []>} : vector<16x32xbf16>, vector<32x128xbf16>, vector<16x128xf32> -> vector<16x128xf32>
    %278 = arith.addf %255, %277 : vector<16x128xf32>
    %279 = vector.extract_strided_slice %252 {offsets = [0, 32], sizes = [16, 32], strides = [1, 1]} : vector<16x384xbf16> to vector<16x32xbf16>
    %280 = vector.extract_strided_slice %252 {offsets = [0, 160], sizes = [16, 32], strides = [1, 1]} : vector<16x384xbf16> to vector<16x32xbf16>
    %281 = vector.extract_strided_slice %252 {offsets = [0, 288], sizes = [16, 32], strides = [1, 1]} : vector<16x384xbf16> to vector<16x32xbf16>
    %cst_115 = arith.constant dense<0.000000e+00> : vector<16x16xf32>
    %282 = tpu.matmul %279, %280, %cst_115 {dimension_numbers = #tpu.dot_dimension_numbers<[1], [1], [0], [0], [0, 0, 1, 0], [], []>} : vector<16x32xbf16>, vector<16x32xbf16>, vector<16x16xf32> -> vector<16x16xf32>
    %cst_116 = arith.constant 0.176776692 : f32
    %283 = vector.broadcast %cst_116 : f32 to vector<16x16xf32>
    %284 = arith.mulf %282, %283 : vector<16x16xf32>
    %285 = arith.addf %284, %52 : vector<16x16xf32>
    %cst_117 = arith.constant dense<0xFF800000> : vector<16xf32>
    %286 = vector.multi_reduction <maximumf>, %285, %cst_117 [1] : vector<16x16xf32> to vector<16xf32>
    %287 = vector.shape_cast %286 : vector<16xf32> to vector<16x1xf32>
    %288 = vector.broadcast %287 : vector<16x1xf32> to vector<16x16xf32>
    %289 = arith.subf %285, %288 : vector<16x16xf32>
    %290 = math.exp %289 : vector<16x16xf32>
    %cst_118 = arith.constant dense<0.000000e+00> : vector<16xf32>
    %291 = vector.multi_reduction <add>, %290, %cst_118 [1] : vector<16x16xf32> to vector<16xf32>
    %292 = vector.shape_cast %291 : vector<16xf32> to vector<16x1xf32>
    %293 = tpu.reciprocal %292 {approx = true} : vector<16x1xf32> -> vector<16x1xf32>
    %294 = vector.broadcast %293 : vector<16x1xf32> to vector<16x16xf32>
    %295 = arith.mulf %290, %294 : vector<16x16xf32>
    %296 = arith.truncf %295 : vector<16x16xf32> to vector<16x16xbf16>
    %cst_119 = arith.constant dense<0.000000e+00> : vector<16x32xf32>
    %297 = tpu.matmul %296, %281, %cst_119 {dimension_numbers = #tpu.dot_dimension_numbers<[1], [0], [0], [1], [0, 0, 1, 1], [], []>} : vector<16x16xbf16>, vector<16x32xbf16>, vector<16x32xf32> -> vector<16x32xf32>
    %298 = arith.truncf %297 : vector<16x32xf32> to vector<16x32xbf16>
    %299 = vector.extract_strided_slice %254 {offsets = [32, 0], sizes = [32, 128], strides = [1, 1]} : vector<128x128xbf16> to vector<32x128xbf16>
    %cst_120 = arith.constant dense<0.000000e+00> : vector<16x128xf32>
    %300 = tpu.matmul %298, %299, %cst_120 {dimension_numbers = #tpu.dot_dimension_numbers<[1], [0], [0], [1], [0, 0, 1, 1], [], []>} : vector<16x32xbf16>, vector<32x128xbf16>, vector<16x128xf32> -> vector<16x128xf32>
    %301 = arith.addf %278, %300 : vector<16x128xf32>
    %302 = vector.extract_strided_slice %252 {offsets = [0, 64], sizes = [16, 32], strides = [1, 1]} : vector<16x384xbf16> to vector<16x32xbf16>
    %303 = vector.extract_strided_slice %252 {offsets = [0, 192], sizes = [16, 32], strides = [1, 1]} : vector<16x384xbf16> to vector<16x32xbf16>
    %304 = vector.extract_strided_slice %252 {offsets = [0, 320], sizes = [16, 32], strides = [1, 1]} : vector<16x384xbf16> to vector<16x32xbf16>
    %cst_121 = arith.constant dense<0.000000e+00> : vector<16x16xf32>
    %305 = tpu.matmul %302, %303, %cst_121 {dimension_numbers = #tpu.dot_dimension_numbers<[1], [1], [0], [0], [0, 0, 1, 0], [], []>} : vector<16x32xbf16>, vector<16x32xbf16>, vector<16x16xf32> -> vector<16x16xf32>
    %cst_122 = arith.constant 0.176776692 : f32
    %306 = vector.broadcast %cst_122 : f32 to vector<16x16xf32>
    %307 = arith.mulf %305, %306 : vector<16x16xf32>
    %308 = arith.addf %307, %52 : vector<16x16xf32>
    %cst_123 = arith.constant dense<0xFF800000> : vector<16xf32>
    %309 = vector.multi_reduction <maximumf>, %308, %cst_123 [1] : vector<16x16xf32> to vector<16xf32>
    %310 = vector.shape_cast %309 : vector<16xf32> to vector<16x1xf32>
    %311 = vector.broadcast %310 : vector<16x1xf32> to vector<16x16xf32>
    %312 = arith.subf %308, %311 : vector<16x16xf32>
    %313 = math.exp %312 : vector<16x16xf32>
    %cst_124 = arith.constant dense<0.000000e+00> : vector<16xf32>
    %314 = vector.multi_reduction <add>, %313, %cst_124 [1] : vector<16x16xf32> to vector<16xf32>
    %315 = vector.shape_cast %314 : vector<16xf32> to vector<16x1xf32>
    %316 = tpu.reciprocal %315 {approx = true} : vector<16x1xf32> -> vector<16x1xf32>
    %317 = vector.broadcast %316 : vector<16x1xf32> to vector<16x16xf32>
    %318 = arith.mulf %313, %317 : vector<16x16xf32>
    %319 = arith.truncf %318 : vector<16x16xf32> to vector<16x16xbf16>
    %cst_125 = arith.constant dense<0.000000e+00> : vector<16x32xf32>
    %320 = tpu.matmul %319, %304, %cst_125 {dimension_numbers = #tpu.dot_dimension_numbers<[1], [0], [0], [1], [0, 0, 1, 1], [], []>} : vector<16x16xbf16>, vector<16x32xbf16>, vector<16x32xf32> -> vector<16x32xf32>
    %321 = arith.truncf %320 : vector<16x32xf32> to vector<16x32xbf16>
    %322 = vector.extract_strided_slice %254 {offsets = [64, 0], sizes = [32, 128], strides = [1, 1]} : vector<128x128xbf16> to vector<32x128xbf16>
    %cst_126 = arith.constant dense<0.000000e+00> : vector<16x128xf32>
    %323 = tpu.matmul %321, %322, %cst_126 {dimension_numbers = #tpu.dot_dimension_numbers<[1], [0], [0], [1], [0, 0, 1, 1], [], []>} : vector<16x32xbf16>, vector<32x128xbf16>, vector<16x128xf32> -> vector<16x128xf32>
    %324 = arith.addf %301, %323 : vector<16x128xf32>
    %325 = vector.extract_strided_slice %252 {offsets = [0, 96], sizes = [16, 32], strides = [1, 1]} : vector<16x384xbf16> to vector<16x32xbf16>
    %326 = vector.extract_strided_slice %252 {offsets = [0, 224], sizes = [16, 32], strides = [1, 1]} : vector<16x384xbf16> to vector<16x32xbf16>
    %327 = vector.extract_strided_slice %252 {offsets = [0, 352], sizes = [16, 32], strides = [1, 1]} : vector<16x384xbf16> to vector<16x32xbf16>
    %cst_127 = arith.constant dense<0.000000e+00> : vector<16x16xf32>
    %328 = tpu.matmul %325, %326, %cst_127 {dimension_numbers = #tpu.dot_dimension_numbers<[1], [1], [0], [0], [0, 0, 1, 0], [], []>} : vector<16x32xbf16>, vector<16x32xbf16>, vector<16x16xf32> -> vector<16x16xf32>
    %cst_128 = arith.constant 0.176776692 : f32
    %329 = vector.broadcast %cst_128 : f32 to vector<16x16xf32>
    %330 = arith.mulf %328, %329 : vector<16x16xf32>
    %331 = arith.addf %330, %52 : vector<16x16xf32>
    %cst_129 = arith.constant dense<0xFF800000> : vector<16xf32>
    %332 = vector.multi_reduction <maximumf>, %331, %cst_129 [1] : vector<16x16xf32> to vector<16xf32>
    %333 = vector.shape_cast %332 : vector<16xf32> to vector<16x1xf32>
    %334 = vector.broadcast %333 : vector<16x1xf32> to vector<16x16xf32>
    %335 = arith.subf %331, %334 : vector<16x16xf32>
    %336 = math.exp %335 : vector<16x16xf32>
    %cst_130 = arith.constant dense<0.000000e+00> : vector<16xf32>
    %337 = vector.multi_reduction <add>, %336, %cst_130 [1] : vector<16x16xf32> to vector<16xf32>
    %338 = vector.shape_cast %337 : vector<16xf32> to vector<16x1xf32>
    %339 = tpu.reciprocal %338 {approx = true} : vector<16x1xf32> -> vector<16x1xf32>
    %340 = vector.broadcast %339 : vector<16x1xf32> to vector<16x16xf32>
    %341 = arith.mulf %336, %340 : vector<16x16xf32>
    %342 = arith.truncf %341 : vector<16x16xf32> to vector<16x16xbf16>
    %cst_131 = arith.constant dense<0.000000e+00> : vector<16x32xf32>
    %343 = tpu.matmul %342, %327, %cst_131 {dimension_numbers = #tpu.dot_dimension_numbers<[1], [0], [0], [1], [0, 0, 1, 1], [], []>} : vector<16x16xbf16>, vector<16x32xbf16>, vector<16x32xf32> -> vector<16x32xf32>
    %344 = arith.truncf %343 : vector<16x32xf32> to vector<16x32xbf16>
    %345 = vector.extract_strided_slice %254 {offsets = [96, 0], sizes = [32, 128], strides = [1, 1]} : vector<128x128xbf16> to vector<32x128xbf16>
    %cst_132 = arith.constant dense<0.000000e+00> : vector<16x128xf32>
    %346 = tpu.matmul %344, %345, %cst_132 {dimension_numbers = #tpu.dot_dimension_numbers<[1], [0], [0], [1], [0, 0, 1, 1], [], []>} : vector<16x32xbf16>, vector<32x128xbf16>, vector<16x128xf32> -> vector<16x128xf32>
    %347 = arith.addf %324, %346 : vector<16x128xf32>
    %c1_133 = arith.constant 1 : index
    %c0_134 = arith.constant 0 : index
    %c0_135 = arith.constant 0 : index
    %348 = vector.load %arg8[%c1_133, %c0_134, %c0_135] : memref<4x1x128xf32, #tpu.memory_space<vmem>>, vector<1x1x128xf32>
    %349 = vector.shape_cast %348 : vector<1x1x128xf32> to vector<1x128xf32>
    %350 = vector.broadcast %349 : vector<1x128xf32> to vector<16x128xf32>
    %351 = arith.addf %347, %350 : vector<16x128xf32>
    %352 = arith.addf %351, %243 : vector<16x128xf32>
    %c1_136 = arith.constant 1 : index
    %c0_137 = arith.constant 0 : index
    %c0_138 = arith.constant 0 : index
    %353 = vector.load %arg9[%c1_136, %c0_137, %c0_138] : memref<4x1x128xf32, #tpu.memory_space<vmem>>, vector<1x1x128xf32>
    %354 = vector.shape_cast %353 : vector<1x1x128xf32> to vector<1x128xf32>
    %c1_139 = arith.constant 1 : index
    %c0_140 = arith.constant 0 : index
    %c0_141 = arith.constant 0 : index
    %355 = vector.load %arg10[%c1_139, %c0_140, %c0_141] : memref<4x1x128xf32, #tpu.memory_space<vmem>>, vector<1x1x128xf32>
    %356 = vector.shape_cast %355 : vector<1x1x128xf32> to vector<1x128xf32>
    %cst_142 = arith.constant dense<0.000000e+00> : vector<16xf32>
    %357 = vector.multi_reduction <add>, %352, %cst_142 [1] : vector<16x128xf32> to vector<16xf32>
    %358 = vector.shape_cast %357 : vector<16xf32> to vector<16x1xf32>
    %cst_143 = arith.constant 1.280000e+02 : f32
    %359 = vector.broadcast %cst_143 : f32 to vector<16x1xf32>
    %360 = arith.divf %358, %359 : vector<16x1xf32>
    %361 = vector.broadcast %360 : vector<16x1xf32> to vector<16x128xf32>
    %362 = arith.subf %352, %361 : vector<16x128xf32>
    %363 = arith.mulf %362, %362 : vector<16x128xf32>
    %cst_144 = arith.constant dense<0.000000e+00> : vector<16xf32>
    %364 = vector.multi_reduction <add>, %363, %cst_144 [1] : vector<16x128xf32> to vector<16xf32>
    %365 = vector.shape_cast %364 : vector<16xf32> to vector<16x1xf32>
    %cst_145 = arith.constant 1.280000e+02 : f32
    %366 = vector.broadcast %cst_145 : f32 to vector<16x1xf32>
    %367 = arith.divf %365, %366 : vector<16x1xf32>
    %368 = vector.broadcast %360 : vector<16x1xf32> to vector<16x128xf32>
    %369 = arith.subf %352, %368 : vector<16x128xf32>
    %cst_146 = arith.constant 9.99999996E-13 : f32
    %370 = vector.broadcast %cst_146 : f32 to vector<16x1xf32>
    %371 = arith.addf %367, %370 : vector<16x1xf32>
    %372 = math.rsqrt %371 : vector<16x1xf32>
    %373 = vector.broadcast %372 : vector<16x1xf32> to vector<16x128xf32>
    %374 = arith.mulf %369, %373 : vector<16x128xf32>
    %375 = vector.broadcast %354 : vector<1x128xf32> to vector<16x128xf32>
    %376 = arith.mulf %374, %375 : vector<16x128xf32>
    %377 = vector.broadcast %356 : vector<1x128xf32> to vector<16x128xf32>
    %378 = arith.addf %376, %377 : vector<16x128xf32>
    %379 = arith.truncf %378 : vector<16x128xf32> to vector<16x128xbf16>
    %c1_147 = arith.constant 1 : index
    %c0_148 = arith.constant 0 : index
    %c0_149 = arith.constant 0 : index
    %380 = vector.load %arg11[%c1_147, %c0_148, %c0_149] : memref<4x128x256xbf16, #tpu.memory_space<vmem>>, vector<1x128x256xbf16>
    %381 = vector.shape_cast %380 : vector<1x128x256xbf16> to vector<128x256xbf16>
    %cst_150 = arith.constant dense<0.000000e+00> : vector<16x256xf32>
    %382 = tpu.matmul %379, %381, %cst_150 {dimension_numbers = #tpu.dot_dimension_numbers<[1], [0], [0], [1], [0, 0, 1, 1], [], []>} : vector<16x128xbf16>, vector<128x256xbf16>, vector<16x256xf32> -> vector<16x256xf32>
    %c1_151 = arith.constant 1 : index
    %c0_152 = arith.constant 0 : index
    %c0_153 = arith.constant 0 : index
    %383 = vector.load %arg12[%c1_151, %c0_152, %c0_153] : memref<4x1x256xf32, #tpu.memory_space<vmem>>, vector<1x1x256xf32>
    %384 = vector.shape_cast %383 : vector<1x1x256xf32> to vector<1x256xf32>
    %385 = vector.broadcast %384 : vector<1x256xf32> to vector<16x256xf32>
    %386 = arith.addf %382, %385 : vector<16x256xf32>
    %387 = arith.mulf %386, %386 : vector<16x256xf32>
    %388 = arith.mulf %386, %387 : vector<16x256xf32>
    %cst_154 = arith.constant 4.471500e-02 : f32
    %389 = vector.broadcast %cst_154 : f32 to vector<16x256xf32>
    %390 = arith.mulf %389, %388 : vector<16x256xf32>
    %391 = arith.addf %386, %390 : vector<16x256xf32>
    %cst_155 = arith.constant 0.797884583 : f32
    %392 = vector.broadcast %cst_155 : f32 to vector<16x256xf32>
    %393 = arith.mulf %392, %391 : vector<16x256xf32>
    %394 = math.tanh %393 : vector<16x256xf32>
    %cst_156 = arith.constant 1.000000e+00 : f32
    %395 = vector.broadcast %cst_156 : f32 to vector<16x256xf32>
    %396 = arith.addf %395, %394 : vector<16x256xf32>
    %cst_157 = arith.constant 5.000000e-01 : f32
    %397 = vector.broadcast %cst_157 : f32 to vector<16x256xf32>
    %398 = arith.mulf %397, %396 : vector<16x256xf32>
    %399 = arith.mulf %386, %398 : vector<16x256xf32>
    %400 = arith.truncf %399 : vector<16x256xf32> to vector<16x256xbf16>
    %c1_158 = arith.constant 1 : index
    %c0_159 = arith.constant 0 : index
    %c0_160 = arith.constant 0 : index
    %401 = vector.load %arg13[%c1_158, %c0_159, %c0_160] : memref<4x256x128xbf16, #tpu.memory_space<vmem>>, vector<1x256x128xbf16>
    %402 = vector.shape_cast %401 : vector<1x256x128xbf16> to vector<256x128xbf16>
    %cst_161 = arith.constant dense<0.000000e+00> : vector<16x128xf32>
    %403 = tpu.matmul %400, %402, %cst_161 {dimension_numbers = #tpu.dot_dimension_numbers<[1], [0], [0], [1], [0, 0, 1, 1], [], []>} : vector<16x256xbf16>, vector<256x128xbf16>, vector<16x128xf32> -> vector<16x128xf32>
    %c1_162 = arith.constant 1 : index
    %c0_163 = arith.constant 0 : index
    %c0_164 = arith.constant 0 : index
    %404 = vector.load %arg14[%c1_162, %c0_163, %c0_164] : memref<4x1x128xf32, #tpu.memory_space<vmem>>, vector<1x1x128xf32>
    %405 = vector.shape_cast %404 : vector<1x1x128xf32> to vector<1x128xf32>
    %406 = vector.broadcast %405 : vector<1x128xf32> to vector<16x128xf32>
    %407 = arith.addf %403, %406 : vector<16x128xf32>
    %408 = arith.addf %407, %378 : vector<16x128xf32>
    %c1_165 = arith.constant 1 : index
    %c0_166 = arith.constant 0 : index
    %c0_167 = arith.constant 0 : index
    %409 = vector.load %arg15[%c1_165, %c0_166, %c0_167] : memref<4x1x128xf32, #tpu.memory_space<vmem>>, vector<1x1x128xf32>
    %410 = vector.shape_cast %409 : vector<1x1x128xf32> to vector<1x128xf32>
    %c1_168 = arith.constant 1 : index
    %c0_169 = arith.constant 0 : index
    %c0_170 = arith.constant 0 : index
    %411 = vector.load %arg16[%c1_168, %c0_169, %c0_170] : memref<4x1x128xf32, #tpu.memory_space<vmem>>, vector<1x1x128xf32>
    %412 = vector.shape_cast %411 : vector<1x1x128xf32> to vector<1x128xf32>
    %cst_171 = arith.constant dense<0.000000e+00> : vector<16xf32>
    %413 = vector.multi_reduction <add>, %408, %cst_171 [1] : vector<16x128xf32> to vector<16xf32>
    %414 = vector.shape_cast %413 : vector<16xf32> to vector<16x1xf32>
    %cst_172 = arith.constant 1.280000e+02 : f32
    %415 = vector.broadcast %cst_172 : f32 to vector<16x1xf32>
    %416 = arith.divf %414, %415 : vector<16x1xf32>
    %417 = vector.broadcast %416 : vector<16x1xf32> to vector<16x128xf32>
    %418 = arith.subf %408, %417 : vector<16x128xf32>
    %419 = arith.mulf %418, %418 : vector<16x128xf32>
    %cst_173 = arith.constant dense<0.000000e+00> : vector<16xf32>
    %420 = vector.multi_reduction <add>, %419, %cst_173 [1] : vector<16x128xf32> to vector<16xf32>
    %421 = vector.shape_cast %420 : vector<16xf32> to vector<16x1xf32>
    %cst_174 = arith.constant 1.280000e+02 : f32
    %422 = vector.broadcast %cst_174 : f32 to vector<16x1xf32>
    %423 = arith.divf %421, %422 : vector<16x1xf32>
    %424 = vector.broadcast %416 : vector<16x1xf32> to vector<16x128xf32>
    %425 = arith.subf %408, %424 : vector<16x128xf32>
    %cst_175 = arith.constant 9.99999996E-13 : f32
    %426 = vector.broadcast %cst_175 : f32 to vector<16x1xf32>
    %427 = arith.addf %423, %426 : vector<16x1xf32>
    %428 = math.rsqrt %427 : vector<16x1xf32>
    %429 = vector.broadcast %428 : vector<16x1xf32> to vector<16x128xf32>
    %430 = arith.mulf %425, %429 : vector<16x128xf32>
    %431 = vector.broadcast %410 : vector<1x128xf32> to vector<16x128xf32>
    %432 = arith.mulf %430, %431 : vector<16x128xf32>
    %433 = vector.broadcast %412 : vector<1x128xf32> to vector<16x128xf32>
    %434 = arith.addf %432, %433 : vector<16x128xf32>
    %435 = arith.truncf %434 : vector<16x128xf32> to vector<16x128xbf16>
    %c2 = arith.constant 2 : index
    %c0_176 = arith.constant 0 : index
    %c0_177 = arith.constant 0 : index
    %436 = vector.load %arg5[%c2, %c0_176, %c0_177] : memref<4x128x384xbf16, #tpu.memory_space<vmem>>, vector<1x128x384xbf16>
    %437 = vector.shape_cast %436 : vector<1x128x384xbf16> to vector<128x384xbf16>
    %cst_178 = arith.constant dense<0.000000e+00> : vector<16x384xf32>
    %438 = tpu.matmul %435, %437, %cst_178 {dimension_numbers = #tpu.dot_dimension_numbers<[1], [0], [0], [1], [0, 0, 1, 1], [], []>} : vector<16x128xbf16>, vector<128x384xbf16>, vector<16x384xf32> -> vector<16x384xf32>
    %c2_179 = arith.constant 2 : index
    %c0_180 = arith.constant 0 : index
    %c0_181 = arith.constant 0 : index
    %439 = vector.load %arg6[%c2_179, %c0_180, %c0_181] : memref<4x1x384xf32, #tpu.memory_space<vmem>>, vector<1x1x384xf32>
    %440 = vector.shape_cast %439 : vector<1x1x384xf32> to vector<1x384xf32>
    %441 = vector.broadcast %440 : vector<1x384xf32> to vector<16x384xf32>
    %442 = arith.addf %438, %441 : vector<16x384xf32>
    %443 = arith.truncf %442 : vector<16x384xf32> to vector<16x384xbf16>
    %c2_182 = arith.constant 2 : index
    %c0_183 = arith.constant 0 : index
    %c0_184 = arith.constant 0 : index
    %444 = vector.load %arg7[%c2_182, %c0_183, %c0_184] : memref<4x128x128xbf16, #tpu.memory_space<vmem>>, vector<1x128x128xbf16>
    %445 = vector.shape_cast %444 : vector<1x128x128xbf16> to vector<128x128xbf16>
    %cst_185 = arith.constant 0.000000e+00 : f32
    %446 = vector.broadcast %cst_185 : f32 to vector<16x128xf32>
    %447 = vector.extract_strided_slice %443 {offsets = [0, 0], sizes = [16, 32], strides = [1, 1]} : vector<16x384xbf16> to vector<16x32xbf16>
    %448 = vector.extract_strided_slice %443 {offsets = [0, 128], sizes = [16, 32], strides = [1, 1]} : vector<16x384xbf16> to vector<16x32xbf16>
    %449 = vector.extract_strided_slice %443 {offsets = [0, 256], sizes = [16, 32], strides = [1, 1]} : vector<16x384xbf16> to vector<16x32xbf16>
    %cst_186 = arith.constant dense<0.000000e+00> : vector<16x16xf32>
    %450 = tpu.matmul %447, %448, %cst_186 {dimension_numbers = #tpu.dot_dimension_numbers<[1], [1], [0], [0], [0, 0, 1, 0], [], []>} : vector<16x32xbf16>, vector<16x32xbf16>, vector<16x16xf32> -> vector<16x16xf32>
    %cst_187 = arith.constant 0.176776692 : f32
    %451 = vector.broadcast %cst_187 : f32 to vector<16x16xf32>
    %452 = arith.mulf %450, %451 : vector<16x16xf32>
    %453 = arith.addf %452, %52 : vector<16x16xf32>
    %cst_188 = arith.constant dense<0xFF800000> : vector<16xf32>
    %454 = vector.multi_reduction <maximumf>, %453, %cst_188 [1] : vector<16x16xf32> to vector<16xf32>
    %455 = vector.shape_cast %454 : vector<16xf32> to vector<16x1xf32>
    %456 = vector.broadcast %455 : vector<16x1xf32> to vector<16x16xf32>
    %457 = arith.subf %453, %456 : vector<16x16xf32>
    %458 = math.exp %457 : vector<16x16xf32>
    %cst_189 = arith.constant dense<0.000000e+00> : vector<16xf32>
    %459 = vector.multi_reduction <add>, %458, %cst_189 [1] : vector<16x16xf32> to vector<16xf32>
    %460 = vector.shape_cast %459 : vector<16xf32> to vector<16x1xf32>
    %461 = tpu.reciprocal %460 {approx = true} : vector<16x1xf32> -> vector<16x1xf32>
    %462 = vector.broadcast %461 : vector<16x1xf32> to vector<16x16xf32>
    %463 = arith.mulf %458, %462 : vector<16x16xf32>
    %464 = arith.truncf %463 : vector<16x16xf32> to vector<16x16xbf16>
    %cst_190 = arith.constant dense<0.000000e+00> : vector<16x32xf32>
    %465 = tpu.matmul %464, %449, %cst_190 {dimension_numbers = #tpu.dot_dimension_numbers<[1], [0], [0], [1], [0, 0, 1, 1], [], []>} : vector<16x16xbf16>, vector<16x32xbf16>, vector<16x32xf32> -> vector<16x32xf32>
    %466 = arith.truncf %465 : vector<16x32xf32> to vector<16x32xbf16>
    %467 = vector.extract_strided_slice %445 {offsets = [0, 0], sizes = [32, 128], strides = [1, 1]} : vector<128x128xbf16> to vector<32x128xbf16>
    %cst_191 = arith.constant dense<0.000000e+00> : vector<16x128xf32>
    %468 = tpu.matmul %466, %467, %cst_191 {dimension_numbers = #tpu.dot_dimension_numbers<[1], [0], [0], [1], [0, 0, 1, 1], [], []>} : vector<16x32xbf16>, vector<32x128xbf16>, vector<16x128xf32> -> vector<16x128xf32>
    %469 = arith.addf %446, %468 : vector<16x128xf32>
    %470 = vector.extract_strided_slice %443 {offsets = [0, 32], sizes = [16, 32], strides = [1, 1]} : vector<16x384xbf16> to vector<16x32xbf16>
    %471 = vector.extract_strided_slice %443 {offsets = [0, 160], sizes = [16, 32], strides = [1, 1]} : vector<16x384xbf16> to vector<16x32xbf16>
    %472 = vector.extract_strided_slice %443 {offsets = [0, 288], sizes = [16, 32], strides = [1, 1]} : vector<16x384xbf16> to vector<16x32xbf16>
    %cst_192 = arith.constant dense<0.000000e+00> : vector<16x16xf32>
    %473 = tpu.matmul %470, %471, %cst_192 {dimension_numbers = #tpu.dot_dimension_numbers<[1], [1], [0], [0], [0, 0, 1, 0], [], []>} : vector<16x32xbf16>, vector<16x32xbf16>, vector<16x16xf32> -> vector<16x16xf32>
    %cst_193 = arith.constant 0.176776692 : f32
    %474 = vector.broadcast %cst_193 : f32 to vector<16x16xf32>
    %475 = arith.mulf %473, %474 : vector<16x16xf32>
    %476 = arith.addf %475, %52 : vector<16x16xf32>
    %cst_194 = arith.constant dense<0xFF800000> : vector<16xf32>
    %477 = vector.multi_reduction <maximumf>, %476, %cst_194 [1] : vector<16x16xf32> to vector<16xf32>
    %478 = vector.shape_cast %477 : vector<16xf32> to vector<16x1xf32>
    %479 = vector.broadcast %478 : vector<16x1xf32> to vector<16x16xf32>
    %480 = arith.subf %476, %479 : vector<16x16xf32>
    %481 = math.exp %480 : vector<16x16xf32>
    %cst_195 = arith.constant dense<0.000000e+00> : vector<16xf32>
    %482 = vector.multi_reduction <add>, %481, %cst_195 [1] : vector<16x16xf32> to vector<16xf32>
    %483 = vector.shape_cast %482 : vector<16xf32> to vector<16x1xf32>
    %484 = tpu.reciprocal %483 {approx = true} : vector<16x1xf32> -> vector<16x1xf32>
    %485 = vector.broadcast %484 : vector<16x1xf32> to vector<16x16xf32>
    %486 = arith.mulf %481, %485 : vector<16x16xf32>
    %487 = arith.truncf %486 : vector<16x16xf32> to vector<16x16xbf16>
    %cst_196 = arith.constant dense<0.000000e+00> : vector<16x32xf32>
    %488 = tpu.matmul %487, %472, %cst_196 {dimension_numbers = #tpu.dot_dimension_numbers<[1], [0], [0], [1], [0, 0, 1, 1], [], []>} : vector<16x16xbf16>, vector<16x32xbf16>, vector<16x32xf32> -> vector<16x32xf32>
    %489 = arith.truncf %488 : vector<16x32xf32> to vector<16x32xbf16>
    %490 = vector.extract_strided_slice %445 {offsets = [32, 0], sizes = [32, 128], strides = [1, 1]} : vector<128x128xbf16> to vector<32x128xbf16>
    %cst_197 = arith.constant dense<0.000000e+00> : vector<16x128xf32>
    %491 = tpu.matmul %489, %490, %cst_197 {dimension_numbers = #tpu.dot_dimension_numbers<[1], [0], [0], [1], [0, 0, 1, 1], [], []>} : vector<16x32xbf16>, vector<32x128xbf16>, vector<16x128xf32> -> vector<16x128xf32>
    %492 = arith.addf %469, %491 : vector<16x128xf32>
    %493 = vector.extract_strided_slice %443 {offsets = [0, 64], sizes = [16, 32], strides = [1, 1]} : vector<16x384xbf16> to vector<16x32xbf16>
    %494 = vector.extract_strided_slice %443 {offsets = [0, 192], sizes = [16, 32], strides = [1, 1]} : vector<16x384xbf16> to vector<16x32xbf16>
    %495 = vector.extract_strided_slice %443 {offsets = [0, 320], sizes = [16, 32], strides = [1, 1]} : vector<16x384xbf16> to vector<16x32xbf16>
    %cst_198 = arith.constant dense<0.000000e+00> : vector<16x16xf32>
    %496 = tpu.matmul %493, %494, %cst_198 {dimension_numbers = #tpu.dot_dimension_numbers<[1], [1], [0], [0], [0, 0, 1, 0], [], []>} : vector<16x32xbf16>, vector<16x32xbf16>, vector<16x16xf32> -> vector<16x16xf32>
    %cst_199 = arith.constant 0.176776692 : f32
    %497 = vector.broadcast %cst_199 : f32 to vector<16x16xf32>
    %498 = arith.mulf %496, %497 : vector<16x16xf32>
    %499 = arith.addf %498, %52 : vector<16x16xf32>
    %cst_200 = arith.constant dense<0xFF800000> : vector<16xf32>
    %500 = vector.multi_reduction <maximumf>, %499, %cst_200 [1] : vector<16x16xf32> to vector<16xf32>
    %501 = vector.shape_cast %500 : vector<16xf32> to vector<16x1xf32>
    %502 = vector.broadcast %501 : vector<16x1xf32> to vector<16x16xf32>
    %503 = arith.subf %499, %502 : vector<16x16xf32>
    %504 = math.exp %503 : vector<16x16xf32>
    %cst_201 = arith.constant dense<0.000000e+00> : vector<16xf32>
    %505 = vector.multi_reduction <add>, %504, %cst_201 [1] : vector<16x16xf32> to vector<16xf32>
    %506 = vector.shape_cast %505 : vector<16xf32> to vector<16x1xf32>
    %507 = tpu.reciprocal %506 {approx = true} : vector<16x1xf32> -> vector<16x1xf32>
    %508 = vector.broadcast %507 : vector<16x1xf32> to vector<16x16xf32>
    %509 = arith.mulf %504, %508 : vector<16x16xf32>
    %510 = arith.truncf %509 : vector<16x16xf32> to vector<16x16xbf16>
    %cst_202 = arith.constant dense<0.000000e+00> : vector<16x32xf32>
    %511 = tpu.matmul %510, %495, %cst_202 {dimension_numbers = #tpu.dot_dimension_numbers<[1], [0], [0], [1], [0, 0, 1, 1], [], []>} : vector<16x16xbf16>, vector<16x32xbf16>, vector<16x32xf32> -> vector<16x32xf32>
    %512 = arith.truncf %511 : vector<16x32xf32> to vector<16x32xbf16>
    %513 = vector.extract_strided_slice %445 {offsets = [64, 0], sizes = [32, 128], strides = [1, 1]} : vector<128x128xbf16> to vector<32x128xbf16>
    %cst_203 = arith.constant dense<0.000000e+00> : vector<16x128xf32>
    %514 = tpu.matmul %512, %513, %cst_203 {dimension_numbers = #tpu.dot_dimension_numbers<[1], [0], [0], [1], [0, 0, 1, 1], [], []>} : vector<16x32xbf16>, vector<32x128xbf16>, vector<16x128xf32> -> vector<16x128xf32>
    %515 = arith.addf %492, %514 : vector<16x128xf32>
    %516 = vector.extract_strided_slice %443 {offsets = [0, 96], sizes = [16, 32], strides = [1, 1]} : vector<16x384xbf16> to vector<16x32xbf16>
    %517 = vector.extract_strided_slice %443 {offsets = [0, 224], sizes = [16, 32], strides = [1, 1]} : vector<16x384xbf16> to vector<16x32xbf16>
    %518 = vector.extract_strided_slice %443 {offsets = [0, 352], sizes = [16, 32], strides = [1, 1]} : vector<16x384xbf16> to vector<16x32xbf16>
    %cst_204 = arith.constant dense<0.000000e+00> : vector<16x16xf32>
    %519 = tpu.matmul %516, %517, %cst_204 {dimension_numbers = #tpu.dot_dimension_numbers<[1], [1], [0], [0], [0, 0, 1, 0], [], []>} : vector<16x32xbf16>, vector<16x32xbf16>, vector<16x16xf32> -> vector<16x16xf32>
    %cst_205 = arith.constant 0.176776692 : f32
    %520 = vector.broadcast %cst_205 : f32 to vector<16x16xf32>
    %521 = arith.mulf %519, %520 : vector<16x16xf32>
    %522 = arith.addf %521, %52 : vector<16x16xf32>
    %cst_206 = arith.constant dense<0xFF800000> : vector<16xf32>
    %523 = vector.multi_reduction <maximumf>, %522, %cst_206 [1] : vector<16x16xf32> to vector<16xf32>
    %524 = vector.shape_cast %523 : vector<16xf32> to vector<16x1xf32>
    %525 = vector.broadcast %524 : vector<16x1xf32> to vector<16x16xf32>
    %526 = arith.subf %522, %525 : vector<16x16xf32>
    %527 = math.exp %526 : vector<16x16xf32>
    %cst_207 = arith.constant dense<0.000000e+00> : vector<16xf32>
    %528 = vector.multi_reduction <add>, %527, %cst_207 [1] : vector<16x16xf32> to vector<16xf32>
    %529 = vector.shape_cast %528 : vector<16xf32> to vector<16x1xf32>
    %530 = tpu.reciprocal %529 {approx = true} : vector<16x1xf32> -> vector<16x1xf32>
    %531 = vector.broadcast %530 : vector<16x1xf32> to vector<16x16xf32>
    %532 = arith.mulf %527, %531 : vector<16x16xf32>
    %533 = arith.truncf %532 : vector<16x16xf32> to vector<16x16xbf16>
    %cst_208 = arith.constant dense<0.000000e+00> : vector<16x32xf32>
    %534 = tpu.matmul %533, %518, %cst_208 {dimension_numbers = #tpu.dot_dimension_numbers<[1], [0], [0], [1], [0, 0, 1, 1], [], []>} : vector<16x16xbf16>, vector<16x32xbf16>, vector<16x32xf32> -> vector<16x32xf32>
    %535 = arith.truncf %534 : vector<16x32xf32> to vector<16x32xbf16>
    %536 = vector.extract_strided_slice %445 {offsets = [96, 0], sizes = [32, 128], strides = [1, 1]} : vector<128x128xbf16> to vector<32x128xbf16>
    %cst_209 = arith.constant dense<0.000000e+00> : vector<16x128xf32>
    %537 = tpu.matmul %535, %536, %cst_209 {dimension_numbers = #tpu.dot_dimension_numbers<[1], [0], [0], [1], [0, 0, 1, 1], [], []>} : vector<16x32xbf16>, vector<32x128xbf16>, vector<16x128xf32> -> vector<16x128xf32>
    %538 = arith.addf %515, %537 : vector<16x128xf32>
    %c2_210 = arith.constant 2 : index
    %c0_211 = arith.constant 0 : index
    %c0_212 = arith.constant 0 : index
    %539 = vector.load %arg8[%c2_210, %c0_211, %c0_212] : memref<4x1x128xf32, #tpu.memory_space<vmem>>, vector<1x1x128xf32>
    %540 = vector.shape_cast %539 : vector<1x1x128xf32> to vector<1x128xf32>
    %541 = vector.broadcast %540 : vector<1x128xf32> to vector<16x128xf32>
    %542 = arith.addf %538, %541 : vector<16x128xf32>
    %543 = arith.addf %542, %434 : vector<16x128xf32>
    %c2_213 = arith.constant 2 : index
    %c0_214 = arith.constant 0 : index
    %c0_215 = arith.constant 0 : index
    %544 = vector.load %arg9[%c2_213, %c0_214, %c0_215] : memref<4x1x128xf32, #tpu.memory_space<vmem>>, vector<1x1x128xf32>
    %545 = vector.shape_cast %544 : vector<1x1x128xf32> to vector<1x128xf32>
    %c2_216 = arith.constant 2 : index
    %c0_217 = arith.constant 0 : index
    %c0_218 = arith.constant 0 : index
    %546 = vector.load %arg10[%c2_216, %c0_217, %c0_218] : memref<4x1x128xf32, #tpu.memory_space<vmem>>, vector<1x1x128xf32>
    %547 = vector.shape_cast %546 : vector<1x1x128xf32> to vector<1x128xf32>
    %cst_219 = arith.constant dense<0.000000e+00> : vector<16xf32>
    %548 = vector.multi_reduction <add>, %543, %cst_219 [1] : vector<16x128xf32> to vector<16xf32>
    %549 = vector.shape_cast %548 : vector<16xf32> to vector<16x1xf32>
    %cst_220 = arith.constant 1.280000e+02 : f32
    %550 = vector.broadcast %cst_220 : f32 to vector<16x1xf32>
    %551 = arith.divf %549, %550 : vector<16x1xf32>
    %552 = vector.broadcast %551 : vector<16x1xf32> to vector<16x128xf32>
    %553 = arith.subf %543, %552 : vector<16x128xf32>
    %554 = arith.mulf %553, %553 : vector<16x128xf32>
    %cst_221 = arith.constant dense<0.000000e+00> : vector<16xf32>
    %555 = vector.multi_reduction <add>, %554, %cst_221 [1] : vector<16x128xf32> to vector<16xf32>
    %556 = vector.shape_cast %555 : vector<16xf32> to vector<16x1xf32>
    %cst_222 = arith.constant 1.280000e+02 : f32
    %557 = vector.broadcast %cst_222 : f32 to vector<16x1xf32>
    %558 = arith.divf %556, %557 : vector<16x1xf32>
    %559 = vector.broadcast %551 : vector<16x1xf32> to vector<16x128xf32>
    %560 = arith.subf %543, %559 : vector<16x128xf32>
    %cst_223 = arith.constant 9.99999996E-13 : f32
    %561 = vector.broadcast %cst_223 : f32 to vector<16x1xf32>
    %562 = arith.addf %558, %561 : vector<16x1xf32>
    %563 = math.rsqrt %562 : vector<16x1xf32>
    %564 = vector.broadcast %563 : vector<16x1xf32> to vector<16x128xf32>
    %565 = arith.mulf %560, %564 : vector<16x128xf32>
    %566 = vector.broadcast %545 : vector<1x128xf32> to vector<16x128xf32>
    %567 = arith.mulf %565, %566 : vector<16x128xf32>
    %568 = vector.broadcast %547 : vector<1x128xf32> to vector<16x128xf32>
    %569 = arith.addf %567, %568 : vector<16x128xf32>
    %570 = arith.truncf %569 : vector<16x128xf32> to vector<16x128xbf16>
    %c2_224 = arith.constant 2 : index
    %c0_225 = arith.constant 0 : index
    %c0_226 = arith.constant 0 : index
    %571 = vector.load %arg11[%c2_224, %c0_225, %c0_226] : memref<4x128x256xbf16, #tpu.memory_space<vmem>>, vector<1x128x256xbf16>
    %572 = vector.shape_cast %571 : vector<1x128x256xbf16> to vector<128x256xbf16>
    %cst_227 = arith.constant dense<0.000000e+00> : vector<16x256xf32>
    %573 = tpu.matmul %570, %572, %cst_227 {dimension_numbers = #tpu.dot_dimension_numbers<[1], [0], [0], [1], [0, 0, 1, 1], [], []>} : vector<16x128xbf16>, vector<128x256xbf16>, vector<16x256xf32> -> vector<16x256xf32>
    %c2_228 = arith.constant 2 : index
    %c0_229 = arith.constant 0 : index
    %c0_230 = arith.constant 0 : index
    %574 = vector.load %arg12[%c2_228, %c0_229, %c0_230] : memref<4x1x256xf32, #tpu.memory_space<vmem>>, vector<1x1x256xf32>
    %575 = vector.shape_cast %574 : vector<1x1x256xf32> to vector<1x256xf32>
    %576 = vector.broadcast %575 : vector<1x256xf32> to vector<16x256xf32>
    %577 = arith.addf %573, %576 : vector<16x256xf32>
    %578 = arith.mulf %577, %577 : vector<16x256xf32>
    %579 = arith.mulf %577, %578 : vector<16x256xf32>
    %cst_231 = arith.constant 4.471500e-02 : f32
    %580 = vector.broadcast %cst_231 : f32 to vector<16x256xf32>
    %581 = arith.mulf %580, %579 : vector<16x256xf32>
    %582 = arith.addf %577, %581 : vector<16x256xf32>
    %cst_232 = arith.constant 0.797884583 : f32
    %583 = vector.broadcast %cst_232 : f32 to vector<16x256xf32>
    %584 = arith.mulf %583, %582 : vector<16x256xf32>
    %585 = math.tanh %584 : vector<16x256xf32>
    %cst_233 = arith.constant 1.000000e+00 : f32
    %586 = vector.broadcast %cst_233 : f32 to vector<16x256xf32>
    %587 = arith.addf %586, %585 : vector<16x256xf32>
    %cst_234 = arith.constant 5.000000e-01 : f32
    %588 = vector.broadcast %cst_234 : f32 to vector<16x256xf32>
    %589 = arith.mulf %588, %587 : vector<16x256xf32>
    %590 = arith.mulf %577, %589 : vector<16x256xf32>
    %591 = arith.truncf %590 : vector<16x256xf32> to vector<16x256xbf16>
    %c2_235 = arith.constant 2 : index
    %c0_236 = arith.constant 0 : index
    %c0_237 = arith.constant 0 : index
    %592 = vector.load %arg13[%c2_235, %c0_236, %c0_237] : memref<4x256x128xbf16, #tpu.memory_space<vmem>>, vector<1x256x128xbf16>
    %593 = vector.shape_cast %592 : vector<1x256x128xbf16> to vector<256x128xbf16>
    %cst_238 = arith.constant dense<0.000000e+00> : vector<16x128xf32>
    %594 = tpu.matmul %591, %593, %cst_238 {dimension_numbers = #tpu.dot_dimension_numbers<[1], [0], [0], [1], [0, 0, 1, 1], [], []>} : vector<16x256xbf16>, vector<256x128xbf16>, vector<16x128xf32> -> vector<16x128xf32>
    %c2_239 = arith.constant 2 : index
    %c0_240 = arith.constant 0 : index
    %c0_241 = arith.constant 0 : index
    %595 = vector.load %arg14[%c2_239, %c0_240, %c0_241] : memref<4x1x128xf32, #tpu.memory_space<vmem>>, vector<1x1x128xf32>
    %596 = vector.shape_cast %595 : vector<1x1x128xf32> to vector<1x128xf32>
    %597 = vector.broadcast %596 : vector<1x128xf32> to vector<16x128xf32>
    %598 = arith.addf %594, %597 : vector<16x128xf32>
    %599 = arith.addf %598, %569 : vector<16x128xf32>
    %c2_242 = arith.constant 2 : index
    %c0_243 = arith.constant 0 : index
    %c0_244 = arith.constant 0 : index
    %600 = vector.load %arg15[%c2_242, %c0_243, %c0_244] : memref<4x1x128xf32, #tpu.memory_space<vmem>>, vector<1x1x128xf32>
    %601 = vector.shape_cast %600 : vector<1x1x128xf32> to vector<1x128xf32>
    %c2_245 = arith.constant 2 : index
    %c0_246 = arith.constant 0 : index
    %c0_247 = arith.constant 0 : index
    %602 = vector.load %arg16[%c2_245, %c0_246, %c0_247] : memref<4x1x128xf32, #tpu.memory_space<vmem>>, vector<1x1x128xf32>
    %603 = vector.shape_cast %602 : vector<1x1x128xf32> to vector<1x128xf32>
    %cst_248 = arith.constant dense<0.000000e+00> : vector<16xf32>
    %604 = vector.multi_reduction <add>, %599, %cst_248 [1] : vector<16x128xf32> to vector<16xf32>
    %605 = vector.shape_cast %604 : vector<16xf32> to vector<16x1xf32>
    %cst_249 = arith.constant 1.280000e+02 : f32
    %606 = vector.broadcast %cst_249 : f32 to vector<16x1xf32>
    %607 = arith.divf %605, %606 : vector<16x1xf32>
    %608 = vector.broadcast %607 : vector<16x1xf32> to vector<16x128xf32>
    %609 = arith.subf %599, %608 : vector<16x128xf32>
    %610 = arith.mulf %609, %609 : vector<16x128xf32>
    %cst_250 = arith.constant dense<0.000000e+00> : vector<16xf32>
    %611 = vector.multi_reduction <add>, %610, %cst_250 [1] : vector<16x128xf32> to vector<16xf32>
    %612 = vector.shape_cast %611 : vector<16xf32> to vector<16x1xf32>
    %cst_251 = arith.constant 1.280000e+02 : f32
    %613 = vector.broadcast %cst_251 : f32 to vector<16x1xf32>
    %614 = arith.divf %612, %613 : vector<16x1xf32>
    %615 = vector.broadcast %607 : vector<16x1xf32> to vector<16x128xf32>
    %616 = arith.subf %599, %615 : vector<16x128xf32>
    %cst_252 = arith.constant 9.99999996E-13 : f32
    %617 = vector.broadcast %cst_252 : f32 to vector<16x1xf32>
    %618 = arith.addf %614, %617 : vector<16x1xf32>
    %619 = math.rsqrt %618 : vector<16x1xf32>
    %620 = vector.broadcast %619 : vector<16x1xf32> to vector<16x128xf32>
    %621 = arith.mulf %616, %620 : vector<16x128xf32>
    %622 = vector.broadcast %601 : vector<1x128xf32> to vector<16x128xf32>
    %623 = arith.mulf %621, %622 : vector<16x128xf32>
    %624 = vector.broadcast %603 : vector<1x128xf32> to vector<16x128xf32>
    %625 = arith.addf %623, %624 : vector<16x128xf32>
    %626 = arith.truncf %625 : vector<16x128xf32> to vector<16x128xbf16>
    %c3 = arith.constant 3 : index
    %c0_253 = arith.constant 0 : index
    %c0_254 = arith.constant 0 : index
    %627 = vector.load %arg5[%c3, %c0_253, %c0_254] : memref<4x128x384xbf16, #tpu.memory_space<vmem>>, vector<1x128x384xbf16>
    %628 = vector.shape_cast %627 : vector<1x128x384xbf16> to vector<128x384xbf16>
    %cst_255 = arith.constant dense<0.000000e+00> : vector<16x384xf32>
    %629 = tpu.matmul %626, %628, %cst_255 {dimension_numbers = #tpu.dot_dimension_numbers<[1], [0], [0], [1], [0, 0, 1, 1], [], []>} : vector<16x128xbf16>, vector<128x384xbf16>, vector<16x384xf32> -> vector<16x384xf32>
    %c3_256 = arith.constant 3 : index
    %c0_257 = arith.constant 0 : index
    %c0_258 = arith.constant 0 : index
    %630 = vector.load %arg6[%c3_256, %c0_257, %c0_258] : memref<4x1x384xf32, #tpu.memory_space<vmem>>, vector<1x1x384xf32>
    %631 = vector.shape_cast %630 : vector<1x1x384xf32> to vector<1x384xf32>
    %632 = vector.broadcast %631 : vector<1x384xf32> to vector<16x384xf32>
    %633 = arith.addf %629, %632 : vector<16x384xf32>
    %634 = arith.truncf %633 : vector<16x384xf32> to vector<16x384xbf16>
    %c3_259 = arith.constant 3 : index
    %c0_260 = arith.constant 0 : index
    %c0_261 = arith.constant 0 : index
    %635 = vector.load %arg7[%c3_259, %c0_260, %c0_261] : memref<4x128x128xbf16, #tpu.memory_space<vmem>>, vector<1x128x128xbf16>
    %636 = vector.shape_cast %635 : vector<1x128x128xbf16> to vector<128x128xbf16>
    %cst_262 = arith.constant 0.000000e+00 : f32
    %637 = vector.broadcast %cst_262 : f32 to vector<16x128xf32>
    %638 = vector.extract_strided_slice %634 {offsets = [0, 0], sizes = [16, 32], strides = [1, 1]} : vector<16x384xbf16> to vector<16x32xbf16>
    %639 = vector.extract_strided_slice %634 {offsets = [0, 128], sizes = [16, 32], strides = [1, 1]} : vector<16x384xbf16> to vector<16x32xbf16>
    %640 = vector.extract_strided_slice %634 {offsets = [0, 256], sizes = [16, 32], strides = [1, 1]} : vector<16x384xbf16> to vector<16x32xbf16>
    %cst_263 = arith.constant dense<0.000000e+00> : vector<16x16xf32>
    %641 = tpu.matmul %638, %639, %cst_263 {dimension_numbers = #tpu.dot_dimension_numbers<[1], [1], [0], [0], [0, 0, 1, 0], [], []>} : vector<16x32xbf16>, vector<16x32xbf16>, vector<16x16xf32> -> vector<16x16xf32>
    %cst_264 = arith.constant 0.176776692 : f32
    %642 = vector.broadcast %cst_264 : f32 to vector<16x16xf32>
    %643 = arith.mulf %641, %642 : vector<16x16xf32>
    %644 = arith.addf %643, %52 : vector<16x16xf32>
    %cst_265 = arith.constant dense<0xFF800000> : vector<16xf32>
    %645 = vector.multi_reduction <maximumf>, %644, %cst_265 [1] : vector<16x16xf32> to vector<16xf32>
    %646 = vector.shape_cast %645 : vector<16xf32> to vector<16x1xf32>
    %647 = vector.broadcast %646 : vector<16x1xf32> to vector<16x16xf32>
    %648 = arith.subf %644, %647 : vector<16x16xf32>
    %649 = math.exp %648 : vector<16x16xf32>
    %cst_266 = arith.constant dense<0.000000e+00> : vector<16xf32>
    %650 = vector.multi_reduction <add>, %649, %cst_266 [1] : vector<16x16xf32> to vector<16xf32>
    %651 = vector.shape_cast %650 : vector<16xf32> to vector<16x1xf32>
    %652 = tpu.reciprocal %651 {approx = true} : vector<16x1xf32> -> vector<16x1xf32>
    %653 = vector.broadcast %652 : vector<16x1xf32> to vector<16x16xf32>
    %654 = arith.mulf %649, %653 : vector<16x16xf32>
    %655 = arith.truncf %654 : vector<16x16xf32> to vector<16x16xbf16>
    %cst_267 = arith.constant dense<0.000000e+00> : vector<16x32xf32>
    %656 = tpu.matmul %655, %640, %cst_267 {dimension_numbers = #tpu.dot_dimension_numbers<[1], [0], [0], [1], [0, 0, 1, 1], [], []>} : vector<16x16xbf16>, vector<16x32xbf16>, vector<16x32xf32> -> vector<16x32xf32>
    %657 = arith.truncf %656 : vector<16x32xf32> to vector<16x32xbf16>
    %658 = vector.extract_strided_slice %636 {offsets = [0, 0], sizes = [32, 128], strides = [1, 1]} : vector<128x128xbf16> to vector<32x128xbf16>
    %cst_268 = arith.constant dense<0.000000e+00> : vector<16x128xf32>
    %659 = tpu.matmul %657, %658, %cst_268 {dimension_numbers = #tpu.dot_dimension_numbers<[1], [0], [0], [1], [0, 0, 1, 1], [], []>} : vector<16x32xbf16>, vector<32x128xbf16>, vector<16x128xf32> -> vector<16x128xf32>
    %660 = arith.addf %637, %659 : vector<16x128xf32>
    %661 = vector.extract_strided_slice %634 {offsets = [0, 32], sizes = [16, 32], strides = [1, 1]} : vector<16x384xbf16> to vector<16x32xbf16>
    %662 = vector.extract_strided_slice %634 {offsets = [0, 160], sizes = [16, 32], strides = [1, 1]} : vector<16x384xbf16> to vector<16x32xbf16>
    %663 = vector.extract_strided_slice %634 {offsets = [0, 288], sizes = [16, 32], strides = [1, 1]} : vector<16x384xbf16> to vector<16x32xbf16>
    %cst_269 = arith.constant dense<0.000000e+00> : vector<16x16xf32>
    %664 = tpu.matmul %661, %662, %cst_269 {dimension_numbers = #tpu.dot_dimension_numbers<[1], [1], [0], [0], [0, 0, 1, 0], [], []>} : vector<16x32xbf16>, vector<16x32xbf16>, vector<16x16xf32> -> vector<16x16xf32>
    %cst_270 = arith.constant 0.176776692 : f32
    %665 = vector.broadcast %cst_270 : f32 to vector<16x16xf32>
    %666 = arith.mulf %664, %665 : vector<16x16xf32>
    %667 = arith.addf %666, %52 : vector<16x16xf32>
    %cst_271 = arith.constant dense<0xFF800000> : vector<16xf32>
    %668 = vector.multi_reduction <maximumf>, %667, %cst_271 [1] : vector<16x16xf32> to vector<16xf32>
    %669 = vector.shape_cast %668 : vector<16xf32> to vector<16x1xf32>
    %670 = vector.broadcast %669 : vector<16x1xf32> to vector<16x16xf32>
    %671 = arith.subf %667, %670 : vector<16x16xf32>
    %672 = math.exp %671 : vector<16x16xf32>
    %cst_272 = arith.constant dense<0.000000e+00> : vector<16xf32>
    %673 = vector.multi_reduction <add>, %672, %cst_272 [1] : vector<16x16xf32> to vector<16xf32>
    %674 = vector.shape_cast %673 : vector<16xf32> to vector<16x1xf32>
    %675 = tpu.reciprocal %674 {approx = true} : vector<16x1xf32> -> vector<16x1xf32>
    %676 = vector.broadcast %675 : vector<16x1xf32> to vector<16x16xf32>
    %677 = arith.mulf %672, %676 : vector<16x16xf32>
    %678 = arith.truncf %677 : vector<16x16xf32> to vector<16x16xbf16>
    %cst_273 = arith.constant dense<0.000000e+00> : vector<16x32xf32>
    %679 = tpu.matmul %678, %663, %cst_273 {dimension_numbers = #tpu.dot_dimension_numbers<[1], [0], [0], [1], [0, 0, 1, 1], [], []>} : vector<16x16xbf16>, vector<16x32xbf16>, vector<16x32xf32> -> vector<16x32xf32>
    %680 = arith.truncf %679 : vector<16x32xf32> to vector<16x32xbf16>
    %681 = vector.extract_strided_slice %636 {offsets = [32, 0], sizes = [32, 128], strides = [1, 1]} : vector<128x128xbf16> to vector<32x128xbf16>
    %cst_274 = arith.constant dense<0.000000e+00> : vector<16x128xf32>
    %682 = tpu.matmul %680, %681, %cst_274 {dimension_numbers = #tpu.dot_dimension_numbers<[1], [0], [0], [1], [0, 0, 1, 1], [], []>} : vector<16x32xbf16>, vector<32x128xbf16>, vector<16x128xf32> -> vector<16x128xf32>
    %683 = arith.addf %660, %682 : vector<16x128xf32>
    %684 = vector.extract_strided_slice %634 {offsets = [0, 64], sizes = [16, 32], strides = [1, 1]} : vector<16x384xbf16> to vector<16x32xbf16>
    %685 = vector.extract_strided_slice %634 {offsets = [0, 192], sizes = [16, 32], strides = [1, 1]} : vector<16x384xbf16> to vector<16x32xbf16>
    %686 = vector.extract_strided_slice %634 {offsets = [0, 320], sizes = [16, 32], strides = [1, 1]} : vector<16x384xbf16> to vector<16x32xbf16>
    %cst_275 = arith.constant dense<0.000000e+00> : vector<16x16xf32>
    %687 = tpu.matmul %684, %685, %cst_275 {dimension_numbers = #tpu.dot_dimension_numbers<[1], [1], [0], [0], [0, 0, 1, 0], [], []>} : vector<16x32xbf16>, vector<16x32xbf16>, vector<16x16xf32> -> vector<16x16xf32>
    %cst_276 = arith.constant 0.176776692 : f32
    %688 = vector.broadcast %cst_276 : f32 to vector<16x16xf32>
    %689 = arith.mulf %687, %688 : vector<16x16xf32>
    %690 = arith.addf %689, %52 : vector<16x16xf32>
    %cst_277 = arith.constant dense<0xFF800000> : vector<16xf32>
    %691 = vector.multi_reduction <maximumf>, %690, %cst_277 [1] : vector<16x16xf32> to vector<16xf32>
    %692 = vector.shape_cast %691 : vector<16xf32> to vector<16x1xf32>
    %693 = vector.broadcast %692 : vector<16x1xf32> to vector<16x16xf32>
    %694 = arith.subf %690, %693 : vector<16x16xf32>
    %695 = math.exp %694 : vector<16x16xf32>
    %cst_278 = arith.constant dense<0.000000e+00> : vector<16xf32>
    %696 = vector.multi_reduction <add>, %695, %cst_278 [1] : vector<16x16xf32> to vector<16xf32>
    %697 = vector.shape_cast %696 : vector<16xf32> to vector<16x1xf32>
    %698 = tpu.reciprocal %697 {approx = true} : vector<16x1xf32> -> vector<16x1xf32>
    %699 = vector.broadcast %698 : vector<16x1xf32> to vector<16x16xf32>
    %700 = arith.mulf %695, %699 : vector<16x16xf32>
    %701 = arith.truncf %700 : vector<16x16xf32> to vector<16x16xbf16>
    %cst_279 = arith.constant dense<0.000000e+00> : vector<16x32xf32>
    %702 = tpu.matmul %701, %686, %cst_279 {dimension_numbers = #tpu.dot_dimension_numbers<[1], [0], [0], [1], [0, 0, 1, 1], [], []>} : vector<16x16xbf16>, vector<16x32xbf16>, vector<16x32xf32> -> vector<16x32xf32>
    %703 = arith.truncf %702 : vector<16x32xf32> to vector<16x32xbf16>
    %704 = vector.extract_strided_slice %636 {offsets = [64, 0], sizes = [32, 128], strides = [1, 1]} : vector<128x128xbf16> to vector<32x128xbf16>
    %cst_280 = arith.constant dense<0.000000e+00> : vector<16x128xf32>
    %705 = tpu.matmul %703, %704, %cst_280 {dimension_numbers = #tpu.dot_dimension_numbers<[1], [0], [0], [1], [0, 0, 1, 1], [], []>} : vector<16x32xbf16>, vector<32x128xbf16>, vector<16x128xf32> -> vector<16x128xf32>
    %706 = arith.addf %683, %705 : vector<16x128xf32>
    %707 = vector.extract_strided_slice %634 {offsets = [0, 96], sizes = [16, 32], strides = [1, 1]} : vector<16x384xbf16> to vector<16x32xbf16>
    %708 = vector.extract_strided_slice %634 {offsets = [0, 224], sizes = [16, 32], strides = [1, 1]} : vector<16x384xbf16> to vector<16x32xbf16>
    %709 = vector.extract_strided_slice %634 {offsets = [0, 352], sizes = [16, 32], strides = [1, 1]} : vector<16x384xbf16> to vector<16x32xbf16>
    %cst_281 = arith.constant dense<0.000000e+00> : vector<16x16xf32>
    %710 = tpu.matmul %707, %708, %cst_281 {dimension_numbers = #tpu.dot_dimension_numbers<[1], [1], [0], [0], [0, 0, 1, 0], [], []>} : vector<16x32xbf16>, vector<16x32xbf16>, vector<16x16xf32> -> vector<16x16xf32>
    %cst_282 = arith.constant 0.176776692 : f32
    %711 = vector.broadcast %cst_282 : f32 to vector<16x16xf32>
    %712 = arith.mulf %710, %711 : vector<16x16xf32>
    %713 = arith.addf %712, %52 : vector<16x16xf32>
    %cst_283 = arith.constant dense<0xFF800000> : vector<16xf32>
    %714 = vector.multi_reduction <maximumf>, %713, %cst_283 [1] : vector<16x16xf32> to vector<16xf32>
    %715 = vector.shape_cast %714 : vector<16xf32> to vector<16x1xf32>
    %716 = vector.broadcast %715 : vector<16x1xf32> to vector<16x16xf32>
    %717 = arith.subf %713, %716 : vector<16x16xf32>
    %718 = math.exp %717 : vector<16x16xf32>
    %cst_284 = arith.constant dense<0.000000e+00> : vector<16xf32>
    %719 = vector.multi_reduction <add>, %718, %cst_284 [1] : vector<16x16xf32> to vector<16xf32>
    %720 = vector.shape_cast %719 : vector<16xf32> to vector<16x1xf32>
    %721 = tpu.reciprocal %720 {approx = true} : vector<16x1xf32> -> vector<16x1xf32>
    %722 = vector.broadcast %721 : vector<16x1xf32> to vector<16x16xf32>
    %723 = arith.mulf %718, %722 : vector<16x16xf32>
    %724 = arith.truncf %723 : vector<16x16xf32> to vector<16x16xbf16>
    %cst_285 = arith.constant dense<0.000000e+00> : vector<16x32xf32>
    %725 = tpu.matmul %724, %709, %cst_285 {dimension_numbers = #tpu.dot_dimension_numbers<[1], [0], [0], [1], [0, 0, 1, 1], [], []>} : vector<16x16xbf16>, vector<16x32xbf16>, vector<16x32xf32> -> vector<16x32xf32>
    %726 = arith.truncf %725 : vector<16x32xf32> to vector<16x32xbf16>
    %727 = vector.extract_strided_slice %636 {offsets = [96, 0], sizes = [32, 128], strides = [1, 1]} : vector<128x128xbf16> to vector<32x128xbf16>
    %cst_286 = arith.constant dense<0.000000e+00> : vector<16x128xf32>
    %728 = tpu.matmul %726, %727, %cst_286 {dimension_numbers = #tpu.dot_dimension_numbers<[1], [0], [0], [1], [0, 0, 1, 1], [], []>} : vector<16x32xbf16>, vector<32x128xbf16>, vector<16x128xf32> -> vector<16x128xf32>
    %729 = arith.addf %706, %728 : vector<16x128xf32>
    %c3_287 = arith.constant 3 : index
    %c0_288 = arith.constant 0 : index
    %c0_289 = arith.constant 0 : index
    %730 = vector.load %arg8[%c3_287, %c0_288, %c0_289] : memref<4x1x128xf32, #tpu.memory_space<vmem>>, vector<1x1x128xf32>
    %731 = vector.shape_cast %730 : vector<1x1x128xf32> to vector<1x128xf32>
    %732 = vector.broadcast %731 : vector<1x128xf32> to vector<16x128xf32>
    %733 = arith.addf %729, %732 : vector<16x128xf32>
    %734 = arith.addf %733, %625 : vector<16x128xf32>
    %c3_290 = arith.constant 3 : index
    %c0_291 = arith.constant 0 : index
    %c0_292 = arith.constant 0 : index
    %735 = vector.load %arg9[%c3_290, %c0_291, %c0_292] : memref<4x1x128xf32, #tpu.memory_space<vmem>>, vector<1x1x128xf32>
    %736 = vector.shape_cast %735 : vector<1x1x128xf32> to vector<1x128xf32>
    %c3_293 = arith.constant 3 : index
    %c0_294 = arith.constant 0 : index
    %c0_295 = arith.constant 0 : index
    %737 = vector.load %arg10[%c3_293, %c0_294, %c0_295] : memref<4x1x128xf32, #tpu.memory_space<vmem>>, vector<1x1x128xf32>
    %738 = vector.shape_cast %737 : vector<1x1x128xf32> to vector<1x128xf32>
    %cst_296 = arith.constant dense<0.000000e+00> : vector<16xf32>
    %739 = vector.multi_reduction <add>, %734, %cst_296 [1] : vector<16x128xf32> to vector<16xf32>
    %740 = vector.shape_cast %739 : vector<16xf32> to vector<16x1xf32>
    %cst_297 = arith.constant 1.280000e+02 : f32
    %741 = vector.broadcast %cst_297 : f32 to vector<16x1xf32>
    %742 = arith.divf %740, %741 : vector<16x1xf32>
    %743 = vector.broadcast %742 : vector<16x1xf32> to vector<16x128xf32>
    %744 = arith.subf %734, %743 : vector<16x128xf32>
    %745 = arith.mulf %744, %744 : vector<16x128xf32>
    %cst_298 = arith.constant dense<0.000000e+00> : vector<16xf32>
    %746 = vector.multi_reduction <add>, %745, %cst_298 [1] : vector<16x128xf32> to vector<16xf32>
    %747 = vector.shape_cast %746 : vector<16xf32> to vector<16x1xf32>
    %cst_299 = arith.constant 1.280000e+02 : f32
    %748 = vector.broadcast %cst_299 : f32 to vector<16x1xf32>
    %749 = arith.divf %747, %748 : vector<16x1xf32>
    %750 = vector.broadcast %742 : vector<16x1xf32> to vector<16x128xf32>
    %751 = arith.subf %734, %750 : vector<16x128xf32>
    %cst_300 = arith.constant 9.99999996E-13 : f32
    %752 = vector.broadcast %cst_300 : f32 to vector<16x1xf32>
    %753 = arith.addf %749, %752 : vector<16x1xf32>
    %754 = math.rsqrt %753 : vector<16x1xf32>
    %755 = vector.broadcast %754 : vector<16x1xf32> to vector<16x128xf32>
    %756 = arith.mulf %751, %755 : vector<16x128xf32>
    %757 = vector.broadcast %736 : vector<1x128xf32> to vector<16x128xf32>
    %758 = arith.mulf %756, %757 : vector<16x128xf32>
    %759 = vector.broadcast %738 : vector<1x128xf32> to vector<16x128xf32>
    %760 = arith.addf %758, %759 : vector<16x128xf32>
    %761 = arith.truncf %760 : vector<16x128xf32> to vector<16x128xbf16>
    %c3_301 = arith.constant 3 : index
    %c0_302 = arith.constant 0 : index
    %c0_303 = arith.constant 0 : index
    %762 = vector.load %arg11[%c3_301, %c0_302, %c0_303] : memref<4x128x256xbf16, #tpu.memory_space<vmem>>, vector<1x128x256xbf16>
    %763 = vector.shape_cast %762 : vector<1x128x256xbf16> to vector<128x256xbf16>
    %cst_304 = arith.constant dense<0.000000e+00> : vector<16x256xf32>
    %764 = tpu.matmul %761, %763, %cst_304 {dimension_numbers = #tpu.dot_dimension_numbers<[1], [0], [0], [1], [0, 0, 1, 1], [], []>} : vector<16x128xbf16>, vector<128x256xbf16>, vector<16x256xf32> -> vector<16x256xf32>
    %c3_305 = arith.constant 3 : index
    %c0_306 = arith.constant 0 : index
    %c0_307 = arith.constant 0 : index
    %765 = vector.load %arg12[%c3_305, %c0_306, %c0_307] : memref<4x1x256xf32, #tpu.memory_space<vmem>>, vector<1x1x256xf32>
    %766 = vector.shape_cast %765 : vector<1x1x256xf32> to vector<1x256xf32>
    %767 = vector.broadcast %766 : vector<1x256xf32> to vector<16x256xf32>
    %768 = arith.addf %764, %767 : vector<16x256xf32>
    %769 = arith.mulf %768, %768 : vector<16x256xf32>
    %770 = arith.mulf %768, %769 : vector<16x256xf32>
    %cst_308 = arith.constant 4.471500e-02 : f32
    %771 = vector.broadcast %cst_308 : f32 to vector<16x256xf32>
    %772 = arith.mulf %771, %770 : vector<16x256xf32>
    %773 = arith.addf %768, %772 : vector<16x256xf32>
    %cst_309 = arith.constant 0.797884583 : f32
    %774 = vector.broadcast %cst_309 : f32 to vector<16x256xf32>
    %775 = arith.mulf %774, %773 : vector<16x256xf32>
    %776 = math.tanh %775 : vector<16x256xf32>
    %cst_310 = arith.constant 1.000000e+00 : f32
    %777 = vector.broadcast %cst_310 : f32 to vector<16x256xf32>
    %778 = arith.addf %777, %776 : vector<16x256xf32>
    %cst_311 = arith.constant 5.000000e-01 : f32
    %779 = vector.broadcast %cst_311 : f32 to vector<16x256xf32>
    %780 = arith.mulf %779, %778 : vector<16x256xf32>
    %781 = arith.mulf %768, %780 : vector<16x256xf32>
    %782 = arith.truncf %781 : vector<16x256xf32> to vector<16x256xbf16>
    %c3_312 = arith.constant 3 : index
    %c0_313 = arith.constant 0 : index
    %c0_314 = arith.constant 0 : index
    %783 = vector.load %arg13[%c3_312, %c0_313, %c0_314] : memref<4x256x128xbf16, #tpu.memory_space<vmem>>, vector<1x256x128xbf16>
    %784 = vector.shape_cast %783 : vector<1x256x128xbf16> to vector<256x128xbf16>
    %cst_315 = arith.constant dense<0.000000e+00> : vector<16x128xf32>
    %785 = tpu.matmul %782, %784, %cst_315 {dimension_numbers = #tpu.dot_dimension_numbers<[1], [0], [0], [1], [0, 0, 1, 1], [], []>} : vector<16x256xbf16>, vector<256x128xbf16>, vector<16x128xf32> -> vector<16x128xf32>
    %c3_316 = arith.constant 3 : index
    %c0_317 = arith.constant 0 : index
    %c0_318 = arith.constant 0 : index
    %786 = vector.load %arg14[%c3_316, %c0_317, %c0_318] : memref<4x1x128xf32, #tpu.memory_space<vmem>>, vector<1x1x128xf32>
    %787 = vector.shape_cast %786 : vector<1x1x128xf32> to vector<1x128xf32>
    %788 = vector.broadcast %787 : vector<1x128xf32> to vector<16x128xf32>
    %789 = arith.addf %785, %788 : vector<16x128xf32>
    %790 = arith.addf %789, %760 : vector<16x128xf32>
    %c3_319 = arith.constant 3 : index
    %c0_320 = arith.constant 0 : index
    %c0_321 = arith.constant 0 : index
    %791 = vector.load %arg15[%c3_319, %c0_320, %c0_321] : memref<4x1x128xf32, #tpu.memory_space<vmem>>, vector<1x1x128xf32>
    %792 = vector.shape_cast %791 : vector<1x1x128xf32> to vector<1x128xf32>
    %c3_322 = arith.constant 3 : index
    %c0_323 = arith.constant 0 : index
    %c0_324 = arith.constant 0 : index
    %793 = vector.load %arg16[%c3_322, %c0_323, %c0_324] : memref<4x1x128xf32, #tpu.memory_space<vmem>>, vector<1x1x128xf32>
    %794 = vector.shape_cast %793 : vector<1x1x128xf32> to vector<1x128xf32>
    %cst_325 = arith.constant dense<0.000000e+00> : vector<16xf32>
    %795 = vector.multi_reduction <add>, %790, %cst_325 [1] : vector<16x128xf32> to vector<16xf32>
    %796 = vector.shape_cast %795 : vector<16xf32> to vector<16x1xf32>
    %cst_326 = arith.constant 1.280000e+02 : f32
    %797 = vector.broadcast %cst_326 : f32 to vector<16x1xf32>
    %798 = arith.divf %796, %797 : vector<16x1xf32>
    %799 = vector.broadcast %798 : vector<16x1xf32> to vector<16x128xf32>
    %800 = arith.subf %790, %799 : vector<16x128xf32>
    %801 = arith.mulf %800, %800 : vector<16x128xf32>
    %cst_327 = arith.constant dense<0.000000e+00> : vector<16xf32>
    %802 = vector.multi_reduction <add>, %801, %cst_327 [1] : vector<16x128xf32> to vector<16xf32>
    %803 = vector.shape_cast %802 : vector<16xf32> to vector<16x1xf32>
    %cst_328 = arith.constant 1.280000e+02 : f32
    %804 = vector.broadcast %cst_328 : f32 to vector<16x1xf32>
    %805 = arith.divf %803, %804 : vector<16x1xf32>
    %806 = vector.broadcast %798 : vector<16x1xf32> to vector<16x128xf32>
    %807 = arith.subf %790, %806 : vector<16x128xf32>
    %cst_329 = arith.constant 9.99999996E-13 : f32
    %808 = vector.broadcast %cst_329 : f32 to vector<16x1xf32>
    %809 = arith.addf %805, %808 : vector<16x1xf32>
    %810 = math.rsqrt %809 : vector<16x1xf32>
    %811 = vector.broadcast %810 : vector<16x1xf32> to vector<16x128xf32>
    %812 = arith.mulf %807, %811 : vector<16x128xf32>
    %813 = vector.broadcast %792 : vector<1x128xf32> to vector<16x128xf32>
    %814 = arith.mulf %812, %813 : vector<16x128xf32>
    %815 = vector.broadcast %794 : vector<1x128xf32> to vector<16x128xf32>
    %816 = arith.addf %814, %815 : vector<16x128xf32>
    %817 = tpu.iota {dimensions = array<i32: 0>} : vector<8x16xi32>
    %818 = arith.sitofp %817 : vector<8x16xi32> to vector<8x16xf32>
    %819 = tpu.iota {dimensions = array<i32: 1>} : vector<8x16xi32>
    %820 = arith.sitofp %819 : vector<8x16xi32> to vector<8x16xf32>
    %cst_330 = arith.constant 5.000000e-01 : f32
    %821 = vector.broadcast %cst_330 : f32 to vector<8x16xf32>
    %822 = arith.addf %820, %821 : vector<8x16xf32>
    %cst_331 = arith.constant 1.250000e-01 : f32
    %823 = vector.broadcast %cst_331 : f32 to vector<8x16xf32>
    %824 = arith.mulf %822, %823 : vector<8x16xf32>
    %825 = math.floor %824 : vector<8x16xf32>
    %826 = arith.cmpf oeq, %818, %825 : vector<8x16xf32>
    %cst_332 = arith.constant 1.250000e-01 : f32
    %cst_333 = arith.constant 0.000000e+00 : f32
    %827 = vector.broadcast %cst_332 : f32 to vector<8x16xf32>
    %828 = vector.broadcast %cst_333 : f32 to vector<8x16xf32>
    %829 = arith.select %826, %827, %828 : vector<8x16xi1>, vector<8x16xf32>
    %830 = arith.truncf %829 : vector<8x16xf32> to vector<8x16xbf16>
    %831 = arith.truncf %816 : vector<16x128xf32> to vector<16x128xbf16>
    %cst_334 = arith.constant dense<0.000000e+00> : vector<8x128xf32>
    %832 = tpu.matmul %830, %831, %cst_334 {dimension_numbers = #tpu.dot_dimension_numbers<[1], [0], [0], [1], [0, 0, 1, 1], [], []>} : vector<8x16xbf16>, vector<16x128xbf16>, vector<8x128xf32> -> vector<8x128xf32>
    %833 = arith.truncf %832 : vector<8x128xf32> to vector<8x128xbf16>
    %c0_335 = arith.constant 0 : index
    %c0_336 = arith.constant 0 : index
    %834 = vector.load %arg17[%c0_335, %c0_336] : memref<128x128xbf16, #tpu.memory_space<vmem>>, vector<128x128xbf16>
    %cst_337 = arith.constant dense<0.000000e+00> : vector<8x128xf32>
    %835 = tpu.matmul %833, %834, %cst_337 {dimension_numbers = #tpu.dot_dimension_numbers<[1], [0], [0], [1], [0, 0, 1, 1], [], []>} : vector<8x128xbf16>, vector<128x128xbf16>, vector<8x128xf32> -> vector<8x128xf32>
    %c0_338 = arith.constant 0 : index
    %c0_339 = arith.constant 0 : index
    %836 = vector.load %arg18[%c0_338, %c0_339] : memref<1x128xf32, #tpu.memory_space<vmem>>, vector<1x128xf32>
    %837 = vector.broadcast %836 : vector<1x128xf32> to vector<8x128xf32>
    %838 = arith.addf %835, %837 : vector<8x128xf32>
    %c0_340 = arith.constant 0 : index
    %c0_341 = arith.constant 0 : index
    %c0_342 = arith.constant 0 : index
    %839 = vector.load %arg19[%c0_340, %c0_341, %c0_342] : memref<1x8x128xf32, #tpu.memory_space<vmem>>, vector<1x8x128xf32>
    %840 = vector.shape_cast %839 : vector<1x8x128xf32> to vector<8x128xf32>
    %841 = vector.shape_cast %838 : vector<8x128xf32> to vector<1x8x128xf32>
    tpu.vector_store %arg19[%c0_340, %c0_341, %c0_342], %841 {strides = array<i32>} : memref<1x8x128xf32, #tpu.memory_space<vmem>>, vector<1x8x128xf32>,
    return
  }
  func.func @transform_0(%arg0: i32) -> (i32, i32, i32) {
    %c0_i32 = arith.constant 0 : i32
    %c0_i32_0 = arith.constant 0 : i32
    %c0_i32_1 = arith.constant 0 : i32
    return %arg0, %c0_i32, %c0_i32_0 : i32, i32, i32
  }
  func.func @transform_1(%arg0: i32) -> (i32, i32, i32) {
    %c0_i32 = arith.constant 0 : i32
    %c0_i32_0 = arith.constant 0 : i32
    %c0_i32_1 = arith.constant 0 : i32
    return %arg0, %c0_i32, %c0_i32_0 : i32, i32, i32
  }
  func.func @transform_2(%arg0: i32) -> (i32, i32) {
    %c0_i32 = arith.constant 0 : i32
    %c0_i32_0 = arith.constant 0 : i32
    %c0_i32_1 = arith.constant 0 : i32
    return %c0_i32, %c0_i32_0 : i32, i32
  }
  func.func @transform_3(%arg0: i32) -> (i32, i32) {
    %c0_i32 = arith.constant 0 : i32
    %c0_i32_0 = arith.constant 0 : i32
    %c0_i32_1 = arith.constant 0 : i32
    return %c0_i32, %c0_i32_0 : i32, i32
  }
  func.func @transform_4(%arg0: i32) -> (i32, i32, i32) {
    %c0_i32 = arith.constant 0 : i32
    %c0_i32_0 = arith.constant 0 : i32
    %c0_i32_1 = arith.constant 0 : i32
    %c0_i32_2 = arith.constant 0 : i32
    return %c0_i32, %c0_i32_0, %c0_i32_1 : i32, i32, i32
  }
  func.func @transform_5(%arg0: i32) -> (i32, i32, i32) {
    %c0_i32 = arith.constant 0 : i32
    %c0_i32_0 = arith.constant 0 : i32
    %c0_i32_1 = arith.constant 0 : i32
    %c0_i32_2 = arith.constant 0 : i32
    return %c0_i32, %c0_i32_0, %c0_i32_1 : i32, i32, i32
  }
  func.func @transform_6(%arg0: i32) -> (i32, i32, i32) {
    %c0_i32 = arith.constant 0 : i32
    %c0_i32_0 = arith.constant 0 : i32
    %c0_i32_1 = arith.constant 0 : i32
    %c0_i32_2 = arith.constant 0 : i32
    return %c0_i32, %c0_i32_0, %c0_i32_1 : i32, i32, i32
  }
  func.func @transform_7(%arg0: i32) -> (i32, i32, i32) {
    %c0_i32 = arith.constant 0 : i32
    %c0_i32_0 = arith.constant 0 : i32
    %c0_i32_1 = arith.constant 0 : i32
    %c0_i32_2 = arith.constant 0 : i32
    return %c0_i32, %c0_i32_0, %c0_i32_1 : i32, i32, i32
  }
  func.func @transform_8(%arg0: i32) -> (i32, i32, i32) {
    %c0_i32 = arith.constant 0 : i32
    %c0_i32_0 = arith.constant 0 : i32
    %c0_i32_1 = arith.constant 0 : i32
    %c0_i32_2 = arith.constant 0 : i32
    return %c0_i32, %c0_i32_0, %c0_i32_1 : i32, i32, i32
  }
  func.func @transform_9(%arg0: i32) -> (i32, i32, i32) {
    %c0_i32 = arith.constant 0 : i32
    %c0_i32_0 = arith.constant 0 : i32
    %c0_i32_1 = arith.constant 0 : i32
    %c0_i32_2 = arith.constant 0 : i32
    return %c0_i32, %c0_i32_0, %c0_i32_1 : i32, i32, i32
  }
  func.func @transform_10(%arg0: i32) -> (i32, i32, i32) {
    %c0_i32 = arith.constant 0 : i32
    %c0_i32_0 = arith.constant 0 : i32
    %c0_i32_1 = arith.constant 0 : i32
    %c0_i32_2 = arith.constant 0 : i32
    return %c0_i32, %c0_i32_0, %c0_i32_1 : i32, i32, i32
  }
  func.func @transform_11(%arg0: i32) -> (i32, i32, i32) {
    %c0_i32 = arith.constant 0 : i32
    %c0_i32_0 = arith.constant 0 : i32
    %c0_i32_1 = arith.constant 0 : i32
    %c0_i32_2 = arith.constant 0 : i32
    return %c0_i32, %c0_i32_0, %c0_i32_1 : i32, i32, i32
  }
  func.func @transform_12(%arg0: i32) -> (i32, i32, i32) {
    %c0_i32 = arith.constant 0 : i32
    %c0_i32_0 = arith.constant 0 : i32
    %c0_i32_1 = arith.constant 0 : i32
    %c0_i32_2 = arith.constant 0 : i32
    return %c0_i32, %c0_i32_0, %c0_i32_1 : i32, i32, i32
  }
  func.func @transform_13(%arg0: i32) -> (i32, i32, i32) {
    %c0_i32 = arith.constant 0 : i32
    %c0_i32_0 = arith.constant 0 : i32
    %c0_i32_1 = arith.constant 0 : i32
    %c0_i32_2 = arith.constant 0 : i32
    return %c0_i32, %c0_i32_0, %c0_i32_1 : i32, i32, i32
  }
  func.func @transform_14(%arg0: i32) -> (i32, i32, i32) {
    %c0_i32 = arith.constant 0 : i32
    %c0_i32_0 = arith.constant 0 : i32
    %c0_i32_1 = arith.constant 0 : i32
    %c0_i32_2 = arith.constant 0 : i32
    return %c0_i32, %c0_i32_0, %c0_i32_1 : i32, i32, i32
  }
  func.func @transform_15(%arg0: i32) -> (i32, i32, i32) {
    %c0_i32 = arith.constant 0 : i32
    %c0_i32_0 = arith.constant 0 : i32
    %c0_i32_1 = arith.constant 0 : i32
    %c0_i32_2 = arith.constant 0 : i32
    return %c0_i32, %c0_i32_0, %c0_i32_1 : i32, i32, i32
  }
  func.func @transform_16(%arg0: i32) -> (i32, i32) {
    %c0_i32 = arith.constant 0 : i32
    %c0_i32_0 = arith.constant 0 : i32
    %c0_i32_1 = arith.constant 0 : i32
    return %c0_i32, %c0_i32_0 : i32, i32
  }
  func.func @transform_17(%arg0: i32) -> (i32, i32) {
    %c0_i32 = arith.constant 0 : i32
    %c0_i32_0 = arith.constant 0 : i32
    %c0_i32_1 = arith.constant 0 : i32
    return %c0_i32, %c0_i32_0 : i32, i32
  }
  func.func @transform_18(%arg0: i32) -> (i32, i32, i32) {
    %c0_i32 = arith.constant 0 : i32
    %c0_i32_0 = arith.constant 0 : i32
    %c0_i32_1 = arith.constant 0 : i32
    return %arg0, %c0_i32, %c0_i32_0 : i32, i32, i32
  }
}

</mosaic_0001>

<llo_original>
// kernel: bert_forward.1
$region0: #{bert_forward.1}
  #allocation0 [shape = 'u32[]', space=smem, size = 0x4, offset = 0x4, fixed_abs, tag = 'smem constant byte address 0x4 - core index']
  #allocation1 [shape = 'u32[144,128]{1,0:T(1,128)}', space=vmem, size = 0x12000, scoped, tag = 'internal scratch']
  %s0 = inlined_call_operand.vmem [shape: f32[1,16,128], index: 0, kind: input, shape index: {}]
  %s1 = inlined_call_operand.vmem [shape: s32[1,1,16], index: 1, kind: input, shape index: {}]
  %s2 = inlined_call_operand.vmem [shape: f32[1,128], index: 2, kind: input, shape index: {}]
  %s3 = inlined_call_operand.vmem [shape: f32[1,128], index: 3, kind: input, shape index: {}]
  %s4 = inlined_call_operand.hbm [shape: bf16[4,128,384], index: 4, kind: input, shape index: {}]
  %s5 = inlined_call_operand.vmem [shape: f32[4,1,384], index: 5, kind: input, shape index: {}]
  %s6 = inlined_call_operand.hbm [shape: bf16[4,128,128], index: 6, kind: input, shape index: {}]
  %s7 = inlined_call_operand.vmem [shape: f32[4,1,128], index: 7, kind: input, shape index: {}]
  %s8 = inlined_call_operand.vmem [shape: f32[4,1,128], index: 8, kind: input, shape index: {}]
  %s9 = inlined_call_operand.vmem [shape: f32[4,1,128], index: 9, kind: input, shape index: {}]
  %s10 = inlined_call_operand.hbm [shape: bf16[4,128,256], index: 10, kind: input, shape index: {}]
  %s11 = inlined_call_operand.vmem [shape: f32[4,1,256], index: 11, kind: input, shape index: {}]
  %s12 = inlined_call_operand.hbm [shape: bf16[4,256,128], index: 12, kind: input, shape index: {}]
  %s13 = inlined_call_operand.vmem [shape: f32[4,1,128], index: 13, kind: input, shape index: {}]
  %s14 = inlined_call_operand.vmem [shape: f32[4,1,128], index: 14, kind: input, shape index: {}]
  %s15 = inlined_call_operand.vmem [shape: f32[4,1,128], index: 15, kind: input, shape index: {}]
  %s16 = inlined_call_operand.vmem [shape: bf16[128,128], index: 16, kind: input, shape index: {}]
  %s17 = inlined_call_operand.vmem [shape: f32[1,128], index: 17, kind: input, shape index: {}]
  %s18 = inlined_call_operand.vmem [shape: f32[1,8,128], index: 18, kind: output, shape index: {}]
  %s19 = sld [smem:[#allocation0]]
  $region98: #{bert_forward.1} parent=0
    _
  %s21 = ssub.s32 1, %s19
  %s22 = scalar_select 0, %s21, %s19
  $region1: #{bert_forward.1} parent=0
    #allocation2 [shape = 'u8[393216]{0}', space=vmem, size = 0x60000, scoped, tag = 'input window, operand 4, single buffered']
    #allocation3 [shape = 's32[1]{0}', space=sflag, size = 0x4, scoped, tag = 'scoped memory for bert_forward.1']
    #allocation4 [shape = 'u8[131072]{0}', space=vmem, size = 0x20000, scoped, tag = 'input window, operand 6, single buffered']
    #allocation5 [shape = 's32[1]{0}', space=sflag, size = 0x4, scoped, tag = 'scoped memory for bert_forward.1']
    #allocation6 [shape = 'u8[262144]{0}', space=vmem, size = 0x40000, scoped, tag = 'input window, operand 10, single buffered']
    #allocation7 [shape = 'u8[262144]{0}', space=vmem, size = 0x40000, scoped, tag = 'input window, operand 12, single buffered']
    #allocation8 [shape = 's32[1]{0}', space=sflag, size = 0x4, scoped, tag = 'scoped memory for bert_forward.1']
    %23 = vsyncpa [#allocation3], 0
    %24 = vsyncpa [#allocation5], 0
    %25 = vsyncpa [#allocation8], 0
    // Predicated region
    $region2: #{bert_forward.1} parent=1 // pred_check
      _
    $region3: #{bert_forward.1} parent=1 // pred_check_branch
      %27 = sbr.rel (0) target = $region5
    $region4: #{bert_forward.1} parent=1 // pred_region
      _
    $region5: #{bert_forward.1} parent=1 // pred_fallthru
      _
    // Predicated region
    $region6: #{bert_forward.1} parent=1 // pred_check
      _
    $region7: #{bert_forward.1} parent=1 // pred_check_branch
      %29 = sbr.rel (0) target = $region9
    $region8: #{bert_forward.1} parent=1 // pred_region
      _
    $region9: #{bert_forward.1} parent=1 // pred_fallthru
      _
    // Predicated region
    $region10: #{bert_forward.1} parent=1 // pred_check
      _
    $region11: #{bert_forward.1} parent=1 // pred_check_branch
      %31 = sbr.rel (0) target = $region13
    $region12: #{bert_forward.1} parent=1 // pred_region
      _
    $region13: #{bert_forward.1} parent=1 // pred_fallthru
      _
    // Predicated region
    $region14: #{bert_forward.1} parent=1 // pred_check
      _
    $region15: #{bert_forward.1} parent=1 // pred_check_branch
      %33 = sbr.rel (0) target = $region17
    $region16: #{bert_forward.1} parent=1 // pred_region
      _
    $region17: #{bert_forward.1} parent=1 // pred_fallthru
      _
    // Predicated region
    $region18: #{bert_forward.1} parent=1 // pred_check
      _
    $region19: #{bert_forward.1} parent=1 // pred_check_branch
      %35 = sbr.rel (0) target = $region21
    $region20: #{bert_forward.1} parent=1 // pred_region
      %s37 = ssub.s32 12288, 12288
      %38 = vsyncadd [#allocation3], %s37
      %s39 = sshll.u32 [#allocation2], 4
      %s40 = int_to_ptr.vmem [resolvable:$true] %s39
      %45 = dma.hbm_to_vmem [thread:$0]  %s4, 12288, %s40, [#allocation3], 192, 192, 12
    $region21: #{bert_forward.1} parent=1 // pred_fallthru
      _
    // Predicated region
    $region22: #{bert_forward.1} parent=1 // pred_check
      _
    $region23: #{bert_forward.1} parent=1 // pred_check_branch
      %47 = sbr.rel (0) target = $region25
    $region24: #{bert_forward.1} parent=1 // pred_region
      _
    $region25: #{bert_forward.1} parent=1 // pred_fallthru
      _
    // Predicated region
    $region26: #{bert_forward.1} parent=1 // pred_check
      _
    $region27: #{bert_forward.1} parent=1 // pred_check_branch
      %49 = sbr.rel (0) target = $region29
    $region28: #{bert_forward.1} parent=1 // pred_region
      %s51 = ssub.s32 4096, 4096
      %52 = vsyncadd [#allocation5], %s51
      %s53 = sshll.u32 [#allocation4], 4
      %s54 = int_to_ptr.vmem [resolvable:$true] %s53
      %59 = dma.hbm_to_vmem [thread:$0]  %s6, 4096, %s54, [#allocation5], 64, 64, 4
    $region29: #{bert_forward.1} parent=1 // pred_fallthru
      _
    // Predicated region
    $region30: #{bert_forward.1} parent=1 // pred_check
      _
    $region31: #{bert_forward.1} parent=1 // pred_check_branch
      %61 = sbr.rel (0) target = $region33
    $region32: #{bert_forward.1} parent=1 // pred_region
      _
    $region33: #{bert_forward.1} parent=1 // pred_fallthru
      _
    // Predicated region
    $region34: #{bert_forward.1} parent=1 // pred_check
      _
    $region35: #{bert_forward.1} parent=1 // pred_check_branch
      %63 = sbr.rel (0) target = $region37
    $region36: #{bert_forward.1} parent=1 // pred_region
      _
    $region37: #{bert_forward.1} parent=1 // pred_fallthru
      _
    // Predicated region
    $region38: #{bert_forward.1} parent=1 // pred_check
      _
    $region39: #{bert_forward.1} parent=1 // pred_check_branch
      %65 = sbr.rel (0) target = $region41
    $region40: #{bert_forward.1} parent=1 // pred_region
      _
    $region41: #{bert_forward.1} parent=1 // pred_fallthru
      _
    // Predicated region
    $region42: #{bert_forward.1} parent=1 // pred_check
      _
    $region43: #{bert_forward.1} parent=1 // pred_check_branch
      %67 = sbr.rel (0) target = $region45
    $region44: #{bert_forward.1} parent=1 // pred_region
      %s69 = ssub.s32 8192, 8192
      %70 = vsyncadd [#allocation5], %s69
      %s71 = sshll.u32 [#allocation6], 4
      %s72 = int_to_ptr.vmem [resolvable:$true] %s71
      %77 = dma.hbm_to_vmem [thread:$0]  %s10, 8192, %s72, [#allocation5], 128, 128, 8
    $region45: #{bert_forward.1} parent=1 // pred_fallthru
      _
    // Predicated region
    $region46: #{bert_forward.1} parent=1 // pred_check
      _
    $region47: #{bert_forward.1} parent=1 // pred_check_branch
      %79 = sbr.rel (0) target = $region49
    $region48: #{bert_forward.1} parent=1 // pred_region
      _
    $region49: #{bert_forward.1} parent=1 // pred_fallthru
      _
    // Predicated region
    $region50: #{bert_forward.1} parent=1 // pred_check
      _
    $region51: #{bert_forward.1} parent=1 // pred_check_branch
      %81 = sbr.rel (0) target = $region53
    $region52: #{bert_forward.1} parent=1 // pred_region
      %s83 = ssub.s32 8192, 8192
      %84 = vsyncadd [#allocation8], %s83
      %s85 = sshll.u32 [#allocation7], 4
      %s86 = int_to_ptr.vmem [resolvable:$true] %s85
      %91 = dma.hbm_to_vmem [thread:$0]  %s12, 8192, %s86, [#allocation8], 64, 64, 4
    $region53: #{bert_forward.1} parent=1 // pred_fallthru
      _
    // Predicated region
    $region54: #{bert_forward.1} parent=1 // pred_check
      _
    $region55: #{bert_forward.1} parent=1 // pred_check_branch
      %93 = sbr.rel (0) target = $region57
    $region56: #{bert_forward.1} parent=1 // pred_region
      _
    $region57: #{bert_forward.1} parent=1 // pred_fallthru
      _
    // Predicated region
    $region58: #{bert_forward.1} parent=1 // pred_check
      _
    $region59: #{bert_forward.1} parent=1 // pred_check_branch
      %95 = sbr.rel (0) target = $region61
    $region60: #{bert_forward.1} parent=1 // pred_region
      _
    $region61: #{bert_forward.1} parent=1 // pred_fallthru
      _
    // Predicated region
    $region62: #{bert_forward.1} parent=1 // pred_check
      _
    $region63: #{bert_forward.1} parent=1 // pred_check_branch
      %97 = sbr.rel (0) target = $region65
    $region64: #{bert_forward.1} parent=1 // pred_region
      _
    $region65: #{bert_forward.1} parent=1 // pred_fallthru
      _
    // Predicated region
    $region66: #{bert_forward.1} parent=1 // pred_check
      _
    $region67: #{bert_forward.1} parent=1 // pred_check_branch
      %99 = sbr.rel (0) target = $region69
    $region68: #{bert_forward.1} parent=1 // pred_region
      _
    $region69: #{bert_forward.1} parent=1 // pred_fallthru
      _
    // Predicated region
    $region70: #{bert_forward.1} parent=1 // pred_check
      _
    $region71: #{bert_forward.1} parent=1 // pred_check_branch
      %101 = sbr.rel (0) target = $region73
    $region72: #{bert_forward.1} parent=1 // pred_region
      _
    $region73: #{bert_forward.1} parent=1 // pred_fallthru
      _
    // Predicated region
    $region74: #{bert_forward.1} parent=1 // pred_check
      _
    $region75: #{bert_forward.1} parent=1 // pred_check_branch
      %103 = sbr.rel (0) target = $region77
    $region76: #{bert_forward.1} parent=1 // pred_region
      %104 = dma.done [#allocation3], 12288
    $region77: #{bert_forward.1} parent=1 // pred_fallthru
      _
    // Predicated region
    $region78: #{bert_forward.1} parent=1 // pred_check
      _
    $region79: #{bert_forward.1} parent=1 // pred_check_branch
      %106 = sbr.rel (0) target = $region81
    $region80: #{bert_forward.1} parent=1 // pred_region
      %107 = dma.done [#allocation5], 4096
    $region81: #{bert_forward.1} parent=1 // pred_fallthru
      _
    // Predicated region
    $region82: #{bert_forward.1} parent=1 // pred_check
      _
    $region83: #{bert_forward.1} parent=1 // pred_check_branch
      %109 = sbr.rel (0) target = $region85
    $region84: #{bert_forward.1} parent=1 // pred_region
      %110 = dma.done [#allocation5], 8192
    $region85: #{bert_forward.1} parent=1 // pred_fallthru
      _
    // Predicated region
    $region86: #{bert_forward.1} parent=1 // pred_check
      _
    $region87: #{bert_forward.1} parent=1 // pred_check_branch
      %112 = sbr.rel (0) target = $region89
    $region88: #{bert_forward.1} parent=1 // pred_region
      %113 = dma.done [#allocation8], 8192
    $region89: #{bert_forward.1} parent=1 // pred_fallthru
      _
    %v115 = vld [vmem:[%s0] sm:$0xff]
    %v116 = vld [vmem:[%s0 + $0x8] sm:$0xff]
    %v117 = vld [vmem:[%s2] sm:$0x1]
    %v118 = vld [vmem:[%s3] sm:$0x1]
    %119 = vadd.xlane.f32.xlu0 %v115
    %v120 = vpop.xlane.xlu0 %119
    %121 = vadd.xlane.f32.xlu0 %v116
    %v122 = vpop.xlane.xlu0 %121
    %v123 = vrcp.pop 128.0
    %v124 = vmul.f32 %v120, %v123
    %v125 = vmul.f32 %v122, %v123
    %v126 = vsub.f32 %v115, %v124
    %v127 = vsub.f32 %v116, %v125
    %v128 = vmul.f32 %v126, %v126
    %v129 = vmul.f32 %v127, %v127
    %130 = vadd.xlane.f32.xlu0 %v128
    %v131 = vpop.xlane.xlu0 %130
    %132 = vadd.xlane.f32.xlu0 %v129
    %v133 = vpop.xlane.xlu0 %132
    %v134 = vmul.f32 %v131, %v123
    %v135 = vmul.f32 %v133, %v123
    %v136 = vadd.f32 %v134, 1e-12
    %v137 = vadd.f32 %v135, 1e-12
    %v138 = vrsqrt.pop %v136
    %v139 = vrsqrt.pop %v137
    %v140 = vmul.f32 %v126, %v138
    %v141 = vmul.f32 %v127, %v139
    %v143 = vlaneseq
    %v144 = vshrl.u32 %v143, 7
    %v145 = vsub.s32 0, %v144
    %v146 = vrot.slane %v117, %v145
    %v148 = vmul.f32 %v140, %v146
    %v149 = vmul.f32 %v141, %v146
    %v151 = vlaneseq
    %v152 = vshrl.u32 %v151, 7
    %v153 = vsub.s32 0, %v152
    %v154 = vrot.slane %v118, %v153
    %v156 = vadd.f32 %v148, %v154
    %v157 = vadd.f32 %v149, %v154
    %v158 = vld [vmem:[%s1] sm:$0x1]
    %vm159 = vcmp.gt.s32.totalorder %v158, 0
    %v160 = vsel %vm159, 0.0, -10000.0
    %v161 = vlaneseq
    %v162 = vshrl.u32 %v161, 7
    %v163 = vadd.s32 %v162, 8
    %v164 = vcvt.s32.f32 %v162
    %v165 = vcvt.s32.f32 %v163
    %v166 = vadd.f32 %v164, 0.5
    %v167 = vadd.f32 %v165, 0.5
    %v168 = vmul.f32 %v166, 0.125
    %v169 = vmul.f32 %v167, 0.125
    %v170 = vfloor.f32 %v168
    %v171 = vfloor.f32 %v169
    %v172 = vlaneseq
    %v173 = vand.u32 %v172, 127
    %v174 = vcvt.s32.f32 %v173
    %v175 = vadd.f32 %v174, 0.5
    %v176 = vmul.f32 %v175, 0.125
    %v177 = vfloor.f32 %v176
    %vm178 = vcmp.eq.f32.partialorder %v170, %v177
    %vm179 = vcmp.eq.f32.partialorder %v171, %v177
    %v180 = vsel %vm178, 0.0, -10000.0
    %v181 = vsel %vm179, 0.0, -10000.0
    %v183 = vlaneseq
    %v184 = vshrl.u32 %v183, 7
    %v185 = vsub.s32 0, %v184
    %v186 = vrot.slane %v160, %v185
    %v188 = vadd.f32 %v180, %v186
    %v189 = vadd.f32 %v181, %v186
    %v190 = vpack.c.bf16 %v157, %v156
    %v191 = vld [vmem:[#allocation2] sm:$0xff]
    %v192 = vld [vmem:[#allocation2 + $0x8] sm:$0xf]
    %v193 = vld [vmem:[#allocation2 + $0xc] sm:$0xff]
    %v194 = vld [vmem:[#allocation2 + $0x14] sm:$0xf]
    %v195 = vld [vmem:[#allocation2 + $0x18] sm:$0xff]
    %v196 = vld [vmem:[#allocation2 + $0x20] sm:$0xf]
    %v197 = vld [vmem:[#allocation2 + $0x24] sm:$0xff]
    %v198 = vld [vmem:[#allocation2 + $0x2c] sm:$0xf]
    %v199 = vld [vmem:[#allocation2 + $0x30] sm:$0xff]
    %v200 = vld [vmem:[#allocation2 + $0x38] sm:$0xf]
    %v201 = vld [vmem:[#allocation2 + $0x3c] sm:$0xff]
    %v202 = vld [vmem:[#allocation2 + $0x44] sm:$0xf]
    %v203 = vld [vmem:[#allocation2 + $0x48] sm:$0xff]
    %v204 = vld [vmem:[#allocation2 + $0x50] sm:$0xf]
    %v205 = vld [vmem:[#allocation2 + $0x54] sm:$0xff]
    %v206 = vld [vmem:[#allocation2 + $0x5c] sm:$0xf]
    %v207 = vld [vmem:[#allocation2 + $0x60] sm:$0xff]
    %v208 = vld [vmem:[#allocation2 + $0x68] sm:$0xf]
    %v209 = vld [vmem:[#allocation2 + $0x6c] sm:$0xff]
    %v210 = vld [vmem:[#allocation2 + $0x74] sm:$0xf]
    %v211 = vld [vmem:[#allocation2 + $0x78] sm:$0xff]
    %v212 = vld [vmem:[#allocation2 + $0x80] sm:$0xf]
    %v213 = vld [vmem:[#allocation2 + $0x84] sm:$0xff]
    %v214 = vld [vmem:[#allocation2 + $0x8c] sm:$0xf]
    %v215 = vld [vmem:[#allocation2 + $0x90] sm:$0xff]
    %v216 = vld [vmem:[#allocation2 + $0x98] sm:$0xf]
    %v217 = vld [vmem:[#allocation2 + $0x9c] sm:$0xff]
    %v218 = vld [vmem:[#allocation2 + $0xa4] sm:$0xf]
    %v219 = vld [vmem:[#allocation2 + $0xa8] sm:$0xff]
    %v220 = vld [vmem:[#allocation2 + $0xb0] sm:$0xf]
    %v221 = vld [vmem:[#allocation2 + $0xb4] sm:$0xff]
    %v222 = vld [vmem:[#allocation2 + $0xbc] sm:$0xf]
    %v223 = vld [vmem:[%s5] sm:$0x7]
    %v225 = vlaneseq
    %v226 = vshrl.u32 %v225, 7
    %v227 = vsub.s32 0, %v226
    %v228 = vrot.slane %v223, %v227
    %v229 = vlaneseq
    %v230 = vshrl.u32 %v229, 7
    %v231 = vsub.s32 1, %v230
    %v232 = vrot.slane %v223, %v231
    %v233 = vlaneseq
    %v234 = vshrl.u32 %v233, 7
    %v235 = vsub.s32 2, %v234
    %v236 = vrot.slane %v223, %v235
    %v272 = vunpack.c.l.b16 %v191
    %v273 = vunpack.c.h.b16 %v191
    %v274 = vunpack.c.l.b16 %v192
    %v275 = vunpack.c.l.b16 %v193
    %v276 = vunpack.c.h.b16 %v193
    %v277 = vunpack.c.l.b16 %v194
    %v278 = vunpack.c.l.b16 %v195
    %v279 = vunpack.c.h.b16 %v195
    %v280 = vunpack.c.l.b16 %v196
    %v281 = vunpack.c.l.b16 %v197
    %v282 = vunpack.c.h.b16 %v197
    %v283 = vunpack.c.l.b16 %v198
    %v284 = vunpack.c.l.b16 %v199
    %v285 = vunpack.c.h.b16 %v199
    %v286 = vunpack.c.l.b16 %v200
    %v287 = vunpack.c.l.b16 %v201
    %v288 = vunpack.c.h.b16 %v201
    %v289 = vunpack.c.l.b16 %v202
    %v290 = vunpack.c.l.b16 %v203
    %v291 = vunpack.c.h.b16 %v203
    %v292 = vunpack.c.l.b16 %v204
    %v293 = vunpack.c.l.b16 %v205
    %v294 = vunpack.c.h.b16 %v205
    %v295 = vunpack.c.l.b16 %v206
    %v296 = vunpack.c.l.b16 %v207
    %v297 = vunpack.c.h.b16 %v207
    %v298 = vunpack.c.l.b16 %v208
    %v299 = vunpack.c.l.b16 %v209
    %v300 = vunpack.c.h.b16 %v209
    %v301 = vunpack.c.l.b16 %v210
    %v302 = vunpack.c.l.b16 %v211
    %v303 = vunpack.c.h.b16 %v211
    %v304 = vunpack.c.l.b16 %v212
    %v305 = vunpack.c.l.b16 %v213
    %v306 = vunpack.c.h.b16 %v213
    %v307 = vunpack.c.l.b16 %v214
    %v308 = vunpack.c.l.b16 %v215
    %v309 = vunpack.c.h.b16 %v215
    %v310 = vunpack.c.l.b16 %v216
    %v311 = vunpack.c.l.b16 %v217
    %v312 = vunpack.c.h.b16 %v217
    %v313 = vunpack.c.l.b16 %v218
    %v314 = vunpack.c.l.b16 %v219
    %v315 = vunpack.c.h.b16 %v219
    %v316 = vunpack.c.l.b16 %v220
    %v317 = vunpack.c.l.b16 %v221
    %v318 = vunpack.c.h.b16 %v221
    %v319 = vunpack.c.l.b16 %v222
    %v320 = vpack.c.b16 %v275, %v272
    %v321 = vpack.c.b16 %v276, %v273
    %v322 = vpack.c.b16 %v277, %v274
    %v323 = vpack.c.b16 %v281, %v278
    %v324 = vpack.c.b16 %v282, %v279
    %v325 = vpack.c.b16 %v283, %v280
    %v326 = vpack.c.b16 %v287, %v284
    %v327 = vpack.c.b16 %v288, %v285
    %v328 = vpack.c.b16 %v289, %v286
    %v329 = vpack.c.b16 %v293, %v290
    %v330 = vpack.c.b16 %v294, %v291
    %v331 = vpack.c.b16 %v295, %v292
    %v332 = vpack.c.b16 %v299, %v296
    %v333 = vpack.c.b16 %v300, %v297
    %v334 = vpack.c.b16 %v301, %v298
    %v335 = vpack.c.b16 %v305, %v302
    %v336 = vpack.c.b16 %v306, %v303
    %v337 = vpack.c.b16 %v307, %v304
    %v338 = vpack.c.b16 %v311, %v308
    %v339 = vpack.c.b16 %v312, %v309
    %v340 = vpack.c.b16 %v313, %v310
    %v341 = vpack.c.b16 %v317, %v314
    %v342 = vpack.c.b16 %v318, %v315
    %v343 = vpack.c.b16 %v319, %v316
    %368 = vmatprep.subr.bf16.mxu0 %v321
    %369 = vmatpush1.bf16.msra.mxu0 %v320
    %370 = vmatprep.subr.bf16.mxu0 %v324
    %371 = vmatpush1.bf16.msra.mxu0 %v323
    %372 = vmatprep.subr.bf16.mxu0 %v327
    %373 = vmatpush1.bf16.msra.mxu0 %v326
    %374 = vmatprep.subr.bf16.mxu0 %v330
    %375 = vmatpush1.bf16.msra.mxu0 %v329
    %376 = vmatprep.subr.bf16.mxu0 %v333
    %377 = vmatpush1.bf16.msra.mxu0 %v332
    %378 = vmatprep.subr.bf16.mxu0 %v336
    %379 = vmatpush1.bf16.msra.mxu0 %v335
    %380 = vmatprep.subr.bf16.mxu0 %v339
    %381 = vmatpush1.bf16.msra.mxu0 %v338
    %382 = vmatprep.subr.bf16.mxu0 %v342
    %383 = vmatpush1.bf16.msra.mxu0 %v341
    %384 = vmatprep.subr.bf16.mxu0 0
    %385 = vmatpush1.bf16.msra.mxu0 0
    %386 = vmatprep.subr.bf16.mxu0 0
    %387 = vmatpush1.bf16.msra.mxu0 0
    %388 = vmatprep.subr.bf16.mxu0 0
    %389 = vmatpush1.bf16.msra.mxu0 0
    %390 = vmatprep.subr.bf16.mxu0 0
    %391 = vmatpush1.bf16.msra.mxu0 0
    %392 = vmatprep.subr.bf16.mxu0 0
    %393 = vmatpush1.bf16.msra.mxu0 0
    %394 = vmatprep.subr.bf16.mxu0 0
    %395 = vmatpush1.bf16.msra.mxu0 0
    %396 = vmatprep.subr.bf16.mxu0 0
    %397 = vmatpush1.bf16.msra.mxu0 0
    %398 = vmatprep.subr.bf16.mxu0 0
    %399 = vmatpush1.bf16.msra.mxu0 0
    %400 = vmatprep.mubr.bf16.mxu0 0
    %401 = vmatmul.mubr.bf16.gmra.mrb[0].mxu0 %v190
    %v402 = vpop.f32.mrb[0].mxu0
    %v403 = vadd.f32 %v228, %v402
    %v404 = vpop.f32.mrb[0].mxu0
    %v405 = vadd.f32 %v232, %v404
    %v406 = vpop.f32.mrb[0].mxu0
    %v407 = vadd.f32 %v228, %v406
    %v408 = vpop.f32.mrb[0].mxu0
    %v409 = vadd.f32 %v232, %v408
    %410 = vdwg.mxu0
    %411 = vmatprep.subr.bf16.mxu0 0
    %412 = vmatpush1.bf16.msra.mxu0 %v322
    %413 = vmatprep.subr.bf16.mxu0 0
    %414 = vmatpush1.bf16.msra.mxu0 %v325
    %415 = vmatprep.subr.bf16.mxu0 0
    %416 = vmatpush1.bf16.msra.mxu0 %v328
    %417 = vmatprep.subr.bf16.mxu0 0
    %418 = vmatpush1.bf16.msra.mxu0 %v331
    %419 = vmatprep.subr.bf16.mxu0 0
    %420 = vmatpush1.bf16.msra.mxu0 %v334
    %421 = vmatprep.subr.bf16.mxu0 0
    %422 = vmatpush1.bf16.msra.mxu0 %v337
    %423 = vmatprep.subr.bf16.mxu0 0
    %424 = vmatpush1.bf16.msra.mxu0 %v340
    %425 = vmatprep.subr.bf16.mxu0 0
    %426 = vmatpush1.bf16.msra.mxu0 %v343
    %427 = vmatprep.subr.bf16.mxu0 0
    %428 = vmatpush1.bf16.msra.mxu0 0
    %429 = vmatprep.subr.bf16.mxu0 0
    %430 = vmatpush1.bf16.msra.mxu0 0
    %431 = vmatprep.subr.bf16.mxu0 0
    %432 = vmatpush1.bf16.msra.mxu0 0
    %433 = vmatprep.subr.bf16.mxu0 0
    %434 = vmatpush1.bf16.msra.mxu0 0
    %435 = vmatprep.subr.bf16.mxu0 0
    %436 = vmatpush1.bf16.msra.mxu0 0
    %437 = vmatprep.subr.bf16.mxu0 0
    %438 = vmatpush1.bf16.msra.mxu0 0
    %439 = vmatprep.subr.bf16.mxu0 0
    %440 = vmatpush1.bf16.msra.mxu0 0
    %441 = vmatprep.subr.bf16.mxu0 0
    %442 = vmatpush1.bf16.msra.mxu0 0
    %443 = vmatprep.mubr.bf16.mxu0 0
    %444 = vmatmul.mubr.bf16.gmra.mrb[0].mxu0 %v190
    %v445 = vpop.f32.mrb[0].mxu0
    %v446 = vadd.f32 %v236, %v445
    %v447 = vpop.f32.mrb[0].mxu0
    %v448 = vpop.f32.mrb[0].mxu0
    %v449 = vadd.f32 %v236, %v448
    %v450 = vpop.f32.mrb[0].mxu0
    %451 = vdwg.mxu0
    %v452 = vpack.c.bf16 %v407, %v403
    %v453 = vpack.c.bf16 %v409, %v405
    %v454 = vpack.c.bf16 %v449, %v446
    %v455 = vld [vmem:[#allocation4] sm:$0xf]
    %v456 = vld [vmem:[#allocation4 + $0x4] sm:$0xf]
    %v457 = vld [vmem:[#allocation4 + $0x8] sm:$0xf]
    %v458 = vld [vmem:[#allocation4 + $0xc] sm:$0xf]
    %v459 = vld [vmem:[#allocation4 + $0x10] sm:$0xf]
    %v460 = vld [vmem:[#allocation4 + $0x14] sm:$0xf]
    %v461 = vld [vmem:[#allocation4 + $0x18] sm:$0xf]
    %v462 = vld [vmem:[#allocation4 + $0x1c] sm:$0xf]
    %v463 = vld [vmem:[#allocation4 + $0x20] sm:$0xf]
    %v464 = vld [vmem:[#allocation4 + $0x24] sm:$0xf]
    %v465 = vld [vmem:[#allocation4 + $0x28] sm:$0xf]
    %v466 = vld [vmem:[#allocation4 + $0x2c] sm:$0xf]
    %v467 = vld [vmem:[#allocation4 + $0x30] sm:$0xf]
    %v468 = vld [vmem:[#allocation4 + $0x34] sm:$0xf]
    %v469 = vld [vmem:[#allocation4 + $0x38] sm:$0xf]
    %v470 = vld [vmem:[#allocation4 + $0x3c] sm:$0xf]
    %vm471 = vcmask 261120
    %v473 = vsel %vm471, %v452, 0
    %v476 = vsel %vm471, %v453, 0
    %478 = vmatprep.subr.bf16.mxu0 0
    %479 = vmatpush1.bf16.xpose.msra.mxu0 %v476
    %480 = vmatprep.subr.bf16.mxu0 0
    %481 = vmatpush1.bf16.xpose.msra.mxu0 0
    %482 = vmatprep.subr.bf16.mxu0 0
    %483 = vmatpush1.bf16.xpose.msra.mxu0 0
    %484 = vmatprep.subr.bf16.mxu0 0
    %485 = vmatpush1.bf16.xpose.msra.mxu0 0
    %486 = vmatprep.subr.bf16.mxu0 0
    %487 = vmatpush1.bf16.xpose.msra.mxu0 0
    %488 = vmatprep.subr.bf16.mxu0 0
    %489 = vmatpush1.bf16.xpose.msra.mxu0 0
    %490 = vmatprep.subr.bf16.mxu0 0
    %491 = vmatpush1.bf16.xpose.msra.mxu0 0
    %492 = vmatprep.subr.bf16.mxu0 0
    %493 = vmatpush1.bf16.xpose.msra.mxu0 0
    %494 = vmatprep.subr.bf16.mxu0 0
    %495 = vmatpush1.bf16.xpose.msra.mxu0 0
    %496 = vmatprep.subr.bf16.mxu0 0
    %497 = vmatpush1.bf16.xpose.msra.mxu0 0
    %498 = vmatprep.subr.bf16.mxu0 0
    %499 = vmatpush1.bf16.xpose.msra.mxu0 0
    %500 = vmatprep.subr.bf16.mxu0 0
    %501 = vmatpush1.bf16.xpose.msra.mxu0 0
    %502 = vmatprep.subr.bf16.mxu0 0
    %503 = vmatpush1.bf16.xpose.msra.mxu0 0
    %504 = vmatprep.subr.bf16.mxu0 0
    %505 = vmatpush1.bf16.xpose.msra.mxu0 0
    %506 = vmatprep.subr.bf16.mxu0 0
    %507 = vmatpush1.bf16.xpose.msra.mxu0 0
    %508 = vmatprep.subr.bf16.mxu0 0
    %509 = vmatpush1.bf16.xpose.msra.mxu0 0
    %510 = vmatprep.mubr.bf16.mxu0 0
    %511 = vmatmul.mubr.bf16.gmra.mrb[0].mxu0 %v473
    %v512 = vpop.f32.mrb[0].mxu0
    %v513 = vadd.f32 0.0, %v512
    %v514 = vpop.f32.mrb[0].mxu0
    %v515 = vpop.f32.mrb[0].mxu0
    %v516 = vadd.f32 0.0, %v515
    %v517 = vpop.f32.mrb[0].mxu0
    %518 = vdwg.mxu0
    %v519 = vmul.f32 %v513, 0.17677669
    %v520 = vmul.f32 %v516, 0.17677669
    %v521 = vadd.f32 %v519, %v188
    %v522 = vadd.f32 %v520, %v189
    %vm523 = vcmask 130048
    %v524 = vsel %vm523, %v521, -inf
    %525 = vmax.xlane.f32.xlu0 %v524
    %v526 = vpop.xlane.xlu0 %525
    %v527 = vsel %vm523, %v522, -inf
    %528 = vmax.xlane.f32.xlu0 %v527
    %v529 = vpop.xlane.xlu0 %528
    %v530 = vsub.f32 %v521, %v526
    %v531 = vsub.f32 %v522, %v529
    %v532 = vmul.f32 %v530, 1.442695
    %v533 = vpow.pop %v532
    %v534 = vmul.f32 %v531, 1.442695
    %v535 = vpow.pop %v534
    %v536 = vsel %vm523, %v533, 0.0
    %537 = vadd.xlane.f32.xlu0 %v536
    %v538 = vpop.xlane.xlu0 %537
    %v539 = vsel %vm523, %v535, 0.0
    %540 = vadd.xlane.f32.xlu0 %v539
    %v541 = vpop.xlane.xlu0 %540
    %v542 = vrcp.pop %v538
    %v543 = vrcp.pop %v541
    %v544 = vmul.f32 %v533, %v542
    %v545 = vmul.f32 %v535, %v543
    %v546 = vpack.c.bf16 %v545, %v544
    %v548 = vsel %vm523, %v546, 0
    %550 = vmatprep.subr.bf16.mxu0 0
    %551 = vmatpush1.bf16.msra.mxu0 %v454
    %552 = vmatprep.subr.bf16.mxu0 0
    %553 = vmatpush1.bf16.msra.mxu0 0
    %554 = vmatprep.subr.bf16.mxu0 0
    %555 = vmatpush1.bf16.msra.mxu0 0
    %556 = vmatprep.subr.bf16.mxu0 0
    %557 = vmatpush1.bf16.msra.mxu0 0
    %558 = vmatprep.subr.bf16.mxu0 0
    %559 = vmatpush1.bf16.msra.mxu0 0
    %560 = vmatprep.subr.bf16.mxu0 0
    %561 = vmatpush1.bf16.msra.mxu0 0
    %562 = vmatprep.subr.bf16.mxu0 0
    %563 = vmatpush1.bf16.msra.mxu0 0
    %564 = vmatprep.subr.bf16.mxu0 0
    %565 = vmatpush1.bf16.msra.mxu0 0
    %566 = vmatprep.subr.bf16.mxu0 0
    %567 = vmatpush1.bf16.msra.mxu0 0
    %568 = vmatprep.subr.bf16.mxu0 0
    %569 = vmatpush1.bf16.msra.mxu0 0
    %570 = vmatprep.subr.bf16.mxu0 0
    %571 = vmatpush1.bf16.msra.mxu0 0
    %572 = vmatprep.subr.bf16.mxu0 0
    %573 = vmatpush1.bf16.msra.mxu0 0
    %574 = vmatprep.subr.bf16.mxu0 0
    %575 = vmatpush1.bf16.msra.mxu0 0
    %576 = vmatprep.subr.bf16.mxu0 0
    %577 = vmatpush1.bf16.msra.mxu0 0
    %578 = vmatprep.subr.bf16.mxu0 0
    %579 = vmatpush1.bf16.msra.mxu0 0
    %580 = vmatprep.subr.bf16.mxu0 0
    %581 = vmatpush1.bf16.msra.mxu0 0
    %582 = vmatprep.mubr.bf16.mxu0 0
    %583 = vmatmul.mubr.bf16.gmra.mrb[0].mxu0 %v548
    %v584 = vpop.f32.mrb[0].mxu0
    %v585 = vadd.f32 0.0, %v584
    %v586 = vpop.f32.mrb[0].mxu0
    %v587 = vpop.f32.mrb[0].mxu0
    %v588 = vadd.f32 0.0, %v587
    %v589 = vpop.f32.mrb[0].mxu0
    %590 = vdwg.mxu0
    %v591 = vpack.c.bf16 %v588, %v585
    %593 = vrot.lane.b32.xlu0 %v452, 96
    %v594 = vpop.permute.xlu0 %593
    %596 = vrot.lane.b32.xlu0 %v453, 96
    %v597 = vpop.permute.xlu0 %596
    %v599 = vsel %vm471, %v594, 0
    %v602 = vsel %vm471, %v597, 0
    %604 = vmatprep.subr.bf16.mxu0 0
    %605 = vmatpush1.bf16.xpose.msra.mxu0 %v602
    %606 = vmatprep.subr.bf16.mxu0 0
    %607 = vmatpush1.bf16.xpose.msra.mxu0 0
    %608 = vmatprep.subr.bf16.mxu0 0
    %609 = vmatpush1.bf16.xpose.msra.mxu0 0
    %610 = vmatprep.subr.bf16.mxu0 0
    %611 = vmatpush1.bf16.xpose.msra.mxu0 0
    %612 = vmatprep.subr.bf16.mxu0 0
    %613 = vmatpush1.bf16.xpose.msra.mxu0 0
    %614 = vmatprep.subr.bf16.mxu0 0
    %615 = vmatpush1.bf16.xpose.msra.mxu0 0
    %616 = vmatprep.subr.bf16.mxu0 0
    %617 = vmatpush1.bf16.xpose.msra.mxu0 0
    %618 = vmatprep.subr.bf16.mxu0 0
    %619 = vmatpush1.bf16.xpose.msra.mxu0 0
    %620 = vmatprep.subr.bf16.mxu0 0
    %621 = vmatpush1.bf16.xpose.msra.mxu0 0
    %622 = vmatprep.subr.bf16.mxu0 0
    %623 = vmatpush1.bf16.xpose.msra.mxu0 0
    %624 = vmatprep.subr.bf16.mxu0 0
    %625 = vmatpush1.bf16.xpose.msra.mxu0 0
    %626 = vmatprep.subr.bf16.mxu0 0
    %627 = vmatpush1.bf16.xpose.msra.mxu0 0
    %628 = vmatprep.subr.bf16.mxu0 0
    %629 = vmatpush1.bf16.xpose.msra.mxu0 0
    %630 = vmatprep.subr.bf16.mxu0 0
    %631 = vmatpush1.bf16.xpose.msra.mxu0 0
    %632 = vmatprep.subr.bf16.mxu0 0
    %633 = vmatpush1.bf16.xpose.msra.mxu0 0
    %634 = vmatprep.subr.bf16.mxu0 0
    %635 = vmatpush1.bf16.xpose.msra.mxu0 0
    %636 = vmatprep.mubr.bf16.mxu0 0
    %637 = vmatmul.mubr.bf16.gmra.mrb[0].mxu0 %v599
    %v638 = vpop.f32.mrb[0].mxu0
    %v639 = vadd.f32 0.0, %v638
    %v640 = vpop.f32.mrb[0].mxu0
    %v641 = vpop.f32.mrb[0].mxu0
    %v642 = vadd.f32 0.0, %v641
    %v643 = vpop.f32.mrb[0].mxu0
    %644 = vdwg.mxu0
    %v645 = vmul.f32 %v639, 0.17677669
    %v646 = vmul.f32 %v642, 0.17677669
    %v647 = vadd.f32 %v645, %v188
    %v648 = vadd.f32 %v646, %v189
    %v649 = vsel %vm523, %v647, -inf
    %650 = vmax.xlane.f32.xlu0 %v649
    %v651 = vpop.xlane.xlu0 %650
    %v652 = vsel %vm523, %v648, -inf
    %653 = vmax.xlane.f32.xlu0 %v652
    %v654 = vpop.xlane.xlu0 %653
    %v655 = vsub.f32 %v647, %v651
    %v656 = vsub.f32 %v648, %v654
    %v657 = vmul.f32 %v655, 1.442695
    %v658 = vpow.pop %v657
    %v659 = vmul.f32 %v656, 1.442695
    %v660 = vpow.pop %v659
    %v661 = vsel %vm523, %v658, 0.0
    %662 = vadd.xlane.f32.xlu0 %v661
    %v663 = vpop.xlane.xlu0 %662
    %v664 = vsel %vm523, %v660, 0.0
    %665 = vadd.xlane.f32.xlu0 %v664
    %v666 = vpop.xlane.xlu0 %665
    %v667 = vrcp.pop %v663
    %v668 = vrcp.pop %v666
    %v669 = vmul.f32 %v658, %v667
    %v670 = vmul.f32 %v660, %v668
    %v671 = vpack.c.bf16 %v670, %v669
    %673 = vrot.lane.b32.xlu0 %v454, 96
    %v674 = vpop.permute.xlu0 %673
    %v677 = vsel %vm523, %v671, 0
    %679 = vmatprep.subr.bf16.mxu0 0
    %680 = vmatpush1.bf16.msra.mxu0 %v674
    %681 = vmatprep.subr.bf16.mxu0 0
    %682 = vmatpush1.bf16.msra.mxu0 0
    %683 = vmatprep.subr.bf16.mxu0 0
    %684 = vmatpush1.bf16.msra.mxu0 0
    %685 = vmatprep.subr.bf16.mxu0 0
    %686 = vmatpush1.bf16.msra.mxu0 0
    %687 = vmatprep.subr.bf16.mxu0 0
    %688 = vmatpush1.bf16.msra.mxu0 0
    %689 = vmatprep.subr.bf16.mxu0 0
    %690 = vmatpush1.bf16.msra.mxu0 0
    %691 = vmatprep.subr.bf16.mxu0 0
    %692 = vmatpush1.bf16.msra.mxu0 0
    %693 = vmatprep.subr.bf16.mxu0 0
    %694 = vmatpush1.bf16.msra.mxu0 0
    %695 = vmatprep.subr.bf16.mxu0 0
    %696 = vmatpush1.bf16.msra.mxu0 0
    %697 = vmatprep.subr.bf16.mxu0 0
    %698 = vmatpush1.bf16.msra.mxu0 0
    %699 = vmatprep.subr.bf16.mxu0 0
    %700 = vmatpush1.bf16.msra.mxu0 0
    %701 = vmatprep.subr.bf16.mxu0 0
    %702 = vmatpush1.bf16.msra.mxu0 0
    %703 = vmatprep.subr.bf16.mxu0 0
    %704 = vmatpush1.bf16.msra.mxu0 0
    %705 = vmatprep.subr.bf16.mxu0 0
    %706 = vmatpush1.bf16.msra.mxu0 0
    %707 = vmatprep.subr.bf16.mxu0 0
    %708 = vmatpush1.bf16.msra.mxu0 0
    %709 = vmatprep.subr.bf16.mxu0 0
    %710 = vmatpush1.bf16.msra.mxu0 0
    %711 = vmatprep.mubr.bf16.mxu0 0
    %712 = vmatmul.mubr.bf16.gmra.mrb[0].mxu0 %v677
    %v713 = vpop.f32.mrb[0].mxu0
    %v714 = vadd.f32 0.0, %v713
    %v715 = vpop.f32.mrb[0].mxu0
    %v716 = vpop.f32.mrb[0].mxu0
    %v717 = vadd.f32 0.0, %v716
    %v718 = vpop.f32.mrb[0].mxu0
    %719 = vdwg.mxu0
    %v720 = vpack.c.bf16 %v717, %v714
    %v725 = vunpack.c.l.b16 %v459
    %v726 = vunpack.c.l.b16 %v460
    %v727 = vunpack.c.l.b16 %v461
    %v728 = vunpack.c.l.b16 %v462
    %v729 = vpack.c.b16 %v726, %v725
    %v730 = vpack.c.b16 %v728, %v727
    %v734 = vsel %vm471, %v720, 0
    %736 = vmatprep.subr.bf16.mxu0 0
    %737 = vmatpush1.bf16.msra.mxu0 %v729
    %738 = vmatprep.subr.bf16.mxu0 0
    %739 = vmatpush1.bf16.msra.mxu0 %v730
    %740 = vmatprep.subr.bf16.mxu0 0
    %741 = vmatpush1.bf16.msra.mxu0 0
    %742 = vmatprep.subr.bf16.mxu0 0
    %743 = vmatpush1.bf16.msra.mxu0 0
    %744 = vmatprep.subr.bf16.mxu0 0
    %745 = vmatpush1.bf16.msra.mxu0 0
    %746 = vmatprep.subr.bf16.mxu0 0
    %747 = vmatpush1.bf16.msra.mxu0 0
    %748 = vmatprep.subr.bf16.mxu0 0
    %749 = vmatpush1.bf16.msra.mxu0 0
    %750 = vmatprep.subr.bf16.mxu0 0
    %751 = vmatpush1.bf16.msra.mxu0 0
    %752 = vmatprep.subr.bf16.mxu0 0
    %753 = vmatpush1.bf16.msra.mxu0 0
    %754 = vmatprep.subr.bf16.mxu0 0
    %755 = vmatpush1.bf16.msra.mxu0 0
    %756 = vmatprep.subr.bf16.mxu0 0
    %757 = vmatpush1.bf16.msra.mxu0 0
    %758 = vmatprep.subr.bf16.mxu0 0
    %759 = vmatpush1.bf16.msra.mxu0 0
    %760 = vmatprep.subr.bf16.mxu0 0
    %761 = vmatpush1.bf16.msra.mxu0 0
    %762 = vmatprep.subr.bf16.mxu0 0
    %763 = vmatpush1.bf16.msra.mxu0 0
    %764 = vmatprep.subr.bf16.mxu0 0
    %765 = vmatpush1.bf16.msra.mxu0 0
    %766 = vmatprep.subr.bf16.mxu0 0
    %767 = vmatpush1.bf16.msra.mxu0 0
    %768 = vmatprep.mubr.bf16.mxu0 0
    %769 = vmatmul.mubr.bf16.gmra.mrb[0].mxu0 %v734
    %v770 = vpop.f32.mrb[0].mxu0
    %v771 = vadd.f32 0.0, %v770
    %v772 = vpop.f32.mrb[0].mxu0
    %v773 = vpop.f32.mrb[0].mxu0
    %v774 = vadd.f32 0.0, %v773
    %v775 = vpop.f32.mrb[0].mxu0
    %776 = vdwg.mxu0
    %v781 = vunpack.c.l.b16 %v455
    %v782 = vunpack.c.l.b16 %v456
    %v783 = vunpack.c.l.b16 %v457
    %v784 = vunpack.c.l.b16 %v458
    %v785 = vpack.c.b16 %v782, %v781
    %v786 = vpack.c.b16 %v784, %v783
    %v790 = vsel %vm471, %v591, 0
    %792 = vmatprep.subr.bf16.mxu0 0
    %793 = vmatpush1.bf16.msra.mxu0 %v785
    %794 = vmatprep.subr.bf16.mxu0 0
    %795 = vmatpush1.bf16.msra.mxu0 %v786
    %796 = vmatprep.subr.bf16.mxu0 0
    %797 = vmatpush1.bf16.msra.mxu0 0
    %798 = vmatprep.subr.bf16.mxu0 0
    %799 = vmatpush1.bf16.msra.mxu0 0
    %800 = vmatprep.subr.bf16.mxu0 0
    %801 = vmatpush1.bf16.msra.mxu0 0
    %802 = vmatprep.subr.bf16.mxu0 0
    %803 = vmatpush1.bf16.msra.mxu0 0
    %804 = vmatprep.subr.bf16.mxu0 0
    %805 = vmatpush1.bf16.msra.mxu0 0
    %806 = vmatprep.subr.bf16.mxu0 0
    %807 = vmatpush1.bf16.msra.mxu0 0
    %808 = vmatprep.subr.bf16.mxu0 0
    %809 = vmatpush1.bf16.msra.mxu0 0
    %810 = vmatprep.subr.bf16.mxu0 0
    %811 = vmatpush1.bf16.msra.mxu0 0
    %812 = vmatprep.subr.bf16.mxu0 0
    %813 = vmatpush1.bf16.msra.mxu0 0
    %814 = vmatprep.subr.bf16.mxu0 0
    %815 = vmatpush1.bf16.msra.mxu0 0
    %816 = vmatprep.subr.bf16.mxu0 0
    %817 = vmatpush1.bf16.msra.mxu0 0
    %818 = vmatprep.subr.bf16.mxu0 0
    %819 = vmatpush1.bf16.msra.mxu0 0
    %820 = vmatprep.subr.bf16.mxu0 0
    %821 = vmatpush1.bf16.msra.mxu0 0
    %822 = vmatprep.subr.bf16.mxu0 0
    %823 = vmatpush1.bf16.msra.mxu0 0
    %824 = vmatprep.mubr.bf16.mxu0 0
    %825 = vmatmul.mubr.bf16.gmra.mrb[0].mxu0 %v790
    %v826 = vpop.f32.mrb[0].mxu0
    %v827 = vadd.f32 %v771, %v826
    %v828 = vpop.f32.mrb[0].mxu0
    %v829 = vpop.f32.mrb[0].mxu0
    %v830 = vadd.f32 %v774, %v829
    %v831 = vpop.f32.mrb[0].mxu0
    %832 = vdwg.mxu0
    %833 = vrot.lane.b32.xlu0 %v452, 64
    %v834 = vpop.permute.xlu0 %833
    %835 = vrot.lane.b32.xlu0 %v453, 64
    %v836 = vpop.permute.xlu0 %835
    %v838 = vsel %vm471, %v834, 0
    %v841 = vsel %vm471, %v836, 0
    %843 = vmatprep.subr.bf16.mxu0 0
    %844 = vmatpush1.bf16.xpose.msra.mxu0 %v841
    %845 = vmatprep.subr.bf16.mxu0 0
    %846 = vmatpush1.bf16.xpose.msra.mxu0 0
    %847 = vmatprep.subr.bf16.mxu0 0
    %848 = vmatpush1.bf16.xpose.msra.mxu0 0
    %849 = vmatprep.subr.bf16.mxu0 0
    %850 = vmatpush1.bf16.xpose.msra.mxu0 0
    %851 = vmatprep.subr.bf16.mxu0 0
    %852 = vmatpush1.bf16.xpose.msra.mxu0 0
    %853 = vmatprep.subr.bf16.mxu0 0
    %854 = vmatpush1.bf16.xpose.msra.mxu0 0
    %855 = vmatprep.subr.bf16.mxu0 0
    %856 = vmatpush1.bf16.xpose.msra.mxu0 0
    %857 = vmatprep.subr.bf16.mxu0 0
    %858 = vmatpush1.bf16.xpose.msra.mxu0 0
    %859 = vmatprep.subr.bf16.mxu0 0
    %860 = vmatpush1.bf16.xpose.msra.mxu0 0
    %861 = vmatprep.subr.bf16.mxu0 0
    %862 = vmatpush1.bf16.xpose.msra.mxu0 0
    %863 = vmatprep.subr.bf16.mxu0 0
    %864 = vmatpush1.bf16.xpose.msra.mxu0 0
    %865 = vmatprep.subr.bf16.mxu0 0
    %866 = vmatpush1.bf16.xpose.msra.mxu0 0
    %867 = vmatprep.subr.bf16.mxu0 0
    %868 = vmatpush1.bf16.xpose.msra.mxu0 0
    %869 = vmatprep.subr.bf16.mxu0 0
    %870 = vmatpush1.bf16.xpose.msra.mxu0 0
    %871 = vmatprep.subr.bf16.mxu0 0
    %872 = vmatpush1.bf16.xpose.msra.mxu0 0
    %873 = vmatprep.subr.bf16.mxu0 0
    %874 = vmatpush1.bf16.xpose.msra.mxu0 0
    %875 = vmatprep.mubr.bf16.mxu0 0
    %876 = vmatmul.mubr.bf16.gmra.mrb[0].mxu0 %v838
    %v877 = vpop.f32.mrb[0].mxu0
    %v878 = vadd.f32 0.0, %v877
    %v879 = vpop.f32.mrb[0].mxu0
    %v880 = vpop.f32.mrb[0].mxu0
    %v881 = vadd.f32 0.0, %v880
    %v882 = vpop.f32.mrb[0].mxu0
    %883 = vdwg.mxu0
    %v884 = vmul.f32 %v878, 0.17677669
    %v885 = vmul.f32 %v881, 0.17677669
    %v886 = vadd.f32 %v884, %v188
    %v887 = vadd.f32 %v885, %v189
    %v888 = vsel %vm523, %v886, -inf
    %889 = vmax.xlane.f32.xlu0 %v888
    %v890 = vpop.xlane.xlu0 %889
    %v891 = vsel %vm523, %v887, -inf
    %892 = vmax.xlane.f32.xlu0 %v891
    %v893 = vpop.xlane.xlu0 %892
    %v894 = vsub.f32 %v886, %v890
    %v895 = vsub.f32 %v887, %v893
    %v896 = vmul.f32 %v894, 1.442695
    %v897 = vpow.pop %v896
    %v898 = vmul.f32 %v895, 1.442695
    %v899 = vpow.pop %v898
    %v900 = vsel %vm523, %v897, 0.0
    %901 = vadd.xlane.f32.xlu0 %v900
    %v902 = vpop.xlane.xlu0 %901
    %v903 = vsel %vm523, %v899, 0.0
    %904 = vadd.xlane.f32.xlu0 %v903
    %v905 = vpop.xlane.xlu0 %904
    %v906 = vrcp.pop %v902
    %v907 = vrcp.pop %v905
    %v908 = vmul.f32 %v897, %v906
    %v909 = vmul.f32 %v899, %v907
    %v910 = vpack.c.bf16 %v909, %v908
    %911 = vrot.lane.b32.xlu0 %v454, 64
    %v912 = vpop.permute.xlu0 %911
    %v915 = vsel %vm523, %v910, 0
    %917 = vmatprep.subr.bf16.mxu0 0
    %918 = vmatpush1.bf16.msra.mxu0 %v912
    %919 = vmatprep.subr.bf16.mxu0 0
    %920 = vmatpush1.bf16.msra.mxu0 0
    %921 = vmatprep.subr.bf16.mxu0 0
    %922 = vmatpush1.bf16.msra.mxu0 0
    %923 = vmatprep.subr.bf16.mxu0 0
    %924 = vmatpush1.bf16.msra.mxu0 0
    %925 = vmatprep.subr.bf16.mxu0 0
    %926 = vmatpush1.bf16.msra.mxu0 0
    %927 = vmatprep.subr.bf16.mxu0 0
    %928 = vmatpush1.bf16.msra.mxu0 0
    %929 = vmatprep.subr.bf16.mxu0 0
    %930 = vmatpush1.bf16.msra.mxu0 0
    %931 = vmatprep.subr.bf16.mxu0 0
    %932 = vmatpush1.bf16.msra.mxu0 0
    %933 = vmatprep.subr.bf16.mxu0 0
    %934 = vmatpush1.bf16.msra.mxu0 0
    %935 = vmatprep.subr.bf16.mxu0 0
    %936 = vmatpush1.bf16.msra.mxu0 0
    %937 = vmatprep.subr.bf16.mxu0 0
    %938 = vmatpush1.bf16.msra.mxu0 0
    %939 = vmatprep.subr.bf16.mxu0 0
    %940 = vmatpush1.bf16.msra.mxu0 0
    %941 = vmatprep.subr.bf16.mxu0 0
    %942 = vmatpush1.bf16.msra.mxu0 0
    %943 = vmatprep.subr.bf16.mxu0 0
    %944 = vmatpush1.bf16.msra.mxu0 0
    %945 = vmatprep.subr.bf16.mxu0 0
    %946 = vmatpush1.bf16.msra.mxu0 0
    %947 = vmatprep.subr.bf16.mxu0 0
    %948 = vmatpush1.bf16.msra.mxu0 0
    %949 = vmatprep.mubr.bf16.mxu0 0
    %950 = vmatmul.mubr.bf16.gmra.mrb[0].mxu0 %v915
    %v951 = vpop.f32.mrb[0].mxu0
    %v952 = vadd.f32 0.0, %v951
    %v953 = vpop.f32.mrb[0].mxu0
    %v954 = vpop.f32.mrb[0].mxu0
    %v955 = vadd.f32 0.0, %v954
    %v956 = vpop.f32.mrb[0].mxu0
    %957 = vdwg.mxu0
    %v958 = vpack.c.bf16 %v955, %v952
    %v963 = vunpack.c.l.b16 %v463
    %v964 = vunpack.c.l.b16 %v464
    %v965 = vunpack.c.l.b16 %v465
    %v966 = vunpack.c.l.b16 %v466
    %v967 = vpack.c.b16 %v964, %v963
    %v968 = vpack.c.b16 %v966, %v965
    %v972 = vsel %vm471, %v958, 0
    %974 = vmatprep.subr.bf16.mxu0 0
    %975 = vmatpush1.bf16.msra.mxu0 %v967
    %976 = vmatprep.subr.bf16.mxu0 0
    %977 = vmatpush1.bf16.msra.mxu0 %v968
    %978 = vmatprep.subr.bf16.mxu0 0
    %979 = vmatpush1.bf16.msra.mxu0 0
    %980 = vmatprep.subr.bf16.mxu0 0
    %981 = vmatpush1.bf16.msra.mxu0 0
    %982 = vmatprep.subr.bf16.mxu0 0
    %983 = vmatpush1.bf16.msra.mxu0 0
    %984 = vmatprep.subr.bf16.mxu0 0
    %985 = vmatpush1.bf16.msra.mxu0 0
    %986 = vmatprep.subr.bf16.mxu0 0
    %987 = vmatpush1.bf16.msra.mxu0 0
    %988 = vmatprep.subr.bf16.mxu0 0
    %989 = vmatpush1.bf16.msra.mxu0 0
    %990 = vmatprep.subr.bf16.mxu0 0
    %991 = vmatpush1.bf16.msra.mxu0 0
    %992 = vmatprep.subr.bf16.mxu0 0
    %993 = vmatpush1.bf16.msra.mxu0 0
    %994 = vmatprep.subr.bf16.mxu0 0
    %995 = vmatpush1.bf16.msra.mxu0 0
    %996 = vmatprep.subr.bf16.mxu0 0
    %997 = vmatpush1.bf16.msra.mxu0 0
    %998 = vmatprep.subr.bf16.mxu0 0
    %999 = vmatpush1.bf16.msra.mxu0 0
    %1000 = vmatprep.subr.bf16.mxu0 0
    %1001 = vmatpush1.bf16.msra.mxu0 0
    %1002 = vmatprep.subr.bf16.mxu0 0
    %1003 = vmatpush1.bf16.msra.mxu0 0
    %1004 = vmatprep.subr.bf16.mxu0 0
    %1005 = vmatpush1.bf16.msra.mxu0 0
    %1006 = vmatprep.mubr.bf16.mxu0 0
    %1007 = vmatmul.mubr.bf16.gmra.mrb[0].mxu0 %v972
    %v1008 = vpop.f32.mrb[0].mxu0
    %v1009 = vadd.f32 0.0, %v1008
    %v1010 = vpop.f32.mrb[0].mxu0
    %v1011 = vpop.f32.mrb[0].mxu0
    %v1012 = vadd.f32 0.0, %v1011
    %v1013 = vpop.f32.mrb[0].mxu0
    %1014 = vdwg.mxu0
    %v1015 = vadd.f32 %v827, %v1009
    %v1016 = vadd.f32 %v830, %v1012
    %1017 = vrot.lane.b32.xlu0 %v452, 32
    %v1018 = vpop.permute.xlu0 %1017
    %1019 = vrot.lane.b32.xlu0 %v453, 32
    %v1020 = vpop.permute.xlu0 %1019
    %v1022 = vsel %vm471, %v1018, 0
    %v1025 = vsel %vm471, %v1020, 0
    %1027 = vmatprep.subr.bf16.mxu0 0
    %1028 = vmatpush1.bf16.xpose.msra.mxu0 %v1025
    %1029 = vmatprep.subr.bf16.mxu0 0
    %1030 = vmatpush1.bf16.xpose.msra.mxu0 0
    %1031 = vmatprep.subr.bf16.mxu0 0
    %1032 = vmatpush1.bf16.xpose.msra.mxu0 0
    %1033 = vmatprep.subr.bf16.mxu0 0
    %1034 = vmatpush1.bf16.xpose.msra.mxu0 0
    %1035 = vmatprep.subr.bf16.mxu0 0
    %1036 = vmatpush1.bf16.xpose.msra.mxu0 0
    %1037 = vmatprep.subr.bf16.mxu0 0
    %1038 = vmatpush1.bf16.xpose.msra.mxu0 0
    %1039 = vmatprep.subr.bf16.mxu0 0
    %1040 = vmatpush1.bf16.xpose.msra.mxu0 0
    %1041 = vmatprep.subr.bf16.mxu0 0
    %1042 = vmatpush1.bf16.xpose.msra.mxu0 0
    %1043 = vmatprep.subr.bf16.mxu0 0
    %1044 = vmatpush1.bf16.xpose.msra.mxu0 0
    %1045 = vmatprep.subr.bf16.mxu0 0
    %1046 = vmatpush1.bf16.xpose.msra.mxu0 0
    %1047 = vmatprep.subr.bf16.mxu0 0
    %1048 = vmatpush1.bf16.xpose.msra.mxu0 0
    %1049 = vmatprep.subr.bf16.mxu0 0
    %1050 = vmatpush1.bf16.xpose.msra.mxu0 0
    %1051 = vmatprep.subr.bf16.mxu0 0
    %1052 = vmatpush1.bf16.xpose.msra.mxu0 0
    %1053 = vmatprep.subr.bf16.mxu0 0
    %1054 = vmatpush1.bf16.xpose.msra.mxu0 0
    %1055 = vmatprep.subr.bf16.mxu0 0
    %1056 = vmatpush1.bf16.xpose.msra.mxu0 0
    %1057 = vmatprep.subr.bf16.mxu0 0
    %1058 = vmatpush1.bf16.xpose.msra.mxu0 0
    %1059 = vmatprep.mubr.bf16.mxu0 0
    %1060 = vmatmul.mubr.bf16.gmra.mrb[0].mxu0 %v1022
    %v1061 = vpop.f32.mrb[0].mxu0
    %v1062 = vadd.f32 0.0, %v1061
    %v1063 = vpop.f32.mrb[0].mxu0
    %v1064 = vpop.f32.mrb[0].mxu0
    %v1065 = vadd.f32 0.0, %v1064
    %v1066 = vpop.f32.mrb[0].mxu0
    %1067 = vdwg.mxu0
    %v1068 = vmul.f32 %v1062, 0.17677669
    %v1069 = vmul.f32 %v1065, 0.17677669
    %v1070 = vadd.f32 %v1068, %v188
    %v1071 = vadd.f32 %v1069, %v189
    %v1072 = vsel %vm523, %v1070, -inf
    %1073 = vmax.xlane.f32.xlu0 %v1072
    %v1074 = vpop.xlane.xlu0 %1073
    %v1075 = vsel %vm523, %v1071, -inf
    %1076 = vmax.xlane.f32.xlu0 %v1075
    %v1077 = vpop.xlane.xlu0 %1076
    %v1078 = vsub.f32 %v1070, %v1074
    %v1079 = vsub.f32 %v1071, %v1077
    %v1080 = vmul.f32 %v1078, 1.442695
    %v1081 = vpow.pop %v1080
    %v1082 = vmul.f32 %v1079, 1.442695
    %v1083 = vpow.pop %v1082
    %v1084 = vsel %vm523, %v1081, 0.0
    %1085 = vadd.xlane.f32.xlu0 %v1084
    %v1086 = vpop.xlane.xlu0 %1085
    %v1087 = vsel %vm523, %v1083, 0.0
    %1088 = vadd.xlane.f32.xlu0 %v1087
    %v1089 = vpop.xlane.xlu0 %1088
    %v1090 = vrcp.pop %v1086
    %v1091 = vrcp.pop %v1089
    %v1092 = vmul.f32 %v1081, %v1090
    %v1093 = vmul.f32 %v1083, %v1091
    %v1094 = vpack.c.bf16 %v1093, %v1092
    %1095 = vrot.lane.b32.xlu0 %v454, 32
    %v1096 = vpop.permute.xlu0 %1095
    %v1099 = vsel %vm523, %v1094, 0
    %1101 = vmatprep.subr.bf16.mxu0 0
    %1102 = vmatpush1.bf16.msra.mxu0 %v1096
    %1103 = vmatprep.subr.bf16.mxu0 0
    %1104 = vmatpush1.bf16.msra.mxu0 0
    %1105 = vmatprep.subr.bf16.mxu0 0
    %1106 = vmatpush1.bf16.msra.mxu0 0
    %1107 = vmatprep.subr.bf16.mxu0 0
    %1108 = vmatpush1.bf16.msra.mxu0 0
    %1109 = vmatprep.subr.bf16.mxu0 0
    %1110 = vmatpush1.bf16.msra.mxu0 0
    %1111 = vmatprep.subr.bf16.mxu0 0
    %1112 = vmatpush1.bf16.msra.mxu0 0
    %1113 = vmatprep.subr.bf16.mxu0 0
    %1114 = vmatpush1.bf16.msra.mxu0 0
    %1115 = vmatprep.subr.bf16.mxu0 0
    %1116 = vmatpush1.bf16.msra.mxu0 0
    %1117 = vmatprep.subr.bf16.mxu0 0
    %1118 = vmatpush1.bf16.msra.mxu0 0
    %1119 = vmatprep.subr.bf16.mxu0 0
    %1120 = vmatpush1.bf16.msra.mxu0 0
    %1121 = vmatprep.subr.bf16.mxu0 0
    %1122 = vmatpush1.bf16.msra.mxu0 0
    %1123 = vmatprep.subr.bf16.mxu0 0
    %1124 = vmatpush1.bf16.msra.mxu0 0
    %1125 = vmatprep.subr.bf16.mxu0 0
    %1126 = vmatpush1.bf16.msra.mxu0 0
    %1127 = vmatprep.subr.bf16.mxu0 0
    %1128 = vmatpush1.bf16.msra.mxu0 0
    %1129 = vmatprep.subr.bf16.mxu0 0
    %1130 = vmatpush1.bf16.msra.mxu0 0
    %1131 = vmatprep.subr.bf16.mxu0 0
    %1132 = vmatpush1.bf16.msra.mxu0 0
    %1133 = vmatprep.mubr.bf16.mxu0 0
    %1134 = vmatmul.mubr.bf16.gmra.mrb[0].mxu0 %v1099
    %v1135 = vpop.f32.mrb[0].mxu0
    %v1136 = vadd.f32 0.0, %v1135
    %v1137 = vpop.f32.mrb[0].mxu0
    %v1138 = vpop.f32.mrb[0].mxu0
    %v1139 = vadd.f32 0.0, %v1138
    %v1140 = vpop.f32.mrb[0].mxu0
    %1141 = vdwg.mxu0
    %v1142 = vpack.c.bf16 %v1139, %v1136
    %v1147 = vunpack.c.l.b16 %v467
    %v1148 = vunpack.c.l.b16 %v468
    %v1149 = vunpack.c.l.b16 %v469
    %v1150 = vunpack.c.l.b16 %v470
    %v1151 = vpack.c.b16 %v1148, %v1147
    %v1152 = vpack.c.b16 %v1150, %v1149
    %v1156 = vsel %vm471, %v1142, 0
    %1158 = vmatprep.subr.bf16.mxu0 0
    %1159 = vmatpush1.bf16.msra.mxu0 %v1151
    %1160 = vmatprep.subr.bf16.mxu0 0
    %1161 = vmatpush1.bf16.msra.mxu0 %v1152
    %1162 = vmatprep.subr.bf16.mxu0 0
    %1163 = vmatpush1.bf16.msra.mxu0 0
    %1164 = vmatprep.subr.bf16.mxu0 0
    %1165 = vmatpush1.bf16.msra.mxu0 0
    %1166 = vmatprep.subr.bf16.mxu0 0
    %1167 = vmatpush1.bf16.msra.mxu0 0
    %1168 = vmatprep.subr.bf16.mxu0 0
    %1169 = vmatpush1.bf16.msra.mxu0 0
    %1170 = vmatprep.subr.bf16.mxu0 0
    %1171 = vmatpush1.bf16.msra.mxu0 0
    %1172 = vmatprep.subr.bf16.mxu0 0
    %1173 = vmatpush1.bf16.msra.mxu0 0
    %1174 = vmatprep.subr.bf16.mxu0 0
    %1175 = vmatpush1.bf16.msra.mxu0 0
    %1176 = vmatprep.subr.bf16.mxu0 0
    %1177 = vmatpush1.bf16.msra.mxu0 0
    %1178 = vmatprep.subr.bf16.mxu0 0
    %1179 = vmatpush1.bf16.msra.mxu0 0
    %1180 = vmatprep.subr.bf16.mxu0 0
    %1181 = vmatpush1.bf16.msra.mxu0 0
    %1182 = vmatprep.subr.bf16.mxu0 0
    %1183 = vmatpush1.bf16.msra.mxu0 0
    %1184 = vmatprep.subr.bf16.mxu0 0
    %1185 = vmatpush1.bf16.msra.mxu0 0
    %1186 = vmatprep.subr.bf16.mxu0 0
    %1187 = vmatpush1.bf16.msra.mxu0 0
    %1188 = vmatprep.subr.bf16.mxu0 0
    %1189 = vmatpush1.bf16.msra.mxu0 0
    %1190 = vmatprep.mubr.bf16.mxu0 0
    %1191 = vmatmul.mubr.bf16.gmra.mrb[0].mxu0 %v1156
    %v1192 = vpop.f32.mrb[0].mxu0
    %v1193 = vadd.f32 0.0, %v1192
    %v1194 = vpop.f32.mrb[0].mxu0
    %v1195 = vpop.f32.mrb[0].mxu0
    %v1196 = vadd.f32 0.0, %v1195
    %v1197 = vpop.f32.mrb[0].mxu0
    %1198 = vdwg.mxu0
    %v1199 = vadd.f32 %v1015, %v1193
    %v1200 = vadd.f32 %v1016, %v1196
    %v1201 = vld [vmem:[%s7] sm:$0x1]
    %v1203 = vlaneseq
    %v1204 = vshrl.u32 %v1203, 7
    %v1205 = vsub.s32 0, %v1204
    %v1206 = vrot.slane %v1201, %v1205
    %v1208 = vadd.f32 %v1199, %v1206
    %v1209 = vadd.f32 %v1200, %v1206
    %v1210 = vadd.f32 %v1208, %v156
    %v1211 = vadd.f32 %v1209, %v157
    %v1212 = vld [vmem:[%s8] sm:$0x1]
    %v1213 = vld [vmem:[%s9] sm:$0x1]
    %1214 = vadd.xlane.f32.xlu0 %v1210
    %v1215 = vpop.xlane.xlu0 %1214
    %1216 = vadd.xlane.f32.xlu0 %v1211
    %v1217 = vpop.xlane.xlu0 %1216
    %v1218 = vmul.f32 %v1215, %v123
    %v1219 = vmul.f32 %v1217, %v123
    %v1220 = vsub.f32 %v1210, %v1218
    %v1221 = vsub.f32 %v1211, %v1219
    %v1222 = vmul.f32 %v1220, %v1220
    %v1223 = vmul.f32 %v1221, %v1221
    %1224 = vadd.xlane.f32.xlu0 %v1222
    %v1225 = vpop.xlane.xlu0 %1224
    %1226 = vadd.xlane.f32.xlu0 %v1223
    %v1227 = vpop.xlane.xlu0 %1226
    %v1228 = vmul.f32 %v1225, %v123
    %v1229 = vmul.f32 %v1227, %v123
    %v1230 = vadd.f32 %v1228, 1e-12
    %v1231 = vadd.f32 %v1229, 1e-12
    %v1232 = vrsqrt.pop %v1230
    %v1233 = vrsqrt.pop %v1231
    %v1234 = vmul.f32 %v1220, %v1232
    %v1235 = vmul.f32 %v1221, %v1233
    %v1237 = vlaneseq
    %v1238 = vshrl.u32 %v1237, 7
    %v1239 = vsub.s32 0, %v1238
    %v1240 = vrot.slane %v1212, %v1239
    %v1242 = vmul.f32 %v1234, %v1240
    %v1243 = vmul.f32 %v1235, %v1240
    %v1245 = vlaneseq
    %v1246 = vshrl.u32 %v1245, 7
    %v1247 = vsub.s32 0, %v1246
    %v1248 = vrot.slane %v1213, %v1247
    %v1250 = vadd.f32 %v1242, %v1248
    %v1251 = vadd.f32 %v1243, %v1248
    %v1252 = vpack.c.bf16 %v1251, %v1250
    %v1253 = vld [vmem:[#allocation6] sm:$0xff]
    %v1254 = vld [vmem:[#allocation6 + $0x8] sm:$0xff]
    %v1255 = vld [vmem:[#allocation6 + $0x10] sm:$0xff]
    %v1256 = vld [vmem:[#allocation6 + $0x18] sm:$0xff]
    %v1257 = vld [vmem:[#allocation6 + $0x20] sm:$0xff]
    %v1258 = vld [vmem:[#allocation6 + $0x28] sm:$0xff]
    %v1259 = vld [vmem:[#allocation6 + $0x30] sm:$0xff]
    %v1260 = vld [vmem:[#allocation6 + $0x38] sm:$0xff]
    %v1261 = vld [vmem:[#allocation6 + $0x40] sm:$0xff]
    %v1262 = vld [vmem:[#allocation6 + $0x48] sm:$0xff]
    %v1263 = vld [vmem:[#allocation6 + $0x50] sm:$0xff]
    %v1264 = vld [vmem:[#allocation6 + $0x58] sm:$0xff]
    %v1265 = vld [vmem:[#allocation6 + $0x60] sm:$0xff]
    %v1266 = vld [vmem:[#allocation6 + $0x68] sm:$0xff]
    %v1267 = vld [vmem:[#allocation6 + $0x70] sm:$0xff]
    %v1268 = vld [vmem:[#allocation6 + $0x78] sm:$0xff]
    %v1269 = vld [vmem:[%s11] sm:$0x3]
    %v1271 = vlaneseq
    %v1272 = vshrl.u32 %v1271, 7
    %v1273 = vsub.s32 0, %v1272
    %v1274 = vrot.slane %v1269, %v1273
    %v1275 = vlaneseq
    %v1276 = vshrl.u32 %v1275, 7
    %v1277 = vsub.s32 1, %v1276
    %v1278 = vrot.slane %v1269, %v1277
    %v1297 = vunpack.c.l.b16 %v1253
    %v1298 = vunpack.c.h.b16 %v1253
    %v1299 = vunpack.c.l.b16 %v1254
    %v1300 = vunpack.c.h.b16 %v1254
    %v1301 = vunpack.c.l.b16 %v1255
    %v1302 = vunpack.c.h.b16 %v1255
    %v1303 = vunpack.c.l.b16 %v1256
    %v1304 = vunpack.c.h.b16 %v1256
    %v1305 = vunpack.c.l.b16 %v1257
    %v1306 = vunpack.c.h.b16 %v1257
    %v1307 = vunpack.c.l.b16 %v1258
    %v1308 = vunpack.c.h.b16 %v1258
    %v1309 = vunpack.c.l.b16 %v1259
    %v1310 = vunpack.c.h.b16 %v1259
    %v1311 = vunpack.c.l.b16 %v1260
    %v1312 = vunpack.c.h.b16 %v1260
    %v1313 = vunpack.c.l.b16 %v1261
    %v1314 = vunpack.c.h.b16 %v1261
    %v1315 = vunpack.c.l.b16 %v1262
    %v1316 = vunpack.c.h.b16 %v1262
    %v1317 = vunpack.c.l.b16 %v1263
    %v1318 = vunpack.c.h.b16 %v1263
    %v1319 = vunpack.c.l.b16 %v1264
    %v1320 = vunpack.c.h.b16 %v1264
    %v1321 = vunpack.c.l.b16 %v1265
    %v1322 = vunpack.c.h.b16 %v1265
    %v1323 = vunpack.c.l.b16 %v1266
    %v1324 = vunpack.c.h.b16 %v1266
    %v1325 = vunpack.c.l.b16 %v1267
    %v1326 = vunpack.c.h.b16 %v1267
    %v1327 = vunpack.c.l.b16 %v1268
    %v1328 = vunpack.c.h.b16 %v1268
    %v1329 = vpack.c.b16 %v1299, %v1297
    %v1330 = vpack.c.b16 %v1300, %v1298
    %v1331 = vpack.c.b16 %v1303, %v1301
    %v1332 = vpack.c.b16 %v1304, %v1302
    %v1333 = vpack.c.b16 %v1307, %v1305
    %v1334 = vpack.c.b16 %v1308, %v1306
    %v1335 = vpack.c.b16 %v1311, %v1309
    %v1336 = vpack.c.b16 %v1312, %v1310
    %v1337 = vpack.c.b16 %v1315, %v1313
    %v1338 = vpack.c.b16 %v1316, %v1314
    %v1339 = vpack.c.b16 %v1319, %v1317
    %v1340 = vpack.c.b16 %v1320, %v1318
    %v1341 = vpack.c.b16 %v1323, %v1321
    %v1342 = vpack.c.b16 %v1324, %v1322
    %v1343 = vpack.c.b16 %v1327, %v1325
    %v1344 = vpack.c.b16 %v1328, %v1326
    %1361 = vmatprep.subr.bf16.mxu0 %v1330
    %1362 = vmatpush1.bf16.msra.mxu0 %v1329
    %1363 = vmatprep.subr.bf16.mxu0 %v1332
    %1364 = vmatpush1.bf16.msra.mxu0 %v1331
    %1365 = vmatprep.subr.bf16.mxu0 %v1334
    %1366 = vmatpush1.bf16.msra.mxu0 %v1333
    %1367 = vmatprep.subr.bf16.mxu0 %v1336
    %1368 = vmatpush1.bf16.msra.mxu0 %v1335
    %1369 = vmatprep.subr.bf16.mxu0 %v1338
    %1370 = vmatpush1.bf16.msra.mxu0 %v1337
    %1371 = vmatprep.subr.bf16.mxu0 %v1340
    %1372 = vmatpush1.bf16.msra.mxu0 %v1339
    %1373 = vmatprep.subr.bf16.mxu0 %v1342
    %1374 = vmatpush1.bf16.msra.mxu0 %v1341
    %1375 = vmatprep.subr.bf16.mxu0 %v1344
    %1376 = vmatpush1.bf16.msra.mxu0 %v1343
    %1377 = vmatprep.subr.bf16.mxu0 0
    %1378 = vmatpush1.bf16.msra.mxu0 0
    %1379 = vmatprep.subr.bf16.mxu0 0
    %1380 = vmatpush1.bf16.msra.mxu0 0
    %1381 = vmatprep.subr.bf16.mxu0 0
    %1382 = vmatpush1.bf16.msra.mxu0 0
    %1383 = vmatprep.subr.bf16.mxu0 0
    %1384 = vmatpush1.bf16.msra.mxu0 0
    %1385 = vmatprep.subr.bf16.mxu0 0
    %1386 = vmatpush1.bf16.msra.mxu0 0
    %1387 = vmatprep.subr.bf16.mxu0 0
    %1388 = vmatpush1.bf16.msra.mxu0 0
    %1389 = vmatprep.subr.bf16.mxu0 0
    %1390 = vmatpush1.bf16.msra.mxu0 0
    %1391 = vmatprep.subr.bf16.mxu0 0
    %1392 = vmatpush1.bf16.msra.mxu0 0
    %1393 = vmatprep.mubr.bf16.mxu0 0
    %1394 = vmatmul.mubr.bf16.gmra.mrb[0].mxu0 %v1252
    %v1395 = vpop.f32.mrb[0].mxu0
    %v1396 = vadd.f32 %v1274, %v1395
    %v1397 = vpop.f32.mrb[0].mxu0
    %v1398 = vadd.f32 %v1278, %v1397
    %v1399 = vpop.f32.mrb[0].mxu0
    %v1400 = vadd.f32 %v1274, %v1399
    %v1401 = vpop.f32.mrb[0].mxu0
    %v1402 = vadd.f32 %v1278, %v1401
    %1403 = vdwg.mxu0
    %v1404 = vmul.f32 %v1396, %v1396
    %v1405 = vmul.f32 %v1398, %v1398
    %v1406 = vmul.f32 %v1400, %v1400
    %v1407 = vmul.f32 %v1402, %v1402
    %v1408 = vmul.f32 %v1396, %v1404
    %v1409 = vmul.f32 %v1398, %v1405
    %v1410 = vmul.f32 %v1400, %v1406
    %v1411 = vmul.f32 %v1402, %v1407
    %v1412 = vmul.f32 %v1408, 0.044715
    %v1413 = vmul.f32 %v1409, 0.044715
    %v1414 = vmul.f32 %v1410, 0.044715
    %v1415 = vmul.f32 %v1411, 0.044715
    %v1416 = vadd.f32 %v1396, %v1412
    %v1417 = vadd.f32 %v1398, %v1413
    %v1418 = vadd.f32 %v1400, %v1414
    %v1419 = vadd.f32 %v1402, %v1415
    %v1420 = vmul.f32 %v1416, 0.7978846
    %v1421 = vmul.f32 %v1417, 0.7978846
    %v1422 = vmul.f32 %v1418, 0.7978846
    %v1423 = vmul.f32 %v1419, 0.7978846
    %v1424 = vtanh.pop %v1420
    %v1425 = vtanh.pop %v1421
    %v1426 = vtanh.pop %v1422
    %v1427 = vtanh.pop %v1423
    %v1428 = vadd.f32 %v1424, 1.0
    %v1429 = vadd.f32 %v1425, 1.0
    %v1430 = vadd.f32 %v1426, 1.0
    %v1431 = vadd.f32 %v1427, 1.0
    %v1432 = vmul.f32 %v1428, 0.5
    %v1433 = vmul.f32 %v1429, 0.5
    %v1434 = vmul.f32 %v1430, 0.5
    %v1435 = vmul.f32 %v1431, 0.5
    %v1436 = vmul.f32 %v1396, %v1432
    %v1437 = vmul.f32 %v1398, %v1433
    %v1438 = vmul.f32 %v1400, %v1434
    %v1439 = vmul.f32 %v1402, %v1435
    %v1440 = vpack.c.bf16 %v1438, %v1436
    %v1441 = vpack.c.bf16 %v1439, %v1437
    %v1442 = vld [vmem:[#allocation7] sm:$0xf]
    %v1443 = vld [vmem:[#allocation7 + $0x4] sm:$0xf]
    %v1444 = vld [vmem:[#allocation7 + $0x8] sm:$0xf]
    %v1445 = vld [vmem:[#allocation7 + $0xc] sm:$0xf]
    %v1446 = vld [vmem:[#allocation7 + $0x10] sm:$0xf]
    %v1447 = vld [vmem:[#allocation7 + $0x14] sm:$0xf]
    %v1448 = vld [vmem:[#allocation7 + $0x18] sm:$0xf]
    %v1449 = vld [vmem:[#allocation7 + $0x1c] sm:$0xf]
    %v1450 = vld [vmem:[#allocation7 + $0x20] sm:$0xf]
    %v1451 = vld [vmem:[#allocation7 + $0x24] sm:$0xf]
    %v1452 = vld [vmem:[#allocation7 + $0x28] sm:$0xf]
    %v1453 = vld [vmem:[#allocation7 + $0x2c] sm:$0xf]
    %v1454 = vld [vmem:[#allocation7 + $0x30] sm:$0xf]
    %v1455 = vld [vmem:[#allocation7 + $0x34] sm:$0xf]
    %v1456 = vld [vmem:[#allocation7 + $0x38] sm:$0xf]
    %v1457 = vld [vmem:[#allocation7 + $0x3c] sm:$0xf]
    %v1458 = vld [vmem:[#allocation7 + $0x40] sm:$0xf]
    %v1459 = vld [vmem:[#allocation7 + $0x44] sm:$0xf]
    %v1460 = vld [vmem:[#allocation7 + $0x48] sm:$0xf]
    %v1461 = vld [vmem:[#allocation7 + $0x4c] sm:$0xf]
    %v1462 = vld [vmem:[#allocation7 + $0x50] sm:$0xf]
    %v1463 = vld [vmem:[#allocation7 + $0x54] sm:$0xf]
    %v1464 = vld [vmem:[#allocation7 + $0x58] sm:$0xf]
    %v1465 = vld [vmem:[#allocation7 + $0x5c] sm:$0xf]
    %v1466 = vld [vmem:[#allocation7 + $0x60] sm:$0xf]
    %v1467 = vld [vmem:[#allocation7 + $0x64] sm:$0xf]
    %v1468 = vld [vmem:[#allocation7 + $0x68] sm:$0xf]
    %v1469 = vld [vmem:[#allocation7 + $0x6c] sm:$0xf]
    %v1470 = vld [vmem:[#allocation7 + $0x70] sm:$0xf]
    %v1471 = vld [vmem:[#allocation7 + $0x74] sm:$0xf]
    %v1472 = vld [vmem:[#allocation7 + $0x78] sm:$0xf]
    %v1473 = vld [vmem:[#allocation7 + $0x7c] sm:$0xf]
    %v1474 = vld [vmem:[%s13] sm:$0x1]
    %v1476 = vlaneseq
    %v1477 = vshrl.u32 %v1476, 7
    %v1478 = vsub.s32 0, %v1477
    %v1479 = vrot.slane %v1474, %v1478
    %v1513 = vunpack.c.l.b16 %v1442
    %v1514 = vunpack.c.l.b16 %v1443
    %v1515 = vunpack.c.l.b16 %v1444
    %v1516 = vunpack.c.l.b16 %v1445
    %v1517 = vunpack.c.l.b16 %v1446
    %v1518 = vunpack.c.l.b16 %v1447
    %v1519 = vunpack.c.l.b16 %v1448
    %v1520 = vunpack.c.l.b16 %v1449
    %v1521 = vunpack.c.l.b16 %v1450
    %v1522 = vunpack.c.l.b16 %v1451
    %v1523 = vunpack.c.l.b16 %v1452
    %v1524 = vunpack.c.l.b16 %v1453
    %v1525 = vunpack.c.l.b16 %v1454
    %v1526 = vunpack.c.l.b16 %v1455
    %v1527 = vunpack.c.l.b16 %v1456
    %v1528 = vunpack.c.l.b16 %v1457
    %v1529 = vunpack.c.l.b16 %v1458
    %v1530 = vunpack.c.l.b16 %v1459
    %v1531 = vunpack.c.l.b16 %v1460
    %v1532 = vunpack.c.l.b16 %v1461
    %v1533 = vunpack.c.l.b16 %v1462
    %v1534 = vunpack.c.l.b16 %v1463
    %v1535 = vunpack.c.l.b16 %v1464
    %v1536 = vunpack.c.l.b16 %v1465
    %v1537 = vunpack.c.l.b16 %v1466
    %v1538 = vunpack.c.l.b16 %v1467
    %v1539 = vunpack.c.l.b16 %v1468
    %v1540 = vunpack.c.l.b16 %v1469
    %v1541 = vunpack.c.l.b16 %v1470
    %v1542 = vunpack.c.l.b16 %v1471
    %v1543 = vunpack.c.l.b16 %v1472
    %v1544 = vunpack.c.l.b16 %v1473
    %v1545 = vpack.c.b16 %v1514, %v1513
    %v1546 = vpack.c.b16 %v1516, %v1515
    %v1547 = vpack.c.b16 %v1518, %v1517
    %v1548 = vpack.c.b16 %v1520, %v1519
    %v1549 = vpack.c.b16 %v1522, %v1521
    %v1550 = vpack.c.b16 %v1524, %v1523
    %v1551 = vpack.c.b16 %v1526, %v1525
    %v1552 = vpack.c.b16 %v1528, %v1527
    %v1553 = vpack.c.b16 %v1530, %v1529
    %v1554 = vpack.c.b16 %v1532, %v1531
    %v1555 = vpack.c.b16 %v1534, %v1533
    %v1556 = vpack.c.b16 %v1536, %v1535
    %v1557 = vpack.c.b16 %v1538, %v1537
    %v1558 = vpack.c.b16 %v1540, %v1539
    %v1559 = vpack.c.b16 %v1542, %v1541
    %v1560 = vpack.c.b16 %v1544, %v1543
    %1577 = vmatprep.subr.bf16.mxu0 0
    %1578 = vmatpush1.bf16.msra.mxu0 %v1545
    %1579 = vmatprep.subr.bf16.mxu0 0
    %1580 = vmatpush1.bf16.msra.mxu0 %v1546
    %1581 = vmatprep.subr.bf16.mxu0 0
    %1582 = vmatpush1.bf16.msra.mxu0 %v1547
    %1583 = vmatprep.subr.bf16.mxu0 0
    %1584 = vmatpush1.bf16.msra.mxu0 %v1548
    %1585 = vmatprep.subr.bf16.mxu0 0
    %1586 = vmatpush1.bf16.msra.mxu0 %v1549
    %1587 = vmatprep.subr.bf16.mxu0 0
    %1588 = vmatpush1.bf16.msra.mxu0 %v1550
    %1589 = vmatprep.subr.bf16.mxu0 0
    %1590 = vmatpush1.bf16.msra.mxu0 %v1551
    %1591 = vmatprep.subr.bf16.mxu0 0
    %1592 = vmatpush1.bf16.msra.mxu0 %v1552
    %1593 = vmatprep.subr.bf16.mxu0 0
    %1594 = vmatpush1.bf16.msra.mxu0 %v1553
    %1595 = vmatprep.subr.bf16.mxu0 0
    %1596 = vmatpush1.bf16.msra.mxu0 %v1554
    %1597 = vmatprep.subr.bf16.mxu0 0
    %1598 = vmatpush1.bf16.msra.mxu0 %v1555
    %1599 = vmatprep.subr.bf16.mxu0 0
    %1600 = vmatpush1.bf16.msra.mxu0 %v1556
    %1601 = vmatprep.subr.bf16.mxu0 0
    %1602 = vmatpush1.bf16.msra.mxu0 %v1557
    %1603 = vmatprep.subr.bf16.mxu0 0
    %1604 = vmatpush1.bf16.msra.mxu0 %v1558
    %1605 = vmatprep.subr.bf16.mxu0 0
    %1606 = vmatpush1.bf16.msra.mxu0 %v1559
    %1607 = vmatprep.subr.bf16.mxu0 0
    %1608 = vmatpush1.bf16.msra.mxu0 %v1560
    %1609 = vmatprep.mubr.bf16.mxu0 %v1441
    %1610 = vmatmul.mubr.bf16.gmra.mrb[0].mxu0 %v1440
    %v1611 = vpop.f32.mrb[0].mxu0
    %v1612 = vadd.f32 %v1479, %v1611
    %v1613 = vpop.f32.mrb[0].mxu0
    %v1614 = vpop.f32.mrb[0].mxu0
    %v1615 = vadd.f32 %v1479, %v1614
    %v1616 = vpop.f32.mrb[0].mxu0
    %1617 = vdwg.mxu0
    %v1618 = vadd.f32 %v1612, %v1250
    %v1619 = vadd.f32 %v1615, %v1251
    %v1620 = vld [vmem:[%s14] sm:$0x1]
    %v1621 = vld [vmem:[%s15] sm:$0x1]
    %1622 = vadd.xlane.f32.xlu0 %v1618
    %v1623 = vpop.xlane.xlu0 %1622
    %1624 = vadd.xlane.f32.xlu0 %v1619
    %v1625 = vpop.xlane.xlu0 %1624
    %v1626 = vmul.f32 %v1623, %v123
    %v1627 = vmul.f32 %v1625, %v123
    %v1628 = vsub.f32 %v1618, %v1626
    %v1629 = vsub.f32 %v1619, %v1627
    %v1630 = vmul.f32 %v1628, %v1628
    %v1631 = vmul.f32 %v1629, %v1629
    %1632 = vadd.xlane.f32.xlu0 %v1630
    %v1633 = vpop.xlane.xlu0 %1632
    %1634 = vadd.xlane.f32.xlu0 %v1631
    %v1635 = vpop.xlane.xlu0 %1634
    %v1636 = vmul.f32 %v1633, %v123
    %v1637 = vmul.f32 %v1635, %v123
    %v1638 = vadd.f32 %v1636, 1e-12
    %v1639 = vadd.f32 %v1637, 1e-12
    %v1640 = vrsqrt.pop %v1638
    %v1641 = vrsqrt.pop %v1639
    %v1642 = vmul.f32 %v1628, %v1640
    %v1643 = vmul.f32 %v1629, %v1641
    %v1645 = vlaneseq
    %v1646 = vshrl.u32 %v1645, 7
    %v1647 = vsub.s32 0, %v1646
    %v1648 = vrot.slane %v1620, %v1647
    %v1650 = vmul.f32 %v1642, %v1648
    %v1651 = vmul.f32 %v1643, %v1648
    %v1653 = vlaneseq
    %v1654 = vshrl.u32 %v1653, 7
    %v1655 = vsub.s32 0, %v1654
    %v1656 = vrot.slane %v1621, %v1655
    %v1658 = vadd.f32 %v1650, %v1656
    %v1659 = vadd.f32 %v1651, %v1656
    %v1660 = vpack.c.bf16 %v1659, %v1658
    %s1661 = scalar_lea.vmem [#allocation2], 192
    %v1662 = vld [vmem:[%s1661] sm:$0xff]
    %v1663 = vld [vmem:[%s1661 + $0x8] sm:$0xf]
    %v1664 = vld [vmem:[%s1661 + $0xc] sm:$0xff]
    %v1665 = vld [vmem:[%s1661 + $0x14] sm:$0xf]
    %v1666 = vld [vmem:[%s1661 + $0x18] sm:$0xff]
    %v1667 = vld [vmem:[%s1661 + $0x20] sm:$0xf]
    %v1668 = vld [vmem:[%s1661 + $0x24] sm:$0xff]
    %v1669 = vld [vmem:[%s1661 + $0x2c] sm:$0xf]
    %v1670 = vld [vmem:[%s1661 + $0x30] sm:$0xff]
    %v1671 = vld [vmem:[%s1661 + $0x38] sm:$0xf]
    %v1672 = vld [vmem:[%s1661 + $0x3c] sm:$0xff]
    %v1673 = vld [vmem:[%s1661 + $0x44] sm:$0xf]
    %v1674 = vld [vmem:[%s1661 + $0x48] sm:$0xff]
    %v1675 = vld [vmem:[%s1661 + $0x50] sm:$0xf]
    %v1676 = vld [vmem:[%s1661 + $0x54] sm:$0xff]
    %v1677 = vld [vmem:[%s1661 + $0x5c] sm:$0xf]
    %v1678 = vld [vmem:[%s1661 + $0x60] sm:$0xff]
    %v1679 = vld [vmem:[%s1661 + $0x68] sm:$0xf]
    %v1680 = vld [vmem:[%s1661 + $0x6c] sm:$0xff]
    %v1681 = vld [vmem:[%s1661 + $0x74] sm:$0xf]
    %v1682 = vld [vmem:[%s1661 + $0x78] sm:$0xff]
    %v1683 = vld [vmem:[%s1661 + $0x80] sm:$0xf]
    %v1684 = vld [vmem:[%s1661 + $0x84] sm:$0xff]
    %v1685 = vld [vmem:[%s1661 + $0x8c] sm:$0xf]
    %v1686 = vld [vmem:[%s1661 + $0x90] sm:$0xff]
    %v1687 = vld [vmem:[%s1661 + $0x98] sm:$0xf]
    %v1688 = vld [vmem:[%s1661 + $0x9c] sm:$0xff]
    %v1689 = vld [vmem:[%s1661 + $0xa4] sm:$0xf]
    %v1690 = vld [vmem:[%s1661 + $0xa8] sm:$0xff]
    %v1691 = vld [vmem:[%s1661 + $0xb0] sm:$0xf]
    %v1692 = vld [vmem:[%s1661 + $0xb4] sm:$0xff]
    %v1693 = vld [vmem:[%s1661 + $0xbc] sm:$0xf]
    %s1694 = scalar_lea.vmem %s5, 3
    %v1695 = vld [vmem:[%s1694] sm:$0x7]
    %v1697 = vlaneseq
    %v1698 = vshrl.u32 %v1697, 7
    %v1699 = vsub.s32 0, %v1698
    %v1700 = vrot.slane %v1695, %v1699
    %v1701 = vlaneseq
    %v1702 = vshrl.u32 %v1701, 7
    %v1703 = vsub.s32 1, %v1702
    %v1704 = vrot.slane %v1695, %v1703
    %v1705 = vlaneseq
    %v1706 = vshrl.u32 %v1705, 7
    %v1707 = vsub.s32 2, %v1706
    %v1708 = vrot.slane %v1695, %v1707
    %v1744 = vunpack.c.l.b16 %v1662
    %v1745 = vunpack.c.h.b16 %v1662
    %v1746 = vunpack.c.l.b16 %v1663
    %v1747 = vunpack.c.l.b16 %v1664
    %v1748 = vunpack.c.h.b16 %v1664
    %v1749 = vunpack.c.l.b16 %v1665
    %v1750 = vunpack.c.l.b16 %v1666
    %v1751 = vunpack.c.h.b16 %v1666
    %v1752 = vunpack.c.l.b16 %v1667
    %v1753 = vunpack.c.l.b16 %v1668
    %v1754 = vunpack.c.h.b16 %v1668
    %v1755 = vunpack.c.l.b16 %v1669
    %v1756 = vunpack.c.l.b16 %v1670
    %v1757 = vunpack.c.h.b16 %v1670
    %v1758 = vunpack.c.l.b16 %v1671
    %v1759 = vunpack.c.l.b16 %v1672
    %v1760 = vunpack.c.h.b16 %v1672
    %v1761 = vunpack.c.l.b16 %v1673
    %v1762 = vunpack.c.l.b16 %v1674
    %v1763 = vunpack.c.h.b16 %v1674
    %v1764 = vunpack.c.l.b16 %v1675
    %v1765 = vunpack.c.l.b16 %v1676
    %v1766 = vunpack.c.h.b16 %v1676
    %v1767 = vunpack.c.l.b16 %v1677
    %v1768 = vunpack.c.l.b16 %v1678
    %v1769 = vunpack.c.h.b16 %v1678
    %v1770 = vunpack.c.l.b16 %v1679
    %v1771 = vunpack.c.l.b16 %v1680
    %v1772 = vunpack.c.h.b16 %v1680
    %v1773 = vunpack.c.l.b16 %v1681
    %v1774 = vunpack.c.l.b16 %v1682
    %v1775 = vunpack.c.h.b16 %v1682
    %v1776 = vunpack.c.l.b16 %v1683
    %v1777 = vunpack.c.l.b16 %v1684
    %v1778 = vunpack.c.h.b16 %v1684
    %v1779 = vunpack.c.l.b16 %v1685
    %v1780 = vunpack.c.l.b16 %v1686
    %v1781 = vunpack.c.h.b16 %v1686
    %v1782 = vunpack.c.l.b16 %v1687
    %v1783 = vunpack.c.l.b16 %v1688
    %v1784 = vunpack.c.h.b16 %v1688
    %v1785 = vunpack.c.l.b16 %v1689
    %v1786 = vunpack.c.l.b16 %v1690
    %v1787 = vunpack.c.h.b16 %v1690
    %v1788 = vunpack.c.l.b16 %v1691
    %v1789 = vunpack.c.l.b16 %v1692
    %v1790 = vunpack.c.h.b16 %v1692
    %v1791 = vunpack.c.l.b16 %v1693
    %v1792 = vpack.c.b16 %v1747, %v1744
    %v1793 = vpack.c.b16 %v1748, %v1745
    %v1794 = vpack.c.b16 %v1749, %v1746
    %v1795 = vpack.c.b16 %v1753, %v1750
    %v1796 = vpack.c.b16 %v1754, %v1751
    %v1797 = vpack.c.b16 %v1755, %v1752
    %v1798 = vpack.c.b16 %v1759, %v1756
    %v1799 = vpack.c.b16 %v1760, %v1757
    %v1800 = vpack.c.b16 %v1761, %v1758
    %v1801 = vpack.c.b16 %v1765, %v1762
    %v1802 = vpack.c.b16 %v1766, %v1763
    %v1803 = vpack.c.b16 %v1767, %v1764
    %v1804 = vpack.c.b16 %v1771, %v1768
    %v1805 = vpack.c.b16 %v1772, %v1769
    %v1806 = vpack.c.b16 %v1773, %v1770
    %v1807 = vpack.c.b16 %v1777, %v1774
    %v1808 = vpack.c.b16 %v1778, %v1775
    %v1809 = vpack.c.b16 %v1779, %v1776
    %v1810 = vpack.c.b16 %v1783, %v1780
    %v1811 = vpack.c.b16 %v1784, %v1781
    %v1812 = vpack.c.b16 %v1785, %v1782
    %v1813 = vpack.c.b16 %v1789, %v1786
    %v1814 = vpack.c.b16 %v1790, %v1787
    %v1815 = vpack.c.b16 %v1791, %v1788
    %1840 = vmatprep.subr.bf16.mxu0 %v1793
    %1841 = vmatpush1.bf16.msra.mxu0 %v1792
    %1842 = vmatprep.subr.bf16.mxu0 %v1796
    %1843 = vmatpush1.bf16.msra.mxu0 %v1795
    %1844 = vmatprep.subr.bf16.mxu0 %v1799
    %1845 = vmatpush1.bf16.msra.mxu0 %v1798
    %1846 = vmatprep.subr.bf16.mxu0 %v1802
    %1847 = vmatpush1.bf16.msra.mxu0 %v1801
    %1848 = vmatprep.subr.bf16.mxu0 %v1805
    %1849 = vmatpush1.bf16.msra.mxu0 %v1804
    %1850 = vmatprep.subr.bf16.mxu0 %v1808
    %1851 = vmatpush1.bf16.msra.mxu0 %v1807
    %1852 = vmatprep.subr.bf16.mxu0 %v1811
    %1853 = vmatpush1.bf16.msra.mxu0 %v1810
    %1854 = vmatprep.subr.bf16.mxu0 %v1814
    %1855 = vmatpush1.bf16.msra.mxu0 %v1813
    %1856 = vmatprep.subr.bf16.mxu0 0
    %1857 = vmatpush1.bf16.msra.mxu0 0
    %1858 = vmatprep.subr.bf16.mxu0 0
    %1859 = vmatpush1.bf16.msra.mxu0 0
    %1860 = vmatprep.subr.bf16.mxu0 0
    %1861 = vmatpush1.bf16.msra.mxu0 0
    %1862 = vmatprep.subr.bf16.mxu0 0
    %1863 = vmatpush1.bf16.msra.mxu0 0
    %1864 = vmatprep.subr.bf16.mxu0 0
    %1865 = vmatpush1.bf16.msra.mxu0 0
    %1866 = vmatprep.subr.bf16.mxu0 0
    %1867 = vmatpush1.bf16.msra.mxu0 0
    %1868 = vmatprep.subr.bf16.mxu0 0
    %1869 = vmatpush1.bf16.msra.mxu0 0
    %1870 = vmatprep.subr.bf16.mxu0 0
    %1871 = vmatpush1.bf16.msra.mxu0 0
    %1872 = vmatprep.mubr.bf16.mxu0 0
    %1873 = vmatmul.mubr.bf16.gmra.mrb[0].mxu0 %v1660
    %v1874 = vpop.f32.mrb[0].mxu0
    %v1875 = vadd.f32 %v1700, %v1874
    %v1876 = vpop.f32.mrb[0].mxu0
    %v1877 = vadd.f32 %v1704, %v1876
    %v1878 = vpop.f32.mrb[0].mxu0
    %v1879 = vadd.f32 %v1700, %v1878
    %v1880 = vpop.f32.mrb[0].mxu0
    %v1881 = vadd.f32 %v1704, %v1880
    %1882 = vdwg.mxu0
    %1883 = vmatprep.subr.bf16.mxu0 0
    %1884 = vmatpush1.bf16.msra.mxu0 %v1794
    %1885 = vmatprep.subr.bf16.mxu0 0
    %1886 = vmatpush1.bf16.msra.mxu0 %v1797
    %1887 = vmatprep.subr.bf16.mxu0 0
    %1888 = vmatpush1.bf16.msra.mxu0 %v1800
    %1889 = vmatprep.subr.bf16.mxu0 0
    %1890 = vmatpush1.bf16.msra.mxu0 %v1803
    %1891 = vmatprep.subr.bf16.mxu0 0
    %1892 = vmatpush1.bf16.msra.mxu0 %v1806
    %1893 = vmatprep.subr.bf16.mxu0 0
    %1894 = vmatpush1.bf16.msra.mxu0 %v1809
    %1895 = vmatprep.subr.bf16.mxu0 0
    %1896 = vmatpush1.bf16.msra.mxu0 %v1812
    %1897 = vmatprep.subr.bf16.mxu0 0
    %1898 = vmatpush1.bf16.msra.mxu0 %v1815
    %1899 = vmatprep.subr.bf16.mxu0 0
    %1900 = vmatpush1.bf16.msra.mxu0 0
    %1901 = vmatprep.subr.bf16.mxu0 0
    %1902 = vmatpush1.bf16.msra.mxu0 0
    %1903 = vmatprep.subr.bf16.mxu0 0
    %1904 = vmatpush1.bf16.msra.mxu0 0
    %1905 = vmatprep.subr.bf16.mxu0 0
    %1906 = vmatpush1.bf16.msra.mxu0 0
    %1907 = vmatprep.subr.bf16.mxu0 0
    %1908 = vmatpush1.bf16.msra.mxu0 0
    %1909 = vmatprep.subr.bf16.mxu0 0
    %1910 = vmatpush1.bf16.msra.mxu0 0
    %1911 = vmatprep.subr.bf16.mxu0 0
    %1912 = vmatpush1.bf16.msra.mxu0 0
    %1913 = vmatprep.subr.bf16.mxu0 0
    %1914 = vmatpush1.bf16.msra.mxu0 0
    %1915 = vmatprep.mubr.bf16.mxu0 0
    %1916 = vmatmul.mubr.bf16.gmra.mrb[0].mxu0 %v1660
    %v1917 = vpop.f32.mrb[0].mxu0
    %v1918 = vadd.f32 %v1708, %v1917
    %v1919 = vpop.f32.mrb[0].mxu0
    %v1920 = vpop.f32.mrb[0].mxu0
    %v1921 = vadd.f32 %v1708, %v1920
    %v1922 = vpop.f32.mrb[0].mxu0
    %1923 = vdwg.mxu0
    %v1924 = vpack.c.bf16 %v1879, %v1875
    %v1925 = vpack.c.bf16 %v1881, %v1877
    %v1926 = vpack.c.bf16 %v1921, %v1918
    %s1927 = scalar_lea.vmem [#allocation4], 64
    %v1928 = vld [vmem:[%s1927] sm:$0xf]
    %v1929 = vld [vmem:[%s1927 + $0x4] sm:$0xf]
    %v1930 = vld [vmem:[%s1927 + $0x8] sm:$0xf]
    %v1931 = vld [vmem:[%s1927 + $0xc] sm:$0xf]
    %v1932 = vld [vmem:[%s1927 + $0x10] sm:$0xf]
    %v1933 = vld [vmem:[%s1927 + $0x14] sm:$0xf]
    %v1934 = vld [vmem:[%s1927 + $0x18] sm:$0xf]
    %v1935 = vld [vmem:[%s1927 + $0x1c] sm:$0xf]
    %v1936 = vld [vmem:[%s1927 + $0x20] sm:$0xf]
    %v1937 = vld [vmem:[%s1927 + $0x24] sm:$0xf]
    %v1938 = vld [vmem:[%s1927 + $0x28] sm:$0xf]
    %v1939 = vld [vmem:[%s1927 + $0x2c] sm:$0xf]
    %v1940 = vld [vmem:[%s1927 + $0x30] sm:$0xf]
    %v1941 = vld [vmem:[%s1927 + $0x34] sm:$0xf]
    %v1942 = vld [vmem:[%s1927 + $0x38] sm:$0xf]
    %v1943 = vld [vmem:[%s1927 + $0x3c] sm:$0xf]
    %v1945 = vsel %vm471, %v1924, 0
    %v1948 = vsel %vm471, %v1925, 0
    %1950 = vmatprep.subr.bf16.mxu0 0
    %1951 = vmatpush1.bf16.xpose.msra.mxu0 %v1948
    %1952 = vmatprep.subr.bf16.mxu0 0
    %1953 = vmatpush1.bf16.xpose.msra.mxu0 0
    %1954 = vmatprep.subr.bf16.mxu0 0
    %1955 = vmatpush1.bf16.xpose.msra.mxu0 0
    %1956 = vmatprep.subr.bf16.mxu0 0
    %1957 = vmatpush1.bf16.xpose.msra.mxu0 0
    %1958 = vmatprep.subr.bf16.mxu0 0
    %1959 = vmatpush1.bf16.xpose.msra.mxu0 0
    %1960 = vmatprep.subr.bf16.mxu0 0
    %1961 = vmatpush1.bf16.xpose.msra.mxu0 0
    %1962 = vmatprep.subr.bf16.mxu0 0
    %1963 = vmatpush1.bf16.xpose.msra.mxu0 0
    %1964 = vmatprep.subr.bf16.mxu0 0
    %1965 = vmatpush1.bf16.xpose.msra.mxu0 0
    %1966 = vmatprep.subr.bf16.mxu0 0
    %1967 = vmatpush1.bf16.xpose.msra.mxu0 0
    %1968 = vmatprep.subr.bf16.mxu0 0
    %1969 = vmatpush1.bf16.xpose.msra.mxu0 0
    %1970 = vmatprep.subr.bf16.mxu0 0
    %1971 = vmatpush1.bf16.xpose.msra.mxu0 0
    %1972 = vmatprep.subr.bf16.mxu0 0
    %1973 = vmatpush1.bf16.xpose.msra.mxu0 0
    %1974 = vmatprep.subr.bf16.mxu0 0
    %1975 = vmatpush1.bf16.xpose.msra.mxu0 0
    %1976 = vmatprep.subr.bf16.mxu0 0
    %1977 = vmatpush1.bf16.xpose.msra.mxu0 0
    %1978 = vmatprep.subr.bf16.mxu0 0
    %1979 = vmatpush1.bf16.xpose.msra.mxu0 0
    %1980 = vmatprep.subr.bf16.mxu0 0
    %1981 = vmatpush1.bf16.xpose.msra.mxu0 0
    %1982 = vmatprep.mubr.bf16.mxu0 0
    %1983 = vmatmul.mubr.bf16.gmra.mrb[0].mxu0 %v1945
    %v1984 = vpop.f32.mrb[0].mxu0
    %v1985 = vadd.f32 0.0, %v1984
    %v1986 = vpop.f32.mrb[0].mxu0
    %v1987 = vpop.f32.mrb[0].mxu0
    %v1988 = vadd.f32 0.0, %v1987
    %v1989 = vpop.f32.mrb[0].mxu0
    %1990 = vdwg.mxu0
    %v1991 = vmul.f32 %v1985, 0.17677669
    %v1992 = vmul.f32 %v1988, 0.17677669
    %v1993 = vadd.f32 %v1991, %v188
    %v1994 = vadd.f32 %v1992, %v189
    %v1995 = vsel %vm523, %v1993, -inf
    %1996 = vmax.xlane.f32.xlu0 %v1995
    %v1997 = vpop.xlane.xlu0 %1996
    %v1998 = vsel %vm523, %v1994, -inf
    %1999 = vmax.xlane.f32.xlu0 %v1998
    %v2000 = vpop.xlane.xlu0 %1999
    %v2001 = vsub.f32 %v1993, %v1997
    %v2002 = vsub.f32 %v1994, %v2000
    %v2003 = vmul.f32 %v2001, 1.442695
    %v2004 = vpow.pop %v2003
    %v2005 = vmul.f32 %v2002, 1.442695
    %v2006 = vpow.pop %v2005
    %v2007 = vsel %vm523, %v2004, 0.0
    %2008 = vadd.xlane.f32.xlu0 %v2007
    %v2009 = vpop.xlane.xlu0 %2008
    %v2010 = vsel %vm523, %v2006, 0.0
    %2011 = vadd.xlane.f32.xlu0 %v2010
    %v2012 = vpop.xlane.xlu0 %2011
    %v2013 = vrcp.pop %v2009
    %v2014 = vrcp.pop %v2012
    %v2015 = vmul.f32 %v2004, %v2013
    %v2016 = vmul.f32 %v2006, %v2014
    %v2017 = vpack.c.bf16 %v2016, %v2015
    %v2019 = vsel %vm523, %v2017, 0
    %2021 = vmatprep.subr.bf16.mxu0 0
    %2022 = vmatpush1.bf16.msra.mxu0 %v1926
    %2023 = vmatprep.subr.bf16.mxu0 0
    %2024 = vmatpush1.bf16.msra.mxu0 0
    %2025 = vmatprep.subr.bf16.mxu0 0
    %2026 = vmatpush1.bf16.msra.mxu0 0
    %2027 = vmatprep.subr.bf16.mxu0 0
    %2028 = vmatpush1.bf16.msra.mxu0 0
    %2029 = vmatprep.subr.bf16.mxu0 0
    %2030 = vmatpush1.bf16.msra.mxu0 0
    %2031 = vmatprep.subr.bf16.mxu0 0
    %2032 = vmatpush1.bf16.msra.mxu0 0
    %2033 = vmatprep.subr.bf16.mxu0 0
    %2034 = vmatpush1.bf16.msra.mxu0 0
    %2035 = vmatprep.subr.bf16.mxu0 0
    %2036 = vmatpush1.bf16.msra.mxu0 0
    %2037 = vmatprep.subr.bf16.mxu0 0
    %2038 = vmatpush1.bf16.msra.mxu0 0
    %2039 = vmatprep.subr.bf16.mxu0 0
    %2040 = vmatpush1.bf16.msra.mxu0 0
    %2041 = vmatprep.subr.bf16.mxu0 0
    %2042 = vmatpush1.bf16.msra.mxu0 0
    %2043 = vmatprep.subr.bf16.mxu0 0
    %2044 = vmatpush1.bf16.msra.mxu0 0
    %2045 = vmatprep.subr.bf16.mxu0 0
    %2046 = vmatpush1.bf16.msra.mxu0 0
    %2047 = vmatprep.subr.bf16.mxu0 0
    %2048 = vmatpush1.bf16.msra.mxu0 0
    %2049 = vmatprep.subr.bf16.mxu0 0
    %2050 = vmatpush1.bf16.msra.mxu0 0
    %2051 = vmatprep.subr.bf16.mxu0 0
    %2052 = vmatpush1.bf16.msra.mxu0 0
    %2053 = vmatprep.mubr.bf16.mxu0 0
    %2054 = vmatmul.mubr.bf16.gmra.mrb[0].mxu0 %v2019
    %v2055 = vpop.f32.mrb[0].mxu0
    %v2056 = vadd.f32 0.0, %v2055
    %v2057 = vpop.f32.mrb[0].mxu0
    %v2058 = vpop.f32.mrb[0].mxu0
    %v2059 = vadd.f32 0.0, %v2058
    %v2060 = vpop.f32.mrb[0].mxu0
    %2061 = vdwg.mxu0
    %v2062 = vpack.c.bf16 %v2059, %v2056
    %2064 = vrot.lane.b32.xlu0 %v1924, 96
    %v2065 = vpop.permute.xlu0 %2064
    %2067 = vrot.lane.b32.xlu0 %v1925, 96
    %v2068 = vpop.permute.xlu0 %2067
    %v2070 = vsel %vm471, %v2065, 0
    %v2073 = vsel %vm471, %v2068, 0
    %2075 = vmatprep.subr.bf16.mxu0 0
    %2076 = vmatpush1.bf16.xpose.msra.mxu0 %v2073
    %2077 = vmatprep.subr.bf16.mxu0 0
    %2078 = vmatpush1.bf16.xpose.msra.mxu0 0
    %2079 = vmatprep.subr.bf16.mxu0 0
    %2080 = vmatpush1.bf16.xpose.msra.mxu0 0
    %2081 = vmatprep.subr.bf16.mxu0 0
    %2082 = vmatpush1.bf16.xpose.msra.mxu0 0
    %2083 = vmatprep.subr.bf16.mxu0 0
    %2084 = vmatpush1.bf16.xpose.msra.mxu0 0
    %2085 = vmatprep.subr.bf16.mxu0 0
    %2086 = vmatpush1.bf16.xpose.msra.mxu0 0
    %2087 = vmatprep.subr.bf16.mxu0 0
    %2088 = vmatpush1.bf16.xpose.msra.mxu0 0
    %2089 = vmatprep.subr.bf16.mxu0 0
    %2090 = vmatpush1.bf16.xpose.msra.mxu0 0
    %2091 = vmatprep.subr.bf16.mxu0 0
    %2092 = vmatpush1.bf16.xpose.msra.mxu0 0
    %2093 = vmatprep.subr.bf16.mxu0 0
    %2094 = vmatpush1.bf16.xpose.msra.mxu0 0
    %2095 = vmatprep.subr.bf16.mxu0 0
    %2096 = vmatpush1.bf16.xpose.msra.mxu0 0
    %2097 = vmatprep.subr.bf16.mxu0 0
    %2098 = vmatpush1.bf16.xpose.msra.mxu0 0
    %2099 = vmatprep.subr.bf16.mxu0 0
    %2100 = vmatpush1.bf16.xpose.msra.mxu0 0
    %2101 = vmatprep.subr.bf16.mxu0 0
    %2102 = vmatpush1.bf16.xpose.msra.mxu0 0
    %2103 = vmatprep.subr.bf16.mxu0 0
    %2104 = vmatpush1.bf16.xpose.msra.mxu0 0
    %2105 = vmatprep.subr.bf16.mxu0 0
    %2106 = vmatpush1.bf16.xpose.msra.mxu0 0
    %2107 = vmatprep.mubr.bf16.mxu0 0
    %2108 = vmatmul.mubr.bf16.gmra.mrb[0].mxu0 %v2070
    %v2109 = vpop.f32.mrb[0].mxu0
    %v2110 = vadd.f32 0.0, %v2109
    %v2111 = vpop.f32.mrb[0].mxu0
    %v2112 = vpop.f32.mrb[0].mxu0
    %v2113 = vadd.f32 0.0, %v2112
    %v2114 = vpop.f32.mrb[0].mxu0
    %2115 = vdwg.mxu0
    %v2116 = vmul.f32 %v2110, 0.17677669
    %v2117 = vmul.f32 %v2113, 0.17677669
    %v2118 = vadd.f32 %v2116, %v188
    %v2119 = vadd.f32 %v2117, %v189
    %v2120 = vsel %vm523, %v2118, -inf
    %2121 = vmax.xlane.f32.xlu0 %v2120
    %v2122 = vpop.xlane.xlu0 %2121
    %v2123 = vsel %vm523, %v2119, -inf
    %2124 = vmax.xlane.f32.xlu0 %v2123
    %v2125 = vpop.xlane.xlu0 %2124
    %v2126 = vsub.f32 %v2118, %v2122
    %v2127 = vsub.f32 %v2119, %v2125
    %v2128 = vmul.f32 %v2126, 1.442695
    %v2129 = vpow.pop %v2128
    %v2130 = vmul.f32 %v2127, 1.442695
    %v2131 = vpow.pop %v2130
    %v2132 = vsel %vm523, %v2129, 0.0
    %2133 = vadd.xlane.f32.xlu0 %v2132
    %v2134 = vpop.xlane.xlu0 %2133
    %v2135 = vsel %vm523, %v2131, 0.0
    %2136 = vadd.xlane.f32.xlu0 %v2135
    %v2137 = vpop.xlane.xlu0 %2136
    %v2138 = vrcp.pop %v2134
    %v2139 = vrcp.pop %v2137
    %v2140 = vmul.f32 %v2129, %v2138
    %v2141 = vmul.f32 %v2131, %v2139
    %v2142 = vpack.c.bf16 %v2141, %v2140
    %2144 = vrot.lane.b32.xlu0 %v1926, 96
    %v2145 = vpop.permute.xlu0 %2144
    %v2148 = vsel %vm523, %v2142, 0
    %2150 = vmatprep.subr.bf16.mxu0 0
    %2151 = vmatpush1.bf16.msra.mxu0 %v2145
    %2152 = vmatprep.subr.bf16.mxu0 0
    %2153 = vmatpush1.bf16.msra.mxu0 0
    %2154 = vmatprep.subr.bf16.mxu0 0
    %2155 = vmatpush1.bf16.msra.mxu0 0
    %2156 = vmatprep.subr.bf16.mxu0 0
    %2157 = vmatpush1.bf16.msra.mxu0 0
    %2158 = vmatprep.subr.bf16.mxu0 0
    %2159 = vmatpush1.bf16.msra.mxu0 0
    %2160 = vmatprep.subr.bf16.mxu0 0
    %2161 = vmatpush1.bf16.msra.mxu0 0
    %2162 = vmatprep.subr.bf16.mxu0 0
    %2163 = vmatpush1.bf16.msra.mxu0 0
    %2164 = vmatprep.subr.bf16.mxu0 0
    %2165 = vmatpush1.bf16.msra.mxu0 0
    %2166 = vmatprep.subr.bf16.mxu0 0
    %2167 = vmatpush1.bf16.msra.mxu0 0
    %2168 = vmatprep.subr.bf16.mxu0 0
    %2169 = vmatpush1.bf16.msra.mxu0 0
    %2170 = vmatprep.subr.bf16.mxu0 0
    %2171 = vmatpush1.bf16.msra.mxu0 0
    %2172 = vmatprep.subr.bf16.mxu0 0
    %2173 = vmatpush1.bf16.msra.mxu0 0
    %2174 = vmatprep.subr.bf16.mxu0 0
    %2175 = vmatpush1.bf16.msra.mxu0 0
    %2176 = vmatprep.subr.bf16.mxu0 0
    %2177 = vmatpush1.bf16.msra.mxu0 0
    %2178 = vmatprep.subr.bf16.mxu0 0
    %2179 = vmatpush1.bf16.msra.mxu0 0
    %2180 = vmatprep.subr.bf16.mxu0 0
    %2181 = vmatpush1.bf16.msra.mxu0 0
    %2182 = vmatprep.mubr.bf16.mxu0 0
    %2183 = vmatmul.mubr.bf16.gmra.mrb[0].mxu0 %v2148
    %v2184 = vpop.f32.mrb[0].mxu0
    %v2185 = vadd.f32 0.0, %v2184
    %v2186 = vpop.f32.mrb[0].mxu0
    %v2187 = vpop.f32.mrb[0].mxu0
    %v2188 = vadd.f32 0.0, %v2187
    %v2189 = vpop.f32.mrb[0].mxu0
    %2190 = vdwg.mxu0
    %v2191 = vpack.c.bf16 %v2188, %v2185
    %v2196 = vunpack.c.l.b16 %v1932
    %v2197 = vunpack.c.l.b16 %v1933
    %v2198 = vunpack.c.l.b16 %v1934
    %v2199 = vunpack.c.l.b16 %v1935
    %v2200 = vpack.c.b16 %v2197, %v2196
    %v2201 = vpack.c.b16 %v2199, %v2198
    %v2205 = vsel %vm471, %v2191, 0
    %2207 = vmatprep.subr.bf16.mxu0 0
    %2208 = vmatpush1.bf16.msra.mxu0 %v2200
    %2209 = vmatprep.subr.bf16.mxu0 0
    %2210 = vmatpush1.bf16.msra.mxu0 %v2201
    %2211 = vmatprep.subr.bf16.mxu0 0
    %2212 = vmatpush1.bf16.msra.mxu0 0
    %2213 = vmatprep.subr.bf16.mxu0 0
    %2214 = vmatpush1.bf16.msra.mxu0 0
    %2215 = vmatprep.subr.bf16.mxu0 0
    %2216 = vmatpush1.bf16.msra.mxu0 0
    %2217 = vmatprep.subr.bf16.mxu0 0
    %2218 = vmatpush1.bf16.msra.mxu0 0
    %2219 = vmatprep.subr.bf16.mxu0 0
    %2220 = vmatpush1.bf16.msra.mxu0 0
    %2221 = vmatprep.subr.bf16.mxu0 0
    %2222 = vmatpush1.bf16.msra.mxu0 0
    %2223 = vmatprep.subr.bf16.mxu0 0
    %2224 = vmatpush1.bf16.msra.mxu0 0
    %2225 = vmatprep.subr.bf16.mxu0 0
    %2226 = vmatpush1.bf16.msra.mxu0 0
    %2227 = vmatprep.subr.bf16.mxu0 0
    %2228 = vmatpush1.bf16.msra.mxu0 0
    %2229 = vmatprep.subr.bf16.mxu0 0
    %2230 = vmatpush1.bf16.msra.mxu0 0
    %2231 = vmatprep.subr.bf16.mxu0 0
    %2232 = vmatpush1.bf16.msra.mxu0 0
    %2233 = vmatprep.subr.bf16.mxu0 0
    %2234 = vmatpush1.bf16.msra.mxu0 0
    %2235 = vmatprep.subr.bf16.mxu0 0
    %2236 = vmatpush1.bf16.msra.mxu0 0
    %2237 = vmatprep.subr.bf16.mxu0 0
    %2238 = vmatpush1.bf16.msra.mxu0 0
    %2239 = vmatprep.mubr.bf16.mxu0 0
    %2240 = vmatmul.mubr.bf16.gmra.mrb[0].mxu0 %v2205
    %v2241 = vpop.f32.mrb[0].mxu0
    %v2242 = vadd.f32 0.0, %v2241
    %v2243 = vpop.f32.mrb[0].mxu0
    %v2244 = vpop.f32.mrb[0].mxu0
    %v2245 = vadd.f32 0.0, %v2244
    %v2246 = vpop.f32.mrb[0].mxu0
    %2247 = vdwg.mxu0
    %v2252 = vunpack.c.l.b16 %v1928
    %v2253 = vunpack.c.l.b16 %v1929
    %v2254 = vunpack.c.l.b16 %v1930
    %v2255 = vunpack.c.l.b16 %v1931
    %v2256 = vpack.c.b16 %v2253, %v2252
    %v2257 = vpack.c.b16 %v2255, %v2254
    %v2261 = vsel %vm471, %v2062, 0
    %2263 = vmatprep.subr.bf16.mxu0 0
    %2264 = vmatpush1.bf16.msra.mxu0 %v2256
    %2265 = vmatprep.subr.bf16.mxu0 0
    %2266 = vmatpush1.bf16.msra.mxu0 %v2257
    %2267 = vmatprep.subr.bf16.mxu0 0
    %2268 = vmatpush1.bf16.msra.mxu0 0
    %2269 = vmatprep.subr.bf16.mxu0 0
    %2270 = vmatpush1.bf16.msra.mxu0 0
    %2271 = vmatprep.subr.bf16.mxu0 0
    %2272 = vmatpush1.bf16.msra.mxu0 0
    %2273 = vmatprep.subr.bf16.mxu0 0
    %2274 = vmatpush1.bf16.msra.mxu0 0
    %2275 = vmatprep.subr.bf16.mxu0 0
    %2276 = vmatpush1.bf16.msra.mxu0 0
    %2277 = vmatprep.subr.bf16.mxu0 0
    %2278 = vmatpush1.bf16.msra.mxu0 0
    %2279 = vmatprep.subr.bf16.mxu0 0
    %2280 = vmatpush1.bf16.msra.mxu0 0
    %2281 = vmatprep.subr.bf16.mxu0 0
    %2282 = vmatpush1.bf16.msra.mxu0 0
    %2283 = vmatprep.subr.bf16.mxu0 0
    %2284 = vmatpush1.bf16.msra.mxu0 0
    %2285 = vmatprep.subr.bf16.mxu0 0
    %2286 = vmatpush1.bf16.msra.mxu0 0
    %2287 = vmatprep.subr.bf16.mxu0 0
    %2288 = vmatpush1.bf16.msra.mxu0 0
    %2289 = vmatprep.subr.bf16.mxu0 0
    %2290 = vmatpush1.bf16.msra.mxu0 0
    %2291 = vmatprep.subr.bf16.mxu0 0
    %2292 = vmatpush1.bf16.msra.mxu0 0
    %2293 = vmatprep.subr.bf16.mxu0 0
    %2294 = vmatpush1.bf16.msra.mxu0 0
    %2295 = vmatprep.mubr.bf16.mxu0 0
    %2296 = vmatmul.mubr.bf16.gmra.mrb[0].mxu0 %v2261
    %v2297 = vpop.f32.mrb[0].mxu0
    %v2298 = vadd.f32 %v2242, %v2297
    %v2299 = vpop.f32.mrb[0].mxu0
    %v2300 = vpop.f32.mrb[0].mxu0
    %v2301 = vadd.f32 %v2245, %v2300
    %v2302 = vpop.f32.mrb[0].mxu0
    %2303 = vdwg.mxu0
    %2304 = vrot.lane.b32.xlu0 %v1924, 64
    %v2305 = vpop.permute.xlu0 %2304
    %2306 = vrot.lane.b32.xlu0 %v1925, 64
    %v2307 = vpop.permute.xlu0 %2306
    %v2309 = vsel %vm471, %v2305, 0
    %v2312 = vsel %vm471, %v2307, 0
    %2314 = vmatprep.subr.bf16.mxu0 0
    %2315 = vmatpush1.bf16.xpose.msra.mxu0 %v2312
    %2316 = vmatprep.subr.bf16.mxu0 0
    %2317 = vmatpush1.bf16.xpose.msra.mxu0 0
    %2318 = vmatprep.subr.bf16.mxu0 0
    %2319 = vmatpush1.bf16.xpose.msra.mxu0 0
    %2320 = vmatprep.subr.bf16.mxu0 0
    %2321 = vmatpush1.bf16.xpose.msra.mxu0 0
    %2322 = vmatprep.subr.bf16.mxu0 0
    %2323 = vmatpush1.bf16.xpose.msra.mxu0 0
    %2324 = vmatprep.subr.bf16.mxu0 0
    %2325 = vmatpush1.bf16.xpose.msra.mxu0 0
    %2326 = vmatprep.subr.bf16.mxu0 0
    %2327 = vmatpush1.bf16.xpose.msra.mxu0 0
    %2328 = vmatprep.subr.bf16.mxu0 0
    %2329 = vmatpush1.bf16.xpose.msra.mxu0 0
    %2330 = vmatprep.subr.bf16.mxu0 0
    %2331 = vmatpush1.bf16.xpose.msra.mxu0 0
    %2332 = vmatprep.subr.bf16.mxu0 0
    %2333 = vmatpush1.bf16.xpose.msra.mxu0 0
    %2334 = vmatprep.subr.bf16.mxu0 0
    %2335 = vmatpush1.bf16.xpose.msra.mxu0 0
    %2336 = vmatprep.subr.bf16.mxu0 0
    %2337 = vmatpush1.bf16.xpose.msra.mxu0 0
    %2338 = vmatprep.subr.bf16.mxu0 0
    %2339 = vmatpush1.bf16.xpose.msra.mxu0 0
    %2340 = vmatprep.subr.bf16.mxu0 0
    %2341 = vmatpush1.bf16.xpose.msra.mxu0 0
    %2342 = vmatprep.subr.bf16.mxu0 0
    %2343 = vmatpush1.bf16.xpose.msra.mxu0 0
    %2344 = vmatprep.subr.bf16.mxu0 0
    %2345 = vmatpush1.bf16.xpose.msra.mxu0 0
    %2346 = vmatprep.mubr.bf16.mxu0 0
    %2347 = vmatmul.mubr.bf16.gmra.mrb[0].mxu0 %v2309
    %v2348 = vpop.f32.mrb[0].mxu0
    %v2349 = vadd.f32 0.0, %v2348
    %v2350 = vpop.f32.mrb[0].mxu0
    %v2351 = vpop.f32.mrb[0].mxu0
    %v2352 = vadd.f32 0.0, %v2351
    %v2353 = vpop.f32.mrb[0].mxu0
    %2354 = vdwg.mxu0
    %v2355 = vmul.f32 %v2349, 0.17677669
    %v2356 = vmul.f32 %v2352, 0.17677669
    %v2357 = vadd.f32 %v2355, %v188
    %v2358 = vadd.f32 %v2356, %v189
    %v2359 = vsel %vm523, %v2357, -inf
    %2360 = vmax.xlane.f32.xlu0 %v2359
    %v2361 = vpop.xlane.xlu0 %2360
    %v2362 = vsel %vm523, %v2358, -inf
    %2363 = vmax.xlane.f32.xlu0 %v2362
    %v2364 = vpop.xlane.xlu0 %2363
    %v2365 = vsub.f32 %v2357, %v2361
    %v2366 = vsub.f32 %v2358, %v2364
    %v2367 = vmul.f32 %v2365, 1.442695
    %v2368 = vpow.pop %v2367
    %v2369 = vmul.f32 %v2366, 1.442695
    %v2370 = vpow.pop %v2369
    %v2371 = vsel %vm523, %v2368, 0.0
    %2372 = vadd.xlane.f32.xlu0 %v2371
    %v2373 = vpop.xlane.xlu0 %2372
    %v2374 = vsel %vm523, %v2370, 0.0
    %2375 = vadd.xlane.f32.xlu0 %v2374
    %v2376 = vpop.xlane.xlu0 %2375
    %v2377 = vrcp.pop %v2373
    %v2378 = vrcp.pop %v2376
    %v2379 = vmul.f32 %v2368, %v2377
    %v2380 = vmul.f32 %v2370, %v2378
    %v2381 = vpack.c.bf16 %v2380, %v2379
    %2382 = vrot.lane.b32.xlu0 %v1926, 64
    %v2383 = vpop.permute.xlu0 %2382
    %v2386 = vsel %vm523, %v2381, 0
    %2388 = vmatprep.subr.bf16.mxu0 0
    %2389 = vmatpush1.bf16.msra.mxu0 %v2383
    %2390 = vmatprep.subr.bf16.mxu0 0
    %2391 = vmatpush1.bf16.msra.mxu0 0
    %2392 = vmatprep.subr.bf16.mxu0 0
    %2393 = vmatpush1.bf16.msra.mxu0 0
    %2394 = vmatprep.subr.bf16.mxu0 0
    %2395 = vmatpush1.bf16.msra.mxu0 0
    %2396 = vmatprep.subr.bf16.mxu0 0
    %2397 = vmatpush1.bf16.msra.mxu0 0
    %2398 = vmatprep.subr.bf16.mxu0 0
    %2399 = vmatpush1.bf16.msra.mxu0 0
    %2400 = vmatprep.subr.bf16.mxu0 0
    %2401 = vmatpush1.bf16.msra.mxu0 0
    %2402 = vmatprep.subr.bf16.mxu0 0
    %2403 = vmatpush1.bf16.msra.mxu0 0
    %2404 = vmatprep.subr.bf16.mxu0 0
    %2405 = vmatpush1.bf16.msra.mxu0 0
    %2406 = vmatprep.subr.bf16.mxu0 0
    %2407 = vmatpush1.bf16.msra.mxu0 0
    %2408 = vmatprep.subr.bf16.mxu0 0
    %2409 = vmatpush1.bf16.msra.mxu0 0
    %2410 = vmatprep.subr.bf16.mxu0 0
    %2411 = vmatpush1.bf16.msra.mxu0 0
    %2412 = vmatprep.subr.bf16.mxu0 0
    %2413 = vmatpush1.bf16.msra.mxu0 0
    %2414 = vmatprep.subr.bf16.mxu0 0
    %2415 = vmatpush1.bf16.msra.mxu0 0
    %2416 = vmatprep.subr.bf16.mxu0 0
    %2417 = vmatpush1.bf16.msra.mxu0 0
    %2418 = vmatprep.subr.bf16.mxu0 0
    %2419 = vmatpush1.bf16.msra.mxu0 0
    %2420 = vmatprep.mubr.bf16.mxu0 0
    %2421 = vmatmul.mubr.bf16.gmra.mrb[0].mxu0 %v2386
    %v2422 = vpop.f32.mrb[0].mxu0
    %v2423 = vadd.f32 0.0, %v2422
    %v2424 = vpop.f32.mrb[0].mxu0
    %v2425 = vpop.f32.mrb[0].mxu0
    %v2426 = vadd.f32 0.0, %v2425
    %v2427 = vpop.f32.mrb[0].mxu0
    %2428 = vdwg.mxu0
    %v2429 = vpack.c.bf16 %v2426, %v2423
    %v2434 = vunpack.c.l.b16 %v1936
    %v2435 = vunpack.c.l.b16 %v1937
    %v2436 = vunpack.c.l.b16 %v1938
    %v2437 = vunpack.c.l.b16 %v1939
    %v2438 = vpack.c.b16 %v2435, %v2434
    %v2439 = vpack.c.b16 %v2437, %v2436
    %v2443 = vsel %vm471, %v2429, 0
    %2445 = vmatprep.subr.bf16.mxu0 0
    %2446 = vmatpush1.bf16.msra.mxu0 %v2438
    %2447 = vmatprep.subr.bf16.mxu0 0
    %2448 = vmatpush1.bf16.msra.mxu0 %v2439
    %2449 = vmatprep.subr.bf16.mxu0 0
    %2450 = vmatpush1.bf16.msra.mxu0 0
    %2451 = vmatprep.subr.bf16.mxu0 0
    %2452 = vmatpush1.bf16.msra.mxu0 0
    %2453 = vmatprep.subr.bf16.mxu0 0
    %2454 = vmatpush1.bf16.msra.mxu0 0
    %2455 = vmatprep.subr.bf16.mxu0 0
    %2456 = vmatpush1.bf16.msra.mxu0 0
    %2457 = vmatprep.subr.bf16.mxu0 0
    %2458 = vmatpush1.bf16.msra.mxu0 0
    %2459 = vmatprep.subr.bf16.mxu0 0
    %2460 = vmatpush1.bf16.msra.mxu0 0
    %2461 = vmatprep.subr.bf16.mxu0 0
    %2462 = vmatpush1.bf16.msra.mxu0 0
    %2463 = vmatprep.subr.bf16.mxu0 0
    %2464 = vmatpush1.bf16.msra.mxu0 0
    %2465 = vmatprep.subr.bf16.mxu0 0
    %2466 = vmatpush1.bf16.msra.mxu0 0
    %2467 = vmatprep.subr.bf16.mxu0 0
    %2468 = vmatpush1.bf16.msra.mxu0 0
    %2469 = vmatprep.subr.bf16.mxu0 0
    %2470 = vmatpush1.bf16.msra.mxu0 0
    %2471 = vmatprep.subr.bf16.mxu0 0
    %2472 = vmatpush1.bf16.msra.mxu0 0
    %2473 = vmatprep.subr.bf16.mxu0 0
    %2474 = vmatpush1.bf16.msra.mxu0 0
    %2475 = vmatprep.subr.bf16.mxu0 0
    %2476 = vmatpush1.bf16.msra.mxu0 0
    %2477 = vmatprep.mubr.bf16.mxu0 0
    %2478 = vmatmul.mubr.bf16.gmra.mrb[0].mxu0 %v2443
    %v2479 = vpop.f32.mrb[0].mxu0
    %v2480 = vadd.f32 0.0, %v2479
    %v2481 = vpop.f32.mrb[0].mxu0
    %v2482 = vpop.f32.mrb[0].mxu0
    %v2483 = vadd.f32 0.0, %v2482
    %v2484 = vpop.f32.mrb[0].mxu0
    %2485 = vdwg.mxu0
    %v2486 = vadd.f32 %v2298, %v2480
    %v2487 = vadd.f32 %v2301, %v2483
    %2488 = vrot.lane.b32.xlu0 %v1924, 32
    %v2489 = vpop.permute.xlu0 %2488
    %2490 = vrot.lane.b32.xlu0 %v1925, 32
    %v2491 = vpop.permute.xlu0 %2490
    %v2493 = vsel %vm471, %v2489, 0
    %v2496 = vsel %vm471, %v2491, 0
    %2498 = vmatprep.subr.bf16.mxu0 0
    %2499 = vmatpush1.bf16.xpose.msra.mxu0 %v2496
    %2500 = vmatprep.subr.bf16.mxu0 0
    %2501 = vmatpush1.bf16.xpose.msra.mxu0 0
    %2502 = vmatprep.subr.bf16.mxu0 0
    %2503 = vmatpush1.bf16.xpose.msra.mxu0 0
    %2504 = vmatprep.subr.bf16.mxu0 0
    %2505 = vmatpush1.bf16.xpose.msra.mxu0 0
    %2506 = vmatprep.subr.bf16.mxu0 0
    %2507 = vmatpush1.bf16.xpose.msra.mxu0 0
    %2508 = vmatprep.subr.bf16.mxu0 0
    %2509 = vmatpush1.bf16.xpose.msra.mxu0 0
    %2510 = vmatprep.subr.bf16.mxu0 0
    %2511 = vmatpush1.bf16.xpose.msra.mxu0 0
    %2512 = vmatprep.subr.bf16.mxu0 0
    %2513 = vmatpush1.bf16.xpose.msra.mxu0 0
    %2514 = vmatprep.subr.bf16.mxu0 0
    %2515 = vmatpush1.bf16.xpose.msra.mxu0 0
    %2516 = vmatprep.subr.bf16.mxu0 0
    %2517 = vmatpush1.bf16.xpose.msra.mxu0 0
    %2518 = vmatprep.subr.bf16.mxu0 0
    %2519 = vmatpush1.bf16.xpose.msra.mxu0 0
    %2520 = vmatprep.subr.bf16.mxu0 0
    %2521 = vmatpush1.bf16.xpose.msra.mxu0 0
    %2522 = vmatprep.subr.bf16.mxu0 0
    %2523 = vmatpush1.bf16.xpose.msra.mxu0 0
    %2524 = vmatprep.subr.bf16.mxu0 0
    %2525 = vmatpush1.bf16.xpose.msra.mxu0 0
    %2526 = vmatprep.subr.bf16.mxu0 0
    %2527 = vmatpush1.bf16.xpose.msra.mxu0 0
    %2528 = vmatprep.subr.bf16.mxu0 0
    %2529 = vmatpush1.bf16.xpose.msra.mxu0 0
    %2530 = vmatprep.mubr.bf16.mxu0 0
    %2531 = vmatmul.mubr.bf16.gmra.mrb[0].mxu0 %v2493
    %v2532 = vpop.f32.mrb[0].mxu0
    %v2533 = vadd.f32 0.0, %v2532
    %v2534 = vpop.f32.mrb[0].mxu0
    %v2535 = vpop.f32.mrb[0].mxu0
    %v2536 = vadd.f32 0.0, %v2535
    %v2537 = vpop.f32.mrb[0].mxu0
    %2538 = vdwg.mxu0
    %v2539 = vmul.f32 %v2533, 0.17677669
    %v2540 = vmul.f32 %v2536, 0.17677669
    %v2541 = vadd.f32 %v2539, %v188
    %v2542 = vadd.f32 %v2540, %v189
    %v2543 = vsel %vm523, %v2541, -inf
    %2544 = vmax.xlane.f32.xlu0 %v2543
    %v2545 = vpop.xlane.xlu0 %2544
    %v2546 = vsel %vm523, %v2542, -inf
    %2547 = vmax.xlane.f32.xlu0 %v2546
    %v2548 = vpop.xlane.xlu0 %2547
    %v2549 = vsub.f32 %v2541, %v2545
    %v2550 = vsub.f32 %v2542, %v2548
    %v2551 = vmul.f32 %v2549, 1.442695
    %v2552 = vpow.pop %v2551
    %v2553 = vmul.f32 %v2550, 1.442695
    %v2554 = vpow.pop %v2553
    %v2555 = vsel %vm523, %v2552, 0.0
    %2556 = vadd.xlane.f32.xlu0 %v2555
    %v2557 = vpop.xlane.xlu0 %2556
    %v2558 = vsel %vm523, %v2554, 0.0
    %2559 = vadd.xlane.f32.xlu0 %v2558
    %v2560 = vpop.xlane.xlu0 %2559
    %v2561 = vrcp.pop %v2557
    %v2562 = vrcp.pop %v2560
    %v2563 = vmul.f32 %v2552, %v2561
    %v2564 = vmul.f32 %v2554, %v2562
    %v2565 = vpack.c.bf16 %v2564, %v2563
    %2566 = vrot.lane.b32.xlu0 %v1926, 32
    %v2567 = vpop.permute.xlu0 %2566
    %v2570 = vsel %vm523, %v2565, 0
    %2572 = vmatprep.subr.bf16.mxu0 0
    %2573 = vmatpush1.bf16.msra.mxu0 %v2567
    %2574 = vmatprep.subr.bf16.mxu0 0
    %2575 = vmatpush1.bf16.msra.mxu0 0
    %2576 = vmatprep.subr.bf16.mxu0 0
    %2577 = vmatpush1.bf16.msra.mxu0 0
    %2578 = vmatprep.subr.bf16.mxu0 0
    %2579 = vmatpush1.bf16.msra.mxu0 0
    %2580 = vmatprep.subr.bf16.mxu0 0
    %2581 = vmatpush1.bf16.msra.mxu0 0
    %2582 = vmatprep.subr.bf16.mxu0 0
    %2583 = vmatpush1.bf16.msra.mxu0 0
    %2584 = vmatprep.subr.bf16.mxu0 0
    %2585 = vmatpush1.bf16.msra.mxu0 0
    %2586 = vmatprep.subr.bf16.mxu0 0
    %2587 = vmatpush1.bf16.msra.mxu0 0
    %2588 = vmatprep.subr.bf16.mxu0 0
    %2589 = vmatpush1.bf16.msra.mxu0 0
    %2590 = vmatprep.subr.bf16.mxu0 0
    %2591 = vmatpush1.bf16.msra.mxu0 0
    %2592 = vmatprep.subr.bf16.mxu0 0
    %2593 = vmatpush1.bf16.msra.mxu0 0
    %2594 = vmatprep.subr.bf16.mxu0 0
    %2595 = vmatpush1.bf16.msra.mxu0 0
    %2596 = vmatprep.subr.bf16.mxu0 0
    %2597 = vmatpush1.bf16.msra.mxu0 0
    %2598 = vmatprep.subr.bf16.mxu0 0
    %2599 = vmatpush1.bf16.msra.mxu0 0
    %2600 = vmatprep.subr.bf16.mxu0 0
    %2601 = vmatpush1.bf16.msra.mxu0 0
    %2602 = vmatprep.subr.bf16.mxu0 0
    %2603 = vmatpush1.bf16.msra.mxu0 0
    %2604 = vmatprep.mubr.bf16.mxu0 0
    %2605 = vmatmul.mubr.bf16.gmra.mrb[0].mxu0 %v2570
    %v2606 = vpop.f32.mrb[0].mxu0
    %v2607 = vadd.f32 0.0, %v2606
    %v2608 = vpop.f32.mrb[0].mxu0
    %v2609 = vpop.f32.mrb[0].mxu0
    %v2610 = vadd.f32 0.0, %v2609
    %v2611 = vpop.f32.mrb[0].mxu0
    %2612 = vdwg.mxu0
    %v2613 = vpack.c.bf16 %v2610, %v2607
    %v2618 = vunpack.c.l.b16 %v1940
    %v2619 = vunpack.c.l.b16 %v1941
    %v2620 = vunpack.c.l.b16 %v1942
    %v2621 = vunpack.c.l.b16 %v1943
    %v2622 = vpack.c.b16 %v2619, %v2618
    %v2623 = vpack.c.b16 %v2621, %v2620
    %v2627 = vsel %vm471, %v2613, 0
    %2629 = vmatprep.subr.bf16.mxu0 0
    %2630 = vmatpush1.bf16.msra.mxu0 %v2622
    %2631 = vmatprep.subr.bf16.mxu0 0
    %2632 = vmatpush1.bf16.msra.mxu0 %v2623
    %2633 = vmatprep.subr.bf16.mxu0 0
    %2634 = vmatpush1.bf16.msra.mxu0 0
    %2635 = vmatprep.subr.bf16.mxu0 0
    %2636 = vmatpush1.bf16.msra.mxu0 0
    %2637 = vmatprep.subr.bf16.mxu0 0
    %2638 = vmatpush1.bf16.msra.mxu0 0
    %2639 = vmatprep.subr.bf16.mxu0 0
    %2640 = vmatpush1.bf16.msra.mxu0 0
    %2641 = vmatprep.subr.bf16.mxu0 0
    %2642 = vmatpush1.bf16.msra.mxu0 0
    %2643 = vmatprep.subr.bf16.mxu0 0
    %2644 = vmatpush1.bf16.msra.mxu0 0
    %2645 = vmatprep.subr.bf16.mxu0 0
    %2646 = vmatpush1.bf16.msra.mxu0 0
    %2647 = vmatprep.subr.bf16.mxu0 0
    %2648 = vmatpush1.bf16.msra.mxu0 0
    %2649 = vmatprep.subr.bf16.mxu0 0
    %2650 = vmatpush1.bf16.msra.mxu0 0
    %2651 = vmatprep.subr.bf16.mxu0 0
    %2652 = vmatpush1.bf16.msra.mxu0 0
    %2653 = vmatprep.subr.bf16.mxu0 0
    %2654 = vmatpush1.bf16.msra.mxu0 0
    %2655 = vmatprep.subr.bf16.mxu0 0
    %2656 = vmatpush1.bf16.msra.mxu0 0
    %2657 = vmatprep.subr.bf16.mxu0 0
    %2658 = vmatpush1.bf16.msra.mxu0 0
    %2659 = vmatprep.subr.bf16.mxu0 0
    %2660 = vmatpush1.bf16.msra.mxu0 0
    %2661 = vmatprep.mubr.bf16.mxu0 0
    %2662 = vmatmul.mubr.bf16.gmra.mrb[0].mxu0 %v2627
    %v2663 = vpop.f32.mrb[0].mxu0
    %v2664 = vadd.f32 0.0, %v2663
    %v2665 = vpop.f32.mrb[0].mxu0
    %v2666 = vpop.f32.mrb[0].mxu0
    %v2667 = vadd.f32 0.0, %v2666
    %v2668 = vpop.f32.mrb[0].mxu0
    %2669 = vdwg.mxu0
    %v2670 = vadd.f32 %v2486, %v2664
    %v2671 = vadd.f32 %v2487, %v2667
    %s2672 = scalar_lea.vmem %s7, 1
    %v2673 = vld [vmem:[%s2672] sm:$0x1]
    %v2675 = vlaneseq
    %v2676 = vshrl.u32 %v2675, 7
    %v2677 = vsub.s32 0, %v2676
    %v2678 = vrot.slane %v2673, %v2677
    %v2680 = vadd.f32 %v2670, %v2678
    %v2681 = vadd.f32 %v2671, %v2678
    %v2682 = vadd.f32 %v2680, %v1658
    %v2683 = vadd.f32 %v2681, %v1659
    %s2684 = scalar_lea.vmem %s8, 1
    %v2685 = vld [vmem:[%s2684] sm:$0x1]
    %s2686 = scalar_lea.vmem %s9, 1
    %v2687 = vld [vmem:[%s2686] sm:$0x1]
    %2688 = vadd.xlane.f32.xlu0 %v2682
    %v2689 = vpop.xlane.xlu0 %2688
    %2690 = vadd.xlane.f32.xlu0 %v2683
    %v2691 = vpop.xlane.xlu0 %2690
    %v2692 = vmul.f32 %v2689, %v123
    %v2693 = vmul.f32 %v2691, %v123
    %v2694 = vsub.f32 %v2682, %v2692
    %v2695 = vsub.f32 %v2683, %v2693
    %v2696 = vmul.f32 %v2694, %v2694
    %v2697 = vmul.f32 %v2695, %v2695
    %2698 = vadd.xlane.f32.xlu0 %v2696
    %v2699 = vpop.xlane.xlu0 %2698
    %2700 = vadd.xlane.f32.xlu0 %v2697
    %v2701 = vpop.xlane.xlu0 %2700
    %v2702 = vmul.f32 %v2699, %v123
    %v2703 = vmul.f32 %v2701, %v123
    %v2704 = vadd.f32 %v2702, 1e-12
    %v2705 = vadd.f32 %v2703, 1e-12
    %v2706 = vrsqrt.pop %v2704
    %v2707 = vrsqrt.pop %v2705
    %v2708 = vmul.f32 %v2694, %v2706
    %v2709 = vmul.f32 %v2695, %v2707
    %v2711 = vlaneseq
    %v2712 = vshrl.u32 %v2711, 7
    %v2713 = vsub.s32 0, %v2712
    %v2714 = vrot.slane %v2685, %v2713
    %v2716 = vmul.f32 %v2708, %v2714
    %v2717 = vmul.f32 %v2709, %v2714
    %v2719 = vlaneseq
    %v2720 = vshrl.u32 %v2719, 7
    %v2721 = vsub.s32 0, %v2720
    %v2722 = vrot.slane %v2687, %v2721
    %v2724 = vadd.f32 %v2716, %v2722
    %v2725 = vadd.f32 %v2717, %v2722
    %v2726 = vpack.c.bf16 %v2725, %v2724
    %s2727 = scalar_lea.vmem [#allocation6], 128
    %v2728 = vld [vmem:[%s2727] sm:$0xff]
    %v2729 = vld [vmem:[%s2727 + $0x8] sm:$0xff]
    %v2730 = vld [vmem:[%s2727 + $0x10] sm:$0xff]
    %v2731 = vld [vmem:[%s2727 + $0x18] sm:$0xff]
    %v2732 = vld [vmem:[%s2727 + $0x20] sm:$0xff]
    %v2733 = vld [vmem:[%s2727 + $0x28] sm:$0xff]
    %v2734 = vld [vmem:[%s2727 + $0x30] sm:$0xff]
    %v2735 = vld [vmem:[%s2727 + $0x38] sm:$0xff]
    %v2736 = vld [vmem:[%s2727 + $0x40] sm:$0xff]
    %v2737 = vld [vmem:[%s2727 + $0x48] sm:$0xff]
    %v2738 = vld [vmem:[%s2727 + $0x50] sm:$0xff]
    %v2739 = vld [vmem:[%s2727 + $0x58] sm:$0xff]
    %v2740 = vld [vmem:[%s2727 + $0x60] sm:$0xff]
    %v2741 = vld [vmem:[%s2727 + $0x68] sm:$0xff]
    %v2742 = vld [vmem:[%s2727 + $0x70] sm:$0xff]
    %v2743 = vld [vmem:[%s2727 + $0x78] sm:$0xff]
    %s2744 = scalar_lea.vmem %s11, 2
    %v2745 = vld [vmem:[%s2744] sm:$0x3]
    %v2747 = vlaneseq
    %v2748 = vshrl.u32 %v2747, 7
    %v2749 = vsub.s32 0, %v2748
    %v2750 = vrot.slane %v2745, %v2749
    %v2751 = vlaneseq
    %v2752 = vshrl.u32 %v2751, 7
    %v2753 = vsub.s32 1, %v2752
    %v2754 = vrot.slane %v2745, %v2753
    %v2773 = vunpack.c.l.b16 %v2728
    %v2774 = vunpack.c.h.b16 %v2728
    %v2775 = vunpack.c.l.b16 %v2729
    %v2776 = vunpack.c.h.b16 %v2729
    %v2777 = vunpack.c.l.b16 %v2730
    %v2778 = vunpack.c.h.b16 %v2730
    %v2779 = vunpack.c.l.b16 %v2731
    %v2780 = vunpack.c.h.b16 %v2731
    %v2781 = vunpack.c.l.b16 %v2732
    %v2782 = vunpack.c.h.b16 %v2732
    %v2783 = vunpack.c.l.b16 %v2733
    %v2784 = vunpack.c.h.b16 %v2733
    %v2785 = vunpack.c.l.b16 %v2734
    %v2786 = vunpack.c.h.b16 %v2734
    %v2787 = vunpack.c.l.b16 %v2735
    %v2788 = vunpack.c.h.b16 %v2735
    %v2789 = vunpack.c.l.b16 %v2736
    %v2790 = vunpack.c.h.b16 %v2736
    %v2791 = vunpack.c.l.b16 %v2737
    %v2792 = vunpack.c.h.b16 %v2737
    %v2793 = vunpack.c.l.b16 %v2738
    %v2794 = vunpack.c.h.b16 %v2738
    %v2795 = vunpack.c.l.b16 %v2739
    %v2796 = vunpack.c.h.b16 %v2739
    %v2797 = vunpack.c.l.b16 %v2740
    %v2798 = vunpack.c.h.b16 %v2740
    %v2799 = vunpack.c.l.b16 %v2741
    %v2800 = vunpack.c.h.b16 %v2741
    %v2801 = vunpack.c.l.b16 %v2742
    %v2802 = vunpack.c.h.b16 %v2742
    %v2803 = vunpack.c.l.b16 %v2743
    %v2804 = vunpack.c.h.b16 %v2743
    %v2805 = vpack.c.b16 %v2775, %v2773
    %v2806 = vpack.c.b16 %v2776, %v2774
    %v2807 = vpack.c.b16 %v2779, %v2777
    %v2808 = vpack.c.b16 %v2780, %v2778
    %v2809 = vpack.c.b16 %v2783, %v2781
    %v2810 = vpack.c.b16 %v2784, %v2782
    %v2811 = vpack.c.b16 %v2787, %v2785
    %v2812 = vpack.c.b16 %v2788, %v2786
    %v2813 = vpack.c.b16 %v2791, %v2789
    %v2814 = vpack.c.b16 %v2792, %v2790
    %v2815 = vpack.c.b16 %v2795, %v2793
    %v2816 = vpack.c.b16 %v2796, %v2794
    %v2817 = vpack.c.b16 %v2799, %v2797
    %v2818 = vpack.c.b16 %v2800, %v2798
    %v2819 = vpack.c.b16 %v2803, %v2801
    %v2820 = vpack.c.b16 %v2804, %v2802
    %2837 = vmatprep.subr.bf16.mxu0 %v2806
    %2838 = vmatpush1.bf16.msra.mxu0 %v2805
    %2839 = vmatprep.subr.bf16.mxu0 %v2808
    %2840 = vmatpush1.bf16.msra.mxu0 %v2807
    %2841 = vmatprep.subr.bf16.mxu0 %v2810
    %2842 = vmatpush1.bf16.msra.mxu0 %v2809
    %2843 = vmatprep.subr.bf16.mxu0 %v2812
    %2844 = vmatpush1.bf16.msra.mxu0 %v2811
    %2845 = vmatprep.subr.bf16.mxu0 %v2814
    %2846 = vmatpush1.bf16.msra.mxu0 %v2813
    %2847 = vmatprep.subr.bf16.mxu0 %v2816
    %2848 = vmatpush1.bf16.msra.mxu0 %v2815
    %2849 = vmatprep.subr.bf16.mxu0 %v2818
    %2850 = vmatpush1.bf16.msra.mxu0 %v2817
    %2851 = vmatprep.subr.bf16.mxu0 %v2820
    %2852 = vmatpush1.bf16.msra.mxu0 %v2819
    %2853 = vmatprep.subr.bf16.mxu0 0
    %2854 = vmatpush1.bf16.msra.mxu0 0
    %2855 = vmatprep.subr.bf16.mxu0 0
    %2856 = vmatpush1.bf16.msra.mxu0 0
    %2857 = vmatprep.subr.bf16.mxu0 0
    %2858 = vmatpush1.bf16.msra.mxu0 0
    %2859 = vmatprep.subr.bf16.mxu0 0
    %2860 = vmatpush1.bf16.msra.mxu0 0
    %2861 = vmatprep.subr.bf16.mxu0 0
    %2862 = vmatpush1.bf16.msra.mxu0 0
    %2863 = vmatprep.subr.bf16.mxu0 0
    %2864 = vmatpush1.bf16.msra.mxu0 0
    %2865 = vmatprep.subr.bf16.mxu0 0
    %2866 = vmatpush1.bf16.msra.mxu0 0
    %2867 = vmatprep.subr.bf16.mxu0 0
    %2868 = vmatpush1.bf16.msra.mxu0 0
    %2869 = vmatprep.mubr.bf16.mxu0 0
    %2870 = vmatmul.mubr.bf16.gmra.mrb[0].mxu0 %v2726
    %v2871 = vpop.f32.mrb[0].mxu0
    %v2872 = vadd.f32 %v2750, %v2871
    %v2873 = vpop.f32.mrb[0].mxu0
    %v2874 = vadd.f32 %v2754, %v2873
    %v2875 = vpop.f32.mrb[0].mxu0
    %v2876 = vadd.f32 %v2750, %v2875
    %v2877 = vpop.f32.mrb[0].mxu0
    %v2878 = vadd.f32 %v2754, %v2877
    %2879 = vdwg.mxu0
    %v2880 = vmul.f32 %v2872, %v2872
    %v2881 = vmul.f32 %v2874, %v2874
    %v2882 = vmul.f32 %v2876, %v2876
    %v2883 = vmul.f32 %v2878, %v2878
    %v2884 = vmul.f32 %v2872, %v2880
    %v2885 = vmul.f32 %v2874, %v2881
    %v2886 = vmul.f32 %v2876, %v2882
    %v2887 = vmul.f32 %v2878, %v2883
    %v2888 = vmul.f32 %v2884, 0.044715
    %v2889 = vmul.f32 %v2885, 0.044715
    %v2890 = vmul.f32 %v2886, 0.044715
    %v2891 = vmul.f32 %v2887, 0.044715
    %v2892 = vadd.f32 %v2872, %v2888
    %v2893 = vadd.f32 %v2874, %v2889
    %v2894 = vadd.f32 %v2876, %v2890
    %v2895 = vadd.f32 %v2878, %v2891
    %v2896 = vmul.f32 %v2892, 0.7978846
    %v2897 = vmul.f32 %v2893, 0.7978846
    %v2898 = vmul.f32 %v2894, 0.7978846
    %v2899 = vmul.f32 %v2895, 0.7978846
    %v2900 = vtanh.pop %v2896
    %v2901 = vtanh.pop %v2897
    %v2902 = vtanh.pop %v2898
    %v2903 = vtanh.pop %v2899
    %v2904 = vadd.f32 %v2900, 1.0
    %v2905 = vadd.f32 %v2901, 1.0
    %v2906 = vadd.f32 %v2902, 1.0
    %v2907 = vadd.f32 %v2903, 1.0
    %v2908 = vmul.f32 %v2904, 0.5
    %v2909 = vmul.f32 %v2905, 0.5
    %v2910 = vmul.f32 %v2906, 0.5
    %v2911 = vmul.f32 %v2907, 0.5
    %v2912 = vmul.f32 %v2872, %v2908
    %v2913 = vmul.f32 %v2874, %v2909
    %v2914 = vmul.f32 %v2876, %v2910
    %v2915 = vmul.f32 %v2878, %v2911
    %v2916 = vpack.c.bf16 %v2914, %v2912
    %v2917 = vpack.c.bf16 %v2915, %v2913
    %s2918 = scalar_lea.vmem [#allocation7], 128
    %v2919 = vld [vmem:[%s2918] sm:$0xf]
    %v2920 = vld [vmem:[%s2918 + $0x4] sm:$0xf]
    %v2921 = vld [vmem:[%s2918 + $0x8] sm:$0xf]
    %v2922 = vld [vmem:[%s2918 + $0xc] sm:$0xf]
    %v2923 = vld [vmem:[%s2918 + $0x10] sm:$0xf]
    %v2924 = vld [vmem:[%s2918 + $0x14] sm:$0xf]
    %v2925 = vld [vmem:[%s2918 + $0x18] sm:$0xf]
    %v2926 = vld [vmem:[%s2918 + $0x1c] sm:$0xf]
    %v2927 = vld [vmem:[%s2918 + $0x20] sm:$0xf]
    %v2928 = vld [vmem:[%s2918 + $0x24] sm:$0xf]
    %v2929 = vld [vmem:[%s2918 + $0x28] sm:$0xf]
    %v2930 = vld [vmem:[%s2918 + $0x2c] sm:$0xf]
    %v2931 = vld [vmem:[%s2918 + $0x30] sm:$0xf]
    %v2932 = vld [vmem:[%s2918 + $0x34] sm:$0xf]
    %v2933 = vld [vmem:[%s2918 + $0x38] sm:$0xf]
    %v2934 = vld [vmem:[%s2918 + $0x3c] sm:$0xf]
    %v2935 = vld [vmem:[%s2918 + $0x40] sm:$0xf]
    %v2936 = vld [vmem:[%s2918 + $0x44] sm:$0xf]
    %v2937 = vld [vmem:[%s2918 + $0x48] sm:$0xf]
    %v2938 = vld [vmem:[%s2918 + $0x4c] sm:$0xf]
    %v2939 = vld [vmem:[%s2918 + $0x50] sm:$0xf]
    %v2940 = vld [vmem:[%s2918 + $0x54] sm:$0xf]
    %v2941 = vld [vmem:[%s2918 + $0x58] sm:$0xf]
    %v2942 = vld [vmem:[%s2918 + $0x5c] sm:$0xf]
    %v2943 = vld [vmem:[%s2918 + $0x60] sm:$0xf]
    %v2944 = vld [vmem:[%s2918 + $0x64] sm:$0xf]
    %v2945 = vld [vmem:[%s2918 + $0x68] sm:$0xf]
    %v2946 = vld [vmem:[%s2918 + $0x6c] sm:$0xf]
    %v2947 = vld [vmem:[%s2918 + $0x70] sm:$0xf]
    %v2948 = vld [vmem:[%s2918 + $0x74] sm:$0xf]
    %v2949 = vld [vmem:[%s2918 + $0x78] sm:$0xf]
    %v2950 = vld [vmem:[%s2918 + $0x7c] sm:$0xf]
    %s2951 = scalar_lea.vmem %s13, 1
    %v2952 = vld [vmem:[%s2951] sm:$0x1]
    %v2954 = vlaneseq
    %v2955 = vshrl.u32 %v2954, 7
    %v2956 = vsub.s32 0, %v2955
    %v2957 = vrot.slane %v2952, %v2956
    %v2991 = vunpack.c.l.b16 %v2919
    %v2992 = vunpack.c.l.b16 %v2920
    %v2993 = vunpack.c.l.b16 %v2921
    %v2994 = vunpack.c.l.b16 %v2922
    %v2995 = vunpack.c.l.b16 %v2923
    %v2996 = vunpack.c.l.b16 %v2924
    %v2997 = vunpack.c.l.b16 %v2925
    %v2998 = vunpack.c.l.b16 %v2926
    %v2999 = vunpack.c.l.b16 %v2927
    %v3000 = vunpack.c.l.b16 %v2928
    %v3001 = vunpack.c.l.b16 %v2929
    %v3002 = vunpack.c.l.b16 %v2930
    %v3003 = vunpack.c.l.b16 %v2931
    %v3004 = vunpack.c.l.b16 %v2932
    %v3005 = vunpack.c.l.b16 %v2933
    %v3006 = vunpack.c.l.b16 %v2934
    %v3007 = vunpack.c.l.b16 %v2935
    %v3008 = vunpack.c.l.b16 %v2936
    %v3009 = vunpack.c.l.b16 %v2937
    %v3010 = vunpack.c.l.b16 %v2938
    %v3011 = vunpack.c.l.b16 %v2939
    %v3012 = vunpack.c.l.b16 %v2940
    %v3013 = vunpack.c.l.b16 %v2941
    %v3014 = vunpack.c.l.b16 %v2942
    %v3015 = vunpack.c.l.b16 %v2943
    %v3016 = vunpack.c.l.b16 %v2944
    %v3017 = vunpack.c.l.b16 %v2945
    %v3018 = vunpack.c.l.b16 %v2946
    %v3019 = vunpack.c.l.b16 %v2947
    %v3020 = vunpack.c.l.b16 %v2948
    %v3021 = vunpack.c.l.b16 %v2949
    %v3022 = vunpack.c.l.b16 %v2950
    %v3023 = vpack.c.b16 %v2992, %v2991
    %v3024 = vpack.c.b16 %v2994, %v2993
    %v3025 = vpack.c.b16 %v2996, %v2995
    %v3026 = vpack.c.b16 %v2998, %v2997
    %v3027 = vpack.c.b16 %v3000, %v2999
    %v3028 = vpack.c.b16 %v3002, %v3001
    %v3029 = vpack.c.b16 %v3004, %v3003
    %v3030 = vpack.c.b16 %v3006, %v3005
    %v3031 = vpack.c.b16 %v3008, %v3007
    %v3032 = vpack.c.b16 %v3010, %v3009
    %v3033 = vpack.c.b16 %v3012, %v3011
    %v3034 = vpack.c.b16 %v3014, %v3013
    %v3035 = vpack.c.b16 %v3016, %v3015
    %v3036 = vpack.c.b16 %v3018, %v3017
    %v3037 = vpack.c.b16 %v3020, %v3019
    %v3038 = vpack.c.b16 %v3022, %v3021
    %3055 = vmatprep.subr.bf16.mxu0 0
    %3056 = vmatpush1.bf16.msra.mxu0 %v3023
    %3057 = vmatprep.subr.bf16.mxu0 0
    %3058 = vmatpush1.bf16.msra.mxu0 %v3024
    %3059 = vmatprep.subr.bf16.mxu0 0
    %3060 = vmatpush1.bf16.msra.mxu0 %v3025
    %3061 = vmatprep.subr.bf16.mxu0 0
    %3062 = vmatpush1.bf16.msra.mxu0 %v3026
    %3063 = vmatprep.subr.bf16.mxu0 0
    %3064 = vmatpush1.bf16.msra.mxu0 %v3027
    %3065 = vmatprep.subr.bf16.mxu0 0
    %3066 = vmatpush1.bf16.msra.mxu0 %v3028
    %3067 = vmatprep.subr.bf16.mxu0 0
    %3068 = vmatpush1.bf16.msra.mxu0 %v3029
    %3069 = vmatprep.subr.bf16.mxu0 0
    %3070 = vmatpush1.bf16.msra.mxu0 %v3030
    %3071 = vmatprep.subr.bf16.mxu0 0
    %3072 = vmatpush1.bf16.msra.mxu0 %v3031
    %3073 = vmatprep.subr.bf16.mxu0 0
    %3074 = vmatpush1.bf16.msra.mxu0 %v3032
    %3075 = vmatprep.subr.bf16.mxu0 0
    %3076 = vmatpush1.bf16.msra.mxu0 %v3033
    %3077 = vmatprep.subr.bf16.mxu0 0
    %3078 = vmatpush1.bf16.msra.mxu0 %v3034
    %3079 = vmatprep.subr.bf16.mxu0 0
    %3080 = vmatpush1.bf16.msra.mxu0 %v3035
    %3081 = vmatprep.subr.bf16.mxu0 0
    %3082 = vmatpush1.bf16.msra.mxu0 %v3036
    %3083 = vmatprep.subr.bf16.mxu0 0
    %3084 = vmatpush1.bf16.msra.mxu0 %v3037
    %3085 = vmatprep.subr.bf16.mxu0 0
    %3086 = vmatpush1.bf16.msra.mxu0 %v3038
    %3087 = vmatprep.mubr.bf16.mxu0 %v2917
    %3088 = vmatmul.mubr.bf16.gmra.mrb[0].mxu0 %v2916
    %v3089 = vpop.f32.mrb[0].mxu0
    %v3090 = vadd.f32 %v2957, %v3089
    %v3091 = vpop.f32.mrb[0].mxu0
    %v3092 = vpop.f32.mrb[0].mxu0
    %v3093 = vadd.f32 %v2957, %v3092
    %v3094 = vpop.f32.mrb[0].mxu0
    %3095 = vdwg.mxu0
    %v3096 = vadd.f32 %v3090, %v2724
    %v3097 = vadd.f32 %v3093, %v2725
    %s3098 = scalar_lea.vmem %s14, 1
    %v3099 = vld [vmem:[%s3098] sm:$0x1]
    %s3100 = scalar_lea.vmem %s15, 1
    %v3101 = vld [vmem:[%s3100] sm:$0x1]
    %3102 = vadd.xlane.f32.xlu0 %v3096
    %v3103 = vpop.xlane.xlu0 %3102
    %3104 = vadd.xlane.f32.xlu0 %v3097
    %v3105 = vpop.xlane.xlu0 %3104
    %v3106 = vmul.f32 %v3103, %v123
    %v3107 = vmul.f32 %v3105, %v123
    %v3108 = vsub.f32 %v3096, %v3106
    %v3109 = vsub.f32 %v3097, %v3107
    %v3110 = vmul.f32 %v3108, %v3108
    %v3111 = vmul.f32 %v3109, %v3109
    %3112 = vadd.xlane.f32.xlu0 %v3110
    %v3113 = vpop.xlane.xlu0 %3112
    %3114 = vadd.xlane.f32.xlu0 %v3111
    %v3115 = vpop.xlane.xlu0 %3114
    %v3116 = vmul.f32 %v3113, %v123
    %v3117 = vmul.f32 %v3115, %v123
    %v3118 = vadd.f32 %v3116, 1e-12
    %v3119 = vadd.f32 %v3117, 1e-12
    %v3120 = vrsqrt.pop %v3118
    %v3121 = vrsqrt.pop %v3119
    %v3122 = vmul.f32 %v3108, %v3120
    %v3123 = vmul.f32 %v3109, %v3121
    %v3125 = vlaneseq
    %v3126 = vshrl.u32 %v3125, 7
    %v3127 = vsub.s32 0, %v3126
    %v3128 = vrot.slane %v3099, %v3127
    %v3130 = vmul.f32 %v3122, %v3128
    %v3131 = vmul.f32 %v3123, %v3128
    %v3133 = vlaneseq
    %v3134 = vshrl.u32 %v3133, 7
    %v3135 = vsub.s32 0, %v3134
    %v3136 = vrot.slane %v3101, %v3135
    %v3138 = vadd.f32 %v3130, %v3136
    %v3139 = vadd.f32 %v3131, %v3136
    %v3140 = vpack.c.bf16 %v3139, %v3138
    %s3141 = scalar_lea.vmem [#allocation2], 384
    %v3142 = vld [vmem:[%s3141] sm:$0xff]
    %v3143 = vld [vmem:[%s3141 + $0x8] sm:$0xf]
    %v3144 = vld [vmem:[%s3141 + $0xc] sm:$0xff]
    %v3145 = vld [vmem:[%s3141 + $0x14] sm:$0xf]
    %v3146 = vld [vmem:[%s3141 + $0x18] sm:$0xff]
    %v3147 = vld [vmem:[%s3141 + $0x20] sm:$0xf]
    %v3148 = vld [vmem:[%s3141 + $0x24] sm:$0xff]
    %v3149 = vld [vmem:[%s3141 + $0x2c] sm:$0xf]
    %v3150 = vld [vmem:[%s3141 + $0x30] sm:$0xff]
    %v3151 = vld [vmem:[%s3141 + $0x38] sm:$0xf]
    %v3152 = vld [vmem:[%s3141 + $0x3c] sm:$0xff]
    %v3153 = vld [vmem:[%s3141 + $0x44] sm:$0xf]
    %v3154 = vld [vmem:[%s3141 + $0x48] sm:$0xff]
    %v3155 = vld [vmem:[%s3141 + $0x50] sm:$0xf]
    %v3156 = vld [vmem:[%s3141 + $0x54] sm:$0xff]
    %v3157 = vld [vmem:[%s3141 + $0x5c] sm:$0xf]
    %v3158 = vld [vmem:[%s3141 + $0x60] sm:$0xff]
    %v3159 = vld [vmem:[%s3141 + $0x68] sm:$0xf]
    %v3160 = vld [vmem:[%s3141 + $0x6c] sm:$0xff]
    %v3161 = vld [vmem:[%s3141 + $0x74] sm:$0xf]
    %v3162 = vld [vmem:[%s3141 + $0x78] sm:$0xff]
    %v3163 = vld [vmem:[%s3141 + $0x80] sm:$0xf]
    %v3164 = vld [vmem:[%s3141 + $0x84] sm:$0xff]
    %v3165 = vld [vmem:[%s3141 + $0x8c] sm:$0xf]
    %v3166 = vld [vmem:[%s3141 + $0x90] sm:$0xff]
    %v3167 = vld [vmem:[%s3141 + $0x98] sm:$0xf]
    %v3168 = vld [vmem:[%s3141 + $0x9c] sm:$0xff]
    %v3169 = vld [vmem:[%s3141 + $0xa4] sm:$0xf]
    %v3170 = vld [vmem:[%s3141 + $0xa8] sm:$0xff]
    %v3171 = vld [vmem:[%s3141 + $0xb0] sm:$0xf]
    %v3172 = vld [vmem:[%s3141 + $0xb4] sm:$0xff]
    %v3173 = vld [vmem:[%s3141 + $0xbc] sm:$0xf]
    %s3174 = scalar_lea.vmem %s5, 6
    %v3175 = vld [vmem:[%s3174] sm:$0x7]
    %v3177 = vlaneseq
    %v3178 = vshrl.u32 %v3177, 7
    %v3179 = vsub.s32 0, %v3178
    %v3180 = vrot.slane %v3175, %v3179
    %v3181 = vlaneseq
    %v3182 = vshrl.u32 %v3181, 7
    %v3183 = vsub.s32 1, %v3182
    %v3184 = vrot.slane %v3175, %v3183
    %v3185 = vlaneseq
    %v3186 = vshrl.u32 %v3185, 7
    %v3187 = vsub.s32 2, %v3186
    %v3188 = vrot.slane %v3175, %v3187
    %v3224 = vunpack.c.l.b16 %v3142
    %v3225 = vunpack.c.h.b16 %v3142
    %v3226 = vunpack.c.l.b16 %v3143
    %v3227 = vunpack.c.l.b16 %v3144
    %v3228 = vunpack.c.h.b16 %v3144
    %v3229 = vunpack.c.l.b16 %v3145
    %v3230 = vunpack.c.l.b16 %v3146
    %v3231 = vunpack.c.h.b16 %v3146
    %v3232 = vunpack.c.l.b16 %v3147
    %v3233 = vunpack.c.l.b16 %v3148
    %v3234 = vunpack.c.h.b16 %v3148
    %v3235 = vunpack.c.l.b16 %v3149
    %v3236 = vunpack.c.l.b16 %v3150
    %v3237 = vunpack.c.h.b16 %v3150
    %v3238 = vunpack.c.l.b16 %v3151
    %v3239 = vunpack.c.l.b16 %v3152
    %v3240 = vunpack.c.h.b16 %v3152
    %v3241 = vunpack.c.l.b16 %v3153
    %v3242 = vunpack.c.l.b16 %v3154
    %v3243 = vunpack.c.h.b16 %v3154
    %v3244 = vunpack.c.l.b16 %v3155
    %v3245 = vunpack.c.l.b16 %v3156
    %v3246 = vunpack.c.h.b16 %v3156
    %v3247 = vunpack.c.l.b16 %v3157
    %v3248 = vunpack.c.l.b16 %v3158
    %v3249 = vunpack.c.h.b16 %v3158
    %v3250 = vunpack.c.l.b16 %v3159
    %v3251 = vunpack.c.l.b16 %v3160
    %v3252 = vunpack.c.h.b16 %v3160
    %v3253 = vunpack.c.l.b16 %v3161
    %v3254 = vunpack.c.l.b16 %v3162
    %v3255 = vunpack.c.h.b16 %v3162
    %v3256 = vunpack.c.l.b16 %v3163
    %v3257 = vunpack.c.l.b16 %v3164
    %v3258 = vunpack.c.h.b16 %v3164
    %v3259 = vunpack.c.l.b16 %v3165
    %v3260 = vunpack.c.l.b16 %v3166
    %v3261 = vunpack.c.h.b16 %v3166
    %v3262 = vunpack.c.l.b16 %v3167
    %v3263 = vunpack.c.l.b16 %v3168
    %v3264 = vunpack.c.h.b16 %v3168
    %v3265 = vunpack.c.l.b16 %v3169
    %v3266 = vunpack.c.l.b16 %v3170
    %v3267 = vunpack.c.h.b16 %v3170
    %v3268 = vunpack.c.l.b16 %v3171
    %v3269 = vunpack.c.l.b16 %v3172
    %v3270 = vunpack.c.h.b16 %v3172
    %v3271 = vunpack.c.l.b16 %v3173
    %v3272 = vpack.c.b16 %v3227, %v3224
    %v3273 = vpack.c.b16 %v3228, %v3225
    %v3274 = vpack.c.b16 %v3229, %v3226
    %v3275 = vpack.c.b16 %v3233, %v3230
    %v3276 = vpack.c.b16 %v3234, %v3231
    %v3277 = vpack.c.b16 %v3235, %v3232
    %v3278 = vpack.c.b16 %v3239, %v3236
    %v3279 = vpack.c.b16 %v3240, %v3237
    %v3280 = vpack.c.b16 %v3241, %v3238
    %v3281 = vpack.c.b16 %v3245, %v3242
    %v3282 = vpack.c.b16 %v3246, %v3243
    %v3283 = vpack.c.b16 %v3247, %v3244
    %v3284 = vpack.c.b16 %v3251, %v3248
    %v3285 = vpack.c.b16 %v3252, %v3249
    %v3286 = vpack.c.b16 %v3253, %v3250
    %v3287 = vpack.c.b16 %v3257, %v3254
    %v3288 = vpack.c.b16 %v3258, %v3255
    %v3289 = vpack.c.b16 %v3259, %v3256
    %v3290 = vpack.c.b16 %v3263, %v3260
    %v3291 = vpack.c.b16 %v3264, %v3261
    %v3292 = vpack.c.b16 %v3265, %v3262
    %v3293 = vpack.c.b16 %v3269, %v3266
    %v3294 = vpack.c.b16 %v3270, %v3267
    %v3295 = vpack.c.b16 %v3271, %v3268
    %3320 = vmatprep.subr.bf16.mxu0 %v3273
    %3321 = vmatpush1.bf16.msra.mxu0 %v3272
    %3322 = vmatprep.subr.bf16.mxu0 %v3276
    %3323 = vmatpush1.bf16.msra.mxu0 %v3275
    %3324 = vmatprep.subr.bf16.mxu0 %v3279
    %3325 = vmatpush1.bf16.msra.mxu0 %v3278
    %3326 = vmatprep.subr.bf16.mxu0 %v3282
    %3327 = vmatpush1.bf16.msra.mxu0 %v3281
    %3328 = vmatprep.subr.bf16.mxu0 %v3285
    %3329 = vmatpush1.bf16.msra.mxu0 %v3284
    %3330 = vmatprep.subr.bf16.mxu0 %v3288
    %3331 = vmatpush1.bf16.msra.mxu0 %v3287
    %3332 = vmatprep.subr.bf16.mxu0 %v3291
    %3333 = vmatpush1.bf16.msra.mxu0 %v3290
    %3334 = vmatprep.subr.bf16.mxu0 %v3294
    %3335 = vmatpush1.bf16.msra.mxu0 %v3293
    %3336 = vmatprep.subr.bf16.mxu0 0
    %3337 = vmatpush1.bf16.msra.mxu0 0
    %3338 = vmatprep.subr.bf16.mxu0 0
    %3339 = vmatpush1.bf16.msra.mxu0 0
    %3340 = vmatprep.subr.bf16.mxu0 0
    %3341 = vmatpush1.bf16.msra.mxu0 0
    %3342 = vmatprep.subr.bf16.mxu0 0
    %3343 = vmatpush1.bf16.msra.mxu0 0
    %3344 = vmatprep.subr.bf16.mxu0 0
    %3345 = vmatpush1.bf16.msra.mxu0 0
    %3346 = vmatprep.subr.bf16.mxu0 0
    %3347 = vmatpush1.bf16.msra.mxu0 0
    %3348 = vmatprep.subr.bf16.mxu0 0
    %3349 = vmatpush1.bf16.msra.mxu0 0
    %3350 = vmatprep.subr.bf16.mxu0 0
    %3351 = vmatpush1.bf16.msra.mxu0 0
    %3352 = vmatprep.mubr.bf16.mxu0 0
    %3353 = vmatmul.mubr.bf16.gmra.mrb[0].mxu0 %v3140
    %v3354 = vpop.f32.mrb[0].mxu0
    %v3355 = vadd.f32 %v3180, %v3354
    %v3356 = vpop.f32.mrb[0].mxu0
    %v3357 = vadd.f32 %v3184, %v3356
    %v3358 = vpop.f32.mrb[0].mxu0
    %v3359 = vadd.f32 %v3180, %v3358
    %v3360 = vpop.f32.mrb[0].mxu0
    %v3361 = vadd.f32 %v3184, %v3360
    %3362 = vdwg.mxu0
    %3363 = vmatprep.subr.bf16.mxu0 0
    %3364 = vmatpush1.bf16.msra.mxu0 %v3274
    %3365 = vmatprep.subr.bf16.mxu0 0
    %3366 = vmatpush1.bf16.msra.mxu0 %v3277
    %3367 = vmatprep.subr.bf16.mxu0 0
    %3368 = vmatpush1.bf16.msra.mxu0 %v3280
    %3369 = vmatprep.subr.bf16.mxu0 0
    %3370 = vmatpush1.bf16.msra.mxu0 %v3283
    %3371 = vmatprep.subr.bf16.mxu0 0
    %3372 = vmatpush1.bf16.msra.mxu0 %v3286
    %3373 = vmatprep.subr.bf16.mxu0 0
    %3374 = vmatpush1.bf16.msra.mxu0 %v3289
    %3375 = vmatprep.subr.bf16.mxu0 0
    %3376 = vmatpush1.bf16.msra.mxu0 %v3292
    %3377 = vmatprep.subr.bf16.mxu0 0
    %3378 = vmatpush1.bf16.msra.mxu0 %v3295
    %3379 = vmatprep.subr.bf16.mxu0 0
    %3380 = vmatpush1.bf16.msra.mxu0 0
    %3381 = vmatprep.subr.bf16.mxu0 0
    %3382 = vmatpush1.bf16.msra.mxu0 0
    %3383 = vmatprep.subr.bf16.mxu0 0
    %3384 = vmatpush1.bf16.msra.mxu0 0
    %3385 = vmatprep.subr.bf16.mxu0 0
    %3386 = vmatpush1.bf16.msra.mxu0 0
    %3387 = vmatprep.subr.bf16.mxu0 0
    %3388 = vmatpush1.bf16.msra.mxu0 0
    %3389 = vmatprep.subr.bf16.mxu0 0
    %3390 = vmatpush1.bf16.msra.mxu0 0
    %3391 = vmatprep.subr.bf16.mxu0 0
    %3392 = vmatpush1.bf16.msra.mxu0 0
    %3393 = vmatprep.subr.bf16.mxu0 0
    %3394 = vmatpush1.bf16.msra.mxu0 0
    %3395 = vmatprep.mubr.bf16.mxu0 0
    %3396 = vmatmul.mubr.bf16.gmra.mrb[0].mxu0 %v3140
    %v3397 = vpop.f32.mrb[0].mxu0
    %v3398 = vadd.f32 %v3188, %v3397
    %v3399 = vpop.f32.mrb[0].mxu0
    %v3400 = vpop.f32.mrb[0].mxu0
    %v3401 = vadd.f32 %v3188, %v3400
    %v3402 = vpop.f32.mrb[0].mxu0
    %3403 = vdwg.mxu0
    %v3404 = vpack.c.bf16 %v3359, %v3355
    %v3405 = vpack.c.bf16 %v3361, %v3357
    %v3406 = vpack.c.bf16 %v3401, %v3398
    %s3407 = scalar_lea.vmem [#allocation4], 128
    %v3408 = vld [vmem:[%s3407] sm:$0xf]
    %v3409 = vld [vmem:[%s3407 + $0x4] sm:$0xf]
    %v3410 = vld [vmem:[%s3407 + $0x8] sm:$0xf]
    %v3411 = vld [vmem:[%s3407 + $0xc] sm:$0xf]
    %v3412 = vld [vmem:[%s3407 + $0x10] sm:$0xf]
    %v3413 = vld [vmem:[%s3407 + $0x14] sm:$0xf]
    %v3414 = vld [vmem:[%s3407 + $0x18] sm:$0xf]
    %v3415 = vld [vmem:[%s3407 + $0x1c] sm:$0xf]
    %v3416 = vld [vmem:[%s3407 + $0x20] sm:$0xf]
    %v3417 = vld [vmem:[%s3407 + $0x24] sm:$0xf]
    %v3418 = vld [vmem:[%s3407 + $0x28] sm:$0xf]
    %v3419 = vld [vmem:[%s3407 + $0x2c] sm:$0xf]
    %v3420 = vld [vmem:[%s3407 + $0x30] sm:$0xf]
    %v3421 = vld [vmem:[%s3407 + $0x34] sm:$0xf]
    %v3422 = vld [vmem:[%s3407 + $0x38] sm:$0xf]
    %v3423 = vld [vmem:[%s3407 + $0x3c] sm:$0xf]
    %v3425 = vsel %vm471, %v3404, 0
    %v3428 = vsel %vm471, %v3405, 0
    %3430 = vmatprep.subr.bf16.mxu0 0
    %3431 = vmatpush1.bf16.xpose.msra.mxu0 %v3428
    %3432 = vmatprep.subr.bf16.mxu0 0
    %3433 = vmatpush1.bf16.xpose.msra.mxu0 0
    %3434 = vmatprep.subr.bf16.mxu0 0
    %3435 = vmatpush1.bf16.xpose.msra.mxu0 0
    %3436 = vmatprep.subr.bf16.mxu0 0
    %3437 = vmatpush1.bf16.xpose.msra.mxu0 0
    %3438 = vmatprep.subr.bf16.mxu0 0
    %3439 = vmatpush1.bf16.xpose.msra.mxu0 0
    %3440 = vmatprep.subr.bf16.mxu0 0
    %3441 = vmatpush1.bf16.xpose.msra.mxu0 0
    %3442 = vmatprep.subr.bf16.mxu0 0
    %3443 = vmatpush1.bf16.xpose.msra.mxu0 0
    %3444 = vmatprep.subr.bf16.mxu0 0
    %3445 = vmatpush1.bf16.xpose.msra.mxu0 0
    %3446 = vmatprep.subr.bf16.mxu0 0
    %3447 = vmatpush1.bf16.xpose.msra.mxu0 0
    %3448 = vmatprep.subr.bf16.mxu0 0
    %3449 = vmatpush1.bf16.xpose.msra.mxu0 0
    %3450 = vmatprep.subr.bf16.mxu0 0
    %3451 = vmatpush1.bf16.xpose.msra.mxu0 0
    %3452 = vmatprep.subr.bf16.mxu0 0
    %3453 = vmatpush1.bf16.xpose.msra.mxu0 0
    %3454 = vmatprep.subr.bf16.mxu0 0
    %3455 = vmatpush1.bf16.xpose.msra.mxu0 0
    %3456 = vmatprep.subr.bf16.mxu0 0
    %3457 = vmatpush1.bf16.xpose.msra.mxu0 0
    %3458 = vmatprep.subr.bf16.mxu0 0
    %3459 = vmatpush1.bf16.xpose.msra.mxu0 0
    %3460 = vmatprep.subr.bf16.mxu0 0
    %3461 = vmatpush1.bf16.xpose.msra.mxu0 0
    %3462 = vmatprep.mubr.bf16.mxu0 0
    %3463 = vmatmul.mubr.bf16.gmra.mrb[0].mxu0 %v3425
    %v3464 = vpop.f32.mrb[0].mxu0
    %v3465 = vadd.f32 0.0, %v3464
    %v3466 = vpop.f32.mrb[0].mxu0
    %v3467 = vpop.f32.mrb[0].mxu0
    %v3468 = vadd.f32 0.0, %v3467
    %v3469 = vpop.f32.mrb[0].mxu0
    %3470 = vdwg.mxu0
    %v3471 = vmul.f32 %v3465, 0.17677669
    %v3472 = vmul.f32 %v3468, 0.17677669
    %v3473 = vadd.f32 %v3471, %v188
    %v3474 = vadd.f32 %v3472, %v189
    %v3475 = vsel %vm523, %v3473, -inf
    %3476 = vmax.xlane.f32.xlu0 %v3475
    %v3477 = vpop.xlane.xlu0 %3476
    %v3478 = vsel %vm523, %v3474, -inf
    %3479 = vmax.xlane.f32.xlu0 %v3478
    %v3480 = vpop.xlane.xlu0 %3479
    %v3481 = vsub.f32 %v3473, %v3477
    %v3482 = vsub.f32 %v3474, %v3480
    %v3483 = vmul.f32 %v3481, 1.442695
    %v3484 = vpow.pop %v3483
    %v3485 = vmul.f32 %v3482, 1.442695
    %v3486 = vpow.pop %v3485
    %v3487 = vsel %vm523, %v3484, 0.0
    %3488 = vadd.xlane.f32.xlu0 %v3487
    %v3489 = vpop.xlane.xlu0 %3488
    %v3490 = vsel %vm523, %v3486, 0.0
    %3491 = vadd.xlane.f32.xlu0 %v3490
    %v3492 = vpop.xlane.xlu0 %3491
    %v3493 = vrcp.pop %v3489
    %v3494 = vrcp.pop %v3492
    %v3495 = vmul.f32 %v3484, %v3493
    %v3496 = vmul.f32 %v3486, %v3494
    %v3497 = vpack.c.bf16 %v3496, %v3495
    %v3499 = vsel %vm523, %v3497, 0
    %3501 = vmatprep.subr.bf16.mxu0 0
    %3502 = vmatpush1.bf16.msra.mxu0 %v3406
    %3503 = vmatprep.subr.bf16.mxu0 0
    %3504 = vmatpush1.bf16.msra.mxu0 0
    %3505 = vmatprep.subr.bf16.mxu0 0
    %3506 = vmatpush1.bf16.msra.mxu0 0
    %3507 = vmatprep.subr.bf16.mxu0 0
    %3508 = vmatpush1.bf16.msra.mxu0 0
    %3509 = vmatprep.subr.bf16.mxu0 0
    %3510 = vmatpush1.bf16.msra.mxu0 0
    %3511 = vmatprep.subr.bf16.mxu0 0
    %3512 = vmatpush1.bf16.msra.mxu0 0
    %3513 = vmatprep.subr.bf16.mxu0 0
    %3514 = vmatpush1.bf16.msra.mxu0 0
    %3515 = vmatprep.subr.bf16.mxu0 0
    %3516 = vmatpush1.bf16.msra.mxu0 0
    %3517 = vmatprep.subr.bf16.mxu0 0
    %3518 = vmatpush1.bf16.msra.mxu0 0
    %3519 = vmatprep.subr.bf16.mxu0 0
    %3520 = vmatpush1.bf16.msra.mxu0 0
    %3521 = vmatprep.subr.bf16.mxu0 0
    %3522 = vmatpush1.bf16.msra.mxu0 0
    %3523 = vmatprep.subr.bf16.mxu0 0
    %3524 = vmatpush1.bf16.msra.mxu0 0
    %3525 = vmatprep.subr.bf16.mxu0 0
    %3526 = vmatpush1.bf16.msra.mxu0 0
    %3527 = vmatprep.subr.bf16.mxu0 0
    %3528 = vmatpush1.bf16.msra.mxu0 0
    %3529 = vmatprep.subr.bf16.mxu0 0
    %3530 = vmatpush1.bf16.msra.mxu0 0
    %3531 = vmatprep.subr.bf16.mxu0 0
    %3532 = vmatpush1.bf16.msra.mxu0 0
    %3533 = vmatprep.mubr.bf16.mxu0 0
    %3534 = vmatmul.mubr.bf16.gmra.mrb[0].mxu0 %v3499
    %v3535 = vpop.f32.mrb[0].mxu0
    %v3536 = vadd.f32 0.0, %v3535
    %v3537 = vpop.f32.mrb[0].mxu0
    %v3538 = vpop.f32.mrb[0].mxu0
    %v3539 = vadd.f32 0.0, %v3538
    %v3540 = vpop.f32.mrb[0].mxu0
    %3541 = vdwg.mxu0
    %v3542 = vpack.c.bf16 %v3539, %v3536
    %3544 = vrot.lane.b32.xlu0 %v3404, 96
    %v3545 = vpop.permute.xlu0 %3544
    %3547 = vrot.lane.b32.xlu0 %v3405, 96
    %v3548 = vpop.permute.xlu0 %3547
    %v3550 = vsel %vm471, %v3545, 0
    %v3553 = vsel %vm471, %v3548, 0
    %3555 = vmatprep.subr.bf16.mxu0 0
    %3556 = vmatpush1.bf16.xpose.msra.mxu0 %v3553
    %3557 = vmatprep.subr.bf16.mxu0 0
    %3558 = vmatpush1.bf16.xpose.msra.mxu0 0
    %3559 = vmatprep.subr.bf16.mxu0 0
    %3560 = vmatpush1.bf16.xpose.msra.mxu0 0
    %3561 = vmatprep.subr.bf16.mxu0 0
    %3562 = vmatpush1.bf16.xpose.msra.mxu0 0
    %3563 = vmatprep.subr.bf16.mxu0 0
    %3564 = vmatpush1.bf16.xpose.msra.mxu0 0
    %3565 = vmatprep.subr.bf16.mxu0 0
    %3566 = vmatpush1.bf16.xpose.msra.mxu0 0
    %3567 = vmatprep.subr.bf16.mxu0 0
    %3568 = vmatpush1.bf16.xpose.msra.mxu0 0
    %3569 = vmatprep.subr.bf16.mxu0 0
    %3570 = vmatpush1.bf16.xpose.msra.mxu0 0
    %3571 = vmatprep.subr.bf16.mxu0 0
    %3572 = vmatpush1.bf16.xpose.msra.mxu0 0
    %3573 = vmatprep.subr.bf16.mxu0 0
    %3574 = vmatpush1.bf16.xpose.msra.mxu0 0
    %3575 = vmatprep.subr.bf16.mxu0 0
    %3576 = vmatpush1.bf16.xpose.msra.mxu0 0
    %3577 = vmatprep.subr.bf16.mxu0 0
    %3578 = vmatpush1.bf16.xpose.msra.mxu0 0
    %3579 = vmatprep.subr.bf16.mxu0 0
    %3580 = vmatpush1.bf16.xpose.msra.mxu0 0
    %3581 = vmatprep.subr.bf16.mxu0 0
    %3582 = vmatpush1.bf16.xpose.msra.mxu0 0
    %3583 = vmatprep.subr.bf16.mxu0 0
    %3584 = vmatpush1.bf16.xpose.msra.mxu0 0
    %3585 = vmatprep.subr.bf16.mxu0 0
    %3586 = vmatpush1.bf16.xpose.msra.mxu0 0
    %3587 = vmatprep.mubr.bf16.mxu0 0
    %3588 = vmatmul.mubr.bf16.gmra.mrb[0].mxu0 %v3550
    %v3589 = vpop.f32.mrb[0].mxu0
    %v3590 = vadd.f32 0.0, %v3589
    %v3591 = vpop.f32.mrb[0].mxu0
    %v3592 = vpop.f32.mrb[0].mxu0
    %v3593 = vadd.f32 0.0, %v3592
    %v3594 = vpop.f32.mrb[0].mxu0
    %3595 = vdwg.mxu0
    %v3596 = vmul.f32 %v3590, 0.17677669
    %v3597 = vmul.f32 %v3593, 0.17677669
    %v3598 = vadd.f32 %v3596, %v188
    %v3599 = vadd.f32 %v3597, %v189
    %v3600 = vsel %vm523, %v3598, -inf
    %3601 = vmax.xlane.f32.xlu0 %v3600
    %v3602 = vpop.xlane.xlu0 %3601
    %v3603 = vsel %vm523, %v3599, -inf
    %3604 = vmax.xlane.f32.xlu0 %v3603
    %v3605 = vpop.xlane.xlu0 %3604
    %v3606 = vsub.f32 %v3598, %v3602
    %v3607 = vsub.f32 %v3599, %v3605
    %v3608 = vmul.f32 %v3606, 1.442695
    %v3609 = vpow.pop %v3608
    %v3610 = vmul.f32 %v3607, 1.442695
    %v3611 = vpow.pop %v3610
    %v3612 = vsel %vm523, %v3609, 0.0
    %3613 = vadd.xlane.f32.xlu0 %v3612
    %v3614 = vpop.xlane.xlu0 %3613
    %v3615 = vsel %vm523, %v3611, 0.0
    %3616 = vadd.xlane.f32.xlu0 %v3615
    %v3617 = vpop.xlane.xlu0 %3616
    %v3618 = vrcp.pop %v3614
    %v3619 = vrcp.pop %v3617
    %v3620 = vmul.f32 %v3609, %v3618
    %v3621 = vmul.f32 %v3611, %v3619
    %v3622 = vpack.c.bf16 %v3621, %v3620
    %3624 = vrot.lane.b32.xlu0 %v3406, 96
    %v3625 = vpop.permute.xlu0 %3624
    %v3628 = vsel %vm523, %v3622, 0
    %3630 = vmatprep.subr.bf16.mxu0 0
    %3631 = vmatpush1.bf16.msra.mxu0 %v3625
    %3632 = vmatprep.subr.bf16.mxu0 0
    %3633 = vmatpush1.bf16.msra.mxu0 0
    %3634 = vmatprep.subr.bf16.mxu0 0
    %3635 = vmatpush1.bf16.msra.mxu0 0
    %3636 = vmatprep.subr.bf16.mxu0 0
    %3637 = vmatpush1.bf16.msra.mxu0 0
    %3638 = vmatprep.subr.bf16.mxu0 0
    %3639 = vmatpush1.bf16.msra.mxu0 0
    %3640 = vmatprep.subr.bf16.mxu0 0
    %3641 = vmatpush1.bf16.msra.mxu0 0
    %3642 = vmatprep.subr.bf16.mxu0 0
    %3643 = vmatpush1.bf16.msra.mxu0 0
    %3644 = vmatprep.subr.bf16.mxu0 0
    %3645 = vmatpush1.bf16.msra.mxu0 0
    %3646 = vmatprep.subr.bf16.mxu0 0
    %3647 = vmatpush1.bf16.msra.mxu0 0
    %3648 = vmatprep.subr.bf16.mxu0 0
    %3649 = vmatpush1.bf16.msra.mxu0 0
    %3650 = vmatprep.subr.bf16.mxu0 0
    %3651 = vmatpush1.bf16.msra.mxu0 0
    %3652 = vmatprep.subr.bf16.mxu0 0
    %3653 = vmatpush1.bf16.msra.mxu0 0
    %3654 = vmatprep.subr.bf16.mxu0 0
    %3655 = vmatpush1.bf16.msra.mxu0 0
    %3656 = vmatprep.subr.bf16.mxu0 0
    %3657 = vmatpush1.bf16.msra.mxu0 0
    %3658 = vmatprep.subr.bf16.mxu0 0
    %3659 = vmatpush1.bf16.msra.mxu0 0
    %3660 = vmatprep.subr.bf16.mxu0 0
    %3661 = vmatpush1.bf16.msra.mxu0 0
    %3662 = vmatprep.mubr.bf16.mxu0 0
    %3663 = vmatmul.mubr.bf16.gmra.mrb[0].mxu0 %v3628
    %v3664 = vpop.f32.mrb[0].mxu0
    %v3665 = vadd.f32 0.0, %v3664
    %v3666 = vpop.f32.mrb[0].mxu0
    %v3667 = vpop.f32.mrb[0].mxu0
    %v3668 = vadd.f32 0.0, %v3667
    %v3669 = vpop.f32.mrb[0].mxu0
    %3670 = vdwg.mxu0
    %v3671 = vpack.c.bf16 %v3668, %v3665
    %v3676 = vunpack.c.l.b16 %v3412
    %v3677 = vunpack.c.l.b16 %v3413
    %v3678 = vunpack.c.l.b16 %v3414
    %v3679 = vunpack.c.l.b16 %v3415
    %v3680 = vpack.c.b16 %v3677, %v3676
    %v3681 = vpack.c.b16 %v3679, %v3678
    %v3685 = vsel %vm471, %v3671, 0
    %3687 = vmatprep.subr.bf16.mxu0 0
    %3688 = vmatpush1.bf16.msra.mxu0 %v3680
    %3689 = vmatprep.subr.bf16.mxu0 0
    %3690 = vmatpush1.bf16.msra.mxu0 %v3681
    %3691 = vmatprep.subr.bf16.mxu0 0
    %3692 = vmatpush1.bf16.msra.mxu0 0
    %3693 = vmatprep.subr.bf16.mxu0 0
    %3694 = vmatpush1.bf16.msra.mxu0 0
    %3695 = vmatprep.subr.bf16.mxu0 0
    %3696 = vmatpush1.bf16.msra.mxu0 0
    %3697 = vmatprep.subr.bf16.mxu0 0
    %3698 = vmatpush1.bf16.msra.mxu0 0
    %3699 = vmatprep.subr.bf16.mxu0 0
    %3700 = vmatpush1.bf16.msra.mxu0 0
    %3701 = vmatprep.subr.bf16.mxu0 0
    %3702 = vmatpush1.bf16.msra.mxu0 0
    %3703 = vmatprep.subr.bf16.mxu0 0
    %3704 = vmatpush1.bf16.msra.mxu0 0
    %3705 = vmatprep.subr.bf16.mxu0 0
    %3706 = vmatpush1.bf16.msra.mxu0 0
    %3707 = vmatprep.subr.bf16.mxu0 0
    %3708 = vmatpush1.bf16.msra.mxu0 0
    %3709 = vmatprep.subr.bf16.mxu0 0
    %3710 = vmatpush1.bf16.msra.mxu0 0
    %3711 = vmatprep.subr.bf16.mxu0 0
    %3712 = vmatpush1.bf16.msra.mxu0 0
    %3713 = vmatprep.subr.bf16.mxu0 0
    %3714 = vmatpush1.bf16.msra.mxu0 0
    %3715 = vmatprep.subr.bf16.mxu0 0
    %3716 = vmatpush1.bf16.msra.mxu0 0
    %3717 = vmatprep.subr.bf16.mxu0 0
    %3718 = vmatpush1.bf16.msra.mxu0 0
    %3719 = vmatprep.mubr.bf16.mxu0 0
    %3720 = vmatmul.mubr.bf16.gmra.mrb[0].mxu0 %v3685
    %v3721 = vpop.f32.mrb[0].mxu0
    %v3722 = vadd.f32 0.0, %v3721
    %v3723 = vpop.f32.mrb[0].mxu0
    %v3724 = vpop.f32.mrb[0].mxu0
    %v3725 = vadd.f32 0.0, %v3724
    %v3726 = vpop.f32.mrb[0].mxu0
    %3727 = vdwg.mxu0
    %v3732 = vunpack.c.l.b16 %v3408
    %v3733 = vunpack.c.l.b16 %v3409
    %v3734 = vunpack.c.l.b16 %v3410
    %v3735 = vunpack.c.l.b16 %v3411
    %v3736 = vpack.c.b16 %v3733, %v3732
    %v3737 = vpack.c.b16 %v3735, %v3734
    %v3741 = vsel %vm471, %v3542, 0
    %3743 = vmatprep.subr.bf16.mxu0 0
    %3744 = vmatpush1.bf16.msra.mxu0 %v3736
    %3745 = vmatprep.subr.bf16.mxu0 0
    %3746 = vmatpush1.bf16.msra.mxu0 %v3737
    %3747 = vmatprep.subr.bf16.mxu0 0
    %3748 = vmatpush1.bf16.msra.mxu0 0
    %3749 = vmatprep.subr.bf16.mxu0 0
    %3750 = vmatpush1.bf16.msra.mxu0 0
    %3751 = vmatprep.subr.bf16.mxu0 0
    %3752 = vmatpush1.bf16.msra.mxu0 0
    %3753 = vmatprep.subr.bf16.mxu0 0
    %3754 = vmatpush1.bf16.msra.mxu0 0
    %3755 = vmatprep.subr.bf16.mxu0 0
    %3756 = vmatpush1.bf16.msra.mxu0 0
    %3757 = vmatprep.subr.bf16.mxu0 0
    %3758 = vmatpush1.bf16.msra.mxu0 0
    %3759 = vmatprep.subr.bf16.mxu0 0
    %3760 = vmatpush1.bf16.msra.mxu0 0
    %3761 = vmatprep.subr.bf16.mxu0 0
    %3762 = vmatpush1.bf16.msra.mxu0 0
    %3763 = vmatprep.subr.bf16.mxu0 0
    %3764 = vmatpush1.bf16.msra.mxu0 0
    %3765 = vmatprep.subr.bf16.mxu0 0
    %3766 = vmatpush1.bf16.msra.mxu0 0
    %3767 = vmatprep.subr.bf16.mxu0 0
    %3768 = vmatpush1.bf16.msra.mxu0 0
    %3769 = vmatprep.subr.bf16.mxu0 0
    %3770 = vmatpush1.bf16.msra.mxu0 0
    %3771 = vmatprep.subr.bf16.mxu0 0
    %3772 = vmatpush1.bf16.msra.mxu0 0
    %3773 = vmatprep.subr.bf16.mxu0 0
    %3774 = vmatpush1.bf16.msra.mxu0 0
    %3775 = vmatprep.mubr.bf16.mxu0 0
    %3776 = vmatmul.mubr.bf16.gmra.mrb[0].mxu0 %v3741
    %v3777 = vpop.f32.mrb[0].mxu0
    %v3778 = vadd.f32 %v3722, %v3777
    %v3779 = vpop.f32.mrb[0].mxu0
    %v3780 = vpop.f32.mrb[0].mxu0
    %v3781 = vadd.f32 %v3725, %v3780
    %v3782 = vpop.f32.mrb[0].mxu0
    %3783 = vdwg.mxu0
    %3784 = vrot.lane.b32.xlu0 %v3404, 64
    %v3785 = vpop.permute.xlu0 %3784
    %3786 = vrot.lane.b32.xlu0 %v3405, 64
    %v3787 = vpop.permute.xlu0 %3786
    %v3789 = vsel %vm471, %v3785, 0
    %v3792 = vsel %vm471, %v3787, 0
    %3794 = vmatprep.subr.bf16.mxu0 0
    %3795 = vmatpush1.bf16.xpose.msra.mxu0 %v3792
    %3796 = vmatprep.subr.bf16.mxu0 0
    %3797 = vmatpush1.bf16.xpose.msra.mxu0 0
    %3798 = vmatprep.subr.bf16.mxu0 0
    %3799 = vmatpush1.bf16.xpose.msra.mxu0 0
    %3800 = vmatprep.subr.bf16.mxu0 0
    %3801 = vmatpush1.bf16.xpose.msra.mxu0 0
    %3802 = vmatprep.subr.bf16.mxu0 0
    %3803 = vmatpush1.bf16.xpose.msra.mxu0 0
    %3804 = vmatprep.subr.bf16.mxu0 0
    %3805 = vmatpush1.bf16.xpose.msra.mxu0 0
    %3806 = vmatprep.subr.bf16.mxu0 0
    %3807 = vmatpush1.bf16.xpose.msra.mxu0 0
    %3808 = vmatprep.subr.bf16.mxu0 0
    %3809 = vmatpush1.bf16.xpose.msra.mxu0 0
    %3810 = vmatprep.subr.bf16.mxu0 0
    %3811 = vmatpush1.bf16.xpose.msra.mxu0 0
    %3812 = vmatprep.subr.bf16.mxu0 0
    %3813 = vmatpush1.bf16.xpose.msra.mxu0 0
    %3814 = vmatprep.subr.bf16.mxu0 0
    %3815 = vmatpush1.bf16.xpose.msra.mxu0 0
    %3816 = vmatprep.subr.bf16.mxu0 0
    %3817 = vmatpush1.bf16.xpose.msra.mxu0 0
    %3818 = vmatprep.subr.bf16.mxu0 0
    %3819 = vmatpush1.bf16.xpose.msra.mxu0 0
    %3820 = vmatprep.subr.bf16.mxu0 0
    %3821 = vmatpush1.bf16.xpose.msra.mxu0 0
    %3822 = vmatprep.subr.bf16.mxu0 0
    %3823 = vmatpush1.bf16.xpose.msra.mxu0 0
    %3824 = vmatprep.subr.bf16.mxu0 0
    %3825 = vmatpush1.bf16.xpose.msra.mxu0 0
    %3826 = vmatprep.mubr.bf16.mxu0 0
    %3827 = vmatmul.mubr.bf16.gmra.mrb[0].mxu0 %v3789
    %v3828 = vpop.f32.mrb[0].mxu0
    %v3829 = vadd.f32 0.0, %v3828
    %v3830 = vpop.f32.mrb[0].mxu0
    %v3831 = vpop.f32.mrb[0].mxu0
    %v3832 = vadd.f32 0.0, %v3831
    %v3833 = vpop.f32.mrb[0].mxu0
    %3834 = vdwg.mxu0
    %v3835 = vmul.f32 %v3829, 0.17677669
    %v3836 = vmul.f32 %v3832, 0.17677669
    %v3837 = vadd.f32 %v3835, %v188
    %v3838 = vadd.f32 %v3836, %v189
    %v3839 = vsel %vm523, %v3837, -inf
    %3840 = vmax.xlane.f32.xlu0 %v3839
    %v3841 = vpop.xlane.xlu0 %3840
    %v3842 = vsel %vm523, %v3838, -inf
    %3843 = vmax.xlane.f32.xlu0 %v3842
    %v3844 = vpop.xlane.xlu0 %3843
    %v3845 = vsub.f32 %v3837, %v3841
    %v3846 = vsub.f32 %v3838, %v3844
    %v3847 = vmul.f32 %v3845, 1.442695
    %v3848 = vpow.pop %v3847
    %v3849 = vmul.f32 %v3846, 1.442695
    %v3850 = vpow.pop %v3849
    %v3851 = vsel %vm523, %v3848, 0.0
    %3852 = vadd.xlane.f32.xlu0 %v3851
    %v3853 = vpop.xlane.xlu0 %3852
    %v3854 = vsel %vm523, %v3850, 0.0
    %3855 = vadd.xlane.f32.xlu0 %v3854
    %v3856 = vpop.xlane.xlu0 %3855
    %v3857 = vrcp.pop %v3853
    %v3858 = vrcp.pop %v3856
    %v3859 = vmul.f32 %v3848, %v3857
    %v3860 = vmul.f32 %v3850, %v3858
    %v3861 = vpack.c.bf16 %v3860, %v3859
    %3862 = vrot.lane.b32.xlu0 %v3406, 64
    %v3863 = vpop.permute.xlu0 %3862
    %v3866 = vsel %vm523, %v3861, 0
    %3868 = vmatprep.subr.bf16.mxu0 0
    %3869 = vmatpush1.bf16.msra.mxu0 %v3863
    %3870 = vmatprep.subr.bf16.mxu0 0
    %3871 = vmatpush1.bf16.msra.mxu0 0
    %3872 = vmatprep.subr.bf16.mxu0 0
    %3873 = vmatpush1.bf16.msra.mxu0 0
    %3874 = vmatprep.subr.bf16.mxu0 0
    %3875 = vmatpush1.bf16.msra.mxu0 0
    %3876 = vmatprep.subr.bf16.mxu0 0
    %3877 = vmatpush1.bf16.msra.mxu0 0
    %3878 = vmatprep.subr.bf16.mxu0 0
    %3879 = vmatpush1.bf16.msra.mxu0 0
    %3880 = vmatprep.subr.bf16.mxu0 0
    %3881 = vmatpush1.bf16.msra.mxu0 0
    %3882 = vmatprep.subr.bf16.mxu0 0
    %3883 = vmatpush1.bf16.msra.mxu0 0
    %3884 = vmatprep.subr.bf16.mxu0 0
    %3885 = vmatpush1.bf16.msra.mxu0 0
    %3886 = vmatprep.subr.bf16.mxu0 0
    %3887 = vmatpush1.bf16.msra.mxu0 0
    %3888 = vmatprep.subr.bf16.mxu0 0
    %3889 = vmatpush1.bf16.msra.mxu0 0
    %3890 = vmatprep.subr.bf16.mxu0 0
    %3891 = vmatpush1.bf16.msra.mxu0 0
    %3892 = vmatprep.subr.bf16.mxu0 0
    %3893 = vmatpush1.bf16.msra.mxu0 0
    %3894 = vmatprep.subr.bf16.mxu0 0
    %3895 = vmatpush1.bf16.msra.mxu0 0
    %3896 = vmatprep.subr.bf16.mxu0 0
    %3897 = vmatpush1.bf16.msra.mxu0 0
    %3898 = vmatprep.subr.bf16.mxu0 0
    %3899 = vmatpush1.bf16.msra.mxu0 0
    %3900 = vmatprep.mubr.bf16.mxu0 0
    %3901 = vmatmul.mubr.bf16.gmra.mrb[0].mxu0 %v3866
    %v3902 = vpop.f32.mrb[0].mxu0
    %v3903 = vadd.f32 0.0, %v3902
    %v3904 = vpop.f32.mrb[0].mxu0
    %v3905 = vpop.f32.mrb[0].mxu0
    %v3906 = vadd.f32 0.0, %v3905
    %v3907 = vpop.f32.mrb[0].mxu0
    %3908 = vdwg.mxu0
    %v3909 = vpack.c.bf16 %v3906, %v3903
    %v3914 = vunpack.c.l.b16 %v3416
    %v3915 = vunpack.c.l.b16 %v3417
    %v3916 = vunpack.c.l.b16 %v3418
    %v3917 = vunpack.c.l.b16 %v3419
    %v3918 = vpack.c.b16 %v3915, %v3914
    %v3919 = vpack.c.b16 %v3917, %v3916
    %v3923 = vsel %vm471, %v3909, 0
    %3925 = vmatprep.subr.bf16.mxu0 0
    %3926 = vmatpush1.bf16.msra.mxu0 %v3918
    %3927 = vmatprep.subr.bf16.mxu0 0
    %3928 = vmatpush1.bf16.msra.mxu0 %v3919
    %3929 = vmatprep.subr.bf16.mxu0 0
    %3930 = vmatpush1.bf16.msra.mxu0 0
    %3931 = vmatprep.subr.bf16.mxu0 0
    %3932 = vmatpush1.bf16.msra.mxu0 0
    %3933 = vmatprep.subr.bf16.mxu0 0
    %3934 = vmatpush1.bf16.msra.mxu0 0
    %3935 = vmatprep.subr.bf16.mxu0 0
    %3936 = vmatpush1.bf16.msra.mxu0 0
    %3937 = vmatprep.subr.bf16.mxu0 0
    %3938 = vmatpush1.bf16.msra.mxu0 0
    %3939 = vmatprep.subr.bf16.mxu0 0
    %3940 = vmatpush1.bf16.msra.mxu0 0
    %3941 = vmatprep.subr.bf16.mxu0 0
    %3942 = vmatpush1.bf16.msra.mxu0 0
    %3943 = vmatprep.subr.bf16.mxu0 0
    %3944 = vmatpush1.bf16.msra.mxu0 0
    %3945 = vmatprep.subr.bf16.mxu0 0
    %3946 = vmatpush1.bf16.msra.mxu0 0
    %3947 = vmatprep.subr.bf16.mxu0 0
    %3948 = vmatpush1.bf16.msra.mxu0 0
    %3949 = vmatprep.subr.bf16.mxu0 0
    %3950 = vmatpush1.bf16.msra.mxu0 0
    %3951 = vmatprep.subr.bf16.mxu0 0
    %3952 = vmatpush1.bf16.msra.mxu0 0
    %3953 = vmatprep.subr.bf16.mxu0 0
    %3954 = vmatpush1.bf16.msra.mxu0 0
    %3955 = vmatprep.subr.bf16.mxu0 0
    %3956 = vmatpush1.bf16.msra.mxu0 0
    %3957 = vmatprep.mubr.bf16.mxu0 0
    %3958 = vmatmul.mubr.bf16.gmra.mrb[0].mxu0 %v3923
    %v3959 = vpop.f32.mrb[0].mxu0
    %v3960 = vadd.f32 0.0, %v3959
    %v3961 = vpop.f32.mrb[0].mxu0
    %v3962 = vpop.f32.mrb[0].mxu0
    %v3963 = vadd.f32 0.0, %v3962
    %v3964 = vpop.f32.mrb[0].mxu0
    %3965 = vdwg.mxu0
    %v3966 = vadd.f32 %v3778, %v3960
    %v3967 = vadd.f32 %v3781, %v3963
    %3968 = vrot.lane.b32.xlu0 %v3404, 32
    %v3969 = vpop.permute.xlu0 %3968
    %3970 = vrot.lane.b32.xlu0 %v3405, 32
    %v3971 = vpop.permute.xlu0 %3970
    %v3973 = vsel %vm471, %v3969, 0
    %v3976 = vsel %vm471, %v3971, 0
    %3978 = vmatprep.subr.bf16.mxu0 0
    %3979 = vmatpush1.bf16.xpose.msra.mxu0 %v3976
    %3980 = vmatprep.subr.bf16.mxu0 0
    %3981 = vmatpush1.bf16.xpose.msra.mxu0 0
    %3982 = vmatprep.subr.bf16.mxu0 0
    %3983 = vmatpush1.bf16.xpose.msra.mxu0 0
    %3984 = vmatprep.subr.bf16.mxu0 0
    %3985 = vmatpush1.bf16.xpose.msra.mxu0 0
    %3986 = vmatprep.subr.bf16.mxu0 0
    %3987 = vmatpush1.bf16.xpose.msra.mxu0 0
    %3988 = vmatprep.subr.bf16.mxu0 0
    %3989 = vmatpush1.bf16.xpose.msra.mxu0 0
    %3990 = vmatprep.subr.bf16.mxu0 0
    %3991 = vmatpush1.bf16.xpose.msra.mxu0 0
    %3992 = vmatprep.subr.bf16.mxu0 0
    %3993 = vmatpush1.bf16.xpose.msra.mxu0 0
    %3994 = vmatprep.subr.bf16.mxu0 0
    %3995 = vmatpush1.bf16.xpose.msra.mxu0 0
    %3996 = vmatprep.subr.bf16.mxu0 0
    %3997 = vmatpush1.bf16.xpose.msra.mxu0 0
    %3998 = vmatprep.subr.bf16.mxu0 0
    %3999 = vmatpush1.bf16.xpose.msra.mxu0 0
    %4000 = vmatprep.subr.bf16.mxu0 0
    %4001 = vmatpush1.bf16.xpose.msra.mxu0 0
    %4002 = vmatprep.subr.bf16.mxu0 0
    %4003 = vmatpush1.bf16.xpose.msra.mxu0 0
    %4004 = vmatprep.subr.bf16.mxu0 0
    %4005 = vmatpush1.bf16.xpose.msra.mxu0 0
    %4006 = vmatprep.subr.bf16.mxu0 0
    %4007 = vmatpush1.bf16.xpose.msra.mxu0 0
    %4008 = vmatprep.subr.bf16.mxu0 0
    %4009 = vmatpush1.bf16.xpose.msra.mxu0 0
    %4010 = vmatprep.mubr.bf16.mxu0 0
    %4011 = vmatmul.mubr.bf16.gmra.mrb[0].mxu0 %v3973
    %v4012 = vpop.f32.mrb[0].mxu0
    %v4013 = vadd.f32 0.0, %v4012
    %v4014 = vpop.f32.mrb[0].mxu0
    %v4015 = vpop.f32.mrb[0].mxu0
    %v4016 = vadd.f32 0.0, %v4015
    %v4017 = vpop.f32.mrb[0].mxu0
    %4018 = vdwg.mxu0
    %v4019 = vmul.f32 %v4013, 0.17677669
    %v4020 = vmul.f32 %v4016, 0.17677669
    %v4021 = vadd.f32 %v4019, %v188
    %v4022 = vadd.f32 %v4020, %v189
    %v4023 = vsel %vm523, %v4021, -inf
    %4024 = vmax.xlane.f32.xlu0 %v4023
    %v4025 = vpop.xlane.xlu0 %4024
    %v4026 = vsel %vm523, %v4022, -inf
    %4027 = vmax.xlane.f32.xlu0 %v4026
    %v4028 = vpop.xlane.xlu0 %4027
    %v4029 = vsub.f32 %v4021, %v4025
    %v4030 = vsub.f32 %v4022, %v4028
    %v4031 = vmul.f32 %v4029, 1.442695
    %v4032 = vpow.pop %v4031
    %v4033 = vmul.f32 %v4030, 1.442695
    %v4034 = vpow.pop %v4033
    %v4035 = vsel %vm523, %v4032, 0.0
    %4036 = vadd.xlane.f32.xlu0 %v4035
    %v4037 = vpop.xlane.xlu0 %4036
    %v4038 = vsel %vm523, %v4034, 0.0
    %4039 = vadd.xlane.f32.xlu0 %v4038
    %v4040 = vpop.xlane.xlu0 %4039
    %v4041 = vrcp.pop %v4037
    %v4042 = vrcp.pop %v4040
    %v4043 = vmul.f32 %v4032, %v4041
    %v4044 = vmul.f32 %v4034, %v4042
    %v4045 = vpack.c.bf16 %v4044, %v4043
    %4046 = vrot.lane.b32.xlu0 %v3406, 32
    %v4047 = vpop.permute.xlu0 %4046
    %v4050 = vsel %vm523, %v4045, 0
    %4052 = vmatprep.subr.bf16.mxu0 0
    %4053 = vmatpush1.bf16.msra.mxu0 %v4047
    %4054 = vmatprep.subr.bf16.mxu0 0
    %4055 = vmatpush1.bf16.msra.mxu0 0
    %4056 = vmatprep.subr.bf16.mxu0 0
    %4057 = vmatpush1.bf16.msra.mxu0 0
    %4058 = vmatprep.subr.bf16.mxu0 0
    %4059 = vmatpush1.bf16.msra.mxu0 0
    %4060 = vmatprep.subr.bf16.mxu0 0
    %4061 = vmatpush1.bf16.msra.mxu0 0
    %4062 = vmatprep.subr.bf16.mxu0 0
    %4063 = vmatpush1.bf16.msra.mxu0 0
    %4064 = vmatprep.subr.bf16.mxu0 0
    %4065 = vmatpush1.bf16.msra.mxu0 0
    %4066 = vmatprep.subr.bf16.mxu0 0
    %4067 = vmatpush1.bf16.msra.mxu0 0
    %4068 = vmatprep.subr.bf16.mxu0 0
    %4069 = vmatpush1.bf16.msra.mxu0 0
    %4070 = vmatprep.subr.bf16.mxu0 0
    %4071 = vmatpush1.bf16.msra.mxu0 0
    %4072 = vmatprep.subr.bf16.mxu0 0
    %4073 = vmatpush1.bf16.msra.mxu0 0
    %4074 = vmatprep.subr.bf16.mxu0 0
    %4075 = vmatpush1.bf16.msra.mxu0 0
    %4076 = vmatprep.subr.bf16.mxu0 0
    %4077 = vmatpush1.bf16.msra.mxu0 0
    %4078 = vmatprep.subr.bf16.mxu0 0
    %4079 = vmatpush1.bf16.msra.mxu0 0
    %4080 = vmatprep.subr.bf16.mxu0 0
    %4081 = vmatpush1.bf16.msra.mxu0 0
    %4082 = vmatprep.subr.bf16.mxu0 0
    %4083 = vmatpush1.bf16.msra.mxu0 0
    %4084 = vmatprep.mubr.bf16.mxu0 0
    %4085 = vmatmul.mubr.bf16.gmra.mrb[0].mxu0 %v4050
    %v4086 = vpop.f32.mrb[0].mxu0
    %v4087 = vadd.f32 0.0, %v4086
    %v4088 = vpop.f32.mrb[0].mxu0
    %v4089 = vpop.f32.mrb[0].mxu0
    %v4090 = vadd.f32 0.0, %v4089
    %v4091 = vpop.f32.mrb[0].mxu0
    %4092 = vdwg.mxu0
    %v4093 = vpack.c.bf16 %v4090, %v4087
    %v4098 = vunpack.c.l.b16 %v3420
    %v4099 = vunpack.c.l.b16 %v3421
    %v4100 = vunpack.c.l.b16 %v3422
    %v4101 = vunpack.c.l.b16 %v3423
    %v4102 = vpack.c.b16 %v4099, %v4098
    %v4103 = vpack.c.b16 %v4101, %v4100
    %v4107 = vsel %vm471, %v4093, 0
    %4109 = vmatprep.subr.bf16.mxu0 0
    %4110 = vmatpush1.bf16.msra.mxu0 %v4102
    %4111 = vmatprep.subr.bf16.mxu0 0
    %4112 = vmatpush1.bf16.msra.mxu0 %v4103
    %4113 = vmatprep.subr.bf16.mxu0 0
    %4114 = vmatpush1.bf16.msra.mxu0 0
    %4115 = vmatprep.subr.bf16.mxu0 0
    %4116 = vmatpush1.bf16.msra.mxu0 0
    %4117 = vmatprep.subr.bf16.mxu0 0
    %4118 = vmatpush1.bf16.msra.mxu0 0
    %4119 = vmatprep.subr.bf16.mxu0 0
    %4120 = vmatpush1.bf16.msra.mxu0 0
    %4121 = vmatprep.subr.bf16.mxu0 0
    %4122 = vmatpush1.bf16.msra.mxu0 0
    %4123 = vmatprep.subr.bf16.mxu0 0
    %4124 = vmatpush1.bf16.msra.mxu0 0
    %4125 = vmatprep.subr.bf16.mxu0 0
    %4126 = vmatpush1.bf16.msra.mxu0 0
    %4127 = vmatprep.subr.bf16.mxu0 0
    %4128 = vmatpush1.bf16.msra.mxu0 0
    %4129 = vmatprep.subr.bf16.mxu0 0
    %4130 = vmatpush1.bf16.msra.mxu0 0
    %4131 = vmatprep.subr.bf16.mxu0 0
    %4132 = vmatpush1.bf16.msra.mxu0 0
    %4133 = vmatprep.subr.bf16.mxu0 0
    %4134 = vmatpush1.bf16.msra.mxu0 0
    %4135 = vmatprep.subr.bf16.mxu0 0
    %4136 = vmatpush1.bf16.msra.mxu0 0
    %4137 = vmatprep.subr.bf16.mxu0 0
    %4138 = vmatpush1.bf16.msra.mxu0 0
    %4139 = vmatprep.subr.bf16.mxu0 0
    %4140 = vmatpush1.bf16.msra.mxu0 0
    %4141 = vmatprep.mubr.bf16.mxu0 0
    %4142 = vmatmul.mubr.bf16.gmra.mrb[0].mxu0 %v4107
    %v4143 = vpop.f32.mrb[0].mxu0
    %v4144 = vadd.f32 0.0, %v4143
    %v4145 = vpop.f32.mrb[0].mxu0
    %v4146 = vpop.f32.mrb[0].mxu0
    %v4147 = vadd.f32 0.0, %v4146
    %v4148 = vpop.f32.mrb[0].mxu0
    %4149 = vdwg.mxu0
    %v4150 = vadd.f32 %v3966, %v4144
    %v4151 = vadd.f32 %v3967, %v4147
    %s4152 = scalar_lea.vmem %s7, 2
    %v4153 = vld [vmem:[%s4152] sm:$0x1]
    %v4155 = vlaneseq
    %v4156 = vshrl.u32 %v4155, 7
    %v4157 = vsub.s32 0, %v4156
    %v4158 = vrot.slane %v4153, %v4157
    %v4160 = vadd.f32 %v4150, %v4158
    %v4161 = vadd.f32 %v4151, %v4158
    %v4162 = vadd.f32 %v4160, %v3138
    %v4163 = vadd.f32 %v4161, %v3139
    %s4164 = scalar_lea.vmem %s8, 2
    %v4165 = vld [vmem:[%s4164] sm:$0x1]
    %s4166 = scalar_lea.vmem %s9, 2
    %v4167 = vld [vmem:[%s4166] sm:$0x1]
    %4168 = vadd.xlane.f32.xlu0 %v4162
    %v4169 = vpop.xlane.xlu0 %4168
    %4170 = vadd.xlane.f32.xlu0 %v4163
    %v4171 = vpop.xlane.xlu0 %4170
    %v4172 = vmul.f32 %v4169, %v123
    %v4173 = vmul.f32 %v4171, %v123
    %v4174 = vsub.f32 %v4162, %v4172
    %v4175 = vsub.f32 %v4163, %v4173
    %v4176 = vmul.f32 %v4174, %v4174
    %v4177 = vmul.f32 %v4175, %v4175
    %4178 = vadd.xlane.f32.xlu0 %v4176
    %v4179 = vpop.xlane.xlu0 %4178
    %4180 = vadd.xlane.f32.xlu0 %v4177
    %v4181 = vpop.xlane.xlu0 %4180
    %v4182 = vmul.f32 %v4179, %v123
    %v4183 = vmul.f32 %v4181, %v123
    %v4184 = vadd.f32 %v4182, 1e-12
    %v4185 = vadd.f32 %v4183, 1e-12
    %v4186 = vrsqrt.pop %v4184
    %v4187 = vrsqrt.pop %v4185
    %v4188 = vmul.f32 %v4174, %v4186
    %v4189 = vmul.f32 %v4175, %v4187
    %v4191 = vlaneseq
    %v4192 = vshrl.u32 %v4191, 7
    %v4193 = vsub.s32 0, %v4192
    %v4194 = vrot.slane %v4165, %v4193
    %v4196 = vmul.f32 %v4188, %v4194
    %v4197 = vmul.f32 %v4189, %v4194
    %v4199 = vlaneseq
    %v4200 = vshrl.u32 %v4199, 7
    %v4201 = vsub.s32 0, %v4200
    %v4202 = vrot.slane %v4167, %v4201
    %v4204 = vadd.f32 %v4196, %v4202
    %v4205 = vadd.f32 %v4197, %v4202
    %v4206 = vpack.c.bf16 %v4205, %v4204
    %s4207 = scalar_lea.vmem [#allocation6], 256
    %v4208 = vld [vmem:[%s4207] sm:$0xff]
    %v4209 = vld [vmem:[%s4207 + $0x8] sm:$0xff]
    %v4210 = vld [vmem:[%s4207 + $0x10] sm:$0xff]
    %v4211 = vld [vmem:[%s4207 + $0x18] sm:$0xff]
    %v4212 = vld [vmem:[%s4207 + $0x20] sm:$0xff]
    %v4213 = vld [vmem:[%s4207 + $0x28] sm:$0xff]
    %v4214 = vld [vmem:[%s4207 + $0x30] sm:$0xff]
    %v4215 = vld [vmem:[%s4207 + $0x38] sm:$0xff]
    %v4216 = vld [vmem:[%s4207 + $0x40] sm:$0xff]
    %v4217 = vld [vmem:[%s4207 + $0x48] sm:$0xff]
    %v4218 = vld [vmem:[%s4207 + $0x50] sm:$0xff]
    %v4219 = vld [vmem:[%s4207 + $0x58] sm:$0xff]
    %v4220 = vld [vmem:[%s4207 + $0x60] sm:$0xff]
    %v4221 = vld [vmem:[%s4207 + $0x68] sm:$0xff]
    %v4222 = vld [vmem:[%s4207 + $0x70] sm:$0xff]
    %v4223 = vld [vmem:[%s4207 + $0x78] sm:$0xff]
    %s4224 = scalar_lea.vmem %s11, 4
    %v4225 = vld [vmem:[%s4224] sm:$0x3]
    %v4227 = vlaneseq
    %v4228 = vshrl.u32 %v4227, 7
    %v4229 = vsub.s32 0, %v4228
    %v4230 = vrot.slane %v4225, %v4229
    %v4231 = vlaneseq
    %v4232 = vshrl.u32 %v4231, 7
    %v4233 = vsub.s32 1, %v4232
    %v4234 = vrot.slane %v4225, %v4233
    %v4253 = vunpack.c.l.b16 %v4208
    %v4254 = vunpack.c.h.b16 %v4208
    %v4255 = vunpack.c.l.b16 %v4209
    %v4256 = vunpack.c.h.b16 %v4209
    %v4257 = vunpack.c.l.b16 %v4210
    %v4258 = vunpack.c.h.b16 %v4210
    %v4259 = vunpack.c.l.b16 %v4211
    %v4260 = vunpack.c.h.b16 %v4211
    %v4261 = vunpack.c.l.b16 %v4212
    %v4262 = vunpack.c.h.b16 %v4212
    %v4263 = vunpack.c.l.b16 %v4213
    %v4264 = vunpack.c.h.b16 %v4213
    %v4265 = vunpack.c.l.b16 %v4214
    %v4266 = vunpack.c.h.b16 %v4214
    %v4267 = vunpack.c.l.b16 %v4215
    %v4268 = vunpack.c.h.b16 %v4215
    %v4269 = vunpack.c.l.b16 %v4216
    %v4270 = vunpack.c.h.b16 %v4216
    %v4271 = vunpack.c.l.b16 %v4217
    %v4272 = vunpack.c.h.b16 %v4217
    %v4273 = vunpack.c.l.b16 %v4218
    %v4274 = vunpack.c.h.b16 %v4218
    %v4275 = vunpack.c.l.b16 %v4219
    %v4276 = vunpack.c.h.b16 %v4219
    %v4277 = vunpack.c.l.b16 %v4220
    %v4278 = vunpack.c.h.b16 %v4220
    %v4279 = vunpack.c.l.b16 %v4221
    %v4280 = vunpack.c.h.b16 %v4221
    %v4281 = vunpack.c.l.b16 %v4222
    %v4282 = vunpack.c.h.b16 %v4222
    %v4283 = vunpack.c.l.b16 %v4223
    %v4284 = vunpack.c.h.b16 %v4223
    %v4285 = vpack.c.b16 %v4255, %v4253
    %v4286 = vpack.c.b16 %v4256, %v4254
    %v4287 = vpack.c.b16 %v4259, %v4257
    %v4288 = vpack.c.b16 %v4260, %v4258
    %v4289 = vpack.c.b16 %v4263, %v4261
    %v4290 = vpack.c.b16 %v4264, %v4262
    %v4291 = vpack.c.b16 %v4267, %v4265
    %v4292 = vpack.c.b16 %v4268, %v4266
    %v4293 = vpack.c.b16 %v4271, %v4269
    %v4294 = vpack.c.b16 %v4272, %v4270
    %v4295 = vpack.c.b16 %v4275, %v4273
    %v4296 = vpack.c.b16 %v4276, %v4274
    %v4297 = vpack.c.b16 %v4279, %v4277
    %v4298 = vpack.c.b16 %v4280, %v4278
    %v4299 = vpack.c.b16 %v4283, %v4281
    %v4300 = vpack.c.b16 %v4284, %v4282
    %4317 = vmatprep.subr.bf16.mxu0 %v4286
    %4318 = vmatpush1.bf16.msra.mxu0 %v4285
    %4319 = vmatprep.subr.bf16.mxu0 %v4288
    %4320 = vmatpush1.bf16.msra.mxu0 %v4287
    %4321 = vmatprep.subr.bf16.mxu0 %v4290
    %4322 = vmatpush1.bf16.msra.mxu0 %v4289
    %4323 = vmatprep.subr.bf16.mxu0 %v4292
    %4324 = vmatpush1.bf16.msra.mxu0 %v4291
    %4325 = vmatprep.subr.bf16.mxu0 %v4294
    %4326 = vmatpush1.bf16.msra.mxu0 %v4293
    %4327 = vmatprep.subr.bf16.mxu0 %v4296
    %4328 = vmatpush1.bf16.msra.mxu0 %v4295
    %4329 = vmatprep.subr.bf16.mxu0 %v4298
    %4330 = vmatpush1.bf16.msra.mxu0 %v4297
    %4331 = vmatprep.subr.bf16.mxu0 %v4300
    %4332 = vmatpush1.bf16.msra.mxu0 %v4299
    %4333 = vmatprep.subr.bf16.mxu0 0
    %4334 = vmatpush1.bf16.msra.mxu0 0
    %4335 = vmatprep.subr.bf16.mxu0 0
    %4336 = vmatpush1.bf16.msra.mxu0 0
    %4337 = vmatprep.subr.bf16.mxu0 0
    %4338 = vmatpush1.bf16.msra.mxu0 0
    %4339 = vmatprep.subr.bf16.mxu0 0
    %4340 = vmatpush1.bf16.msra.mxu0 0
    %4341 = vmatprep.subr.bf16.mxu0 0
    %4342 = vmatpush1.bf16.msra.mxu0 0
    %4343 = vmatprep.subr.bf16.mxu0 0
    %4344 = vmatpush1.bf16.msra.mxu0 0
    %4345 = vmatprep.subr.bf16.mxu0 0
    %4346 = vmatpush1.bf16.msra.mxu0 0
    %4347 = vmatprep.subr.bf16.mxu0 0
    %4348 = vmatpush1.bf16.msra.mxu0 0
    %4349 = vmatprep.mubr.bf16.mxu0 0
    %4350 = vmatmul.mubr.bf16.gmra.mrb[0].mxu0 %v4206
    %v4351 = vpop.f32.mrb[0].mxu0
    %v4352 = vadd.f32 %v4230, %v4351
    %v4353 = vpop.f32.mrb[0].mxu0
    %v4354 = vadd.f32 %v4234, %v4353
    %v4355 = vpop.f32.mrb[0].mxu0
    %v4356 = vadd.f32 %v4230, %v4355
    %v4357 = vpop.f32.mrb[0].mxu0
    %v4358 = vadd.f32 %v4234, %v4357
    %4359 = vdwg.mxu0
    %v4360 = vmul.f32 %v4352, %v4352
    %v4361 = vmul.f32 %v4354, %v4354
    %v4362 = vmul.f32 %v4356, %v4356
    %v4363 = vmul.f32 %v4358, %v4358
    %v4364 = vmul.f32 %v4352, %v4360
    %v4365 = vmul.f32 %v4354, %v4361
    %v4366 = vmul.f32 %v4356, %v4362
    %v4367 = vmul.f32 %v4358, %v4363
    %v4368 = vmul.f32 %v4364, 0.044715
    %v4369 = vmul.f32 %v4365, 0.044715
    %v4370 = vmul.f32 %v4366, 0.044715
    %v4371 = vmul.f32 %v4367, 0.044715
    %v4372 = vadd.f32 %v4352, %v4368
    %v4373 = vadd.f32 %v4354, %v4369
    %v4374 = vadd.f32 %v4356, %v4370
    %v4375 = vadd.f32 %v4358, %v4371
    %v4376 = vmul.f32 %v4372, 0.7978846
    %v4377 = vmul.f32 %v4373, 0.7978846
    %v4378 = vmul.f32 %v4374, 0.7978846
    %v4379 = vmul.f32 %v4375, 0.7978846
    %v4380 = vtanh.pop %v4376
    %v4381 = vtanh.pop %v4377
    %v4382 = vtanh.pop %v4378
    %v4383 = vtanh.pop %v4379
    %v4384 = vadd.f32 %v4380, 1.0
    %v4385 = vadd.f32 %v4381, 1.0
    %v4386 = vadd.f32 %v4382, 1.0
    %v4387 = vadd.f32 %v4383, 1.0
    %v4388 = vmul.f32 %v4384, 0.5
    %v4389 = vmul.f32 %v4385, 0.5
    %v4390 = vmul.f32 %v4386, 0.5
    %v4391 = vmul.f32 %v4387, 0.5
    %v4392 = vmul.f32 %v4352, %v4388
    %v4393 = vmul.f32 %v4354, %v4389
    %v4394 = vmul.f32 %v4356, %v4390
    %v4395 = vmul.f32 %v4358, %v4391
    %v4396 = vpack.c.bf16 %v4394, %v4392
    %v4397 = vpack.c.bf16 %v4395, %v4393
    %s4398 = scalar_lea.vmem [#allocation7], 256
    %v4399 = vld [vmem:[%s4398] sm:$0xf]
    %v4400 = vld [vmem:[%s4398 + $0x4] sm:$0xf]
    %v4401 = vld [vmem:[%s4398 + $0x8] sm:$0xf]
    %v4402 = vld [vmem:[%s4398 + $0xc] sm:$0xf]
    %v4403 = vld [vmem:[%s4398 + $0x10] sm:$0xf]
    %v4404 = vld [vmem:[%s4398 + $0x14] sm:$0xf]
    %v4405 = vld [vmem:[%s4398 + $0x18] sm:$0xf]
    %v4406 = vld [vmem:[%s4398 + $0x1c] sm:$0xf]
    %v4407 = vld [vmem:[%s4398 + $0x20] sm:$0xf]
    %v4408 = vld [vmem:[%s4398 + $0x24] sm:$0xf]
    %v4409 = vld [vmem:[%s4398 + $0x28] sm:$0xf]
    %v4410 = vld [vmem:[%s4398 + $0x2c] sm:$0xf]
    %v4411 = vld [vmem:[%s4398 + $0x30] sm:$0xf]
    %v4412 = vld [vmem:[%s4398 + $0x34] sm:$0xf]
    %v4413 = vld [vmem:[%s4398 + $0x38] sm:$0xf]
    %v4414 = vld [vmem:[%s4398 + $0x3c] sm:$0xf]
    %v4415 = vld [vmem:[%s4398 + $0x40] sm:$0xf]
    %v4416 = vld [vmem:[%s4398 + $0x44] sm:$0xf]
    %v4417 = vld [vmem:[%s4398 + $0x48] sm:$0xf]
    %v4418 = vld [vmem:[%s4398 + $0x4c] sm:$0xf]
    %v4419 = vld [vmem:[%s4398 + $0x50] sm:$0xf]
    %v4420 = vld [vmem:[%s4398 + $0x54] sm:$0xf]
    %v4421 = vld [vmem:[%s4398 + $0x58] sm:$0xf]
    %v4422 = vld [vmem:[%s4398 + $0x5c] sm:$0xf]
    %v4423 = vld [vmem:[%s4398 + $0x60] sm:$0xf]
    %v4424 = vld [vmem:[%s4398 + $0x64] sm:$0xf]
    %v4425 = vld [vmem:[%s4398 + $0x68] sm:$0xf]
    %v4426 = vld [vmem:[%s4398 + $0x6c] sm:$0xf]
    %v4427 = vld [vmem:[%s4398 + $0x70] sm:$0xf]
    %v4428 = vld [vmem:[%s4398 + $0x74] sm:$0xf]
    %v4429 = vld [vmem:[%s4398 + $0x78] sm:$0xf]
    %v4430 = vld [vmem:[%s4398 + $0x7c] sm:$0xf]
    %s4431 = scalar_lea.vmem %s13, 2
    %v4432 = vld [vmem:[%s4431] sm:$0x1]
    %v4434 = vlaneseq
    %v4435 = vshrl.u32 %v4434, 7
    %v4436 = vsub.s32 0, %v4435
    %v4437 = vrot.slane %v4432, %v4436
    %v4471 = vunpack.c.l.b16 %v4399
    %v4472 = vunpack.c.l.b16 %v4400
    %v4473 = vunpack.c.l.b16 %v4401
    %v4474 = vunpack.c.l.b16 %v4402
    %v4475 = vunpack.c.l.b16 %v4403
    %v4476 = vunpack.c.l.b16 %v4404
    %v4477 = vunpack.c.l.b16 %v4405
    %v4478 = vunpack.c.l.b16 %v4406
    %v4479 = vunpack.c.l.b16 %v4407
    %v4480 = vunpack.c.l.b16 %v4408
    %v4481 = vunpack.c.l.b16 %v4409
    %v4482 = vunpack.c.l.b16 %v4410
    %v4483 = vunpack.c.l.b16 %v4411
    %v4484 = vunpack.c.l.b16 %v4412
    %v4485 = vunpack.c.l.b16 %v4413
    %v4486 = vunpack.c.l.b16 %v4414
    %v4487 = vunpack.c.l.b16 %v4415
    %v4488 = vunpack.c.l.b16 %v4416
    %v4489 = vunpack.c.l.b16 %v4417
    %v4490 = vunpack.c.l.b16 %v4418
    %v4491 = vunpack.c.l.b16 %v4419
    %v4492 = vunpack.c.l.b16 %v4420
    %v4493 = vunpack.c.l.b16 %v4421
    %v4494 = vunpack.c.l.b16 %v4422
    %v4495 = vunpack.c.l.b16 %v4423
    %v4496 = vunpack.c.l.b16 %v4424
    %v4497 = vunpack.c.l.b16 %v4425
    %v4498 = vunpack.c.l.b16 %v4426
    %v4499 = vunpack.c.l.b16 %v4427
    %v4500 = vunpack.c.l.b16 %v4428
    %v4501 = vunpack.c.l.b16 %v4429
    %v4502 = vunpack.c.l.b16 %v4430
    %v4503 = vpack.c.b16 %v4472, %v4471
    %v4504 = vpack.c.b16 %v4474, %v4473
    %v4505 = vpack.c.b16 %v4476, %v4475
    %v4506 = vpack.c.b16 %v4478, %v4477
    %v4507 = vpack.c.b16 %v4480, %v4479
    %v4508 = vpack.c.b16 %v4482, %v4481
    %v4509 = vpack.c.b16 %v4484, %v4483
    %v4510 = vpack.c.b16 %v4486, %v4485
    %v4511 = vpack.c.b16 %v4488, %v4487
    %v4512 = vpack.c.b16 %v4490, %v4489
    %v4513 = vpack.c.b16 %v4492, %v4491
    %v4514 = vpack.c.b16 %v4494, %v4493
    %v4515 = vpack.c.b16 %v4496, %v4495
    %v4516 = vpack.c.b16 %v4498, %v4497
    %v4517 = vpack.c.b16 %v4500, %v4499
    %v4518 = vpack.c.b16 %v4502, %v4501
    %4535 = vmatprep.subr.bf16.mxu0 0
    %4536 = vmatpush1.bf16.msra.mxu0 %v4503
    %4537 = vmatprep.subr.bf16.mxu0 0
    %4538 = vmatpush1.bf16.msra.mxu0 %v4504
    %4539 = vmatprep.subr.bf16.mxu0 0
    %4540 = vmatpush1.bf16.msra.mxu0 %v4505
    %4541 = vmatprep.subr.bf16.mxu0 0
    %4542 = vmatpush1.bf16.msra.mxu0 %v4506
    %4543 = vmatprep.subr.bf16.mxu0 0
    %4544 = vmatpush1.bf16.msra.mxu0 %v4507
    %4545 = vmatprep.subr.bf16.mxu0 0
    %4546 = vmatpush1.bf16.msra.mxu0 %v4508
    %4547 = vmatprep.subr.bf16.mxu0 0
    %4548 = vmatpush1.bf16.msra.mxu0 %v4509
    %4549 = vmatprep.subr.bf16.mxu0 0
    %4550 = vmatpush1.bf16.msra.mxu0 %v4510
    %4551 = vmatprep.subr.bf16.mxu0 0
    %4552 = vmatpush1.bf16.msra.mxu0 %v4511
    %4553 = vmatprep.subr.bf16.mxu0 0
    %4554 = vmatpush1.bf16.msra.mxu0 %v4512
    %4555 = vmatprep.subr.bf16.mxu0 0
    %4556 = vmatpush1.bf16.msra.mxu0 %v4513
    %4557 = vmatprep.subr.bf16.mxu0 0
    %4558 = vmatpush1.bf16.msra.mxu0 %v4514
    %4559 = vmatprep.subr.bf16.mxu0 0
    %4560 = vmatpush1.bf16.msra.mxu0 %v4515
    %4561 = vmatprep.subr.bf16.mxu0 0
    %4562 = vmatpush1.bf16.msra.mxu0 %v4516
    %4563 = vmatprep.subr.bf16.mxu0 0
    %4564 = vmatpush1.bf16.msra.mxu0 %v4517
    %4565 = vmatprep.subr.bf16.mxu0 0
    %4566 = vmatpush1.bf16.msra.mxu0 %v4518
    %4567 = vmatprep.mubr.bf16.mxu0 %v4397
    %4568 = vmatmul.mubr.bf16.gmra.mrb[0].mxu0 %v4396
    %v4569 = vpop.f32.mrb[0].mxu0
    %v4570 = vadd.f32 %v4437, %v4569
    %v4571 = vpop.f32.mrb[0].mxu0
    %v4572 = vpop.f32.mrb[0].mxu0
    %v4573 = vadd.f32 %v4437, %v4572
    %v4574 = vpop.f32.mrb[0].mxu0
    %4575 = vdwg.mxu0
    %v4576 = vadd.f32 %v4570, %v4204
    %v4577 = vadd.f32 %v4573, %v4205
    %s4578 = scalar_lea.vmem %s14, 2
    %v4579 = vld [vmem:[%s4578] sm:$0x1]
    %s4580 = scalar_lea.vmem %s15, 2
    %v4581 = vld [vmem:[%s4580] sm:$0x1]
    %4582 = vadd.xlane.f32.xlu0 %v4576
    %v4583 = vpop.xlane.xlu0 %4582
    %4584 = vadd.xlane.f32.xlu0 %v4577
    %v4585 = vpop.xlane.xlu0 %4584
    %v4586 = vmul.f32 %v4583, %v123
    %v4587 = vmul.f32 %v4585, %v123
    %v4588 = vsub.f32 %v4576, %v4586
    %v4589 = vsub.f32 %v4577, %v4587
    %v4590 = vmul.f32 %v4588, %v4588
    %v4591 = vmul.f32 %v4589, %v4589
    %4592 = vadd.xlane.f32.xlu0 %v4590
    %v4593 = vpop.xlane.xlu0 %4592
    %4594 = vadd.xlane.f32.xlu0 %v4591
    %v4595 = vpop.xlane.xlu0 %4594
    %v4596 = vmul.f32 %v4593, %v123
    %v4597 = vmul.f32 %v4595, %v123
    %v4598 = vadd.f32 %v4596, 1e-12
    %v4599 = vadd.f32 %v4597, 1e-12
    %v4600 = vrsqrt.pop %v4598
    %v4601 = vrsqrt.pop %v4599
    %v4602 = vmul.f32 %v4588, %v4600
    %v4603 = vmul.f32 %v4589, %v4601
    %v4605 = vlaneseq
    %v4606 = vshrl.u32 %v4605, 7
    %v4607 = vsub.s32 0, %v4606
    %v4608 = vrot.slane %v4579, %v4607
    %v4610 = vmul.f32 %v4602, %v4608
    %v4611 = vmul.f32 %v4603, %v4608
    %v4613 = vlaneseq
    %v4614 = vshrl.u32 %v4613, 7
    %v4615 = vsub.s32 0, %v4614
    %v4616 = vrot.slane %v4581, %v4615
    %v4618 = vadd.f32 %v4610, %v4616
    %v4619 = vadd.f32 %v4611, %v4616
    %v4620 = vpack.c.bf16 %v4619, %v4618
    %s4621 = scalar_lea.vmem [#allocation2], 576
    %v4622 = vld [vmem:[%s4621] sm:$0xff]
    %v4623 = vld [vmem:[%s4621 + $0x8] sm:$0xf]
    %v4624 = vld [vmem:[%s4621 + $0xc] sm:$0xff]
    %v4625 = vld [vmem:[%s4621 + $0x14] sm:$0xf]
    %v4626 = vld [vmem:[%s4621 + $0x18] sm:$0xff]
    %v4627 = vld [vmem:[%s4621 + $0x20] sm:$0xf]
    %v4628 = vld [vmem:[%s4621 + $0x24] sm:$0xff]
    %v4629 = vld [vmem:[%s4621 + $0x2c] sm:$0xf]
    %v4630 = vld [vmem:[%s4621 + $0x30] sm:$0xff]
    %v4631 = vld [vmem:[%s4621 + $0x38] sm:$0xf]
    %v4632 = vld [vmem:[%s4621 + $0x3c] sm:$0xff]
    %v4633 = vld [vmem:[%s4621 + $0x44] sm:$0xf]
    %v4634 = vld [vmem:[%s4621 + $0x48] sm:$0xff]
    %v4635 = vld [vmem:[%s4621 + $0x50] sm:$0xf]
    %v4636 = vld [vmem:[%s4621 + $0x54] sm:$0xff]
    %v4637 = vld [vmem:[%s4621 + $0x5c] sm:$0xf]
    %v4638 = vld [vmem:[%s4621 + $0x60] sm:$0xff]
    %v4639 = vld [vmem:[%s4621 + $0x68] sm:$0xf]
    %v4640 = vld [vmem:[%s4621 + $0x6c] sm:$0xff]
    %v4641 = vld [vmem:[%s4621 + $0x74] sm:$0xf]
    %v4642 = vld [vmem:[%s4621 + $0x78] sm:$0xff]
    %v4643 = vld [vmem:[%s4621 + $0x80] sm:$0xf]
    %v4644 = vld [vmem:[%s4621 + $0x84] sm:$0xff]
    %v4645 = vld [vmem:[%s4621 + $0x8c] sm:$0xf]
    %v4646 = vld [vmem:[%s4621 + $0x90] sm:$0xff]
    %v4647 = vld [vmem:[%s4621 + $0x98] sm:$0xf]
    %v4648 = vld [vmem:[%s4621 + $0x9c] sm:$0xff]
    %v4649 = vld [vmem:[%s4621 + $0xa4] sm:$0xf]
    %v4650 = vld [vmem:[%s4621 + $0xa8] sm:$0xff]
    %v4651 = vld [vmem:[%s4621 + $0xb0] sm:$0xf]
    %v4652 = vld [vmem:[%s4621 + $0xb4] sm:$0xff]
    %v4653 = vld [vmem:[%s4621 + $0xbc] sm:$0xf]
    %s4654 = scalar_lea.vmem %s5, 9
    %v4655 = vld [vmem:[%s4654] sm:$0x7]
    %v4657 = vlaneseq
    %v4658 = vshrl.u32 %v4657, 7
    %v4659 = vsub.s32 0, %v4658
    %v4660 = vrot.slane %v4655, %v4659
    %v4661 = vlaneseq
    %v4662 = vshrl.u32 %v4661, 7
    %v4663 = vsub.s32 1, %v4662
    %v4664 = vrot.slane %v4655, %v4663
    %v4665 = vlaneseq
    %v4666 = vshrl.u32 %v4665, 7
    %v4667 = vsub.s32 2, %v4666
    %v4668 = vrot.slane %v4655, %v4667
    %v4704 = vunpack.c.l.b16 %v4622
    %v4705 = vunpack.c.h.b16 %v4622
    %v4706 = vunpack.c.l.b16 %v4623
    %v4707 = vunpack.c.l.b16 %v4624
    %v4708 = vunpack.c.h.b16 %v4624
    %v4709 = vunpack.c.l.b16 %v4625
    %v4710 = vunpack.c.l.b16 %v4626
    %v4711 = vunpack.c.h.b16 %v4626
    %v4712 = vunpack.c.l.b16 %v4627
    %v4713 = vunpack.c.l.b16 %v4628
    %v4714 = vunpack.c.h.b16 %v4628
    %v4715 = vunpack.c.l.b16 %v4629
    %v4716 = vunpack.c.l.b16 %v4630
    %v4717 = vunpack.c.h.b16 %v4630
    %v4718 = vunpack.c.l.b16 %v4631
    %v4719 = vunpack.c.l.b16 %v4632
    %v4720 = vunpack.c.h.b16 %v4632
    %v4721 = vunpack.c.l.b16 %v4633
    %v4722 = vunpack.c.l.b16 %v4634
    %v4723 = vunpack.c.h.b16 %v4634
    %v4724 = vunpack.c.l.b16 %v4635
    %v4725 = vunpack.c.l.b16 %v4636
    %v4726 = vunpack.c.h.b16 %v4636
    %v4727 = vunpack.c.l.b16 %v4637
    %v4728 = vunpack.c.l.b16 %v4638
    %v4729 = vunpack.c.h.b16 %v4638
    %v4730 = vunpack.c.l.b16 %v4639
    %v4731 = vunpack.c.l.b16 %v4640
    %v4732 = vunpack.c.h.b16 %v4640
    %v4733 = vunpack.c.l.b16 %v4641
    %v4734 = vunpack.c.l.b16 %v4642
    %v4735 = vunpack.c.h.b16 %v4642
    %v4736 = vunpack.c.l.b16 %v4643
    %v4737 = vunpack.c.l.b16 %v4644
    %v4738 = vunpack.c.h.b16 %v4644
    %v4739 = vunpack.c.l.b16 %v4645
    %v4740 = vunpack.c.l.b16 %v4646
    %v4741 = vunpack.c.h.b16 %v4646
    %v4742 = vunpack.c.l.b16 %v4647
    %v4743 = vunpack.c.l.b16 %v4648
    %v4744 = vunpack.c.h.b16 %v4648
    %v4745 = vunpack.c.l.b16 %v4649
    %v4746 = vunpack.c.l.b16 %v4650
    %v4747 = vunpack.c.h.b16 %v4650
    %v4748 = vunpack.c.l.b16 %v4651
    %v4749 = vunpack.c.l.b16 %v4652
    %v4750 = vunpack.c.h.b16 %v4652
    %v4751 = vunpack.c.l.b16 %v4653
    %v4752 = vpack.c.b16 %v4707, %v4704
    %v4753 = vpack.c.b16 %v4708, %v4705
    %v4754 = vpack.c.b16 %v4709, %v4706
    %v4755 = vpack.c.b16 %v4713, %v4710
    %v4756 = vpack.c.b16 %v4714, %v4711
    %v4757 = vpack.c.b16 %v4715, %v4712
    %v4758 = vpack.c.b16 %v4719, %v4716
    %v4759 = vpack.c.b16 %v4720, %v4717
    %v4760 = vpack.c.b16 %v4721, %v4718
    %v4761 = vpack.c.b16 %v4725, %v4722
    %v4762 = vpack.c.b16 %v4726, %v4723
    %v4763 = vpack.c.b16 %v4727, %v4724
    %v4764 = vpack.c.b16 %v4731, %v4728
    %v4765 = vpack.c.b16 %v4732, %v4729
    %v4766 = vpack.c.b16 %v4733, %v4730
    %v4767 = vpack.c.b16 %v4737, %v4734
    %v4768 = vpack.c.b16 %v4738, %v4735
    %v4769 = vpack.c.b16 %v4739, %v4736
    %v4770 = vpack.c.b16 %v4743, %v4740
    %v4771 = vpack.c.b16 %v4744, %v4741
    %v4772 = vpack.c.b16 %v4745, %v4742
    %v4773 = vpack.c.b16 %v4749, %v4746
    %v4774 = vpack.c.b16 %v4750, %v4747
    %v4775 = vpack.c.b16 %v4751, %v4748
    %4800 = vmatprep.subr.bf16.mxu0 %v4753
    %4801 = vmatpush1.bf16.msra.mxu0 %v4752
    %4802 = vmatprep.subr.bf16.mxu0 %v4756
    %4803 = vmatpush1.bf16.msra.mxu0 %v4755
    %4804 = vmatprep.subr.bf16.mxu0 %v4759
    %4805 = vmatpush1.bf16.msra.mxu0 %v4758
    %4806 = vmatprep.subr.bf16.mxu0 %v4762
    %4807 = vmatpush1.bf16.msra.mxu0 %v4761
    %4808 = vmatprep.subr.bf16.mxu0 %v4765
    %4809 = vmatpush1.bf16.msra.mxu0 %v4764
    %4810 = vmatprep.subr.bf16.mxu0 %v4768
    %4811 = vmatpush1.bf16.msra.mxu0 %v4767
    %4812 = vmatprep.subr.bf16.mxu0 %v4771
    %4813 = vmatpush1.bf16.msra.mxu0 %v4770
    %4814 = vmatprep.subr.bf16.mxu0 %v4774
    %4815 = vmatpush1.bf16.msra.mxu0 %v4773
    %4816 = vmatprep.subr.bf16.mxu0 0
    %4817 = vmatpush1.bf16.msra.mxu0 0
    %4818 = vmatprep.subr.bf16.mxu0 0
    %4819 = vmatpush1.bf16.msra.mxu0 0
    %4820 = vmatprep.subr.bf16.mxu0 0
    %4821 = vmatpush1.bf16.msra.mxu0 0
    %4822 = vmatprep.subr.bf16.mxu0 0
    %4823 = vmatpush1.bf16.msra.mxu0 0
    %4824 = vmatprep.subr.bf16.mxu0 0
    %4825 = vmatpush1.bf16.msra.mxu0 0
    %4826 = vmatprep.subr.bf16.mxu0 0
    %4827 = vmatpush1.bf16.msra.mxu0 0
    %4828 = vmatprep.subr.bf16.mxu0 0
    %4829 = vmatpush1.bf16.msra.mxu0 0
    %4830 = vmatprep.subr.bf16.mxu0 0
    %4831 = vmatpush1.bf16.msra.mxu0 0
    %4832 = vmatprep.mubr.bf16.mxu0 0
    %4833 = vmatmul.mubr.bf16.gmra.mrb[0].mxu0 %v4620
    %v4834 = vpop.f32.mrb[0].mxu0
    %v4835 = vadd.f32 %v4660, %v4834
    %v4836 = vpop.f32.mrb[0].mxu0
    %v4837 = vadd.f32 %v4664, %v4836
    %v4838 = vpop.f32.mrb[0].mxu0
    %v4839 = vadd.f32 %v4660, %v4838
    %v4840 = vpop.f32.mrb[0].mxu0
    %v4841 = vadd.f32 %v4664, %v4840
    %4842 = vdwg.mxu0
    %4843 = vmatprep.subr.bf16.mxu0 0
    %4844 = vmatpush1.bf16.msra.mxu0 %v4754
    %4845 = vmatprep.subr.bf16.mxu0 0
    %4846 = vmatpush1.bf16.msra.mxu0 %v4757
    %4847 = vmatprep.subr.bf16.mxu0 0
    %4848 = vmatpush1.bf16.msra.mxu0 %v4760
    %4849 = vmatprep.subr.bf16.mxu0 0
    %4850 = vmatpush1.bf16.msra.mxu0 %v4763
    %4851 = vmatprep.subr.bf16.mxu0 0
    %4852 = vmatpush1.bf16.msra.mxu0 %v4766
    %4853 = vmatprep.subr.bf16.mxu0 0
    %4854 = vmatpush1.bf16.msra.mxu0 %v4769
    %4855 = vmatprep.subr.bf16.mxu0 0
    %4856 = vmatpush1.bf16.msra.mxu0 %v4772
    %4857 = vmatprep.subr.bf16.mxu0 0
    %4858 = vmatpush1.bf16.msra.mxu0 %v4775
    %4859 = vmatprep.subr.bf16.mxu0 0
    %4860 = vmatpush1.bf16.msra.mxu0 0
    %4861 = vmatprep.subr.bf16.mxu0 0
    %4862 = vmatpush1.bf16.msra.mxu0 0
    %4863 = vmatprep.subr.bf16.mxu0 0
    %4864 = vmatpush1.bf16.msra.mxu0 0
    %4865 = vmatprep.subr.bf16.mxu0 0
    %4866 = vmatpush1.bf16.msra.mxu0 0
    %4867 = vmatprep.subr.bf16.mxu0 0
    %4868 = vmatpush1.bf16.msra.mxu0 0
    %4869 = vmatprep.subr.bf16.mxu0 0
    %4870 = vmatpush1.bf16.msra.mxu0 0
    %4871 = vmatprep.subr.bf16.mxu0 0
    %4872 = vmatpush1.bf16.msra.mxu0 0
    %4873 = vmatprep.subr.bf16.mxu0 0
    %4874 = vmatpush1.bf16.msra.mxu0 0
    %4875 = vmatprep.mubr.bf16.mxu0 0
    %4876 = vmatmul.mubr.bf16.gmra.mrb[0].mxu0 %v4620
    %v4877 = vpop.f32.mrb[0].mxu0
    %v4878 = vadd.f32 %v4668, %v4877
    %v4879 = vpop.f32.mrb[0].mxu0
    %v4880 = vpop.f32.mrb[0].mxu0
    %v4881 = vadd.f32 %v4668, %v4880
    %v4882 = vpop.f32.mrb[0].mxu0
    %4883 = vdwg.mxu0
    %v4884 = vpack.c.bf16 %v4839, %v4835
    %v4885 = vpack.c.bf16 %v4841, %v4837
    %v4886 = vpack.c.bf16 %v4881, %v4878
    %s4887 = scalar_lea.vmem [#allocation4], 192
    %v4888 = vld [vmem:[%s4887] sm:$0xf]
    %v4889 = vld [vmem:[%s4887 + $0x4] sm:$0xf]
    %v4890 = vld [vmem:[%s4887 + $0x8] sm:$0xf]
    %v4891 = vld [vmem:[%s4887 + $0xc] sm:$0xf]
    %v4892 = vld [vmem:[%s4887 + $0x10] sm:$0xf]
    %v4893 = vld [vmem:[%s4887 + $0x14] sm:$0xf]
    %v4894 = vld [vmem:[%s4887 + $0x18] sm:$0xf]
    %v4895 = vld [vmem:[%s4887 + $0x1c] sm:$0xf]
    %v4896 = vld [vmem:[%s4887 + $0x20] sm:$0xf]
    %v4897 = vld [vmem:[%s4887 + $0x24] sm:$0xf]
    %v4898 = vld [vmem:[%s4887 + $0x28] sm:$0xf]
    %v4899 = vld [vmem:[%s4887 + $0x2c] sm:$0xf]
    %v4900 = vld [vmem:[%s4887 + $0x30] sm:$0xf]
    %v4901 = vld [vmem:[%s4887 + $0x34] sm:$0xf]
    %v4902 = vld [vmem:[%s4887 + $0x38] sm:$0xf]
    %v4903 = vld [vmem:[%s4887 + $0x3c] sm:$0xf]
    %v4905 = vsel %vm471, %v4884, 0
    %v4908 = vsel %vm471, %v4885, 0
    %4910 = vmatprep.subr.bf16.mxu0 0
    %4911 = vmatpush1.bf16.xpose.msra.mxu0 %v4908
    %4912 = vmatprep.subr.bf16.mxu0 0
    %4913 = vmatpush1.bf16.xpose.msra.mxu0 0
    %4914 = vmatprep.subr.bf16.mxu0 0
    %4915 = vmatpush1.bf16.xpose.msra.mxu0 0
    %4916 = vmatprep.subr.bf16.mxu0 0
    %4917 = vmatpush1.bf16.xpose.msra.mxu0 0
    %4918 = vmatprep.subr.bf16.mxu0 0
    %4919 = vmatpush1.bf16.xpose.msra.mxu0 0
    %4920 = vmatprep.subr.bf16.mxu0 0
    %4921 = vmatpush1.bf16.xpose.msra.mxu0 0
    %4922 = vmatprep.subr.bf16.mxu0 0
    %4923 = vmatpush1.bf16.xpose.msra.mxu0 0
    %4924 = vmatprep.subr.bf16.mxu0 0
    %4925 = vmatpush1.bf16.xpose.msra.mxu0 0
    %4926 = vmatprep.subr.bf16.mxu0 0
    %4927 = vmatpush1.bf16.xpose.msra.mxu0 0
    %4928 = vmatprep.subr.bf16.mxu0 0
    %4929 = vmatpush1.bf16.xpose.msra.mxu0 0
    %4930 = vmatprep.subr.bf16.mxu0 0
    %4931 = vmatpush1.bf16.xpose.msra.mxu0 0
    %4932 = vmatprep.subr.bf16.mxu0 0
    %4933 = vmatpush1.bf16.xpose.msra.mxu0 0
    %4934 = vmatprep.subr.bf16.mxu0 0
    %4935 = vmatpush1.bf16.xpose.msra.mxu0 0
    %4936 = vmatprep.subr.bf16.mxu0 0
    %4937 = vmatpush1.bf16.xpose.msra.mxu0 0
    %4938 = vmatprep.subr.bf16.mxu0 0
    %4939 = vmatpush1.bf16.xpose.msra.mxu0 0
    %4940 = vmatprep.subr.bf16.mxu0 0
    %4941 = vmatpush1.bf16.xpose.msra.mxu0 0
    %4942 = vmatprep.mubr.bf16.mxu0 0
    %4943 = vmatmul.mubr.bf16.gmra.mrb[0].mxu0 %v4905
    %v4944 = vpop.f32.mrb[0].mxu0
    %v4945 = vadd.f32 0.0, %v4944
    %v4946 = vpop.f32.mrb[0].mxu0
    %v4947 = vpop.f32.mrb[0].mxu0
    %v4948 = vadd.f32 0.0, %v4947
    %v4949 = vpop.f32.mrb[0].mxu0
    %4950 = vdwg.mxu0
    %v4951 = vmul.f32 %v4945, 0.17677669
    %v4952 = vmul.f32 %v4948, 0.17677669
    %v4953 = vadd.f32 %v4951, %v188
    %v4954 = vadd.f32 %v4952, %v189
    %v4955 = vsel %vm523, %v4953, -inf
    %4956 = vmax.xlane.f32.xlu0 %v4955
    %v4957 = vpop.xlane.xlu0 %4956
    %v4958 = vsel %vm523, %v4954, -inf
    %4959 = vmax.xlane.f32.xlu0 %v4958
    %v4960 = vpop.xlane.xlu0 %4959
    %v4961 = vsub.f32 %v4953, %v4957
    %v4962 = vsub.f32 %v4954, %v4960
    %v4963 = vmul.f32 %v4961, 1.442695
    %v4964 = vpow.pop %v4963
    %v4965 = vmul.f32 %v4962, 1.442695
    %v4966 = vpow.pop %v4965
    %v4967 = vsel %vm523, %v4964, 0.0
    %4968 = vadd.xlane.f32.xlu0 %v4967
    %v4969 = vpop.xlane.xlu0 %4968
    %v4970 = vsel %vm523, %v4966, 0.0
    %4971 = vadd.xlane.f32.xlu0 %v4970
    %v4972 = vpop.xlane.xlu0 %4971
    %v4973 = vrcp.pop %v4969
    %v4974 = vrcp.pop %v4972
    %v4975 = vmul.f32 %v4964, %v4973
    %v4976 = vmul.f32 %v4966, %v4974
    %v4977 = vpack.c.bf16 %v4976, %v4975
    %v4979 = vsel %vm523, %v4977, 0
    %4981 = vmatprep.subr.bf16.mxu0 0
    %4982 = vmatpush1.bf16.msra.mxu0 %v4886
    %4983 = vmatprep.subr.bf16.mxu0 0
    %4984 = vmatpush1.bf16.msra.mxu0 0
    %4985 = vmatprep.subr.bf16.mxu0 0
    %4986 = vmatpush1.bf16.msra.mxu0 0
    %4987 = vmatprep.subr.bf16.mxu0 0
    %4988 = vmatpush1.bf16.msra.mxu0 0
    %4989 = vmatprep.subr.bf16.mxu0 0
    %4990 = vmatpush1.bf16.msra.mxu0 0
    %4991 = vmatprep.subr.bf16.mxu0 0
    %4992 = vmatpush1.bf16.msra.mxu0 0
    %4993 = vmatprep.subr.bf16.mxu0 0
    %4994 = vmatpush1.bf16.msra.mxu0 0
    %4995 = vmatprep.subr.bf16.mxu0 0
    %4996 = vmatpush1.bf16.msra.mxu0 0
    %4997 = vmatprep.subr.bf16.mxu0 0
    %4998 = vmatpush1.bf16.msra.mxu0 0
    %4999 = vmatprep.subr.bf16.mxu0 0
    %5000 = vmatpush1.bf16.msra.mxu0 0
    %5001 = vmatprep.subr.bf16.mxu0 0
    %5002 = vmatpush1.bf16.msra.mxu0 0
    %5003 = vmatprep.subr.bf16.mxu0 0
    %5004 = vmatpush1.bf16.msra.mxu0 0
    %5005 = vmatprep.subr.bf16.mxu0 0
    %5006 = vmatpush1.bf16.msra.mxu0 0
    %5007 = vmatprep.subr.bf16.mxu0 0
    %5008 = vmatpush1.bf16.msra.mxu0 0
    %5009 = vmatprep.subr.bf16.mxu0 0
    %5010 = vmatpush1.bf16.msra.mxu0 0
    %5011 = vmatprep.subr.bf16.mxu0 0
    %5012 = vmatpush1.bf16.msra.mxu0 0
    %5013 = vmatprep.mubr.bf16.mxu0 0
    %5014 = vmatmul.mubr.bf16.gmra.mrb[0].mxu0 %v4979
    %v5015 = vpop.f32.mrb[0].mxu0
    %v5016 = vadd.f32 0.0, %v5015
    %v5017 = vpop.f32.mrb[0].mxu0
    %v5018 = vpop.f32.mrb[0].mxu0
    %v5019 = vadd.f32 0.0, %v5018
    %v5020 = vpop.f32.mrb[0].mxu0
    %5021 = vdwg.mxu0
    %v5022 = vpack.c.bf16 %v5019, %v5016
    %5024 = vrot.lane.b32.xlu0 %v4884, 96
    %v5025 = vpop.permute.xlu0 %5024
    %5027 = vrot.lane.b32.xlu0 %v4885, 96
    %v5028 = vpop.permute.xlu0 %5027
    %v5030 = vsel %vm471, %v5025, 0
    %v5033 = vsel %vm471, %v5028, 0
    %5035 = vmatprep.subr.bf16.mxu0 0
    %5036 = vmatpush1.bf16.xpose.msra.mxu0 %v5033
    %5037 = vmatprep.subr.bf16.mxu0 0
    %5038 = vmatpush1.bf16.xpose.msra.mxu0 0
    %5039 = vmatprep.subr.bf16.mxu0 0
    %5040 = vmatpush1.bf16.xpose.msra.mxu0 0
    %5041 = vmatprep.subr.bf16.mxu0 0
    %5042 = vmatpush1.bf16.xpose.msra.mxu0 0
    %5043 = vmatprep.subr.bf16.mxu0 0
    %5044 = vmatpush1.bf16.xpose.msra.mxu0 0
    %5045 = vmatprep.subr.bf16.mxu0 0
    %5046 = vmatpush1.bf16.xpose.msra.mxu0 0
    %5047 = vmatprep.subr.bf16.mxu0 0
    %5048 = vmatpush1.bf16.xpose.msra.mxu0 0
    %5049 = vmatprep.subr.bf16.mxu0 0
    %5050 = vmatpush1.bf16.xpose.msra.mxu0 0
    %5051 = vmatprep.subr.bf16.mxu0 0
    %5052 = vmatpush1.bf16.xpose.msra.mxu0 0
    %5053 = vmatprep.subr.bf16.mxu0 0
    %5054 = vmatpush1.bf16.xpose.msra.mxu0 0
    %5055 = vmatprep.subr.bf16.mxu0 0
    %5056 = vmatpush1.bf16.xpose.msra.mxu0 0
    %5057 = vmatprep.subr.bf16.mxu0 0
    %5058 = vmatpush1.bf16.xpose.msra.mxu0 0
    %5059 = vmatprep.subr.bf16.mxu0 0
    %5060 = vmatpush1.bf16.xpose.msra.mxu0 0
    %5061 = vmatprep.subr.bf16.mxu0 0
    %5062 = vmatpush1.bf16.xpose.msra.mxu0 0
    %5063 = vmatprep.subr.bf16.mxu0 0
    %5064 = vmatpush1.bf16.xpose.msra.mxu0 0
    %5065 = vmatprep.subr.bf16.mxu0 0
    %5066 = vmatpush1.bf16.xpose.msra.mxu0 0
    %5067 = vmatprep.mubr.bf16.mxu0 0
    %5068 = vmatmul.mubr.bf16.gmra.mrb[0].mxu0 %v5030
    %v5069 = vpop.f32.mrb[0].mxu0
    %v5070 = vadd.f32 0.0, %v5069
    %v5071 = vpop.f32.mrb[0].mxu0
    %v5072 = vpop.f32.mrb[0].mxu0
    %v5073 = vadd.f32 0.0, %v5072
    %v5074 = vpop.f32.mrb[0].mxu0
    %5075 = vdwg.mxu0
    %v5076 = vmul.f32 %v5070, 0.17677669
    %v5077 = vmul.f32 %v5073, 0.17677669
    %v5078 = vadd.f32 %v5076, %v188
    %v5079 = vadd.f32 %v5077, %v189
    %v5080 = vsel %vm523, %v5078, -inf
    %5081 = vmax.xlane.f32.xlu0 %v5080
    %v5082 = vpop.xlane.xlu0 %5081
    %v5083 = vsel %vm523, %v5079, -inf
    %5084 = vmax.xlane.f32.xlu0 %v5083
    %v5085 = vpop.xlane.xlu0 %5084
    %v5086 = vsub.f32 %v5078, %v5082
    %v5087 = vsub.f32 %v5079, %v5085
    %v5088 = vmul.f32 %v5086, 1.442695
    %v5089 = vpow.pop %v5088
    %v5090 = vmul.f32 %v5087, 1.442695
    %v5091 = vpow.pop %v5090
    %v5092 = vsel %vm523, %v5089, 0.0
    %5093 = vadd.xlane.f32.xlu0 %v5092
    %v5094 = vpop.xlane.xlu0 %5093
    %v5095 = vsel %vm523, %v5091, 0.0
    %5096 = vadd.xlane.f32.xlu0 %v5095
    %v5097 = vpop.xlane.xlu0 %5096
    %v5098 = vrcp.pop %v5094
    %v5099 = vrcp.pop %v5097
    %v5100 = vmul.f32 %v5089, %v5098
    %v5101 = vmul.f32 %v5091, %v5099
    %v5102 = vpack.c.bf16 %v5101, %v5100
    %5104 = vrot.lane.b32.xlu0 %v4886, 96
    %v5105 = vpop.permute.xlu0 %5104
    %v5108 = vsel %vm523, %v5102, 0
    %5110 = vmatprep.subr.bf16.mxu0 0
    %5111 = vmatpush1.bf16.msra.mxu0 %v5105
    %5112 = vmatprep.subr.bf16.mxu0 0
    %5113 = vmatpush1.bf16.msra.mxu0 0
    %5114 = vmatprep.subr.bf16.mxu0 0
    %5115 = vmatpush1.bf16.msra.mxu0 0
    %5116 = vmatprep.subr.bf16.mxu0 0
    %5117 = vmatpush1.bf16.msra.mxu0 0
    %5118 = vmatprep.subr.bf16.mxu0 0
    %5119 = vmatpush1.bf16.msra.mxu0 0
    %5120 = vmatprep.subr.bf16.mxu0 0
    %5121 = vmatpush1.bf16.msra.mxu0 0
    %5122 = vmatprep.subr.bf16.mxu0 0
    %5123 = vmatpush1.bf16.msra.mxu0 0
    %5124 = vmatprep.subr.bf16.mxu0 0
    %5125 = vmatpush1.bf16.msra.mxu0 0
    %5126 = vmatprep.subr.bf16.mxu0 0
    %5127 = vmatpush1.bf16.msra.mxu0 0
    %5128 = vmatprep.subr.bf16.mxu0 0
    %5129 = vmatpush1.bf16.msra.mxu0 0
    %5130 = vmatprep.subr.bf16.mxu0 0
    %5131 = vmatpush1.bf16.msra.mxu0 0
    %5132 = vmatprep.subr.bf16.mxu0 0
    %5133 = vmatpush1.bf16.msra.mxu0 0
    %5134 = vmatprep.subr.bf16.mxu0 0
    %5135 = vmatpush1.bf16.msra.mxu0 0
    %5136 = vmatprep.subr.bf16.mxu0 0
    %5137 = vmatpush1.bf16.msra.mxu0 0
    %5138 = vmatprep.subr.bf16.mxu0 0
    %5139 = vmatpush1.bf16.msra.mxu0 0
    %5140 = vmatprep.subr.bf16.mxu0 0
    %5141 = vmatpush1.bf16.msra.mxu0 0
    %5142 = vmatprep.mubr.bf16.mxu0 0
    %5143 = vmatmul.mubr.bf16.gmra.mrb[0].mxu0 %v5108
    %v5144 = vpop.f32.mrb[0].mxu0
    %v5145 = vadd.f32 0.0, %v5144
    %v5146 = vpop.f32.mrb[0].mxu0
    %v5147 = vpop.f32.mrb[0].mxu0
    %v5148 = vadd.f32 0.0, %v5147
    %v5149 = vpop.f32.mrb[0].mxu0
    %5150 = vdwg.mxu0
    %v5151 = vpack.c.bf16 %v5148, %v5145
    %v5156 = vunpack.c.l.b16 %v4892
    %v5157 = vunpack.c.l.b16 %v4893
    %v5158 = vunpack.c.l.b16 %v4894
    %v5159 = vunpack.c.l.b16 %v4895
    %v5160 = vpack.c.b16 %v5157, %v5156
    %v5161 = vpack.c.b16 %v5159, %v5158
    %v5165 = vsel %vm471, %v5151, 0
    %5167 = vmatprep.subr.bf16.mxu0 0
    %5168 = vmatpush1.bf16.msra.mxu0 %v5160
    %5169 = vmatprep.subr.bf16.mxu0 0
    %5170 = vmatpush1.bf16.msra.mxu0 %v5161
    %5171 = vmatprep.subr.bf16.mxu0 0
    %5172 = vmatpush1.bf16.msra.mxu0 0
    %5173 = vmatprep.subr.bf16.mxu0 0
    %5174 = vmatpush1.bf16.msra.mxu0 0
    %5175 = vmatprep.subr.bf16.mxu0 0
    %5176 = vmatpush1.bf16.msra.mxu0 0
    %5177 = vmatprep.subr.bf16.mxu0 0
    %5178 = vmatpush1.bf16.msra.mxu0 0
    %5179 = vmatprep.subr.bf16.mxu0 0
    %5180 = vmatpush1.bf16.msra.mxu0 0
    %5181 = vmatprep.subr.bf16.mxu0 0
    %5182 = vmatpush1.bf16.msra.mxu0 0
    %5183 = vmatprep.subr.bf16.mxu0 0
    %5184 = vmatpush1.bf16.msra.mxu0 0
    %5185 = vmatprep.subr.bf16.mxu0 0
    %5186 = vmatpush1.bf16.msra.mxu0 0
    %5187 = vmatprep.subr.bf16.mxu0 0
    %5188 = vmatpush1.bf16.msra.mxu0 0
    %5189 = vmatprep.subr.bf16.mxu0 0
    %5190 = vmatpush1.bf16.msra.mxu0 0
    %5191 = vmatprep.subr.bf16.mxu0 0
    %5192 = vmatpush1.bf16.msra.mxu0 0
    %5193 = vmatprep.subr.bf16.mxu0 0
    %5194 = vmatpush1.bf16.msra.mxu0 0
    %5195 = vmatprep.subr.bf16.mxu0 0
    %5196 = vmatpush1.bf16.msra.mxu0 0
    %5197 = vmatprep.subr.bf16.mxu0 0
    %5198 = vmatpush1.bf16.msra.mxu0 0
    %5199 = vmatprep.mubr.bf16.mxu0 0
    %5200 = vmatmul.mubr.bf16.gmra.mrb[0].mxu0 %v5165
    %v5201 = vpop.f32.mrb[0].mxu0
    %v5202 = vadd.f32 0.0, %v5201
    %v5203 = vpop.f32.mrb[0].mxu0
    %v5204 = vpop.f32.mrb[0].mxu0
    %v5205 = vadd.f32 0.0, %v5204
    %v5206 = vpop.f32.mrb[0].mxu0
    %5207 = vdwg.mxu0
    %v5212 = vunpack.c.l.b16 %v4888
    %v5213 = vunpack.c.l.b16 %v4889
    %v5214 = vunpack.c.l.b16 %v4890
    %v5215 = vunpack.c.l.b16 %v4891
    %v5216 = vpack.c.b16 %v5213, %v5212
    %v5217 = vpack.c.b16 %v5215, %v5214
    %v5221 = vsel %vm471, %v5022, 0
    %5223 = vmatprep.subr.bf16.mxu0 0
    %5224 = vmatpush1.bf16.msra.mxu0 %v5216
    %5225 = vmatprep.subr.bf16.mxu0 0
    %5226 = vmatpush1.bf16.msra.mxu0 %v5217
    %5227 = vmatprep.subr.bf16.mxu0 0
    %5228 = vmatpush1.bf16.msra.mxu0 0
    %5229 = vmatprep.subr.bf16.mxu0 0
    %5230 = vmatpush1.bf16.msra.mxu0 0
    %5231 = vmatprep.subr.bf16.mxu0 0
    %5232 = vmatpush1.bf16.msra.mxu0 0
    %5233 = vmatprep.subr.bf16.mxu0 0
    %5234 = vmatpush1.bf16.msra.mxu0 0
    %5235 = vmatprep.subr.bf16.mxu0 0
    %5236 = vmatpush1.bf16.msra.mxu0 0
    %5237 = vmatprep.subr.bf16.mxu0 0
    %5238 = vmatpush1.bf16.msra.mxu0 0
    %5239 = vmatprep.subr.bf16.mxu0 0
    %5240 = vmatpush1.bf16.msra.mxu0 0
    %5241 = vmatprep.subr.bf16.mxu0 0
    %5242 = vmatpush1.bf16.msra.mxu0 0
    %5243 = vmatprep.subr.bf16.mxu0 0
    %5244 = vmatpush1.bf16.msra.mxu0 0
    %5245 = vmatprep.subr.bf16.mxu0 0
    %5246 = vmatpush1.bf16.msra.mxu0 0
    %5247 = vmatprep.subr.bf16.mxu0 0
    %5248 = vmatpush1.bf16.msra.mxu0 0
    %5249 = vmatprep.subr.bf16.mxu0 0
    %5250 = vmatpush1.bf16.msra.mxu0 0
    %5251 = vmatprep.subr.bf16.mxu0 0
    %5252 = vmatpush1.bf16.msra.mxu0 0
    %5253 = vmatprep.subr.bf16.mxu0 0
    %5254 = vmatpush1.bf16.msra.mxu0 0
    %5255 = vmatprep.mubr.bf16.mxu0 0
    %5256 = vmatmul.mubr.bf16.gmra.mrb[0].mxu0 %v5221
    %v5257 = vpop.f32.mrb[0].mxu0
    %v5258 = vadd.f32 %v5202, %v5257
    %v5259 = vpop.f32.mrb[0].mxu0
    %v5260 = vpop.f32.mrb[0].mxu0
    %v5261 = vadd.f32 %v5205, %v5260
    %v5262 = vpop.f32.mrb[0].mxu0
    %5263 = vdwg.mxu0
    %5264 = vrot.lane.b32.xlu0 %v4884, 64
    %v5265 = vpop.permute.xlu0 %5264
    %5266 = vrot.lane.b32.xlu0 %v4885, 64
    %v5267 = vpop.permute.xlu0 %5266
    %v5269 = vsel %vm471, %v5265, 0
    %v5272 = vsel %vm471, %v5267, 0
    %5274 = vmatprep.subr.bf16.mxu0 0
    %5275 = vmatpush1.bf16.xpose.msra.mxu0 %v5272
    %5276 = vmatprep.subr.bf16.mxu0 0
    %5277 = vmatpush1.bf16.xpose.msra.mxu0 0
    %5278 = vmatprep.subr.bf16.mxu0 0
    %5279 = vmatpush1.bf16.xpose.msra.mxu0 0
    %5280 = vmatprep.subr.bf16.mxu0 0
    %5281 = vmatpush1.bf16.xpose.msra.mxu0 0
    %5282 = vmatprep.subr.bf16.mxu0 0
    %5283 = vmatpush1.bf16.xpose.msra.mxu0 0
    %5284 = vmatprep.subr.bf16.mxu0 0
    %5285 = vmatpush1.bf16.xpose.msra.mxu0 0
    %5286 = vmatprep.subr.bf16.mxu0 0
    %5287 = vmatpush1.bf16.xpose.msra.mxu0 0
    %5288 = vmatprep.subr.bf16.mxu0 0
    %5289 = vmatpush1.bf16.xpose.msra.mxu0 0
    %5290 = vmatprep.subr.bf16.mxu0 0
    %5291 = vmatpush1.bf16.xpose.msra.mxu0 0
    %5292 = vmatprep.subr.bf16.mxu0 0
    %5293 = vmatpush1.bf16.xpose.msra.mxu0 0
    %5294 = vmatprep.subr.bf16.mxu0 0
    %5295 = vmatpush1.bf16.xpose.msra.mxu0 0
    %5296 = vmatprep.subr.bf16.mxu0 0
    %5297 = vmatpush1.bf16.xpose.msra.mxu0 0
    %5298 = vmatprep.subr.bf16.mxu0 0
    %5299 = vmatpush1.bf16.xpose.msra.mxu0 0
    %5300 = vmatprep.subr.bf16.mxu0 0
    %5301 = vmatpush1.bf16.xpose.msra.mxu0 0
    %5302 = vmatprep.subr.bf16.mxu0 0
    %5303 = vmatpush1.bf16.xpose.msra.mxu0 0
    %5304 = vmatprep.subr.bf16.mxu0 0
    %5305 = vmatpush1.bf16.xpose.msra.mxu0 0
    %5306 = vmatprep.mubr.bf16.mxu0 0
    %5307 = vmatmul.mubr.bf16.gmra.mrb[0].mxu0 %v5269
    %v5308 = vpop.f32.mrb[0].mxu0
    %v5309 = vadd.f32 0.0, %v5308
    %v5310 = vpop.f32.mrb[0].mxu0
    %v5311 = vpop.f32.mrb[0].mxu0
    %v5312 = vadd.f32 0.0, %v5311
    %v5313 = vpop.f32.mrb[0].mxu0
    %5314 = vdwg.mxu0
    %v5315 = vmul.f32 %v5309, 0.17677669
    %v5316 = vmul.f32 %v5312, 0.17677669
    %v5317 = vadd.f32 %v5315, %v188
    %v5318 = vadd.f32 %v5316, %v189
    %v5319 = vsel %vm523, %v5317, -inf
    %5320 = vmax.xlane.f32.xlu0 %v5319
    %v5321 = vpop.xlane.xlu0 %5320
    %v5322 = vsel %vm523, %v5318, -inf
    %5323 = vmax.xlane.f32.xlu0 %v5322
    %v5324 = vpop.xlane.xlu0 %5323
    %v5325 = vsub.f32 %v5317, %v5321
    %v5326 = vsub.f32 %v5318, %v5324
    %v5327 = vmul.f32 %v5325, 1.442695
    %v5328 = vpow.pop %v5327
    %v5329 = vmul.f32 %v5326, 1.442695
    %v5330 = vpow.pop %v5329
    %v5331 = vsel %vm523, %v5328, 0.0
    %5332 = vadd.xlane.f32.xlu0 %v5331
    %v5333 = vpop.xlane.xlu0 %5332
    %v5334 = vsel %vm523, %v5330, 0.0
    %5335 = vadd.xlane.f32.xlu0 %v5334
    %v5336 = vpop.xlane.xlu0 %5335
    %v5337 = vrcp.pop %v5333
    %v5338 = vrcp.pop %v5336
    %v5339 = vmul.f32 %v5328, %v5337
    %v5340 = vmul.f32 %v5330, %v5338
    %v5341 = vpack.c.bf16 %v5340, %v5339
    %5342 = vrot.lane.b32.xlu0 %v4886, 64
    %v5343 = vpop.permute.xlu0 %5342
    %v5346 = vsel %vm523, %v5341, 0
    %5348 = vmatprep.subr.bf16.mxu0 0
    %5349 = vmatpush1.bf16.msra.mxu0 %v5343
    %5350 = vmatprep.subr.bf16.mxu0 0
    %5351 = vmatpush1.bf16.msra.mxu0 0
    %5352 = vmatprep.subr.bf16.mxu0 0
    %5353 = vmatpush1.bf16.msra.mxu0 0
    %5354 = vmatprep.subr.bf16.mxu0 0
    %5355 = vmatpush1.bf16.msra.mxu0 0
    %5356 = vmatprep.subr.bf16.mxu0 0
    %5357 = vmatpush1.bf16.msra.mxu0 0
    %5358 = vmatprep.subr.bf16.mxu0 0
    %5359 = vmatpush1.bf16.msra.mxu0 0
    %5360 = vmatprep.subr.bf16.mxu0 0
    %5361 = vmatpush1.bf16.msra.mxu0 0
    %5362 = vmatprep.subr.bf16.mxu0 0
    %5363 = vmatpush1.bf16.msra.mxu0 0
    %5364 = vmatprep.subr.bf16.mxu0 0
    %5365 = vmatpush1.bf16.msra.mxu0 0
    %5366 = vmatprep.subr.bf16.mxu0 0
    %5367 = vmatpush1.bf16.msra.mxu0 0
    %5368 = vmatprep.subr.bf16.mxu0 0
    %5369 = vmatpush1.bf16.msra.mxu0 0
    %5370 = vmatprep.subr.bf16.mxu0 0
    %5371 = vmatpush1.bf16.msra.mxu0 0
    %5372 = vmatprep.subr.bf16.mxu0 0
    %5373 = vmatpush1.bf16.msra.mxu0 0
    %5374 = vmatprep.subr.bf16.mxu0 0
    %5375 = vmatpush1.bf16.msra.mxu0 0
    %5376 = vmatprep.subr.bf16.mxu0 0
    %5377 = vmatpush1.bf16.msra.mxu0 0
    %5378 = vmatprep.subr.bf16.mxu0 0
    %5379 = vmatpush1.bf16.msra.mxu0 0
    %5380 = vmatprep.mubr.bf16.mxu0 0
    %5381 = vmatmul.mubr.bf16.gmra.mrb[0].mxu0 %v5346
    %v5382 = vpop.f32.mrb[0].mxu0
    %v5383 = vadd.f32 0.0, %v5382
    %v5384 = vpop.f32.mrb[0].mxu0
    %v5385 = vpop.f32.mrb[0].mxu0
    %v5386 = vadd.f32 0.0, %v5385
    %v5387 = vpop.f32.mrb[0].mxu0
    %5388 = vdwg.mxu0
    %v5389 = vpack.c.bf16 %v5386, %v5383
    %v5394 = vunpack.c.l.b16 %v4896
    %v5395 = vunpack.c.l.b16 %v4897
    %v5396 = vunpack.c.l.b16 %v4898
    %v5397 = vunpack.c.l.b16 %v4899
    %v5398 = vpack.c.b16 %v5395, %v5394
    %v5399 = vpack.c.b16 %v5397, %v5396
    %v5403 = vsel %vm471, %v5389, 0
    %5405 = vmatprep.subr.bf16.mxu0 0
    %5406 = vmatpush1.bf16.msra.mxu0 %v5398
    %5407 = vmatprep.subr.bf16.mxu0 0
    %5408 = vmatpush1.bf16.msra.mxu0 %v5399
    %5409 = vmatprep.subr.bf16.mxu0 0
    %5410 = vmatpush1.bf16.msra.mxu0 0
    %5411 = vmatprep.subr.bf16.mxu0 0
    %5412 = vmatpush1.bf16.msra.mxu0 0
    %5413 = vmatprep.subr.bf16.mxu0 0
    %5414 = vmatpush1.bf16.msra.mxu0 0
    %5415 = vmatprep.subr.bf16.mxu0 0
    %5416 = vmatpush1.bf16.msra.mxu0 0
    %5417 = vmatprep.subr.bf16.mxu0 0
    %5418 = vmatpush1.bf16.msra.mxu0 0
    %5419 = vmatprep.subr.bf16.mxu0 0
    %5420 = vmatpush1.bf16.msra.mxu0 0
    %5421 = vmatprep.subr.bf16.mxu0 0
    %5422 = vmatpush1.bf16.msra.mxu0 0
    %5423 = vmatprep.subr.bf16.mxu0 0
    %5424 = vmatpush1.bf16.msra.mxu0 0
    %5425 = vmatprep.subr.bf16.mxu0 0
    %5426 = vmatpush1.bf16.msra.mxu0 0
    %5427 = vmatprep.subr.bf16.mxu0 0
    %5428 = vmatpush1.bf16.msra.mxu0 0
    %5429 = vmatprep.subr.bf16.mxu0 0
    %5430 = vmatpush1.bf16.msra.mxu0 0
    %5431 = vmatprep.subr.bf16.mxu0 0
    %5432 = vmatpush1.bf16.msra.mxu0 0
    %5433 = vmatprep.subr.bf16.mxu0 0
    %5434 = vmatpush1.bf16.msra.mxu0 0
    %5435 = vmatprep.subr.bf16.mxu0 0
    %5436 = vmatpush1.bf16.msra.mxu0 0
    %5437 = vmatprep.mubr.bf16.mxu0 0
    %5438 = vmatmul.mubr.bf16.gmra.mrb[0].mxu0 %v5403
    %v5439 = vpop.f32.mrb[0].mxu0
    %v5440 = vadd.f32 0.0, %v5439
    %v5441 = vpop.f32.mrb[0].mxu0
    %v5442 = vpop.f32.mrb[0].mxu0
    %v5443 = vadd.f32 0.0, %v5442
    %v5444 = vpop.f32.mrb[0].mxu0
    %5445 = vdwg.mxu0
    %v5446 = vadd.f32 %v5258, %v5440
    %v5447 = vadd.f32 %v5261, %v5443
    %5448 = vrot.lane.b32.xlu0 %v4884, 32
    %v5449 = vpop.permute.xlu0 %5448
    %5450 = vrot.lane.b32.xlu0 %v4885, 32
    %v5451 = vpop.permute.xlu0 %5450
    %v5453 = vsel %vm471, %v5449, 0
    %v5456 = vsel %vm471, %v5451, 0
    %5458 = vmatprep.subr.bf16.mxu0 0
    %5459 = vmatpush1.bf16.xpose.msra.mxu0 %v5456
    %5460 = vmatprep.subr.bf16.mxu0 0
    %5461 = vmatpush1.bf16.xpose.msra.mxu0 0
    %5462 = vmatprep.subr.bf16.mxu0 0
    %5463 = vmatpush1.bf16.xpose.msra.mxu0 0
    %5464 = vmatprep.subr.bf16.mxu0 0
    %5465 = vmatpush1.bf16.xpose.msra.mxu0 0
    %5466 = vmatprep.subr.bf16.mxu0 0
    %5467 = vmatpush1.bf16.xpose.msra.mxu0 0
    %5468 = vmatprep.subr.bf16.mxu0 0
    %5469 = vmatpush1.bf16.xpose.msra.mxu0 0
    %5470 = vmatprep.subr.bf16.mxu0 0
    %5471 = vmatpush1.bf16.xpose.msra.mxu0 0
    %5472 = vmatprep.subr.bf16.mxu0 0
    %5473 = vmatpush1.bf16.xpose.msra.mxu0 0
    %5474 = vmatprep.subr.bf16.mxu0 0
    %5475 = vmatpush1.bf16.xpose.msra.mxu0 0
    %5476 = vmatprep.subr.bf16.mxu0 0
    %5477 = vmatpush1.bf16.xpose.msra.mxu0 0
    %5478 = vmatprep.subr.bf16.mxu0 0
    %5479 = vmatpush1.bf16.xpose.msra.mxu0 0
    %5480 = vmatprep.subr.bf16.mxu0 0
    %5481 = vmatpush1.bf16.xpose.msra.mxu0 0
    %5482 = vmatprep.subr.bf16.mxu0 0
    %5483 = vmatpush1.bf16.xpose.msra.mxu0 0
    %5484 = vmatprep.subr.bf16.mxu0 0
    %5485 = vmatpush1.bf16.xpose.msra.mxu0 0
    %5486 = vmatprep.subr.bf16.mxu0 0
    %5487 = vmatpush1.bf16.xpose.msra.mxu0 0
    %5488 = vmatprep.subr.bf16.mxu0 0
    %5489 = vmatpush1.bf16.xpose.msra.mxu0 0
    %5490 = vmatprep.mubr.bf16.mxu0 0
    %5491 = vmatmul.mubr.bf16.gmra.mrb[0].mxu0 %v5453
    %v5492 = vpop.f32.mrb[0].mxu0
    %v5493 = vadd.f32 0.0, %v5492
    %v5494 = vpop.f32.mrb[0].mxu0
    %v5495 = vpop.f32.mrb[0].mxu0
    %v5496 = vadd.f32 0.0, %v5495
    %v5497 = vpop.f32.mrb[0].mxu0
    %5498 = vdwg.mxu0
    %v5499 = vmul.f32 %v5493, 0.17677669
    %v5500 = vmul.f32 %v5496, 0.17677669
    %v5501 = vadd.f32 %v5499, %v188
    %v5502 = vadd.f32 %v5500, %v189
    %v5503 = vsel %vm523, %v5501, -inf
    %5504 = vmax.xlane.f32.xlu0 %v5503
    %v5505 = vpop.xlane.xlu0 %5504
    %v5506 = vsel %vm523, %v5502, -inf
    %5507 = vmax.xlane.f32.xlu0 %v5506
    %v5508 = vpop.xlane.xlu0 %5507
    %v5509 = vsub.f32 %v5501, %v5505
    %v5510 = vsub.f32 %v5502, %v5508
    %v5511 = vmul.f32 %v5509, 1.442695
    %v5512 = vpow.pop %v5511
    %v5513 = vmul.f32 %v5510, 1.442695
    %v5514 = vpow.pop %v5513
    %v5515 = vsel %vm523, %v5512, 0.0
    %5516 = vadd.xlane.f32.xlu0 %v5515
    %v5517 = vpop.xlane.xlu0 %5516
    %v5518 = vsel %vm523, %v5514, 0.0
    %5519 = vadd.xlane.f32.xlu0 %v5518
    %v5520 = vpop.xlane.xlu0 %5519
    %v5521 = vrcp.pop %v5517
    %v5522 = vrcp.pop %v5520
    %v5523 = vmul.f32 %v5512, %v5521
    %v5524 = vmul.f32 %v5514, %v5522
    %v5525 = vpack.c.bf16 %v5524, %v5523
    %5526 = vrot.lane.b32.xlu0 %v4886, 32
    %v5527 = vpop.permute.xlu0 %5526
    %v5530 = vsel %vm523, %v5525, 0
    %5532 = vmatprep.subr.bf16.mxu0 0
    %5533 = vmatpush1.bf16.msra.mxu0 %v5527
    %5534 = vmatprep.subr.bf16.mxu0 0
    %5535 = vmatpush1.bf16.msra.mxu0 0
    %5536 = vmatprep.subr.bf16.mxu0 0
    %5537 = vmatpush1.bf16.msra.mxu0 0
    %5538 = vmatprep.subr.bf16.mxu0 0
    %5539 = vmatpush1.bf16.msra.mxu0 0
    %5540 = vmatprep.subr.bf16.mxu0 0
    %5541 = vmatpush1.bf16.msra.mxu0 0
    %5542 = vmatprep.subr.bf16.mxu0 0
    %5543 = vmatpush1.bf16.msra.mxu0 0
    %5544 = vmatprep.subr.bf16.mxu0 0
    %5545 = vmatpush1.bf16.msra.mxu0 0
    %5546 = vmatprep.subr.bf16.mxu0 0
    %5547 = vmatpush1.bf16.msra.mxu0 0
    %5548 = vmatprep.subr.bf16.mxu0 0
    %5549 = vmatpush1.bf16.msra.mxu0 0
    %5550 = vmatprep.subr.bf16.mxu0 0
    %5551 = vmatpush1.bf16.msra.mxu0 0
    %5552 = vmatprep.subr.bf16.mxu0 0
    %5553 = vmatpush1.bf16.msra.mxu0 0
    %5554 = vmatprep.subr.bf16.mxu0 0
    %5555 = vmatpush1.bf16.msra.mxu0 0
    %5556 = vmatprep.subr.bf16.mxu0 0
    %5557 = vmatpush1.bf16.msra.mxu0 0
    %5558 = vmatprep.subr.bf16.mxu0 0
    %5559 = vmatpush1.bf16.msra.mxu0 0
    %5560 = vmatprep.subr.bf16.mxu0 0
    %5561 = vmatpush1.bf16.msra.mxu0 0
    %5562 = vmatprep.subr.bf16.mxu0 0
    %5563 = vmatpush1.bf16.msra.mxu0 0
    %5564 = vmatprep.mubr.bf16.mxu0 0
    %5565 = vmatmul.mubr.bf16.gmra.mrb[0].mxu0 %v5530
    %v5566 = vpop.f32.mrb[0].mxu0
    %v5567 = vadd.f32 0.0, %v5566
    %v5568 = vpop.f32.mrb[0].mxu0
    %v5569 = vpop.f32.mrb[0].mxu0
    %v5570 = vadd.f32 0.0, %v5569
    %v5571 = vpop.f32.mrb[0].mxu0
    %5572 = vdwg.mxu0
    %v5573 = vpack.c.bf16 %v5570, %v5567
    %v5578 = vunpack.c.l.b16 %v4900
    %v5579 = vunpack.c.l.b16 %v4901
    %v5580 = vunpack.c.l.b16 %v4902
    %v5581 = vunpack.c.l.b16 %v4903
    %v5582 = vpack.c.b16 %v5579, %v5578
    %v5583 = vpack.c.b16 %v5581, %v5580
    %v5587 = vsel %vm471, %v5573, 0
    %5589 = vmatprep.subr.bf16.mxu0 0
    %5590 = vmatpush1.bf16.msra.mxu0 %v5582
    %5591 = vmatprep.subr.bf16.mxu0 0
    %5592 = vmatpush1.bf16.msra.mxu0 %v5583
    %5593 = vmatprep.subr.bf16.mxu0 0
    %5594 = vmatpush1.bf16.msra.mxu0 0
    %5595 = vmatprep.subr.bf16.mxu0 0
    %5596 = vmatpush1.bf16.msra.mxu0 0
    %5597 = vmatprep.subr.bf16.mxu0 0
    %5598 = vmatpush1.bf16.msra.mxu0 0
    %5599 = vmatprep.subr.bf16.mxu0 0
    %5600 = vmatpush1.bf16.msra.mxu0 0
    %5601 = vmatprep.subr.bf16.mxu0 0
    %5602 = vmatpush1.bf16.msra.mxu0 0
    %5603 = vmatprep.subr.bf16.mxu0 0
    %5604 = vmatpush1.bf16.msra.mxu0 0
    %5605 = vmatprep.subr.bf16.mxu0 0
    %5606 = vmatpush1.bf16.msra.mxu0 0
    %5607 = vmatprep.subr.bf16.mxu0 0
    %5608 = vmatpush1.bf16.msra.mxu0 0
    %5609 = vmatprep.subr.bf16.mxu0 0
    %5610 = vmatpush1.bf16.msra.mxu0 0
    %5611 = vmatprep.subr.bf16.mxu0 0
    %5612 = vmatpush1.bf16.msra.mxu0 0
    %5613 = vmatprep.subr.bf16.mxu0 0
    %5614 = vmatpush1.bf16.msra.mxu0 0
    %5615 = vmatprep.subr.bf16.mxu0 0
    %5616 = vmatpush1.bf16.msra.mxu0 0
    %5617 = vmatprep.subr.bf16.mxu0 0
    %5618 = vmatpush1.bf16.msra.mxu0 0
    %5619 = vmatprep.subr.bf16.mxu0 0
    %5620 = vmatpush1.bf16.msra.mxu0 0
    %5621 = vmatprep.mubr.bf16.mxu0 0
    %5622 = vmatmul.mubr.bf16.gmra.mrb[0].mxu0 %v5587
    %v5623 = vpop.f32.mrb[0].mxu0
    %v5624 = vadd.f32 0.0, %v5623
    %v5625 = vpop.f32.mrb[0].mxu0
    %v5626 = vpop.f32.mrb[0].mxu0
    %v5627 = vadd.f32 0.0, %v5626
    %v5628 = vpop.f32.mrb[0].mxu0
    %5629 = vdwg.mxu0
    %v5630 = vadd.f32 %v5446, %v5624
    %v5631 = vadd.f32 %v5447, %v5627
    %s5632 = scalar_lea.vmem %s7, 3
    %v5633 = vld [vmem:[%s5632] sm:$0x1]
    %v5635 = vlaneseq
    %v5636 = vshrl.u32 %v5635, 7
    %v5637 = vsub.s32 0, %v5636
    %v5638 = vrot.slane %v5633, %v5637
    %v5640 = vadd.f32 %v5630, %v5638
    %v5641 = vadd.f32 %v5631, %v5638
    %v5642 = vadd.f32 %v5640, %v4618
    %v5643 = vadd.f32 %v5641, %v4619
    %s5644 = scalar_lea.vmem %s8, 3
    %v5645 = vld [vmem:[%s5644] sm:$0x1]
    %s5646 = scalar_lea.vmem %s9, 3
    %v5647 = vld [vmem:[%s5646] sm:$0x1]
    %5648 = vadd.xlane.f32.xlu0 %v5642
    %v5649 = vpop.xlane.xlu0 %5648
    %5650 = vadd.xlane.f32.xlu0 %v5643
    %v5651 = vpop.xlane.xlu0 %5650
    %v5652 = vmul.f32 %v5649, %v123
    %v5653 = vmul.f32 %v5651, %v123
    %v5654 = vsub.f32 %v5642, %v5652
    %v5655 = vsub.f32 %v5643, %v5653
    %v5656 = vmul.f32 %v5654, %v5654
    %v5657 = vmul.f32 %v5655, %v5655
    %5658 = vadd.xlane.f32.xlu0 %v5656
    %v5659 = vpop.xlane.xlu0 %5658
    %5660 = vadd.xlane.f32.xlu0 %v5657
    %v5661 = vpop.xlane.xlu0 %5660
    %v5662 = vmul.f32 %v5659, %v123
    %v5663 = vmul.f32 %v5661, %v123
    %v5664 = vadd.f32 %v5662, 1e-12
    %v5665 = vadd.f32 %v5663, 1e-12
    %v5666 = vrsqrt.pop %v5664
    %v5667 = vrsqrt.pop %v5665
    %v5668 = vmul.f32 %v5654, %v5666
    %v5669 = vmul.f32 %v5655, %v5667
    %v5671 = vlaneseq
    %v5672 = vshrl.u32 %v5671, 7
    %v5673 = vsub.s32 0, %v5672
    %v5674 = vrot.slane %v5645, %v5673
    %v5676 = vmul.f32 %v5668, %v5674
    %v5677 = vmul.f32 %v5669, %v5674
    %v5679 = vlaneseq
    %v5680 = vshrl.u32 %v5679, 7
    %v5681 = vsub.s32 0, %v5680
    %v5682 = vrot.slane %v5647, %v5681
    %v5684 = vadd.f32 %v5676, %v5682
    %v5685 = vadd.f32 %v5677, %v5682
    %v5686 = vpack.c.bf16 %v5685, %v5684
    %s5687 = scalar_lea.vmem [#allocation6], 384
    %v5688 = vld [vmem:[%s5687] sm:$0xff]
    %v5689 = vld [vmem:[%s5687 + $0x8] sm:$0xff]
    %v5690 = vld [vmem:[%s5687 + $0x10] sm:$0xff]
    %v5691 = vld [vmem:[%s5687 + $0x18] sm:$0xff]
    %v5692 = vld [vmem:[%s5687 + $0x20] sm:$0xff]
    %v5693 = vld [vmem:[%s5687 + $0x28] sm:$0xff]
    %v5694 = vld [vmem:[%s5687 + $0x30] sm:$0xff]
    %v5695 = vld [vmem:[%s5687 + $0x38] sm:$0xff]
    %v5696 = vld [vmem:[%s5687 + $0x40] sm:$0xff]
    %v5697 = vld [vmem:[%s5687 + $0x48] sm:$0xff]
    %v5698 = vld [vmem:[%s5687 + $0x50] sm:$0xff]
    %v5699 = vld [vmem:[%s5687 + $0x58] sm:$0xff]
    %v5700 = vld [vmem:[%s5687 + $0x60] sm:$0xff]
    %v5701 = vld [vmem:[%s5687 + $0x68] sm:$0xff]
    %v5702 = vld [vmem:[%s5687 + $0x70] sm:$0xff]
    %v5703 = vld [vmem:[%s5687 + $0x78] sm:$0xff]
    %s5704 = scalar_lea.vmem %s11, 6
    %v5705 = vld [vmem:[%s5704] sm:$0x3]
    %v5707 = vlaneseq
    %v5708 = vshrl.u32 %v5707, 7
    %v5709 = vsub.s32 0, %v5708
    %v5710 = vrot.slane %v5705, %v5709
    %v5711 = vlaneseq
    %v5712 = vshrl.u32 %v5711, 7
    %v5713 = vsub.s32 1, %v5712
    %v5714 = vrot.slane %v5705, %v5713
    %v5733 = vunpack.c.l.b16 %v5688
    %v5734 = vunpack.c.h.b16 %v5688
    %v5735 = vunpack.c.l.b16 %v5689
    %v5736 = vunpack.c.h.b16 %v5689
    %v5737 = vunpack.c.l.b16 %v5690
    %v5738 = vunpack.c.h.b16 %v5690
    %v5739 = vunpack.c.l.b16 %v5691
    %v5740 = vunpack.c.h.b16 %v5691
    %v5741 = vunpack.c.l.b16 %v5692
    %v5742 = vunpack.c.h.b16 %v5692
    %v5743 = vunpack.c.l.b16 %v5693
    %v5744 = vunpack.c.h.b16 %v5693
    %v5745 = vunpack.c.l.b16 %v5694
    %v5746 = vunpack.c.h.b16 %v5694
    %v5747 = vunpack.c.l.b16 %v5695
    %v5748 = vunpack.c.h.b16 %v5695
    %v5749 = vunpack.c.l.b16 %v5696
    %v5750 = vunpack.c.h.b16 %v5696
    %v5751 = vunpack.c.l.b16 %v5697
    %v5752 = vunpack.c.h.b16 %v5697
    %v5753 = vunpack.c.l.b16 %v5698
    %v5754 = vunpack.c.h.b16 %v5698
    %v5755 = vunpack.c.l.b16 %v5699
    %v5756 = vunpack.c.h.b16 %v5699
    %v5757 = vunpack.c.l.b16 %v5700
    %v5758 = vunpack.c.h.b16 %v5700
    %v5759 = vunpack.c.l.b16 %v5701
    %v5760 = vunpack.c.h.b16 %v5701
    %v5761 = vunpack.c.l.b16 %v5702
    %v5762 = vunpack.c.h.b16 %v5702
    %v5763 = vunpack.c.l.b16 %v5703
    %v5764 = vunpack.c.h.b16 %v5703
    %v5765 = vpack.c.b16 %v5735, %v5733
    %v5766 = vpack.c.b16 %v5736, %v5734
    %v5767 = vpack.c.b16 %v5739, %v5737
    %v5768 = vpack.c.b16 %v5740, %v5738
    %v5769 = vpack.c.b16 %v5743, %v5741
    %v5770 = vpack.c.b16 %v5744, %v5742
    %v5771 = vpack.c.b16 %v5747, %v5745
    %v5772 = vpack.c.b16 %v5748, %v5746
    %v5773 = vpack.c.b16 %v5751, %v5749
    %v5774 = vpack.c.b16 %v5752, %v5750
    %v5775 = vpack.c.b16 %v5755, %v5753
    %v5776 = vpack.c.b16 %v5756, %v5754
    %v5777 = vpack.c.b16 %v5759, %v5757
    %v5778 = vpack.c.b16 %v5760, %v5758
    %v5779 = vpack.c.b16 %v5763, %v5761
    %v5780 = vpack.c.b16 %v5764, %v5762
    %5797 = vmatprep.subr.bf16.mxu0 %v5766
    %5798 = vmatpush1.bf16.msra.mxu0 %v5765
    %5799 = vmatprep.subr.bf16.mxu0 %v5768
    %5800 = vmatpush1.bf16.msra.mxu0 %v5767
    %5801 = vmatprep.subr.bf16.mxu0 %v5770
    %5802 = vmatpush1.bf16.msra.mxu0 %v5769
    %5803 = vmatprep.subr.bf16.mxu0 %v5772
    %5804 = vmatpush1.bf16.msra.mxu0 %v5771
    %5805 = vmatprep.subr.bf16.mxu0 %v5774
    %5806 = vmatpush1.bf16.msra.mxu0 %v5773
    %5807 = vmatprep.subr.bf16.mxu0 %v5776
    %5808 = vmatpush1.bf16.msra.mxu0 %v5775
    %5809 = vmatprep.subr.bf16.mxu0 %v5778
    %5810 = vmatpush1.bf16.msra.mxu0 %v5777
    %5811 = vmatprep.subr.bf16.mxu0 %v5780
    %5812 = vmatpush1.bf16.msra.mxu0 %v5779
    %5813 = vmatprep.subr.bf16.mxu0 0
    %5814 = vmatpush1.bf16.msra.mxu0 0
    %5815 = vmatprep.subr.bf16.mxu0 0
    %5816 = vmatpush1.bf16.msra.mxu0 0
    %5817 = vmatprep.subr.bf16.mxu0 0
    %5818 = vmatpush1.bf16.msra.mxu0 0
    %5819 = vmatprep.subr.bf16.mxu0 0
    %5820 = vmatpush1.bf16.msra.mxu0 0
    %5821 = vmatprep.subr.bf16.mxu0 0
    %5822 = vmatpush1.bf16.msra.mxu0 0
    %5823 = vmatprep.subr.bf16.mxu0 0
    %5824 = vmatpush1.bf16.msra.mxu0 0
    %5825 = vmatprep.subr.bf16.mxu0 0
    %5826 = vmatpush1.bf16.msra.mxu0 0
    %5827 = vmatprep.subr.bf16.mxu0 0
    %5828 = vmatpush1.bf16.msra.mxu0 0
    %5829 = vmatprep.mubr.bf16.mxu0 0
    %5830 = vmatmul.mubr.bf16.gmra.mrb[0].mxu0 %v5686
    %v5831 = vpop.f32.mrb[0].mxu0
    %v5832 = vadd.f32 %v5710, %v5831
    %v5833 = vpop.f32.mrb[0].mxu0
    %v5834 = vadd.f32 %v5714, %v5833
    %v5835 = vpop.f32.mrb[0].mxu0
    %v5836 = vadd.f32 %v5710, %v5835
    %v5837 = vpop.f32.mrb[0].mxu0
    %v5838 = vadd.f32 %v5714, %v5837
    %5839 = vdwg.mxu0
    %v5840 = vmul.f32 %v5832, %v5832
    %v5841 = vmul.f32 %v5834, %v5834
    %v5842 = vmul.f32 %v5836, %v5836
    %v5843 = vmul.f32 %v5838, %v5838
    %v5844 = vmul.f32 %v5832, %v5840
    %v5845 = vmul.f32 %v5834, %v5841
    %v5846 = vmul.f32 %v5836, %v5842
    %v5847 = vmul.f32 %v5838, %v5843
    %v5848 = vmul.f32 %v5844, 0.044715
    %v5849 = vmul.f32 %v5845, 0.044715
    %v5850 = vmul.f32 %v5846, 0.044715
    %v5851 = vmul.f32 %v5847, 0.044715
    %v5852 = vadd.f32 %v5832, %v5848
    %v5853 = vadd.f32 %v5834, %v5849
    %v5854 = vadd.f32 %v5836, %v5850
    %v5855 = vadd.f32 %v5838, %v5851
    %v5856 = vmul.f32 %v5852, 0.7978846
    %v5857 = vmul.f32 %v5853, 0.7978846
    %v5858 = vmul.f32 %v5854, 0.7978846
    %v5859 = vmul.f32 %v5855, 0.7978846
    %v5860 = vtanh.pop %v5856
    %v5861 = vtanh.pop %v5857
    %v5862 = vtanh.pop %v5858
    %v5863 = vtanh.pop %v5859
    %v5864 = vadd.f32 %v5860, 1.0
    %v5865 = vadd.f32 %v5861, 1.0
    %v5866 = vadd.f32 %v5862, 1.0
    %v5867 = vadd.f32 %v5863, 1.0
    %v5868 = vmul.f32 %v5864, 0.5
    %v5869 = vmul.f32 %v5865, 0.5
    %v5870 = vmul.f32 %v5866, 0.5
    %v5871 = vmul.f32 %v5867, 0.5
    %v5872 = vmul.f32 %v5832, %v5868
    %v5873 = vmul.f32 %v5834, %v5869
    %v5874 = vmul.f32 %v5836, %v5870
    %v5875 = vmul.f32 %v5838, %v5871
    %v5876 = vpack.c.bf16 %v5874, %v5872
    %v5877 = vpack.c.bf16 %v5875, %v5873
    %s5878 = scalar_lea.vmem [#allocation7], 384
    %v5879 = vld [vmem:[%s5878] sm:$0xf]
    %v5880 = vld [vmem:[%s5878 + $0x4] sm:$0xf]
    %v5881 = vld [vmem:[%s5878 + $0x8] sm:$0xf]
    %v5882 = vld [vmem:[%s5878 + $0xc] sm:$0xf]
    %v5883 = vld [vmem:[%s5878 + $0x10] sm:$0xf]
    %v5884 = vld [vmem:[%s5878 + $0x14] sm:$0xf]
    %v5885 = vld [vmem:[%s5878 + $0x18] sm:$0xf]
    %v5886 = vld [vmem:[%s5878 + $0x1c] sm:$0xf]
    %v5887 = vld [vmem:[%s5878 + $0x20] sm:$0xf]
    %v5888 = vld [vmem:[%s5878 + $0x24] sm:$0xf]
    %v5889 = vld [vmem:[%s5878 + $0x28] sm:$0xf]
    %v5890 = vld [vmem:[%s5878 + $0x2c] sm:$0xf]
    %v5891 = vld [vmem:[%s5878 + $0x30] sm:$0xf]
    %v5892 = vld [vmem:[%s5878 + $0x34] sm:$0xf]
    %v5893 = vld [vmem:[%s5878 + $0x38] sm:$0xf]
    %v5894 = vld [vmem:[%s5878 + $0x3c] sm:$0xf]
    %v5895 = vld [vmem:[%s5878 + $0x40] sm:$0xf]
    %v5896 = vld [vmem:[%s5878 + $0x44] sm:$0xf]
    %v5897 = vld [vmem:[%s5878 + $0x48] sm:$0xf]
    %v5898 = vld [vmem:[%s5878 + $0x4c] sm:$0xf]
    %v5899 = vld [vmem:[%s5878 + $0x50] sm:$0xf]
    %v5900 = vld [vmem:[%s5878 + $0x54] sm:$0xf]
    %v5901 = vld [vmem:[%s5878 + $0x58] sm:$0xf]
    %v5902 = vld [vmem:[%s5878 + $0x5c] sm:$0xf]
    %v5903 = vld [vmem:[%s5878 + $0x60] sm:$0xf]
    %v5904 = vld [vmem:[%s5878 + $0x64] sm:$0xf]
    %v5905 = vld [vmem:[%s5878 + $0x68] sm:$0xf]
    %v5906 = vld [vmem:[%s5878 + $0x6c] sm:$0xf]
    %v5907 = vld [vmem:[%s5878 + $0x70] sm:$0xf]
    %v5908 = vld [vmem:[%s5878 + $0x74] sm:$0xf]
    %v5909 = vld [vmem:[%s5878 + $0x78] sm:$0xf]
    %v5910 = vld [vmem:[%s5878 + $0x7c] sm:$0xf]
    %s5911 = scalar_lea.vmem %s13, 3
    %v5912 = vld [vmem:[%s5911] sm:$0x1]
    %v5914 = vlaneseq
    %v5915 = vshrl.u32 %v5914, 7
    %v5916 = vsub.s32 0, %v5915
    %v5917 = vrot.slane %v5912, %v5916
    %v5951 = vunpack.c.l.b16 %v5879
    %v5952 = vunpack.c.l.b16 %v5880
    %v5953 = vunpack.c.l.b16 %v5881
    %v5954 = vunpack.c.l.b16 %v5882
    %v5955 = vunpack.c.l.b16 %v5883
    %v5956 = vunpack.c.l.b16 %v5884
    %v5957 = vunpack.c.l.b16 %v5885
    %v5958 = vunpack.c.l.b16 %v5886
    %v5959 = vunpack.c.l.b16 %v5887
    %v5960 = vunpack.c.l.b16 %v5888
    %v5961 = vunpack.c.l.b16 %v5889
    %v5962 = vunpack.c.l.b16 %v5890
    %v5963 = vunpack.c.l.b16 %v5891
    %v5964 = vunpack.c.l.b16 %v5892
    %v5965 = vunpack.c.l.b16 %v5893
    %v5966 = vunpack.c.l.b16 %v5894
    %v5967 = vunpack.c.l.b16 %v5895
    %v5968 = vunpack.c.l.b16 %v5896
    %v5969 = vunpack.c.l.b16 %v5897
    %v5970 = vunpack.c.l.b16 %v5898
    %v5971 = vunpack.c.l.b16 %v5899
    %v5972 = vunpack.c.l.b16 %v5900
    %v5973 = vunpack.c.l.b16 %v5901
    %v5974 = vunpack.c.l.b16 %v5902
    %v5975 = vunpack.c.l.b16 %v5903
    %v5976 = vunpack.c.l.b16 %v5904
    %v5977 = vunpack.c.l.b16 %v5905
    %v5978 = vunpack.c.l.b16 %v5906
    %v5979 = vunpack.c.l.b16 %v5907
    %v5980 = vunpack.c.l.b16 %v5908
    %v5981 = vunpack.c.l.b16 %v5909
    %v5982 = vunpack.c.l.b16 %v5910
    %v5983 = vpack.c.b16 %v5952, %v5951
    %v5984 = vpack.c.b16 %v5954, %v5953
    %v5985 = vpack.c.b16 %v5956, %v5955
    %v5986 = vpack.c.b16 %v5958, %v5957
    %v5987 = vpack.c.b16 %v5960, %v5959
    %v5988 = vpack.c.b16 %v5962, %v5961
    %v5989 = vpack.c.b16 %v5964, %v5963
    %v5990 = vpack.c.b16 %v5966, %v5965
    %v5991 = vpack.c.b16 %v5968, %v5967
    %v5992 = vpack.c.b16 %v5970, %v5969
    %v5993 = vpack.c.b16 %v5972, %v5971
    %v5994 = vpack.c.b16 %v5974, %v5973
    %v5995 = vpack.c.b16 %v5976, %v5975
    %v5996 = vpack.c.b16 %v5978, %v5977
    %v5997 = vpack.c.b16 %v5980, %v5979
    %v5998 = vpack.c.b16 %v5982, %v5981
    %6015 = vmatprep.subr.bf16.mxu0 0
    %6016 = vmatpush1.bf16.msra.mxu0 %v5983
    %6017 = vmatprep.subr.bf16.mxu0 0
    %6018 = vmatpush1.bf16.msra.mxu0 %v5984
    %6019 = vmatprep.subr.bf16.mxu0 0
    %6020 = vmatpush1.bf16.msra.mxu0 %v5985
    %6021 = vmatprep.subr.bf16.mxu0 0
    %6022 = vmatpush1.bf16.msra.mxu0 %v5986
    %6023 = vmatprep.subr.bf16.mxu0 0
    %6024 = vmatpush1.bf16.msra.mxu0 %v5987
    %6025 = vmatprep.subr.bf16.mxu0 0
    %6026 = vmatpush1.bf16.msra.mxu0 %v5988
    %6027 = vmatprep.subr.bf16.mxu0 0
    %6028 = vmatpush1.bf16.msra.mxu0 %v5989
    %6029 = vmatprep.subr.bf16.mxu0 0
    %6030 = vmatpush1.bf16.msra.mxu0 %v5990
    %6031 = vmatprep.subr.bf16.mxu0 0
    %6032 = vmatpush1.bf16.msra.mxu0 %v5991
    %6033 = vmatprep.subr.bf16.mxu0 0
    %6034 = vmatpush1.bf16.msra.mxu0 %v5992
    %6035 = vmatprep.subr.bf16.mxu0 0
    %6036 = vmatpush1.bf16.msra.mxu0 %v5993
    %6037 = vmatprep.subr.bf16.mxu0 0
    %6038 = vmatpush1.bf16.msra.mxu0 %v5994
    %6039 = vmatprep.subr.bf16.mxu0 0
    %6040 = vmatpush1.bf16.msra.mxu0 %v5995
    %6041 = vmatprep.subr.bf16.mxu0 0
    %6042 = vmatpush1.bf16.msra.mxu0 %v5996
    %6043 = vmatprep.subr.bf16.mxu0 0
    %6044 = vmatpush1.bf16.msra.mxu0 %v5997
    %6045 = vmatprep.subr.bf16.mxu0 0
    %6046 = vmatpush1.bf16.msra.mxu0 %v5998
    %6047 = vmatprep.mubr.bf16.mxu0 %v5877
    %6048 = vmatmul.mubr.bf16.gmra.mrb[0].mxu0 %v5876
    %v6049 = vpop.f32.mrb[0].mxu0
    %v6050 = vadd.f32 %v5917, %v6049
    %v6051 = vpop.f32.mrb[0].mxu0
    %v6052 = vpop.f32.mrb[0].mxu0
    %v6053 = vadd.f32 %v5917, %v6052
    %v6054 = vpop.f32.mrb[0].mxu0
    %6055 = vdwg.mxu0
    %v6056 = vadd.f32 %v6050, %v5684
    %v6057 = vadd.f32 %v6053, %v5685
    %s6058 = scalar_lea.vmem %s14, 3
    %v6059 = vld [vmem:[%s6058] sm:$0x1]
    %s6060 = scalar_lea.vmem %s15, 3
    %v6061 = vld [vmem:[%s6060] sm:$0x1]
    %6062 = vadd.xlane.f32.xlu0 %v6056
    %v6063 = vpop.xlane.xlu0 %6062
    %6064 = vadd.xlane.f32.xlu0 %v6057
    %v6065 = vpop.xlane.xlu0 %6064
    %v6066 = vmul.f32 %v6063, %v123
    %v6067 = vmul.f32 %v6065, %v123
    %v6068 = vsub.f32 %v6056, %v6066
    %v6069 = vsub.f32 %v6057, %v6067
    %v6070 = vmul.f32 %v6068, %v6068
    %v6071 = vmul.f32 %v6069, %v6069
    %6072 = vadd.xlane.f32.xlu0 %v6070
    %v6073 = vpop.xlane.xlu0 %6072
    %6074 = vadd.xlane.f32.xlu0 %v6071
    %v6075 = vpop.xlane.xlu0 %6074
    %v6076 = vmul.f32 %v6073, %v123
    %v6077 = vmul.f32 %v6075, %v123
    %v6078 = vadd.f32 %v6076, 1e-12
    %v6079 = vadd.f32 %v6077, 1e-12
    %v6080 = vrsqrt.pop %v6078
    %v6081 = vrsqrt.pop %v6079
    %v6082 = vmul.f32 %v6068, %v6080
    %v6083 = vmul.f32 %v6069, %v6081
    %v6085 = vlaneseq
    %v6086 = vshrl.u32 %v6085, 7
    %v6087 = vsub.s32 0, %v6086
    %v6088 = vrot.slane %v6059, %v6087
    %v6090 = vmul.f32 %v6082, %v6088
    %v6091 = vmul.f32 %v6083, %v6088
    %v6093 = vlaneseq
    %v6094 = vshrl.u32 %v6093, 7
    %v6095 = vsub.s32 0, %v6094
    %v6096 = vrot.slane %v6061, %v6095
    %v6098 = vadd.f32 %v6090, %v6096
    %v6099 = vadd.f32 %v6091, %v6096
    %vm6100 = vcmp.eq.f32.partialorder %v164, %v177
    %v6101 = vsel %vm6100, 0.125, 0.0
    %v6102 = vpack.c.bf16 %v6101, %v6101
    %v6103 = vpack.c.bf16 %v6099, %v6098
    %v6105 = vsel %vm523, %v6102, 0
    %6107 = vmatprep.subr.bf16.mxu0 0
    %6108 = vmatpush1.bf16.msra.mxu0 %v6103
    %6109 = vmatprep.subr.bf16.mxu0 0
    %6110 = vmatpush1.bf16.msra.mxu0 0
    %6111 = vmatprep.subr.bf16.mxu0 0
    %6112 = vmatpush1.bf16.msra.mxu0 0
    %6113 = vmatprep.subr.bf16.mxu0 0
    %6114 = vmatpush1.bf16.msra.mxu0 0
    %6115 = vmatprep.subr.bf16.mxu0 0
    %6116 = vmatpush1.bf16.msra.mxu0 0
    %6117 = vmatprep.subr.bf16.mxu0 0
    %6118 = vmatpush1.bf16.msra.mxu0 0
    %6119 = vmatprep.subr.bf16.mxu0 0
    %6120 = vmatpush1.bf16.msra.mxu0 0
    %6121 = vmatprep.subr.bf16.mxu0 0
    %6122 = vmatpush1.bf16.msra.mxu0 0
    %6123 = vmatprep.subr.bf16.mxu0 0
    %6124 = vmatpush1.bf16.msra.mxu0 0
    %6125 = vmatprep.subr.bf16.mxu0 0
    %6126 = vmatpush1.bf16.msra.mxu0 0
    %6127 = vmatprep.subr.bf16.mxu0 0
    %6128 = vmatpush1.bf16.msra.mxu0 0
    %6129 = vmatprep.subr.bf16.mxu0 0
    %6130 = vmatpush1.bf16.msra.mxu0 0
    %6131 = vmatprep.subr.bf16.mxu0 0
    %6132 = vmatpush1.bf16.msra.mxu0 0
    %6133 = vmatprep.subr.bf16.mxu0 0
    %6134 = vmatpush1.bf16.msra.mxu0 0
    %6135 = vmatprep.subr.bf16.mxu0 0
    %6136 = vmatpush1.bf16.msra.mxu0 0
    %6137 = vmatprep.subr.bf16.mxu0 0
    %6138 = vmatpush1.bf16.msra.mxu0 0
    %6139 = vmatprep.mubr.bf16.mxu0 0
    %6140 = vmatmul.mubr.bf16.gmra.mrb[0].mxu0 %v6105
    %v6141 = vpop.f32.mrb[0].mxu0
    %v6142 = vadd.f32 0.0, %v6141
    %v6143 = vpop.f32.mrb[0].mxu0
    %v6144 = vpop.f32.mrb[0].mxu0
    %v6145 = vpop.f32.mrb[0].mxu0
    %6146 = vdwg.mxu0
    %v6147 = vpack.c.bf16 %v6142, %v6142
    %v6148 = vld [vmem:[%s16] sm:$0xf]
    %v6149 = vld [vmem:[%s16 + $0x4] sm:$0xf]
    %v6150 = vld [vmem:[%s16 + $0x8] sm:$0xf]
    %v6151 = vld [vmem:[%s16 + $0xc] sm:$0xf]
    %v6152 = vld [vmem:[%s16 + $0x10] sm:$0xf]
    %v6153 = vld [vmem:[%s16 + $0x14] sm:$0xf]
    %v6154 = vld [vmem:[%s16 + $0x18] sm:$0xf]
    %v6155 = vld [vmem:[%s16 + $0x1c] sm:$0xf]
    %v6156 = vld [vmem:[%s16 + $0x20] sm:$0xf]
    %v6157 = vld [vmem:[%s16 + $0x24] sm:$0xf]
    %v6158 = vld [vmem:[%s16 + $0x28] sm:$0xf]
    %v6159 = vld [vmem:[%s16 + $0x2c] sm:$0xf]
    %v6160 = vld [vmem:[%s16 + $0x30] sm:$0xf]
    %v6161 = vld [vmem:[%s16 + $0x34] sm:$0xf]
    %v6162 = vld [vmem:[%s16 + $0x38] sm:$0xf]
    %v6163 = vld [vmem:[%s16 + $0x3c] sm:$0xf]
    %v6164 = vld [vmem:[%s17] sm:$0x1]
    %v6166 = vlaneseq
    %v6167 = vshrl.u32 %v6166, 7
    %v6168 = vsub.s32 0, %v6167
    %v6169 = vrot.slane %v6164, %v6168
    %v6187 = vunpack.c.l.b16 %v6148
    %v6188 = vunpack.c.l.b16 %v6149
    %v6189 = vunpack.c.l.b16 %v6150
    %v6190 = vunpack.c.l.b16 %v6151
    %v6191 = vunpack.c.l.b16 %v6152
    %v6192 = vunpack.c.l.b16 %v6153
    %v6193 = vunpack.c.l.b16 %v6154
    %v6194 = vunpack.c.l.b16 %v6155
    %v6195 = vunpack.c.l.b16 %v6156
    %v6196 = vunpack.c.l.b16 %v6157
    %v6197 = vunpack.c.l.b16 %v6158
    %v6198 = vunpack.c.l.b16 %v6159
    %v6199 = vunpack.c.l.b16 %v6160
    %v6200 = vunpack.c.l.b16 %v6161
    %v6201 = vunpack.c.l.b16 %v6162
    %v6202 = vunpack.c.l.b16 %v6163
    %v6203 = vpack.c.b16 %v6188, %v6187
    %v6204 = vpack.c.b16 %v6190, %v6189
    %v6205 = vpack.c.b16 %v6192, %v6191
    %v6206 = vpack.c.b16 %v6194, %v6193
    %v6207 = vpack.c.b16 %v6196, %v6195
    %v6208 = vpack.c.b16 %v6198, %v6197
    %v6209 = vpack.c.b16 %v6200, %v6199
    %v6210 = vpack.c.b16 %v6202, %v6201
    %6219 = vmatprep.subr.bf16.mxu0 0
    %6220 = vmatpush1.bf16.msra.mxu0 %v6203
    %6221 = vmatprep.subr.bf16.mxu0 0
    %6222 = vmatpush1.bf16.msra.mxu0 %v6204
    %6223 = vmatprep.subr.bf16.mxu0 0
    %6224 = vmatpush1.bf16.msra.mxu0 %v6205
    %6225 = vmatprep.subr.bf16.mxu0 0
    %6226 = vmatpush1.bf16.msra.mxu0 %v6206
    %6227 = vmatprep.subr.bf16.mxu0 0
    %6228 = vmatpush1.bf16.msra.mxu0 %v6207
    %6229 = vmatprep.subr.bf16.mxu0 0
    %6230 = vmatpush1.bf16.msra.mxu0 %v6208
    %6231 = vmatprep.subr.bf16.mxu0 0
    %6232 = vmatpush1.bf16.msra.mxu0 %v6209
    %6233 = vmatprep.subr.bf16.mxu0 0
    %6234 = vmatpush1.bf16.msra.mxu0 %v6210
    %6235 = vmatprep.subr.bf16.mxu0 0
    %6236 = vmatpush1.bf16.msra.mxu0 0
    %6237 = vmatprep.subr.bf16.mxu0 0
    %6238 = vmatpush1.bf16.msra.mxu0 0
    %6239 = vmatprep.subr.bf16.mxu0 0
    %6240 = vmatpush1.bf16.msra.mxu0 0
    %6241 = vmatprep.subr.bf16.mxu0 0
    %6242 = vmatpush1.bf16.msra.mxu0 0
    %6243 = vmatprep.subr.bf16.mxu0 0
    %6244 = vmatpush1.bf16.msra.mxu0 0
    %6245 = vmatprep.subr.bf16.mxu0 0
    %6246 = vmatpush1.bf16.msra.mxu0 0
    %6247 = vmatprep.subr.bf16.mxu0 0
    %6248 = vmatpush1.bf16.msra.mxu0 0
    %6249 = vmatprep.subr.bf16.mxu0 0
    %6250 = vmatpush1.bf16.msra.mxu0 0
    %6251 = vmatprep.mubr.bf16.mxu0 0
    %6252 = vmatmul.mubr.bf16.gmra.mrb[0].mxu0 %v6147
    %v6253 = vpop.f32.mrb[0].mxu0
    %v6254 = vadd.f32 %v6169, %v6253
    %v6255 = vpop.f32.mrb[0].mxu0
    %v6256 = vpop.f32.mrb[0].mxu0
    %v6257 = vpop.f32.mrb[0].mxu0
    %6258 = vdwg.mxu0
    %6259 = vst [vmem:[%s18] sm:$0xff] %v6254
    // Predicated region
    $region90: #{bert_forward.1} parent=1 // pred_check
      _
    $region91: #{bert_forward.1} parent=1 // pred_check_branch
      %6261 = sbr.rel (0) target = $region93
    $region92: #{bert_forward.1} parent=1 // pred_region
      _
    $region93: #{bert_forward.1} parent=1 // pred_fallthru
      _
    // Predicated region
    $region94: #{bert_forward.1} parent=1 // pred_check
      _
    $region95: #{bert_forward.1} parent=1 // pred_check_branch
      %6263 = sbr.rel (0) target = $region97
    $region96: #{bert_forward.1} parent=1 // pred_region
      _
    $region97: #{bert_forward.1} parent=1 // pred_fallthru
      _
    %6264 = vsyncpa [#allocation3], 1
    %6265 = vsyncpa [#allocation5], 1
    %6266 = vsyncpa [#allocation8], 1

</llo_original>
